<compile_context>
chip_gen: v7x
topology: tpu7x:2x2x1
jax: 0.10.0
libtpu: 0.0.40
codegen_flags: <defaults>
</compile_context>

<pallas_src>
import jax
import jax.numpy as jnp
from jax import lax
from jax.experimental import pallas as pl
from jax.experimental.pallas import tpu as pltpu

# ---- model hyper-parameters consistent with V1.__init__ ----
IN_DIMS = [8, 12, 16]          # per node-type input feature dims
NODE_COUNTS = [8, 8, 16]       # nodes per type -> N = 32
N_NODES = sum(NODE_COUNTS)
HIDDEN = 32                    # args.hidden_dim
HEADS = 4                      # heads[l]
HEAD_DIM = HIDDEN // HEADS
NUM_LAYERS = 2                 # args.num_layers
EDGE_DIM = 8                   # args.edge_feats
NUM_ETYPES = 3
NUM_CLASSES = 3                # args.num_classes
SLOPE = 0.05                   # leaky-relu negative slope
ALPHA = 0.05                   # residual-attention mixing coefficient
NEG_INF = -1e30


def _vmem_spec(shape):
    """Full-array VMEM BlockSpec for grid=(1,)."""
    nd = len(shape)
    return pl.BlockSpec(shape, lambda i, _nd=nd: (0,) * _nd)


def _smem_spec():
    """Whole array in SMEM (used for the tiny edge-type attention tables)."""
    return pl.BlockSpec(memory_space=pltpu.MemorySpace.SMEM)


# ----------------------------- fused kernel -----------------------------

def _gat_conv(h_in, fc_w_ref, al_ref, art_ref, ee_ref, mask, etype,
              res_attn, resval, attn_scr):
    """One dense Simple-HGN GAT convolution, entirely in VMEM.

    h_in:   [N, in_dim] value
    fc_w:   [in_dim, HIDDEN] ref
    al:     [HEADS, HIDDEN] ref   block-expanded attn_l (row h nonzero only on head-h cols)
    art:    [HIDDEN, HEADS] ref   block-expanded attn_r, transposed
    ee:     SMEM ref, flat [NUM_ETYPES*HEADS]; ee[t*HEADS+h] = edge-type attn term
    mask:   [N, N] value, 1.0 where edge dst<-src exists
    etype:  [N, N] int32 value
    res_attn: [HEADS, N, N] value or None  (previous-layer attention)
    resval: [N, HIDDEN] value or None      (identity residual)
    attn_scr: [HEADS, N, N] VMEM scratch ref (assembly buffer, reused per call)
    returns (out [N, HIDDEN], attn [HEADS, N, N])
    """
    n = mask.shape[0]
    h = jnp.dot(h_in, fc_w_ref[...], preferred_element_type=jnp.float32)      # [N, HIDDEN]

    # Attention terms for ALL heads with two matmuls (no per-head lane slices of h):
    #   el_t[h, j] = sum_d attn_l[h, d] * h[j, h*D+d]   (source term)
    #   er[i, h]   = sum_d attn_r[h, d] * h[i, h*D+d]   (destination term)
    el_t = lax.dot_general(al_ref[...], h, (((1,), (1,)), ((), ())),
                           preferred_element_type=jnp.float32)                 # [HEADS, N]
    er = jnp.dot(h, art_ref[...], preferred_element_type=jnp.float32)          # [N, HEADS]

    # Per-head logits construction (cheap VPU work, writes into the [H,N,N] buffer);
    # the expensive softmax below is done batched over all heads at once.
    for hh in range(HEADS):
        eeh = jnp.zeros((n, n), jnp.float32) + ee_ref[hh]                      # type 0
        for t in range(1, NUM_ETYPES):
            eeh = jnp.where(etype == t, ee_ref[t * HEADS + hh], eeh)
        logits = er[:, hh:hh + 1] + el_t[hh:hh + 1, :] + eeh                   # [Ndst, Nsrc]
        logits = jnp.where(logits >= 0.0, logits, SLOPE * logits)              # leaky relu
        logits = jnp.where(mask > 0.0, logits, NEG_INF)                        # single mask pass
        attn_scr[hh] = logits

    logits3 = attn_scr[...]                                                    # [HEADS, N, N]
    m = jnp.max(logits3, axis=-1, keepdims=True)
    p = jnp.exp(logits3 - m)                                                   # masked entries underflow to 0
    denom = jnp.maximum(jnp.sum(p, axis=-1, keepdims=True), 1e-20)             # guard 0 in-degree
    a = p / denom                                                              # edge softmax (batched over heads)
    if res_attn is not None:
        a = a * (1.0 - ALPHA) + res_attn * ALPHA                               # residual attention mix
    attn_scr[...] = a

    # Aggregation: per-head matmul against the full-width head-masked feature
    # matrix (no sub-128-lane slices of h); 4 tiny MXU dots.
    col = lax.broadcasted_iota(jnp.int32, (1, HIDDEN), 1)
    rst = resval if resval is not None else jnp.zeros((n, HIDDEN), jnp.float32)
    for hh in range(HEADS):
        hmask = jnp.logical_and(col >= hh * HEAD_DIM, col < (hh + 1) * HEAD_DIM)
        rst = rst + jnp.dot(attn_scr[hh], jnp.where(hmask, h, 0.0),
                            preferred_element_type=jnp.float32)
    out = jnp.where(rst > 0.0, rst, jnp.exp(jnp.minimum(rst, 0.0)) - 1.0)      # ELU (safe dead branch)
    return out, a


def _v1_fused_kernel(
    # per-type node features + input projections
    f0, f1, f2, w0, b0, w1, b1, w2, b2,
    # query indicator and dense graph structure
    q_in, mask_ref, etype_ref,
    # GAT layers: (fc_w, attn_l_full, attn_r_full_T, ee_table) each
    g0_fcw, g0_al, g0_art, g0_ee,
    g1_fcw, g1_al, g1_art, g1_ee,
    r0_fcw, r0_al, r0_art, r0_ee,
    r1_fcw, r1_al, r1_art, r1_ee,
    # fusion linears
    fw0, fb0, fw1, fb1,
    # output
    out_ref,
    # scratch
    x_scr, attn_scr,
):
    # ---- per-node-type Linear + ReLU (dropout = identity in eval) ----
    r0e = NODE_COUNTS[0]
    r1e = NODE_COUNTS[0] + NODE_COUNTS[1]
    x_scr[0:r0e, :] = jnp.maximum(
        jnp.dot(f0[...], w0[...], preferred_element_type=jnp.float32) + b0[...], 0.0)
    x_scr[r0e:r1e, :] = jnp.maximum(
        jnp.dot(f1[...], w1[...], preferred_element_type=jnp.float32) + b1[...], 0.0)
    x_scr[r1e:N_NODES, :] = jnp.maximum(
        jnp.dot(f2[...], w2[...], preferred_element_type=jnp.float32) + b2[...], 0.0)
    x = x_scr[...]
    qf = q_in[...]
    mask = mask_ref[...]
    etype = etype_ref[...]

    gparams = [(g0_fcw, g0_al, g0_art, g0_ee), (g1_fcw, g1_al, g1_art, g1_ee)]
    rparams = [(r0_fcw, r0_al, r0_art, r0_ee), (r1_fcw, r1_al, r1_art, r1_ee)]
    fparams = [(fw0, fb0), (fw1, fb1)]

    res_g, res_q = None, None
    for l in range(NUM_LAYERS):
        # graph-GAT branch (identity residual from layer 1 on)
        x, res_g = _gat_conv(x, *gparams[l], mask, etype, res_g,
                             x if l > 0 else None, attn_scr)
        # query-GAT branch
        qf, res_q = _gat_conv(qf, *rparams[l], mask, etype, res_q,
                              qf if l > 0 else None, attn_scr)
        # fusion Linear on concat(x, q): split the weight rows instead of
        # concatenating activations (keeps everything 2D and lane-dense).
        fw, fb = fparams[l]
        qf = (jnp.dot(x, fw[0:HIDDEN, :], preferred_element_type=jnp.float32)
              + jnp.dot(qf, fw[HIDDEN:2 * HIDDEN, :], preferred_element_type=jnp.float32)
              + fb[...])
        if l < NUM_LAYERS - 1:
            qf = jnp.maximum(qf, 0.0)                                          # ReLU (dropout = identity)

    out_ref[...] = qf


# ----------------------------- wrapper -----------------------------

def _expand_attn(a):
    """[H, D] -> [H, H*D]: row h carries a[h] on head-h's columns, 0 elsewhere."""
    hh, dd = a.shape
    eye = jnp.eye(hh, dtype=a.dtype)
    return (eye[:, :, None] * a[None, :, :]).reshape(hh, hh * dd)


def _prep_gat_params(p):
    """Parameter-only preprocessing (tiny XLA ops, cacheable alongside params)."""
    al_full = _expand_attn(p['attn_l'])                        # [H, HIDDEN]
    ar_full_t = _expand_attn(p['attn_r']).T                    # [HIDDEN, H]
    # edge-type attention table [T, H]; column ordering matches torch's
    # fc_e(...).view(-1, heads, edge_feats) (index = h*EDGE_DIM + e).
    e_proj = (p['edge_emb'] @ p['fc_e_w']).reshape(NUM_ETYPES, HEADS, EDGE_DIM)
    ee_tab = jnp.sum(e_proj * p['attn_e'][None], axis=-1)      # [T, H]
    return [p['fc_w'], al_full, ar_full_t, ee_tab.reshape(-1)]


@jax.jit
def v1_forward(params, features_list, etype_mat, mask, q):
    inputs, in_specs = [], []

    def add_vmem(x):
        inputs.append(x)
        in_specs.append(_vmem_spec(x.shape))

    def add_smem(x):
        inputs.append(x)
        in_specs.append(_smem_spec())

    # order must match _v1_fused_kernel's signature
    for feat in features_list:
        add_vmem(feat)
    for (w, b) in params['fc_list']:
        add_vmem(w)
        add_vmem(b)
    add_vmem(q)
    add_vmem(mask)
    add_vmem(etype_mat)
    for p in params['graph_gat'] + params['query_gat']:
        fcw, al, art, ee = _prep_gat_params(p)
        add_vmem(fcw)
        add_vmem(al)
        add_vmem(art)
        add_smem(ee)
    for (fw, fb) in params['fusion']:
        add_vmem(fw)
        add_vmem(fb)

    return pl.pallas_call(
        _v1_fused_kernel,
        out_shape=jax.ShapeDtypeStruct((N_NODES, NUM_CLASSES), jnp.float32),
        grid=(1,),
        in_specs=in_specs,
        out_specs=_vmem_spec((N_NODES, NUM_CLASSES)),
        scratch_shapes=[pltpu.VMEM((N_NODES, HIDDEN), jnp.float32),
                        pltpu.VMEM((HEADS, N_NODES, N_NODES), jnp.float32)],
        compiler_params=pltpu.CompilerParams(dimension_semantics=("arbitrary",)),
    )(*inputs)


# ----------------------------- parameters -----------------------------

def init_params(key):
    keys = iter(jax.random.split(key, 128))

    def nrm(shape, scale=0.1):
        return scale * jax.random.normal(next(keys), shape, jnp.float32)

    def gat_params(in_dim):
        return dict(
            fc_w=nrm((in_dim, HIDDEN)),
            attn_l=nrm((HEADS, HEAD_DIM)),
            attn_r=nrm((HEADS, HEAD_DIM)),
            attn_e=nrm((HEADS, EDGE_DIM)),
            edge_emb=nrm((NUM_ETYPES, EDGE_DIM)),
            fc_e_w=nrm((EDGE_DIM, EDGE_DIM * HEADS)),
        )

    params = {
        'fc_list': [(nrm((d, HIDDEN)), nrm((1, HIDDEN))) for d in IN_DIMS],
        'graph_gat': [gat_params(HIDDEN) for _ in range(NUM_LAYERS)],
        'query_gat': [gat_params(1 if l == 0 else HIDDEN)
                      for l in range(NUM_LAYERS)],
    }
    fusion = [(nrm((2 * HIDDEN, HIDDEN)), nrm((1, HIDDEN)))
              for _ in range(NUM_LAYERS - 1)]
    fusion.append((nrm((2 * HIDDEN, NUM_CLASSES)), nrm((1, NUM_CLASSES))))
    params['fusion'] = fusion
    return params


if __name__ == "__main__":
    root = jax.random.PRNGKey(0)
    kp, kf, kq, ka, ke = jax.random.split(root, 5)

    params = init_params(kp)

    # per node-type features
    fkeys = jax.random.split(kf, len(IN_DIMS))
    features_list = [jax.random.normal(fk, (c, d), jnp.float32)
                     for fk, c, d in zip(fkeys, NODE_COUNTS, IN_DIMS)]
    # query indicator q: [N, 1]
    q0 = (jax.random.uniform(kq, (N_NODES, 1)) < 0.2).astype(jnp.float32)

    # dense graph: random edges + self loops (every node has in-degree >= 1)
    adj = jax.random.bernoulli(ka, 0.25, (N_NODES, N_NODES)).astype(jnp.float32)
    mask = jnp.maximum(adj, jnp.eye(N_NODES, dtype=jnp.float32))        # [Ndst, Nsrc]
    etype_mat = jax.random.randint(ke, (N_NODES, N_NODES), 0, NUM_ETYPES,
                                   dtype=jnp.int32)

    out = v1_forward(params, features_list, etype_mat, mask, q0)
    out = jax.block_until_ready(out)
    assert out.shape == (N_NODES, NUM_CLASSES)
    assert bool(jnp.all(jnp.isfinite(out)))
    print("KERNEL_OK")
</pallas_src>

<mosaic_0001>
module attributes {stable_mosaic.version = 11 : i64} {
  func.func @_v1_fused_kernel(%arg0: i32, %arg1: memref<8x8xf32, #tpu.memory_space<vmem>>, %arg2: memref<8x12xf32, #tpu.memory_space<vmem>>, %arg3: memref<16x16xf32, #tpu.memory_space<vmem>>, %arg4: memref<8x32xf32, #tpu.memory_space<vmem>>, %arg5: memref<1x32xf32, #tpu.memory_space<vmem>>, %arg6: memref<12x32xf32, #tpu.memory_space<vmem>>, %arg7: memref<1x32xf32, #tpu.memory_space<vmem>>, %arg8: memref<16x32xf32, #tpu.memory_space<vmem>>, %arg9: memref<1x32xf32, #tpu.memory_space<vmem>>, %arg10: memref<32x1xf32, #tpu.memory_space<vmem>>, %arg11: memref<32x32xf32, #tpu.memory_space<vmem>>, %arg12: memref<32x32xi32, #tpu.memory_space<vmem>>, %arg13: memref<32x32xf32, #tpu.memory_space<vmem>>, %arg14: memref<4x32xf32, #tpu.memory_space<vmem>>, %arg15: memref<32x4xf32, #tpu.memory_space<vmem>>, %arg16: memref<12xf32, #tpu.memory_space<smem>>, %arg17: memref<32x32xf32, #tpu.memory_space<vmem>>, %arg18: memref<4x32xf32, #tpu.memory_space<vmem>>, %arg19: memref<32x4xf32, #tpu.memory_space<vmem>>, %arg20: memref<12xf32, #tpu.memory_space<smem>>, %arg21: memref<1x32xf32, #tpu.memory_space<vmem>>, %arg22: memref<4x32xf32, #tpu.memory_space<vmem>>, %arg23: memref<32x4xf32, #tpu.memory_space<vmem>>, %arg24: memref<12xf32, #tpu.memory_space<smem>>, %arg25: memref<32x32xf32, #tpu.memory_space<vmem>>, %arg26: memref<4x32xf32, #tpu.memory_space<vmem>>, %arg27: memref<32x4xf32, #tpu.memory_space<vmem>>, %arg28: memref<12xf32, #tpu.memory_space<smem>>, %arg29: memref<64x32xf32, #tpu.memory_space<vmem>>, %arg30: memref<1x32xf32, #tpu.memory_space<vmem>>, %arg31: memref<64x3xf32, #tpu.memory_space<vmem>>, %arg32: memref<1x3xf32, #tpu.memory_space<vmem>>, %arg33: memref<32x3xf32, #tpu.memory_space<vmem>>, %arg34: memref<32x32xf32, #tpu.memory_space<vmem>>, %arg35: memref<4x32x32xf32, #tpu.memory_space<vmem>>) attributes {dimension_semantics = [#tpu.dimension_semantics<arbitrary>], iteration_bounds = array<i64: 1>, scalar_prefetch = 0 : i64, scratch_operands = 2 : i64, tpu.core_type = #tpu.core_type<tc>, window_params = [{pipeline_mode = #tpu.pipeline_mode<synchronous>, transform_indices = @transform_0, window_bounds = array<i64: 8, 8>}, {pipeline_mode = #tpu.pipeline_mode<synchronous>, transform_indices = @transform_1, window_bounds = array<i64: 8, 12>}, {pipeline_mode = #tpu.pipeline_mode<synchronous>, transform_indices = @transform_2, window_bounds = array<i64: 16, 16>}, {pipeline_mode = #tpu.pipeline_mode<synchronous>, transform_indices = @transform_3, window_bounds = array<i64: 8, 32>}, {pipeline_mode = #tpu.pipeline_mode<synchronous>, transform_indices = @transform_4, window_bounds = array<i64: 1, 32>}, {pipeline_mode = #tpu.pipeline_mode<synchronous>, transform_indices = @transform_5, window_bounds = array<i64: 12, 32>}, {pipeline_mode = #tpu.pipeline_mode<synchronous>, transform_indices = @transform_6, window_bounds = array<i64: 1, 32>}, {pipeline_mode = #tpu.pipeline_mode<synchronous>, transform_indices = @transform_7, window_bounds = array<i64: 16, 32>}, {pipeline_mode = #tpu.pipeline_mode<synchronous>, transform_indices = @transform_8, window_bounds = array<i64: 1, 32>}, {pipeline_mode = #tpu.pipeline_mode<synchronous>, transform_indices = @transform_9, window_bounds = array<i64: 32, 1>}, {pipeline_mode = #tpu.pipeline_mode<synchronous>, transform_indices = @transform_10, window_bounds = array<i64: 32, 32>}, {pipeline_mode = #tpu.pipeline_mode<synchronous>, transform_indices = @transform_11, window_bounds = array<i64: 32, 32>}, {pipeline_mode = #tpu.pipeline_mode<synchronous>, transform_indices = @transform_12, window_bounds = array<i64: 32, 32>}, {pipeline_mode = #tpu.pipeline_mode<synchronous>, transform_indices = @transform_13, window_bounds = array<i64: 4, 32>}, {pipeline_mode = #tpu.pipeline_mode<synchronous>, transform_indices = @transform_14, window_bounds = array<i64: 32, 4>}, {transform_indices = @transform_15, window_bounds = array<i64: 12>}, {pipeline_mode = #tpu.pipeline_mode<synchronous>, transform_indices = @transform_16, window_bounds = array<i64: 32, 32>}, {pipeline_mode = #tpu.pipeline_mode<synchronous>, transform_indices = @transform_17, window_bounds = array<i64: 4, 32>}, {pipeline_mode = #tpu.pipeline_mode<synchronous>, transform_indices = @transform_18, window_bounds = array<i64: 32, 4>}, {transform_indices = @transform_19, window_bounds = array<i64: 12>}, {pipeline_mode = #tpu.pipeline_mode<synchronous>, transform_indices = @transform_20, window_bounds = array<i64: 1, 32>}, {pipeline_mode = #tpu.pipeline_mode<synchronous>, transform_indices = @transform_21, window_bounds = array<i64: 4, 32>}, {pipeline_mode = #tpu.pipeline_mode<synchronous>, transform_indices = @transform_22, window_bounds = array<i64: 32, 4>}, {transform_indices = @transform_23, window_bounds = array<i64: 12>}, {pipeline_mode = #tpu.pipeline_mode<synchronous>, transform_indices = @transform_24, window_bounds = array<i64: 32, 32>}, {pipeline_mode = #tpu.pipeline_mode<synchronous>, transform_indices = @transform_25, window_bounds = array<i64: 4, 32>}, {pipeline_mode = #tpu.pipeline_mode<synchronous>, transform_indices = @transform_26, window_bounds = array<i64: 32, 4>}, {transform_indices = @transform_27, window_bounds = array<i64: 12>}, {pipeline_mode = #tpu.pipeline_mode<synchronous>, transform_indices = @transform_28, window_bounds = array<i64: 64, 32>}, {pipeline_mode = #tpu.pipeline_mode<synchronous>, transform_indices = @transform_29, window_bounds = array<i64: 1, 32>}, {pipeline_mode = #tpu.pipeline_mode<synchronous>, transform_indices = @transform_30, window_bounds = array<i64: 64, 3>}, {pipeline_mode = #tpu.pipeline_mode<synchronous>, transform_indices = @transform_31, window_bounds = array<i64: 1, 3>}, {pipeline_mode = #tpu.pipeline_mode<synchronous>, transform_indices = @transform_32, window_bounds = array<i64: 32, 3>}]} {
    %c0 = arith.constant 0 : index
    %c0_0 = arith.constant 0 : index
    %0 = vector.load %arg1[%c0, %c0_0] : memref<8x8xf32, #tpu.memory_space<vmem>>, vector<8x8xf32>
    %c0_1 = arith.constant 0 : index
    %c0_2 = arith.constant 0 : index
    %1 = vector.load %arg4[%c0_1, %c0_2] : memref<8x32xf32, #tpu.memory_space<vmem>>, vector<8x32xf32>
    %cst = arith.constant dense<0.000000e+00> : vector<8x32xf32>
    %2 = tpu.matmul %0, %1, %cst {dimension_numbers = #tpu.dot_dimension_numbers<[1], [0], [0], [1], [0, 0, 1, 1], [], []>} : vector<8x8xf32>, vector<8x32xf32>, vector<8x32xf32> -> vector<8x32xf32>
    %c0_3 = arith.constant 0 : index
    %c0_4 = arith.constant 0 : index
    %3 = vector.load %arg5[%c0_3, %c0_4] : memref<1x32xf32, #tpu.memory_space<vmem>>, vector<1x32xf32>
    %4 = vector.broadcast %3 : vector<1x32xf32> to vector<8x32xf32>
    %5 = arith.addf %2, %4 : vector<8x32xf32>
    %cst_5 = arith.constant 0.000000e+00 : f32
    %6 = vector.broadcast %cst_5 : f32 to vector<8x32xf32>
    %7 = arith.maximumf %5, %6 : vector<8x32xf32>
    %c0_6 = arith.constant 0 : index
    %c0_7 = arith.constant 0 : index
    %8 = vector.load %arg34[%c0_6, %c0_7] : memref<32x32xf32, #tpu.memory_space<vmem>>, vector<8x32xf32>
    tpu.vector_store %arg34[%c0_6, %c0_7], %7 {strides = array<i32>} : memref<32x32xf32, #tpu.memory_space<vmem>>, vector<8x32xf32>,
    %c0_8 = arith.constant 0 : index
    %c0_9 = arith.constant 0 : index
    %9 = vector.load %arg2[%c0_8, %c0_9] : memref<8x12xf32, #tpu.memory_space<vmem>>, vector<8x12xf32>
    %c0_10 = arith.constant 0 : index
    %c0_11 = arith.constant 0 : index
    %10 = vector.load %arg6[%c0_10, %c0_11] : memref<12x32xf32, #tpu.memory_space<vmem>>, vector<12x32xf32>
    %cst_12 = arith.constant dense<0.000000e+00> : vector<8x32xf32>
    %11 = tpu.matmul %9, %10, %cst_12 {dimension_numbers = #tpu.dot_dimension_numbers<[1], [0], [0], [1], [0, 0, 1, 1], [], []>} : vector<8x12xf32>, vector<12x32xf32>, vector<8x32xf32> -> vector<8x32xf32>
    %c0_13 = arith.constant 0 : index
    %c0_14 = arith.constant 0 : index
    %12 = vector.load %arg7[%c0_13, %c0_14] : memref<1x32xf32, #tpu.memory_space<vmem>>, vector<1x32xf32>
    %13 = vector.broadcast %12 : vector<1x32xf32> to vector<8x32xf32>
    %14 = arith.addf %11, %13 : vector<8x32xf32>
    %cst_15 = arith.constant 0.000000e+00 : f32
    %15 = vector.broadcast %cst_15 : f32 to vector<8x32xf32>
    %16 = arith.maximumf %14, %15 : vector<8x32xf32>
    %c8 = arith.constant 8 : index
    %c0_16 = arith.constant 0 : index
    %17 = vector.load %arg34[%c8, %c0_16] : memref<32x32xf32, #tpu.memory_space<vmem>>, vector<8x32xf32>
    tpu.vector_store %arg34[%c8, %c0_16], %16 {strides = array<i32>} : memref<32x32xf32, #tpu.memory_space<vmem>>, vector<8x32xf32>,
    %c0_17 = arith.constant 0 : index
    %c0_18 = arith.constant 0 : index
    %18 = vector.load %arg3[%c0_17, %c0_18] : memref<16x16xf32, #tpu.memory_space<vmem>>, vector<16x16xf32>
    %c0_19 = arith.constant 0 : index
    %c0_20 = arith.constant 0 : index
    %19 = vector.load %arg8[%c0_19, %c0_20] : memref<16x32xf32, #tpu.memory_space<vmem>>, vector<16x32xf32>
    %cst_21 = arith.constant dense<0.000000e+00> : vector<16x32xf32>
    %20 = tpu.matmul %18, %19, %cst_21 {dimension_numbers = #tpu.dot_dimension_numbers<[1], [0], [0], [1], [0, 0, 1, 1], [], []>} : vector<16x16xf32>, vector<16x32xf32>, vector<16x32xf32> -> vector<16x32xf32>
    %c0_22 = arith.constant 0 : index
    %c0_23 = arith.constant 0 : index
    %21 = vector.load %arg9[%c0_22, %c0_23] : memref<1x32xf32, #tpu.memory_space<vmem>>, vector<1x32xf32>
    %22 = vector.broadcast %21 : vector<1x32xf32> to vector<16x32xf32>
    %23 = arith.addf %20, %22 : vector<16x32xf32>
    %cst_24 = arith.constant 0.000000e+00 : f32
    %24 = vector.broadcast %cst_24 : f32 to vector<16x32xf32>
    %25 = arith.maximumf %23, %24 : vector<16x32xf32>
    %c16 = arith.constant 16 : index
    %c0_25 = arith.constant 0 : index
    %26 = vector.load %arg34[%c16, %c0_25] : memref<32x32xf32, #tpu.memory_space<vmem>>, vector<16x32xf32>
    tpu.vector_store %arg34[%c16, %c0_25], %25 {strides = array<i32>} : memref<32x32xf32, #tpu.memory_space<vmem>>, vector<16x32xf32>,
    %c0_26 = arith.constant 0 : index
    %c0_27 = arith.constant 0 : index
    %27 = vector.load %arg34[%c0_26, %c0_27] : memref<32x32xf32, #tpu.memory_space<vmem>>, vector<32x32xf32>
    %c0_28 = arith.constant 0 : index
    %c0_29 = arith.constant 0 : index
    %28 = vector.load %arg10[%c0_28, %c0_29] : memref<32x1xf32, #tpu.memory_space<vmem>>, vector<32x1xf32>
    %c0_30 = arith.constant 0 : index
    %c0_31 = arith.constant 0 : index
    %29 = vector.load %arg11[%c0_30, %c0_31] : memref<32x32xf32, #tpu.memory_space<vmem>>, vector<32x32xf32>
    %c0_32 = arith.constant 0 : index
    %c0_33 = arith.constant 0 : index
    %30 = vector.load %arg12[%c0_32, %c0_33] : memref<32x32xi32, #tpu.memory_space<vmem>>, vector<32x32xi32>
    %c0_34 = arith.constant 0 : index
    %c0_35 = arith.constant 0 : index
    %31 = vector.load %arg13[%c0_34, %c0_35] : memref<32x32xf32, #tpu.memory_space<vmem>>, vector<32x32xf32>
    %cst_36 = arith.constant dense<0.000000e+00> : vector<32x32xf32>
    %32 = tpu.matmul %27, %31, %cst_36 {dimension_numbers = #tpu.dot_dimension_numbers<[1], [0], [0], [1], [0, 0, 1, 1], [], []>} : vector<32x32xf32>, vector<32x32xf32>, vector<32x32xf32> -> vector<32x32xf32>
    %c0_37 = arith.constant 0 : index
    %c0_38 = arith.constant 0 : index
    %33 = vector.load %arg14[%c0_37, %c0_38] : memref<4x32xf32, #tpu.memory_space<vmem>>, vector<4x32xf32>
    %cst_39 = arith.constant dense<0.000000e+00> : vector<4x32xf32>
    %34 = tpu.matmul %33, %32, %cst_39 {dimension_numbers = #tpu.dot_dimension_numbers<[1], [1], [0], [0], [0, 0, 1, 0], [], []>} : vector<4x32xf32>, vector<32x32xf32>, vector<4x32xf32> -> vector<4x32xf32>
    %c0_40 = arith.constant 0 : index
    %c0_41 = arith.constant 0 : index
    %35 = vector.load %arg15[%c0_40, %c0_41] : memref<32x4xf32, #tpu.memory_space<vmem>>, vector<32x4xf32>
    %cst_42 = arith.constant dense<0.000000e+00> : vector<32x4xf32>
    %36 = tpu.matmul %32, %35, %cst_42 {dimension_numbers = #tpu.dot_dimension_numbers<[1], [0], [0], [1], [0, 0, 1, 1], [], []>} : vector<32x32xf32>, vector<32x4xf32>, vector<32x4xf32> -> vector<32x4xf32>
    %cst_43 = arith.constant 0.000000e+00 : f32
    %37 = vector.broadcast %cst_43 : f32 to vector<32x32xf32>
    %c0_44 = arith.constant 0 : index
    %38 = memref.load %arg16[%c0_44] : memref<12xf32, #tpu.memory_space<smem>>
    %39 = vector.broadcast %38 : f32 to vector<32x32xf32>
    %40 = arith.addf %37, %39 : vector<32x32xf32>
    %c1_i32 = arith.constant 1 : i32
    %41 = vector.broadcast %c1_i32 : i32 to vector<32x32xi32>
    %42 = arith.cmpi eq, %30, %41 : vector<32x32xi32>
    %c4 = arith.constant 4 : index
    %43 = memref.load %arg16[%c4] : memref<12xf32, #tpu.memory_space<smem>>
    %44 = vector.broadcast %43 : f32 to vector<32x32xf32>
    %45 = arith.select %42, %44, %40 : vector<32x32xi1>, vector<32x32xf32>
    %c2_i32 = arith.constant 2 : i32
    %46 = vector.broadcast %c2_i32 : i32 to vector<32x32xi32>
    %47 = arith.cmpi eq, %30, %46 : vector<32x32xi32>
    %c8_45 = arith.constant 8 : index
    %48 = memref.load %arg16[%c8_45] : memref<12xf32, #tpu.memory_space<smem>>
    %49 = vector.broadcast %48 : f32 to vector<32x32xf32>
    %50 = arith.select %47, %49, %45 : vector<32x32xi1>, vector<32x32xf32>
    %51 = vector.extract_strided_slice %36 {offsets = [0, 0], sizes = [32, 1], strides = [1, 1]} : vector<32x4xf32> to vector<32x1xf32>
    %52 = vector.extract_strided_slice %34 {offsets = [0, 0], sizes = [1, 32], strides = [1, 1]} : vector<4x32xf32> to vector<1x32xf32>
    %53 = vector.broadcast %51 : vector<32x1xf32> to vector<32x32xf32>
    %54 = vector.broadcast %52 : vector<1x32xf32> to vector<32x32xf32>
    %55 = arith.addf %53, %54 : vector<32x32xf32>
    %56 = arith.addf %55, %50 : vector<32x32xf32>
    %cst_46 = arith.constant 0.000000e+00 : f32
    %57 = vector.broadcast %cst_46 : f32 to vector<32x32xf32>
    %58 = arith.cmpf oge, %56, %57 : vector<32x32xf32>
    %cst_47 = arith.constant 5.000000e-02 : f32
    %59 = vector.broadcast %cst_47 : f32 to vector<32x32xf32>
    %60 = arith.mulf %59, %56 : vector<32x32xf32>
    %61 = arith.select %58, %56, %60 : vector<32x32xi1>, vector<32x32xf32>
    %cst_48 = arith.constant 0.000000e+00 : f32
    %62 = vector.broadcast %cst_48 : f32 to vector<32x32xf32>
    %63 = arith.cmpf ogt, %29, %62 : vector<32x32xf32>
    %cst_49 = arith.constant -1.000000e+30 : f32
    %64 = vector.broadcast %cst_49 : f32 to vector<32x32xf32>
    %65 = arith.select %63, %61, %64 : vector<32x32xi1>, vector<32x32xf32>
    %c0_50 = arith.constant 0 : index
    %c0_51 = arith.constant 0 : index
    %c0_52 = arith.constant 0 : index
    %66 = vector.load %arg35[%c0_50, %c0_51, %c0_52] : memref<4x32x32xf32, #tpu.memory_space<vmem>>, vector<1x32x32xf32>
    %67 = vector.shape_cast %66 : vector<1x32x32xf32> to vector<32x32xf32>
    %68 = vector.shape_cast %65 : vector<32x32xf32> to vector<1x32x32xf32>
    tpu.vector_store %arg35[%c0_50, %c0_51, %c0_52], %68 {strides = array<i32>} : memref<4x32x32xf32, #tpu.memory_space<vmem>>, vector<1x32x32xf32>,
    %cst_53 = arith.constant 0.000000e+00 : f32
    %69 = vector.broadcast %cst_53 : f32 to vector<32x32xf32>
    %c1 = arith.constant 1 : index
    %70 = memref.load %arg16[%c1] : memref<12xf32, #tpu.memory_space<smem>>
    %71 = vector.broadcast %70 : f32 to vector<32x32xf32>
    %72 = arith.addf %69, %71 : vector<32x32xf32>
    %c1_i32_54 = arith.constant 1 : i32
    %73 = vector.broadcast %c1_i32_54 : i32 to vector<32x32xi32>
    %74 = arith.cmpi eq, %30, %73 : vector<32x32xi32>
    %c5 = arith.constant 5 : index
    %75 = memref.load %arg16[%c5] : memref<12xf32, #tpu.memory_space<smem>>
    %76 = vector.broadcast %75 : f32 to vector<32x32xf32>
    %77 = arith.select %74, %76, %72 : vector<32x32xi1>, vector<32x32xf32>
    %c2_i32_55 = arith.constant 2 : i32
    %78 = vector.broadcast %c2_i32_55 : i32 to vector<32x32xi32>
    %79 = arith.cmpi eq, %30, %78 : vector<32x32xi32>
    %c9 = arith.constant 9 : index
    %80 = memref.load %arg16[%c9] : memref<12xf32, #tpu.memory_space<smem>>
    %81 = vector.broadcast %80 : f32 to vector<32x32xf32>
    %82 = arith.select %79, %81, %77 : vector<32x32xi1>, vector<32x32xf32>
    %83 = vector.extract_strided_slice %36 {offsets = [0, 1], sizes = [32, 1], strides = [1, 1]} : vector<32x4xf32> to vector<32x1xf32>
    %84 = vector.extract_strided_slice %34 {offsets = [1, 0], sizes = [1, 32], strides = [1, 1]} : vector<4x32xf32> to vector<1x32xf32>
    %85 = vector.broadcast %83 : vector<32x1xf32> to vector<32x32xf32>
    %86 = vector.broadcast %84 : vector<1x32xf32> to vector<32x32xf32>
    %87 = arith.addf %85, %86 : vector<32x32xf32>
    %88 = arith.addf %87, %82 : vector<32x32xf32>
    %cst_56 = arith.constant 0.000000e+00 : f32
    %89 = vector.broadcast %cst_56 : f32 to vector<32x32xf32>
    %90 = arith.cmpf oge, %88, %89 : vector<32x32xf32>
    %cst_57 = arith.constant 5.000000e-02 : f32
    %91 = vector.broadcast %cst_57 : f32 to vector<32x32xf32>
    %92 = arith.mulf %91, %88 : vector<32x32xf32>
    %93 = arith.select %90, %88, %92 : vector<32x32xi1>, vector<32x32xf32>
    %cst_58 = arith.constant 0.000000e+00 : f32
    %94 = vector.broadcast %cst_58 : f32 to vector<32x32xf32>
    %95 = arith.cmpf ogt, %29, %94 : vector<32x32xf32>
    %cst_59 = arith.constant -1.000000e+30 : f32
    %96 = vector.broadcast %cst_59 : f32 to vector<32x32xf32>
    %97 = arith.select %95, %93, %96 : vector<32x32xi1>, vector<32x32xf32>
    %c1_60 = arith.constant 1 : index
    %c0_61 = arith.constant 0 : index
    %c0_62 = arith.constant 0 : index
    %98 = vector.load %arg35[%c1_60, %c0_61, %c0_62] : memref<4x32x32xf32, #tpu.memory_space<vmem>>, vector<1x32x32xf32>
    %99 = vector.shape_cast %98 : vector<1x32x32xf32> to vector<32x32xf32>
    %100 = vector.shape_cast %97 : vector<32x32xf32> to vector<1x32x32xf32>
    tpu.vector_store %arg35[%c1_60, %c0_61, %c0_62], %100 {strides = array<i32>} : memref<4x32x32xf32, #tpu.memory_space<vmem>>, vector<1x32x32xf32>,
    %cst_63 = arith.constant 0.000000e+00 : f32
    %101 = vector.broadcast %cst_63 : f32 to vector<32x32xf32>
    %c2 = arith.constant 2 : index
    %102 = memref.load %arg16[%c2] : memref<12xf32, #tpu.memory_space<smem>>
    %103 = vector.broadcast %102 : f32 to vector<32x32xf32>
    %104 = arith.addf %101, %103 : vector<32x32xf32>
    %c1_i32_64 = arith.constant 1 : i32
    %105 = vector.broadcast %c1_i32_64 : i32 to vector<32x32xi32>
    %106 = arith.cmpi eq, %30, %105 : vector<32x32xi32>
    %c6 = arith.constant 6 : index
    %107 = memref.load %arg16[%c6] : memref<12xf32, #tpu.memory_space<smem>>
    %108 = vector.broadcast %107 : f32 to vector<32x32xf32>
    %109 = arith.select %106, %108, %104 : vector<32x32xi1>, vector<32x32xf32>
    %c2_i32_65 = arith.constant 2 : i32
    %110 = vector.broadcast %c2_i32_65 : i32 to vector<32x32xi32>
    %111 = arith.cmpi eq, %30, %110 : vector<32x32xi32>
    %c10 = arith.constant 10 : index
    %112 = memref.load %arg16[%c10] : memref<12xf32, #tpu.memory_space<smem>>
    %113 = vector.broadcast %112 : f32 to vector<32x32xf32>
    %114 = arith.select %111, %113, %109 : vector<32x32xi1>, vector<32x32xf32>
    %115 = vector.extract_strided_slice %36 {offsets = [0, 2], sizes = [32, 1], strides = [1, 1]} : vector<32x4xf32> to vector<32x1xf32>
    %116 = vector.extract_strided_slice %34 {offsets = [2, 0], sizes = [1, 32], strides = [1, 1]} : vector<4x32xf32> to vector<1x32xf32>
    %117 = vector.broadcast %115 : vector<32x1xf32> to vector<32x32xf32>
    %118 = vector.broadcast %116 : vector<1x32xf32> to vector<32x32xf32>
    %119 = arith.addf %117, %118 : vector<32x32xf32>
    %120 = arith.addf %119, %114 : vector<32x32xf32>
    %cst_66 = arith.constant 0.000000e+00 : f32
    %121 = vector.broadcast %cst_66 : f32 to vector<32x32xf32>
    %122 = arith.cmpf oge, %120, %121 : vector<32x32xf32>
    %cst_67 = arith.constant 5.000000e-02 : f32
    %123 = vector.broadcast %cst_67 : f32 to vector<32x32xf32>
    %124 = arith.mulf %123, %120 : vector<32x32xf32>
    %125 = arith.select %122, %120, %124 : vector<32x32xi1>, vector<32x32xf32>
    %cst_68 = arith.constant 0.000000e+00 : f32
    %126 = vector.broadcast %cst_68 : f32 to vector<32x32xf32>
    %127 = arith.cmpf ogt, %29, %126 : vector<32x32xf32>
    %cst_69 = arith.constant -1.000000e+30 : f32
    %128 = vector.broadcast %cst_69 : f32 to vector<32x32xf32>
    %129 = arith.select %127, %125, %128 : vector<32x32xi1>, vector<32x32xf32>
    %c2_70 = arith.constant 2 : index
    %c0_71 = arith.constant 0 : index
    %c0_72 = arith.constant 0 : index
    %130 = vector.load %arg35[%c2_70, %c0_71, %c0_72] : memref<4x32x32xf32, #tpu.memory_space<vmem>>, vector<1x32x32xf32>
    %131 = vector.shape_cast %130 : vector<1x32x32xf32> to vector<32x32xf32>
    %132 = vector.shape_cast %129 : vector<32x32xf32> to vector<1x32x32xf32>
    tpu.vector_store %arg35[%c2_70, %c0_71, %c0_72], %132 {strides = array<i32>} : memref<4x32x32xf32, #tpu.memory_space<vmem>>, vector<1x32x32xf32>,
    %cst_73 = arith.constant 0.000000e+00 : f32
    %133 = vector.broadcast %cst_73 : f32 to vector<32x32xf32>
    %c3 = arith.constant 3 : index
    %134 = memref.load %arg16[%c3] : memref<12xf32, #tpu.memory_space<smem>>
    %135 = vector.broadcast %134 : f32 to vector<32x32xf32>
    %136 = arith.addf %133, %135 : vector<32x32xf32>
    %c1_i32_74 = arith.constant 1 : i32
    %137 = vector.broadcast %c1_i32_74 : i32 to vector<32x32xi32>
    %138 = arith.cmpi eq, %30, %137 : vector<32x32xi32>
    %c7 = arith.constant 7 : index
    %139 = memref.load %arg16[%c7] : memref<12xf32, #tpu.memory_space<smem>>
    %140 = vector.broadcast %139 : f32 to vector<32x32xf32>
    %141 = arith.select %138, %140, %136 : vector<32x32xi1>, vector<32x32xf32>
    %c2_i32_75 = arith.constant 2 : i32
    %142 = vector.broadcast %c2_i32_75 : i32 to vector<32x32xi32>
    %143 = arith.cmpi eq, %30, %142 : vector<32x32xi32>
    %c11 = arith.constant 11 : index
    %144 = memref.load %arg16[%c11] : memref<12xf32, #tpu.memory_space<smem>>
    %145 = vector.broadcast %144 : f32 to vector<32x32xf32>
    %146 = arith.select %143, %145, %141 : vector<32x32xi1>, vector<32x32xf32>
    %147 = vector.extract_strided_slice %36 {offsets = [0, 3], sizes = [32, 1], strides = [1, 1]} : vector<32x4xf32> to vector<32x1xf32>
    %148 = vector.extract_strided_slice %34 {offsets = [3, 0], sizes = [1, 32], strides = [1, 1]} : vector<4x32xf32> to vector<1x32xf32>
    %149 = vector.broadcast %147 : vector<32x1xf32> to vector<32x32xf32>
    %150 = vector.broadcast %148 : vector<1x32xf32> to vector<32x32xf32>
    %151 = arith.addf %149, %150 : vector<32x32xf32>
    %152 = arith.addf %151, %146 : vector<32x32xf32>
    %cst_76 = arith.constant 0.000000e+00 : f32
    %153 = vector.broadcast %cst_76 : f32 to vector<32x32xf32>
    %154 = arith.cmpf oge, %152, %153 : vector<32x32xf32>
    %cst_77 = arith.constant 5.000000e-02 : f32
    %155 = vector.broadcast %cst_77 : f32 to vector<32x32xf32>
    %156 = arith.mulf %155, %152 : vector<32x32xf32>
    %157 = arith.select %154, %152, %156 : vector<32x32xi1>, vector<32x32xf32>
    %cst_78 = arith.constant 0.000000e+00 : f32
    %158 = vector.broadcast %cst_78 : f32 to vector<32x32xf32>
    %159 = arith.cmpf ogt, %29, %158 : vector<32x32xf32>
    %cst_79 = arith.constant -1.000000e+30 : f32
    %160 = vector.broadcast %cst_79 : f32 to vector<32x32xf32>
    %161 = arith.select %159, %157, %160 : vector<32x32xi1>, vector<32x32xf32>
    %c3_80 = arith.constant 3 : index
    %c0_81 = arith.constant 0 : index
    %c0_82 = arith.constant 0 : index
    %162 = vector.load %arg35[%c3_80, %c0_81, %c0_82] : memref<4x32x32xf32, #tpu.memory_space<vmem>>, vector<1x32x32xf32>
    %163 = vector.shape_cast %162 : vector<1x32x32xf32> to vector<32x32xf32>
    %164 = vector.shape_cast %161 : vector<32x32xf32> to vector<1x32x32xf32>
    tpu.vector_store %arg35[%c3_80, %c0_81, %c0_82], %164 {strides = array<i32>} : memref<4x32x32xf32, #tpu.memory_space<vmem>>, vector<1x32x32xf32>,
    %c0_83 = arith.constant 0 : index
    %c0_84 = arith.constant 0 : index
    %c0_85 = arith.constant 0 : index
    %165 = vector.load %arg35[%c0_83, %c0_84, %c0_85] : memref<4x32x32xf32, #tpu.memory_space<vmem>>, vector<4x32x32xf32>
    %cst_86 = arith.constant dense<0xFF800000> : vector<4x32xf32>
    %166 = vector.multi_reduction <maximumf>, %165, %cst_86 [2] : vector<4x32x32xf32> to vector<4x32xf32>
    %167 = vector.shape_cast %166 : vector<4x32xf32> to vector<4x32x1xf32>
    %168 = vector.broadcast %167 : vector<4x32x1xf32> to vector<4x32x32xf32>
    %169 = arith.subf %165, %168 : vector<4x32x32xf32>
    %170 = math.exp %169 : vector<4x32x32xf32>
    %cst_87 = arith.constant dense<0.000000e+00> : vector<4x32xf32>
    %171 = vector.multi_reduction <add>, %170, %cst_87 [2] : vector<4x32x32xf32> to vector<4x32xf32>
    %172 = vector.shape_cast %171 : vector<4x32xf32> to vector<4x32x1xf32>
    %cst_88 = arith.constant 9.99999968E-21 : f32
    %173 = vector.broadcast %cst_88 : f32 to vector<4x32x1xf32>
    %174 = arith.maximumf %172, %173 : vector<4x32x1xf32>
    %175 = vector.broadcast %174 : vector<4x32x1xf32> to vector<4x32x32xf32>
    %176 = arith.divf %170, %175 : vector<4x32x32xf32>
    %c0_89 = arith.constant 0 : index
    %c0_90 = arith.constant 0 : index
    %c0_91 = arith.constant 0 : index
    %177 = vector.load %arg35[%c0_89, %c0_90, %c0_91] : memref<4x32x32xf32, #tpu.memory_space<vmem>>, vector<4x32x32xf32>
    tpu.vector_store %arg35[%c0_89, %c0_90, %c0_91], %176 {strides = array<i32>} : memref<4x32x32xf32, #tpu.memory_space<vmem>>, vector<4x32x32xf32>,
    %178 = tpu.iota {dimensions = array<i32: 1>} : vector<1x32xi32>
    %cst_92 = arith.constant 0.000000e+00 : f32
    %179 = vector.broadcast %cst_92 : f32 to vector<32x32xf32>
    %c0_i32 = arith.constant 0 : i32
    %180 = vector.broadcast %c0_i32 : i32 to vector<1x32xi32>
    %181 = arith.cmpi sge, %178, %180 : vector<1x32xi32>
    %c8_i32 = arith.constant 8 : i32
    %182 = vector.broadcast %c8_i32 : i32 to vector<1x32xi32>
    %183 = arith.cmpi slt, %178, %182 : vector<1x32xi32>
    %184 = arith.andi %181, %183 : vector<1x32xi1>
    %c0_93 = arith.constant 0 : index
    %c0_94 = arith.constant 0 : index
    %c0_95 = arith.constant 0 : index
    %185 = vector.load %arg35[%c0_93, %c0_94, %c0_95] : memref<4x32x32xf32, #tpu.memory_space<vmem>>, vector<1x32x32xf32>
    %186 = vector.shape_cast %185 : vector<1x32x32xf32> to vector<32x32xf32>
    %cst_96 = arith.constant 0.000000e+00 : f32
    %187 = vector.shape_cast %184 : vector<1x32xi1> to vector<1x32xi1>
    %188 = vector.broadcast %187 : vector<1x32xi1> to vector<32x32xi1>
    %189 = vector.broadcast %cst_96 : f32 to vector<32x32xf32>
    %190 = arith.select %188, %32, %189 : vector<32x32xi1>, vector<32x32xf32>
    %cst_97 = arith.constant dense<0.000000e+00> : vector<32x32xf32>
    %191 = tpu.matmul %186, %190, %cst_97 {dimension_numbers = #tpu.dot_dimension_numbers<[1], [0], [0], [1], [0, 0, 1, 1], [], []>} : vector<32x32xf32>, vector<32x32xf32>, vector<32x32xf32> -> vector<32x32xf32>
    %192 = arith.addf %179, %191 : vector<32x32xf32>
    %c8_i32_98 = arith.constant 8 : i32
    %193 = vector.broadcast %c8_i32_98 : i32 to vector<1x32xi32>
    %194 = arith.cmpi sge, %178, %193 : vector<1x32xi32>
    %c16_i32 = arith.constant 16 : i32
    %195 = vector.broadcast %c16_i32 : i32 to vector<1x32xi32>
    %196 = arith.cmpi slt, %178, %195 : vector<1x32xi32>
    %197 = arith.andi %194, %196 : vector<1x32xi1>
    %c1_99 = arith.constant 1 : index
    %c0_100 = arith.constant 0 : index
    %c0_101 = arith.constant 0 : index
    %198 = vector.load %arg35[%c1_99, %c0_100, %c0_101] : memref<4x32x32xf32, #tpu.memory_space<vmem>>, vector<1x32x32xf32>
    %199 = vector.shape_cast %198 : vector<1x32x32xf32> to vector<32x32xf32>
    %cst_102 = arith.constant 0.000000e+00 : f32
    %200 = vector.shape_cast %197 : vector<1x32xi1> to vector<1x32xi1>
    %201 = vector.broadcast %200 : vector<1x32xi1> to vector<32x32xi1>
    %202 = vector.broadcast %cst_102 : f32 to vector<32x32xf32>
    %203 = arith.select %201, %32, %202 : vector<32x32xi1>, vector<32x32xf32>
    %cst_103 = arith.constant dense<0.000000e+00> : vector<32x32xf32>
    %204 = tpu.matmul %199, %203, %cst_103 {dimension_numbers = #tpu.dot_dimension_numbers<[1], [0], [0], [1], [0, 0, 1, 1], [], []>} : vector<32x32xf32>, vector<32x32xf32>, vector<32x32xf32> -> vector<32x32xf32>
    %205 = arith.addf %192, %204 : vector<32x32xf32>
    %c16_i32_104 = arith.constant 16 : i32
    %206 = vector.broadcast %c16_i32_104 : i32 to vector<1x32xi32>
    %207 = arith.cmpi sge, %178, %206 : vector<1x32xi32>
    %c24_i32 = arith.constant 24 : i32
    %208 = vector.broadcast %c24_i32 : i32 to vector<1x32xi32>
    %209 = arith.cmpi slt, %178, %208 : vector<1x32xi32>
    %210 = arith.andi %207, %209 : vector<1x32xi1>
    %c2_105 = arith.constant 2 : index
    %c0_106 = arith.constant 0 : index
    %c0_107 = arith.constant 0 : index
    %211 = vector.load %arg35[%c2_105, %c0_106, %c0_107] : memref<4x32x32xf32, #tpu.memory_space<vmem>>, vector<1x32x32xf32>
    %212 = vector.shape_cast %211 : vector<1x32x32xf32> to vector<32x32xf32>
    %cst_108 = arith.constant 0.000000e+00 : f32
    %213 = vector.shape_cast %210 : vector<1x32xi1> to vector<1x32xi1>
    %214 = vector.broadcast %213 : vector<1x32xi1> to vector<32x32xi1>
    %215 = vector.broadcast %cst_108 : f32 to vector<32x32xf32>
    %216 = arith.select %214, %32, %215 : vector<32x32xi1>, vector<32x32xf32>
    %cst_109 = arith.constant dense<0.000000e+00> : vector<32x32xf32>
    %217 = tpu.matmul %212, %216, %cst_109 {dimension_numbers = #tpu.dot_dimension_numbers<[1], [0], [0], [1], [0, 0, 1, 1], [], []>} : vector<32x32xf32>, vector<32x32xf32>, vector<32x32xf32> -> vector<32x32xf32>
    %218 = arith.addf %205, %217 : vector<32x32xf32>
    %c24_i32_110 = arith.constant 24 : i32
    %219 = vector.broadcast %c24_i32_110 : i32 to vector<1x32xi32>
    %220 = arith.cmpi sge, %178, %219 : vector<1x32xi32>
    %c32_i32 = arith.constant 32 : i32
    %221 = vector.broadcast %c32_i32 : i32 to vector<1x32xi32>
    %222 = arith.cmpi slt, %178, %221 : vector<1x32xi32>
    %223 = arith.andi %220, %222 : vector<1x32xi1>
    %c3_111 = arith.constant 3 : index
    %c0_112 = arith.constant 0 : index
    %c0_113 = arith.constant 0 : index
    %224 = vector.load %arg35[%c3_111, %c0_112, %c0_113] : memref<4x32x32xf32, #tpu.memory_space<vmem>>, vector<1x32x32xf32>
    %225 = vector.shape_cast %224 : vector<1x32x32xf32> to vector<32x32xf32>
    %cst_114 = arith.constant 0.000000e+00 : f32
    %226 = vector.shape_cast %223 : vector<1x32xi1> to vector<1x32xi1>
    %227 = vector.broadcast %226 : vector<1x32xi1> to vector<32x32xi1>
    %228 = vector.broadcast %cst_114 : f32 to vector<32x32xf32>
    %229 = arith.select %227, %32, %228 : vector<32x32xi1>, vector<32x32xf32>
    %cst_115 = arith.constant dense<0.000000e+00> : vector<32x32xf32>
    %230 = tpu.matmul %225, %229, %cst_115 {dimension_numbers = #tpu.dot_dimension_numbers<[1], [0], [0], [1], [0, 0, 1, 1], [], []>} : vector<32x32xf32>, vector<32x32xf32>, vector<32x32xf32> -> vector<32x32xf32>
    %231 = arith.addf %218, %230 : vector<32x32xf32>
    %cst_116 = arith.constant 0.000000e+00 : f32
    %232 = vector.broadcast %cst_116 : f32 to vector<32x32xf32>
    %233 = arith.cmpf ogt, %231, %232 : vector<32x32xf32>
    %cst_117 = arith.constant 0.000000e+00 : f32
    %234 = vector.broadcast %cst_117 : f32 to vector<32x32xf32>
    %235 = arith.minimumf %231, %234 : vector<32x32xf32>
    %236 = math.exp %235 : vector<32x32xf32>
    %cst_118 = arith.constant 1.000000e+00 : f32
    %237 = vector.broadcast %cst_118 : f32 to vector<32x32xf32>
    %238 = arith.subf %236, %237 : vector<32x32xf32>
    %239 = arith.select %233, %231, %238 : vector<32x32xi1>, vector<32x32xf32>
    %c0_119 = arith.constant 0 : index
    %c0_120 = arith.constant 0 : index
    %240 = vector.load %arg21[%c0_119, %c0_120] : memref<1x32xf32, #tpu.memory_space<vmem>>, vector<1x32xf32>
    %cst_121 = arith.constant dense<0.000000e+00> : vector<32x32xf32>
    %241 = tpu.matmul %28, %240, %cst_121 {dimension_numbers = #tpu.dot_dimension_numbers<[1], [0], [0], [1], [0, 0, 1, 1], [], []>} : vector<32x1xf32>, vector<1x32xf32>, vector<32x32xf32> -> vector<32x32xf32>
    %c0_122 = arith.constant 0 : index
    %c0_123 = arith.constant 0 : index
    %242 = vector.load %arg22[%c0_122, %c0_123] : memref<4x32xf32, #tpu.memory_space<vmem>>, vector<4x32xf32>
    %cst_124 = arith.constant dense<0.000000e+00> : vector<4x32xf32>
    %243 = tpu.matmul %242, %241, %cst_124 {dimension_numbers = #tpu.dot_dimension_numbers<[1], [1], [0], [0], [0, 0, 1, 0], [], []>} : vector<4x32xf32>, vector<32x32xf32>, vector<4x32xf32> -> vector<4x32xf32>
    %c0_125 = arith.constant 0 : index
    %c0_126 = arith.constant 0 : index
    %244 = vector.load %arg23[%c0_125, %c0_126] : memref<32x4xf32, #tpu.memory_space<vmem>>, vector<32x4xf32>
    %cst_127 = arith.constant dense<0.000000e+00> : vector<32x4xf32>
    %245 = tpu.matmul %241, %244, %cst_127 {dimension_numbers = #tpu.dot_dimension_numbers<[1], [0], [0], [1], [0, 0, 1, 1], [], []>} : vector<32x32xf32>, vector<32x4xf32>, vector<32x4xf32> -> vector<32x4xf32>
    %cst_128 = arith.constant 0.000000e+00 : f32
    %246 = vector.broadcast %cst_128 : f32 to vector<32x32xf32>
    %c0_129 = arith.constant 0 : index
    %247 = memref.load %arg24[%c0_129] : memref<12xf32, #tpu.memory_space<smem>>
    %248 = vector.broadcast %247 : f32 to vector<32x32xf32>
    %249 = arith.addf %246, %248 : vector<32x32xf32>
    %c1_i32_130 = arith.constant 1 : i32
    %250 = vector.broadcast %c1_i32_130 : i32 to vector<32x32xi32>
    %251 = arith.cmpi eq, %30, %250 : vector<32x32xi32>
    %c4_131 = arith.constant 4 : index
    %252 = memref.load %arg24[%c4_131] : memref<12xf32, #tpu.memory_space<smem>>
    %253 = vector.broadcast %252 : f32 to vector<32x32xf32>
    %254 = arith.select %251, %253, %249 : vector<32x32xi1>, vector<32x32xf32>
    %c2_i32_132 = arith.constant 2 : i32
    %255 = vector.broadcast %c2_i32_132 : i32 to vector<32x32xi32>
    %256 = arith.cmpi eq, %30, %255 : vector<32x32xi32>
    %c8_133 = arith.constant 8 : index
    %257 = memref.load %arg24[%c8_133] : memref<12xf32, #tpu.memory_space<smem>>
    %258 = vector.broadcast %257 : f32 to vector<32x32xf32>
    %259 = arith.select %256, %258, %254 : vector<32x32xi1>, vector<32x32xf32>
    %260 = vector.extract_strided_slice %245 {offsets = [0, 0], sizes = [32, 1], strides = [1, 1]} : vector<32x4xf32> to vector<32x1xf32>
    %261 = vector.extract_strided_slice %243 {offsets = [0, 0], sizes = [1, 32], strides = [1, 1]} : vector<4x32xf32> to vector<1x32xf32>
    %262 = vector.broadcast %260 : vector<32x1xf32> to vector<32x32xf32>
    %263 = vector.broadcast %261 : vector<1x32xf32> to vector<32x32xf32>
    %264 = arith.addf %262, %263 : vector<32x32xf32>
    %265 = arith.addf %264, %259 : vector<32x32xf32>
    %cst_134 = arith.constant 0.000000e+00 : f32
    %266 = vector.broadcast %cst_134 : f32 to vector<32x32xf32>
    %267 = arith.cmpf oge, %265, %266 : vector<32x32xf32>
    %cst_135 = arith.constant 5.000000e-02 : f32
    %268 = vector.broadcast %cst_135 : f32 to vector<32x32xf32>
    %269 = arith.mulf %268, %265 : vector<32x32xf32>
    %270 = arith.select %267, %265, %269 : vector<32x32xi1>, vector<32x32xf32>
    %cst_136 = arith.constant 0.000000e+00 : f32
    %271 = vector.broadcast %cst_136 : f32 to vector<32x32xf32>
    %272 = arith.cmpf ogt, %29, %271 : vector<32x32xf32>
    %cst_137 = arith.constant -1.000000e+30 : f32
    %273 = vector.broadcast %cst_137 : f32 to vector<32x32xf32>
    %274 = arith.select %272, %270, %273 : vector<32x32xi1>, vector<32x32xf32>
    %c0_138 = arith.constant 0 : index
    %c0_139 = arith.constant 0 : index
    %c0_140 = arith.constant 0 : index
    %275 = vector.load %arg35[%c0_138, %c0_139, %c0_140] : memref<4x32x32xf32, #tpu.memory_space<vmem>>, vector<1x32x32xf32>
    %276 = vector.shape_cast %275 : vector<1x32x32xf32> to vector<32x32xf32>
    %277 = vector.shape_cast %274 : vector<32x32xf32> to vector<1x32x32xf32>
    tpu.vector_store %arg35[%c0_138, %c0_139, %c0_140], %277 {strides = array<i32>} : memref<4x32x32xf32, #tpu.memory_space<vmem>>, vector<1x32x32xf32>,
    %cst_141 = arith.constant 0.000000e+00 : f32
    %278 = vector.broadcast %cst_141 : f32 to vector<32x32xf32>
    %c1_142 = arith.constant 1 : index
    %279 = memref.load %arg24[%c1_142] : memref<12xf32, #tpu.memory_space<smem>>
    %280 = vector.broadcast %279 : f32 to vector<32x32xf32>
    %281 = arith.addf %278, %280 : vector<32x32xf32>
    %c1_i32_143 = arith.constant 1 : i32
    %282 = vector.broadcast %c1_i32_143 : i32 to vector<32x32xi32>
    %283 = arith.cmpi eq, %30, %282 : vector<32x32xi32>
    %c5_144 = arith.constant 5 : index
    %284 = memref.load %arg24[%c5_144] : memref<12xf32, #tpu.memory_space<smem>>
    %285 = vector.broadcast %284 : f32 to vector<32x32xf32>
    %286 = arith.select %283, %285, %281 : vector<32x32xi1>, vector<32x32xf32>
    %c2_i32_145 = arith.constant 2 : i32
    %287 = vector.broadcast %c2_i32_145 : i32 to vector<32x32xi32>
    %288 = arith.cmpi eq, %30, %287 : vector<32x32xi32>
    %c9_146 = arith.constant 9 : index
    %289 = memref.load %arg24[%c9_146] : memref<12xf32, #tpu.memory_space<smem>>
    %290 = vector.broadcast %289 : f32 to vector<32x32xf32>
    %291 = arith.select %288, %290, %286 : vector<32x32xi1>, vector<32x32xf32>
    %292 = vector.extract_strided_slice %245 {offsets = [0, 1], sizes = [32, 1], strides = [1, 1]} : vector<32x4xf32> to vector<32x1xf32>
    %293 = vector.extract_strided_slice %243 {offsets = [1, 0], sizes = [1, 32], strides = [1, 1]} : vector<4x32xf32> to vector<1x32xf32>
    %294 = vector.broadcast %292 : vector<32x1xf32> to vector<32x32xf32>
    %295 = vector.broadcast %293 : vector<1x32xf32> to vector<32x32xf32>
    %296 = arith.addf %294, %295 : vector<32x32xf32>
    %297 = arith.addf %296, %291 : vector<32x32xf32>
    %cst_147 = arith.constant 0.000000e+00 : f32
    %298 = vector.broadcast %cst_147 : f32 to vector<32x32xf32>
    %299 = arith.cmpf oge, %297, %298 : vector<32x32xf32>
    %cst_148 = arith.constant 5.000000e-02 : f32
    %300 = vector.broadcast %cst_148 : f32 to vector<32x32xf32>
    %301 = arith.mulf %300, %297 : vector<32x32xf32>
    %302 = arith.select %299, %297, %301 : vector<32x32xi1>, vector<32x32xf32>
    %cst_149 = arith.constant 0.000000e+00 : f32
    %303 = vector.broadcast %cst_149 : f32 to vector<32x32xf32>
    %304 = arith.cmpf ogt, %29, %303 : vector<32x32xf32>
    %cst_150 = arith.constant -1.000000e+30 : f32
    %305 = vector.broadcast %cst_150 : f32 to vector<32x32xf32>
    %306 = arith.select %304, %302, %305 : vector<32x32xi1>, vector<32x32xf32>
    %c1_151 = arith.constant 1 : index
    %c0_152 = arith.constant 0 : index
    %c0_153 = arith.constant 0 : index
    %307 = vector.load %arg35[%c1_151, %c0_152, %c0_153] : memref<4x32x32xf32, #tpu.memory_space<vmem>>, vector<1x32x32xf32>
    %308 = vector.shape_cast %307 : vector<1x32x32xf32> to vector<32x32xf32>
    %309 = vector.shape_cast %306 : vector<32x32xf32> to vector<1x32x32xf32>
    tpu.vector_store %arg35[%c1_151, %c0_152, %c0_153], %309 {strides = array<i32>} : memref<4x32x32xf32, #tpu.memory_space<vmem>>, vector<1x32x32xf32>,
    %cst_154 = arith.constant 0.000000e+00 : f32
    %310 = vector.broadcast %cst_154 : f32 to vector<32x32xf32>
    %c2_155 = arith.constant 2 : index
    %311 = memref.load %arg24[%c2_155] : memref<12xf32, #tpu.memory_space<smem>>
    %312 = vector.broadcast %311 : f32 to vector<32x32xf32>
    %313 = arith.addf %310, %312 : vector<32x32xf32>
    %c1_i32_156 = arith.constant 1 : i32
    %314 = vector.broadcast %c1_i32_156 : i32 to vector<32x32xi32>
    %315 = arith.cmpi eq, %30, %314 : vector<32x32xi32>
    %c6_157 = arith.constant 6 : index
    %316 = memref.load %arg24[%c6_157] : memref<12xf32, #tpu.memory_space<smem>>
    %317 = vector.broadcast %316 : f32 to vector<32x32xf32>
    %318 = arith.select %315, %317, %313 : vector<32x32xi1>, vector<32x32xf32>
    %c2_i32_158 = arith.constant 2 : i32
    %319 = vector.broadcast %c2_i32_158 : i32 to vector<32x32xi32>
    %320 = arith.cmpi eq, %30, %319 : vector<32x32xi32>
    %c10_159 = arith.constant 10 : index
    %321 = memref.load %arg24[%c10_159] : memref<12xf32, #tpu.memory_space<smem>>
    %322 = vector.broadcast %321 : f32 to vector<32x32xf32>
    %323 = arith.select %320, %322, %318 : vector<32x32xi1>, vector<32x32xf32>
    %324 = vector.extract_strided_slice %245 {offsets = [0, 2], sizes = [32, 1], strides = [1, 1]} : vector<32x4xf32> to vector<32x1xf32>
    %325 = vector.extract_strided_slice %243 {offsets = [2, 0], sizes = [1, 32], strides = [1, 1]} : vector<4x32xf32> to vector<1x32xf32>
    %326 = vector.broadcast %324 : vector<32x1xf32> to vector<32x32xf32>
    %327 = vector.broadcast %325 : vector<1x32xf32> to vector<32x32xf32>
    %328 = arith.addf %326, %327 : vector<32x32xf32>
    %329 = arith.addf %328, %323 : vector<32x32xf32>
    %cst_160 = arith.constant 0.000000e+00 : f32
    %330 = vector.broadcast %cst_160 : f32 to vector<32x32xf32>
    %331 = arith.cmpf oge, %329, %330 : vector<32x32xf32>
    %cst_161 = arith.constant 5.000000e-02 : f32
    %332 = vector.broadcast %cst_161 : f32 to vector<32x32xf32>
    %333 = arith.mulf %332, %329 : vector<32x32xf32>
    %334 = arith.select %331, %329, %333 : vector<32x32xi1>, vector<32x32xf32>
    %cst_162 = arith.constant 0.000000e+00 : f32
    %335 = vector.broadcast %cst_162 : f32 to vector<32x32xf32>
    %336 = arith.cmpf ogt, %29, %335 : vector<32x32xf32>
    %cst_163 = arith.constant -1.000000e+30 : f32
    %337 = vector.broadcast %cst_163 : f32 to vector<32x32xf32>
    %338 = arith.select %336, %334, %337 : vector<32x32xi1>, vector<32x32xf32>
    %c2_164 = arith.constant 2 : index
    %c0_165 = arith.constant 0 : index
    %c0_166 = arith.constant 0 : index
    %339 = vector.load %arg35[%c2_164, %c0_165, %c0_166] : memref<4x32x32xf32, #tpu.memory_space<vmem>>, vector<1x32x32xf32>
    %340 = vector.shape_cast %339 : vector<1x32x32xf32> to vector<32x32xf32>
    %341 = vector.shape_cast %338 : vector<32x32xf32> to vector<1x32x32xf32>
    tpu.vector_store %arg35[%c2_164, %c0_165, %c0_166], %341 {strides = array<i32>} : memref<4x32x32xf32, #tpu.memory_space<vmem>>, vector<1x32x32xf32>,
    %cst_167 = arith.constant 0.000000e+00 : f32
    %342 = vector.broadcast %cst_167 : f32 to vector<32x32xf32>
    %c3_168 = arith.constant 3 : index
    %343 = memref.load %arg24[%c3_168] : memref<12xf32, #tpu.memory_space<smem>>
    %344 = vector.broadcast %343 : f32 to vector<32x32xf32>
    %345 = arith.addf %342, %344 : vector<32x32xf32>
    %c1_i32_169 = arith.constant 1 : i32
    %346 = vector.broadcast %c1_i32_169 : i32 to vector<32x32xi32>
    %347 = arith.cmpi eq, %30, %346 : vector<32x32xi32>
    %c7_170 = arith.constant 7 : index
    %348 = memref.load %arg24[%c7_170] : memref<12xf32, #tpu.memory_space<smem>>
    %349 = vector.broadcast %348 : f32 to vector<32x32xf32>
    %350 = arith.select %347, %349, %345 : vector<32x32xi1>, vector<32x32xf32>
    %c2_i32_171 = arith.constant 2 : i32
    %351 = vector.broadcast %c2_i32_171 : i32 to vector<32x32xi32>
    %352 = arith.cmpi eq, %30, %351 : vector<32x32xi32>
    %c11_172 = arith.constant 11 : index
    %353 = memref.load %arg24[%c11_172] : memref<12xf32, #tpu.memory_space<smem>>
    %354 = vector.broadcast %353 : f32 to vector<32x32xf32>
    %355 = arith.select %352, %354, %350 : vector<32x32xi1>, vector<32x32xf32>
    %356 = vector.extract_strided_slice %245 {offsets = [0, 3], sizes = [32, 1], strides = [1, 1]} : vector<32x4xf32> to vector<32x1xf32>
    %357 = vector.extract_strided_slice %243 {offsets = [3, 0], sizes = [1, 32], strides = [1, 1]} : vector<4x32xf32> to vector<1x32xf32>
    %358 = vector.broadcast %356 : vector<32x1xf32> to vector<32x32xf32>
    %359 = vector.broadcast %357 : vector<1x32xf32> to vector<32x32xf32>
    %360 = arith.addf %358, %359 : vector<32x32xf32>
    %361 = arith.addf %360, %355 : vector<32x32xf32>
    %cst_173 = arith.constant 0.000000e+00 : f32
    %362 = vector.broadcast %cst_173 : f32 to vector<32x32xf32>
    %363 = arith.cmpf oge, %361, %362 : vector<32x32xf32>
    %cst_174 = arith.constant 5.000000e-02 : f32
    %364 = vector.broadcast %cst_174 : f32 to vector<32x32xf32>
    %365 = arith.mulf %364, %361 : vector<32x32xf32>
    %366 = arith.select %363, %361, %365 : vector<32x32xi1>, vector<32x32xf32>
    %cst_175 = arith.constant 0.000000e+00 : f32
    %367 = vector.broadcast %cst_175 : f32 to vector<32x32xf32>
    %368 = arith.cmpf ogt, %29, %367 : vector<32x32xf32>
    %cst_176 = arith.constant -1.000000e+30 : f32
    %369 = vector.broadcast %cst_176 : f32 to vector<32x32xf32>
    %370 = arith.select %368, %366, %369 : vector<32x32xi1>, vector<32x32xf32>
    %c3_177 = arith.constant 3 : index
    %c0_178 = arith.constant 0 : index
    %c0_179 = arith.constant 0 : index
    %371 = vector.load %arg35[%c3_177, %c0_178, %c0_179] : memref<4x32x32xf32, #tpu.memory_space<vmem>>, vector<1x32x32xf32>
    %372 = vector.shape_cast %371 : vector<1x32x32xf32> to vector<32x32xf32>
    %373 = vector.shape_cast %370 : vector<32x32xf32> to vector<1x32x32xf32>
    tpu.vector_store %arg35[%c3_177, %c0_178, %c0_179], %373 {strides = array<i32>} : memref<4x32x32xf32, #tpu.memory_space<vmem>>, vector<1x32x32xf32>,
    %c0_180 = arith.constant 0 : index
    %c0_181 = arith.constant 0 : index
    %c0_182 = arith.constant 0 : index
    %374 = vector.load %arg35[%c0_180, %c0_181, %c0_182] : memref<4x32x32xf32, #tpu.memory_space<vmem>>, vector<4x32x32xf32>
    %cst_183 = arith.constant dense<0xFF800000> : vector<4x32xf32>
    %375 = vector.multi_reduction <maximumf>, %374, %cst_183 [2] : vector<4x32x32xf32> to vector<4x32xf32>
    %376 = vector.shape_cast %375 : vector<4x32xf32> to vector<4x32x1xf32>
    %377 = vector.broadcast %376 : vector<4x32x1xf32> to vector<4x32x32xf32>
    %378 = arith.subf %374, %377 : vector<4x32x32xf32>
    %379 = math.exp %378 : vector<4x32x32xf32>
    %cst_184 = arith.constant dense<0.000000e+00> : vector<4x32xf32>
    %380 = vector.multi_reduction <add>, %379, %cst_184 [2] : vector<4x32x32xf32> to vector<4x32xf32>
    %381 = vector.shape_cast %380 : vector<4x32xf32> to vector<4x32x1xf32>
    %cst_185 = arith.constant 9.99999968E-21 : f32
    %382 = vector.broadcast %cst_185 : f32 to vector<4x32x1xf32>
    %383 = arith.maximumf %381, %382 : vector<4x32x1xf32>
    %384 = vector.broadcast %383 : vector<4x32x1xf32> to vector<4x32x32xf32>
    %385 = arith.divf %379, %384 : vector<4x32x32xf32>
    %c0_186 = arith.constant 0 : index
    %c0_187 = arith.constant 0 : index
    %c0_188 = arith.constant 0 : index
    %386 = vector.load %arg35[%c0_186, %c0_187, %c0_188] : memref<4x32x32xf32, #tpu.memory_space<vmem>>, vector<4x32x32xf32>
    tpu.vector_store %arg35[%c0_186, %c0_187, %c0_188], %385 {strides = array<i32>} : memref<4x32x32xf32, #tpu.memory_space<vmem>>, vector<4x32x32xf32>,
    %387 = tpu.iota {dimensions = array<i32: 1>} : vector<1x32xi32>
    %cst_189 = arith.constant 0.000000e+00 : f32
    %388 = vector.broadcast %cst_189 : f32 to vector<32x32xf32>
    %c0_i32_190 = arith.constant 0 : i32
    %389 = vector.broadcast %c0_i32_190 : i32 to vector<1x32xi32>
    %390 = arith.cmpi sge, %387, %389 : vector<1x32xi32>
    %c8_i32_191 = arith.constant 8 : i32
    %391 = vector.broadcast %c8_i32_191 : i32 to vector<1x32xi32>
    %392 = arith.cmpi slt, %387, %391 : vector<1x32xi32>
    %393 = arith.andi %390, %392 : vector<1x32xi1>
    %c0_192 = arith.constant 0 : index
    %c0_193 = arith.constant 0 : index
    %c0_194 = arith.constant 0 : index
    %394 = vector.load %arg35[%c0_192, %c0_193, %c0_194] : memref<4x32x32xf32, #tpu.memory_space<vmem>>, vector<1x32x32xf32>
    %395 = vector.shape_cast %394 : vector<1x32x32xf32> to vector<32x32xf32>
    %cst_195 = arith.constant 0.000000e+00 : f32
    %396 = vector.shape_cast %393 : vector<1x32xi1> to vector<1x32xi1>
    %397 = vector.broadcast %396 : vector<1x32xi1> to vector<32x32xi1>
    %398 = vector.broadcast %cst_195 : f32 to vector<32x32xf32>
    %399 = arith.select %397, %241, %398 : vector<32x32xi1>, vector<32x32xf32>
    %cst_196 = arith.constant dense<0.000000e+00> : vector<32x32xf32>
    %400 = tpu.matmul %395, %399, %cst_196 {dimension_numbers = #tpu.dot_dimension_numbers<[1], [0], [0], [1], [0, 0, 1, 1], [], []>} : vector<32x32xf32>, vector<32x32xf32>, vector<32x32xf32> -> vector<32x32xf32>
    %401 = arith.addf %388, %400 : vector<32x32xf32>
    %c8_i32_197 = arith.constant 8 : i32
    %402 = vector.broadcast %c8_i32_197 : i32 to vector<1x32xi32>
    %403 = arith.cmpi sge, %387, %402 : vector<1x32xi32>
    %c16_i32_198 = arith.constant 16 : i32
    %404 = vector.broadcast %c16_i32_198 : i32 to vector<1x32xi32>
    %405 = arith.cmpi slt, %387, %404 : vector<1x32xi32>
    %406 = arith.andi %403, %405 : vector<1x32xi1>
    %c1_199 = arith.constant 1 : index
    %c0_200 = arith.constant 0 : index
    %c0_201 = arith.constant 0 : index
    %407 = vector.load %arg35[%c1_199, %c0_200, %c0_201] : memref<4x32x32xf32, #tpu.memory_space<vmem>>, vector<1x32x32xf32>
    %408 = vector.shape_cast %407 : vector<1x32x32xf32> to vector<32x32xf32>
    %cst_202 = arith.constant 0.000000e+00 : f32
    %409 = vector.shape_cast %406 : vector<1x32xi1> to vector<1x32xi1>
    %410 = vector.broadcast %409 : vector<1x32xi1> to vector<32x32xi1>
    %411 = vector.broadcast %cst_202 : f32 to vector<32x32xf32>
    %412 = arith.select %410, %241, %411 : vector<32x32xi1>, vector<32x32xf32>
    %cst_203 = arith.constant dense<0.000000e+00> : vector<32x32xf32>
    %413 = tpu.matmul %408, %412, %cst_203 {dimension_numbers = #tpu.dot_dimension_numbers<[1], [0], [0], [1], [0, 0, 1, 1], [], []>} : vector<32x32xf32>, vector<32x32xf32>, vector<32x32xf32> -> vector<32x32xf32>
    %414 = arith.addf %401, %413 : vector<32x32xf32>
    %c16_i32_204 = arith.constant 16 : i32
    %415 = vector.broadcast %c16_i32_204 : i32 to vector<1x32xi32>
    %416 = arith.cmpi sge, %387, %415 : vector<1x32xi32>
    %c24_i32_205 = arith.constant 24 : i32
    %417 = vector.broadcast %c24_i32_205 : i32 to vector<1x32xi32>
    %418 = arith.cmpi slt, %387, %417 : vector<1x32xi32>
    %419 = arith.andi %416, %418 : vector<1x32xi1>
    %c2_206 = arith.constant 2 : index
    %c0_207 = arith.constant 0 : index
    %c0_208 = arith.constant 0 : index
    %420 = vector.load %arg35[%c2_206, %c0_207, %c0_208] : memref<4x32x32xf32, #tpu.memory_space<vmem>>, vector<1x32x32xf32>
    %421 = vector.shape_cast %420 : vector<1x32x32xf32> to vector<32x32xf32>
    %cst_209 = arith.constant 0.000000e+00 : f32
    %422 = vector.shape_cast %419 : vector<1x32xi1> to vector<1x32xi1>
    %423 = vector.broadcast %422 : vector<1x32xi1> to vector<32x32xi1>
    %424 = vector.broadcast %cst_209 : f32 to vector<32x32xf32>
    %425 = arith.select %423, %241, %424 : vector<32x32xi1>, vector<32x32xf32>
    %cst_210 = arith.constant dense<0.000000e+00> : vector<32x32xf32>
    %426 = tpu.matmul %421, %425, %cst_210 {dimension_numbers = #tpu.dot_dimension_numbers<[1], [0], [0], [1], [0, 0, 1, 1], [], []>} : vector<32x32xf32>, vector<32x32xf32>, vector<32x32xf32> -> vector<32x32xf32>
    %427 = arith.addf %414, %426 : vector<32x32xf32>
    %c24_i32_211 = arith.constant 24 : i32
    %428 = vector.broadcast %c24_i32_211 : i32 to vector<1x32xi32>
    %429 = arith.cmpi sge, %387, %428 : vector<1x32xi32>
    %c32_i32_212 = arith.constant 32 : i32
    %430 = vector.broadcast %c32_i32_212 : i32 to vector<1x32xi32>
    %431 = arith.cmpi slt, %387, %430 : vector<1x32xi32>
    %432 = arith.andi %429, %431 : vector<1x32xi1>
    %c3_213 = arith.constant 3 : index
    %c0_214 = arith.constant 0 : index
    %c0_215 = arith.constant 0 : index
    %433 = vector.load %arg35[%c3_213, %c0_214, %c0_215] : memref<4x32x32xf32, #tpu.memory_space<vmem>>, vector<1x32x32xf32>
    %434 = vector.shape_cast %433 : vector<1x32x32xf32> to vector<32x32xf32>
    %cst_216 = arith.constant 0.000000e+00 : f32
    %435 = vector.shape_cast %432 : vector<1x32xi1> to vector<1x32xi1>
    %436 = vector.broadcast %435 : vector<1x32xi1> to vector<32x32xi1>
    %437 = vector.broadcast %cst_216 : f32 to vector<32x32xf32>
    %438 = arith.select %436, %241, %437 : vector<32x32xi1>, vector<32x32xf32>
    %cst_217 = arith.constant dense<0.000000e+00> : vector<32x32xf32>
    %439 = tpu.matmul %434, %438, %cst_217 {dimension_numbers = #tpu.dot_dimension_numbers<[1], [0], [0], [1], [0, 0, 1, 1], [], []>} : vector<32x32xf32>, vector<32x32xf32>, vector<32x32xf32> -> vector<32x32xf32>
    %440 = arith.addf %427, %439 : vector<32x32xf32>
    %cst_218 = arith.constant 0.000000e+00 : f32
    %441 = vector.broadcast %cst_218 : f32 to vector<32x32xf32>
    %442 = arith.cmpf ogt, %440, %441 : vector<32x32xf32>
    %cst_219 = arith.constant 0.000000e+00 : f32
    %443 = vector.broadcast %cst_219 : f32 to vector<32x32xf32>
    %444 = arith.minimumf %440, %443 : vector<32x32xf32>
    %445 = math.exp %444 : vector<32x32xf32>
    %cst_220 = arith.constant 1.000000e+00 : f32
    %446 = vector.broadcast %cst_220 : f32 to vector<32x32xf32>
    %447 = arith.subf %445, %446 : vector<32x32xf32>
    %448 = arith.select %442, %440, %447 : vector<32x32xi1>, vector<32x32xf32>
    %c0_221 = arith.constant 0 : index
    %c0_222 = arith.constant 0 : index
    %449 = vector.load %arg29[%c0_221, %c0_222] : memref<64x32xf32, #tpu.memory_space<vmem>>, vector<32x32xf32>
    %cst_223 = arith.constant dense<0.000000e+00> : vector<32x32xf32>
    %450 = tpu.matmul %239, %449, %cst_223 {dimension_numbers = #tpu.dot_dimension_numbers<[1], [0], [0], [1], [0, 0, 1, 1], [], []>} : vector<32x32xf32>, vector<32x32xf32>, vector<32x32xf32> -> vector<32x32xf32>
    %c32 = arith.constant 32 : index
    %c0_224 = arith.constant 0 : index
    %451 = vector.load %arg29[%c32, %c0_224] : memref<64x32xf32, #tpu.memory_space<vmem>>, vector<32x32xf32>
    %cst_225 = arith.constant dense<0.000000e+00> : vector<32x32xf32>
    %452 = tpu.matmul %448, %451, %cst_225 {dimension_numbers = #tpu.dot_dimension_numbers<[1], [0], [0], [1], [0, 0, 1, 1], [], []>} : vector<32x32xf32>, vector<32x32xf32>, vector<32x32xf32> -> vector<32x32xf32>
    %453 = arith.addf %450, %452 : vector<32x32xf32>
    %c0_226 = arith.constant 0 : index
    %c0_227 = arith.constant 0 : index
    %454 = vector.load %arg30[%c0_226, %c0_227] : memref<1x32xf32, #tpu.memory_space<vmem>>, vector<1x32xf32>
    %455 = vector.broadcast %454 : vector<1x32xf32> to vector<32x32xf32>
    %456 = arith.addf %453, %455 : vector<32x32xf32>
    %cst_228 = arith.constant 0.000000e+00 : f32
    %457 = vector.broadcast %cst_228 : f32 to vector<32x32xf32>
    %458 = arith.maximumf %456, %457 : vector<32x32xf32>
    %c0_229 = arith.constant 0 : index
    %c0_230 = arith.constant 0 : index
    %459 = vector.load %arg17[%c0_229, %c0_230] : memref<32x32xf32, #tpu.memory_space<vmem>>, vector<32x32xf32>
    %cst_231 = arith.constant dense<0.000000e+00> : vector<32x32xf32>
    %460 = tpu.matmul %239, %459, %cst_231 {dimension_numbers = #tpu.dot_dimension_numbers<[1], [0], [0], [1], [0, 0, 1, 1], [], []>} : vector<32x32xf32>, vector<32x32xf32>, vector<32x32xf32> -> vector<32x32xf32>
    %c0_232 = arith.constant 0 : index
    %c0_233 = arith.constant 0 : index
    %461 = vector.load %arg18[%c0_232, %c0_233] : memref<4x32xf32, #tpu.memory_space<vmem>>, vector<4x32xf32>
    %cst_234 = arith.constant dense<0.000000e+00> : vector<4x32xf32>
    %462 = tpu.matmul %461, %460, %cst_234 {dimension_numbers = #tpu.dot_dimension_numbers<[1], [1], [0], [0], [0, 0, 1, 0], [], []>} : vector<4x32xf32>, vector<32x32xf32>, vector<4x32xf32> -> vector<4x32xf32>
    %c0_235 = arith.constant 0 : index
    %c0_236 = arith.constant 0 : index
    %463 = vector.load %arg19[%c0_235, %c0_236] : memref<32x4xf32, #tpu.memory_space<vmem>>, vector<32x4xf32>
    %cst_237 = arith.constant dense<0.000000e+00> : vector<32x4xf32>
    %464 = tpu.matmul %460, %463, %cst_237 {dimension_numbers = #tpu.dot_dimension_numbers<[1], [0], [0], [1], [0, 0, 1, 1], [], []>} : vector<32x32xf32>, vector<32x4xf32>, vector<32x4xf32> -> vector<32x4xf32>
    %cst_238 = arith.constant 0.000000e+00 : f32
    %465 = vector.broadcast %cst_238 : f32 to vector<32x32xf32>
    %c0_239 = arith.constant 0 : index
    %466 = memref.load %arg20[%c0_239] : memref<12xf32, #tpu.memory_space<smem>>
    %467 = vector.broadcast %466 : f32 to vector<32x32xf32>
    %468 = arith.addf %465, %467 : vector<32x32xf32>
    %c1_i32_240 = arith.constant 1 : i32
    %469 = vector.broadcast %c1_i32_240 : i32 to vector<32x32xi32>
    %470 = arith.cmpi eq, %30, %469 : vector<32x32xi32>
    %c4_241 = arith.constant 4 : index
    %471 = memref.load %arg20[%c4_241] : memref<12xf32, #tpu.memory_space<smem>>
    %472 = vector.broadcast %471 : f32 to vector<32x32xf32>
    %473 = arith.select %470, %472, %468 : vector<32x32xi1>, vector<32x32xf32>
    %c2_i32_242 = arith.constant 2 : i32
    %474 = vector.broadcast %c2_i32_242 : i32 to vector<32x32xi32>
    %475 = arith.cmpi eq, %30, %474 : vector<32x32xi32>
    %c8_243 = arith.constant 8 : index
    %476 = memref.load %arg20[%c8_243] : memref<12xf32, #tpu.memory_space<smem>>
    %477 = vector.broadcast %476 : f32 to vector<32x32xf32>
    %478 = arith.select %475, %477, %473 : vector<32x32xi1>, vector<32x32xf32>
    %479 = vector.extract_strided_slice %464 {offsets = [0, 0], sizes = [32, 1], strides = [1, 1]} : vector<32x4xf32> to vector<32x1xf32>
    %480 = vector.extract_strided_slice %462 {offsets = [0, 0], sizes = [1, 32], strides = [1, 1]} : vector<4x32xf32> to vector<1x32xf32>
    %481 = vector.broadcast %479 : vector<32x1xf32> to vector<32x32xf32>
    %482 = vector.broadcast %480 : vector<1x32xf32> to vector<32x32xf32>
    %483 = arith.addf %481, %482 : vector<32x32xf32>
    %484 = arith.addf %483, %478 : vector<32x32xf32>
    %cst_244 = arith.constant 0.000000e+00 : f32
    %485 = vector.broadcast %cst_244 : f32 to vector<32x32xf32>
    %486 = arith.cmpf oge, %484, %485 : vector<32x32xf32>
    %cst_245 = arith.constant 5.000000e-02 : f32
    %487 = vector.broadcast %cst_245 : f32 to vector<32x32xf32>
    %488 = arith.mulf %487, %484 : vector<32x32xf32>
    %489 = arith.select %486, %484, %488 : vector<32x32xi1>, vector<32x32xf32>
    %cst_246 = arith.constant 0.000000e+00 : f32
    %490 = vector.broadcast %cst_246 : f32 to vector<32x32xf32>
    %491 = arith.cmpf ogt, %29, %490 : vector<32x32xf32>
    %cst_247 = arith.constant -1.000000e+30 : f32
    %492 = vector.broadcast %cst_247 : f32 to vector<32x32xf32>
    %493 = arith.select %491, %489, %492 : vector<32x32xi1>, vector<32x32xf32>
    %c0_248 = arith.constant 0 : index
    %c0_249 = arith.constant 0 : index
    %c0_250 = arith.constant 0 : index
    %494 = vector.load %arg35[%c0_248, %c0_249, %c0_250] : memref<4x32x32xf32, #tpu.memory_space<vmem>>, vector<1x32x32xf32>
    %495 = vector.shape_cast %494 : vector<1x32x32xf32> to vector<32x32xf32>
    %496 = vector.shape_cast %493 : vector<32x32xf32> to vector<1x32x32xf32>
    tpu.vector_store %arg35[%c0_248, %c0_249, %c0_250], %496 {strides = array<i32>} : memref<4x32x32xf32, #tpu.memory_space<vmem>>, vector<1x32x32xf32>,
    %cst_251 = arith.constant 0.000000e+00 : f32
    %497 = vector.broadcast %cst_251 : f32 to vector<32x32xf32>
    %c1_252 = arith.constant 1 : index
    %498 = memref.load %arg20[%c1_252] : memref<12xf32, #tpu.memory_space<smem>>
    %499 = vector.broadcast %498 : f32 to vector<32x32xf32>
    %500 = arith.addf %497, %499 : vector<32x32xf32>
    %c1_i32_253 = arith.constant 1 : i32
    %501 = vector.broadcast %c1_i32_253 : i32 to vector<32x32xi32>
    %502 = arith.cmpi eq, %30, %501 : vector<32x32xi32>
    %c5_254 = arith.constant 5 : index
    %503 = memref.load %arg20[%c5_254] : memref<12xf32, #tpu.memory_space<smem>>
    %504 = vector.broadcast %503 : f32 to vector<32x32xf32>
    %505 = arith.select %502, %504, %500 : vector<32x32xi1>, vector<32x32xf32>
    %c2_i32_255 = arith.constant 2 : i32
    %506 = vector.broadcast %c2_i32_255 : i32 to vector<32x32xi32>
    %507 = arith.cmpi eq, %30, %506 : vector<32x32xi32>
    %c9_256 = arith.constant 9 : index
    %508 = memref.load %arg20[%c9_256] : memref<12xf32, #tpu.memory_space<smem>>
    %509 = vector.broadcast %508 : f32 to vector<32x32xf32>
    %510 = arith.select %507, %509, %505 : vector<32x32xi1>, vector<32x32xf32>
    %511 = vector.extract_strided_slice %464 {offsets = [0, 1], sizes = [32, 1], strides = [1, 1]} : vector<32x4xf32> to vector<32x1xf32>
    %512 = vector.extract_strided_slice %462 {offsets = [1, 0], sizes = [1, 32], strides = [1, 1]} : vector<4x32xf32> to vector<1x32xf32>
    %513 = vector.broadcast %511 : vector<32x1xf32> to vector<32x32xf32>
    %514 = vector.broadcast %512 : vector<1x32xf32> to vector<32x32xf32>
    %515 = arith.addf %513, %514 : vector<32x32xf32>
    %516 = arith.addf %515, %510 : vector<32x32xf32>
    %cst_257 = arith.constant 0.000000e+00 : f32
    %517 = vector.broadcast %cst_257 : f32 to vector<32x32xf32>
    %518 = arith.cmpf oge, %516, %517 : vector<32x32xf32>
    %cst_258 = arith.constant 5.000000e-02 : f32
    %519 = vector.broadcast %cst_258 : f32 to vector<32x32xf32>
    %520 = arith.mulf %519, %516 : vector<32x32xf32>
    %521 = arith.select %518, %516, %520 : vector<32x32xi1>, vector<32x32xf32>
    %cst_259 = arith.constant 0.000000e+00 : f32
    %522 = vector.broadcast %cst_259 : f32 to vector<32x32xf32>
    %523 = arith.cmpf ogt, %29, %522 : vector<32x32xf32>
    %cst_260 = arith.constant -1.000000e+30 : f32
    %524 = vector.broadcast %cst_260 : f32 to vector<32x32xf32>
    %525 = arith.select %523, %521, %524 : vector<32x32xi1>, vector<32x32xf32>
    %c1_261 = arith.constant 1 : index
    %c0_262 = arith.constant 0 : index
    %c0_263 = arith.constant 0 : index
    %526 = vector.load %arg35[%c1_261, %c0_262, %c0_263] : memref<4x32x32xf32, #tpu.memory_space<vmem>>, vector<1x32x32xf32>
    %527 = vector.shape_cast %526 : vector<1x32x32xf32> to vector<32x32xf32>
    %528 = vector.shape_cast %525 : vector<32x32xf32> to vector<1x32x32xf32>
    tpu.vector_store %arg35[%c1_261, %c0_262, %c0_263], %528 {strides = array<i32>} : memref<4x32x32xf32, #tpu.memory_space<vmem>>, vector<1x32x32xf32>,
    %cst_264 = arith.constant 0.000000e+00 : f32
    %529 = vector.broadcast %cst_264 : f32 to vector<32x32xf32>
    %c2_265 = arith.constant 2 : index
    %530 = memref.load %arg20[%c2_265] : memref<12xf32, #tpu.memory_space<smem>>
    %531 = vector.broadcast %530 : f32 to vector<32x32xf32>
    %532 = arith.addf %529, %531 : vector<32x32xf32>
    %c1_i32_266 = arith.constant 1 : i32
    %533 = vector.broadcast %c1_i32_266 : i32 to vector<32x32xi32>
    %534 = arith.cmpi eq, %30, %533 : vector<32x32xi32>
    %c6_267 = arith.constant 6 : index
    %535 = memref.load %arg20[%c6_267] : memref<12xf32, #tpu.memory_space<smem>>
    %536 = vector.broadcast %535 : f32 to vector<32x32xf32>
    %537 = arith.select %534, %536, %532 : vector<32x32xi1>, vector<32x32xf32>
    %c2_i32_268 = arith.constant 2 : i32
    %538 = vector.broadcast %c2_i32_268 : i32 to vector<32x32xi32>
    %539 = arith.cmpi eq, %30, %538 : vector<32x32xi32>
    %c10_269 = arith.constant 10 : index
    %540 = memref.load %arg20[%c10_269] : memref<12xf32, #tpu.memory_space<smem>>
    %541 = vector.broadcast %540 : f32 to vector<32x32xf32>
    %542 = arith.select %539, %541, %537 : vector<32x32xi1>, vector<32x32xf32>
    %543 = vector.extract_strided_slice %464 {offsets = [0, 2], sizes = [32, 1], strides = [1, 1]} : vector<32x4xf32> to vector<32x1xf32>
    %544 = vector.extract_strided_slice %462 {offsets = [2, 0], sizes = [1, 32], strides = [1, 1]} : vector<4x32xf32> to vector<1x32xf32>
    %545 = vector.broadcast %543 : vector<32x1xf32> to vector<32x32xf32>
    %546 = vector.broadcast %544 : vector<1x32xf32> to vector<32x32xf32>
    %547 = arith.addf %545, %546 : vector<32x32xf32>
    %548 = arith.addf %547, %542 : vector<32x32xf32>
    %cst_270 = arith.constant 0.000000e+00 : f32
    %549 = vector.broadcast %cst_270 : f32 to vector<32x32xf32>
    %550 = arith.cmpf oge, %548, %549 : vector<32x32xf32>
    %cst_271 = arith.constant 5.000000e-02 : f32
    %551 = vector.broadcast %cst_271 : f32 to vector<32x32xf32>
    %552 = arith.mulf %551, %548 : vector<32x32xf32>
    %553 = arith.select %550, %548, %552 : vector<32x32xi1>, vector<32x32xf32>
    %cst_272 = arith.constant 0.000000e+00 : f32
    %554 = vector.broadcast %cst_272 : f32 to vector<32x32xf32>
    %555 = arith.cmpf ogt, %29, %554 : vector<32x32xf32>
    %cst_273 = arith.constant -1.000000e+30 : f32
    %556 = vector.broadcast %cst_273 : f32 to vector<32x32xf32>
    %557 = arith.select %555, %553, %556 : vector<32x32xi1>, vector<32x32xf32>
    %c2_274 = arith.constant 2 : index
    %c0_275 = arith.constant 0 : index
    %c0_276 = arith.constant 0 : index
    %558 = vector.load %arg35[%c2_274, %c0_275, %c0_276] : memref<4x32x32xf32, #tpu.memory_space<vmem>>, vector<1x32x32xf32>
    %559 = vector.shape_cast %558 : vector<1x32x32xf32> to vector<32x32xf32>
    %560 = vector.shape_cast %557 : vector<32x32xf32> to vector<1x32x32xf32>
    tpu.vector_store %arg35[%c2_274, %c0_275, %c0_276], %560 {strides = array<i32>} : memref<4x32x32xf32, #tpu.memory_space<vmem>>, vector<1x32x32xf32>,
    %cst_277 = arith.constant 0.000000e+00 : f32
    %561 = vector.broadcast %cst_277 : f32 to vector<32x32xf32>
    %c3_278 = arith.constant 3 : index
    %562 = memref.load %arg20[%c3_278] : memref<12xf32, #tpu.memory_space<smem>>
    %563 = vector.broadcast %562 : f32 to vector<32x32xf32>
    %564 = arith.addf %561, %563 : vector<32x32xf32>
    %c1_i32_279 = arith.constant 1 : i32
    %565 = vector.broadcast %c1_i32_279 : i32 to vector<32x32xi32>
    %566 = arith.cmpi eq, %30, %565 : vector<32x32xi32>
    %c7_280 = arith.constant 7 : index
    %567 = memref.load %arg20[%c7_280] : memref<12xf32, #tpu.memory_space<smem>>
    %568 = vector.broadcast %567 : f32 to vector<32x32xf32>
    %569 = arith.select %566, %568, %564 : vector<32x32xi1>, vector<32x32xf32>
    %c2_i32_281 = arith.constant 2 : i32
    %570 = vector.broadcast %c2_i32_281 : i32 to vector<32x32xi32>
    %571 = arith.cmpi eq, %30, %570 : vector<32x32xi32>
    %c11_282 = arith.constant 11 : index
    %572 = memref.load %arg20[%c11_282] : memref<12xf32, #tpu.memory_space<smem>>
    %573 = vector.broadcast %572 : f32 to vector<32x32xf32>
    %574 = arith.select %571, %573, %569 : vector<32x32xi1>, vector<32x32xf32>
    %575 = vector.extract_strided_slice %464 {offsets = [0, 3], sizes = [32, 1], strides = [1, 1]} : vector<32x4xf32> to vector<32x1xf32>
    %576 = vector.extract_strided_slice %462 {offsets = [3, 0], sizes = [1, 32], strides = [1, 1]} : vector<4x32xf32> to vector<1x32xf32>
    %577 = vector.broadcast %575 : vector<32x1xf32> to vector<32x32xf32>
    %578 = vector.broadcast %576 : vector<1x32xf32> to vector<32x32xf32>
    %579 = arith.addf %577, %578 : vector<32x32xf32>
    %580 = arith.addf %579, %574 : vector<32x32xf32>
    %cst_283 = arith.constant 0.000000e+00 : f32
    %581 = vector.broadcast %cst_283 : f32 to vector<32x32xf32>
    %582 = arith.cmpf oge, %580, %581 : vector<32x32xf32>
    %cst_284 = arith.constant 5.000000e-02 : f32
    %583 = vector.broadcast %cst_284 : f32 to vector<32x32xf32>
    %584 = arith.mulf %583, %580 : vector<32x32xf32>
    %585 = arith.select %582, %580, %584 : vector<32x32xi1>, vector<32x32xf32>
    %cst_285 = arith.constant 0.000000e+00 : f32
    %586 = vector.broadcast %cst_285 : f32 to vector<32x32xf32>
    %587 = arith.cmpf ogt, %29, %586 : vector<32x32xf32>
    %cst_286 = arith.constant -1.000000e+30 : f32
    %588 = vector.broadcast %cst_286 : f32 to vector<32x32xf32>
    %589 = arith.select %587, %585, %588 : vector<32x32xi1>, vector<32x32xf32>
    %c3_287 = arith.constant 3 : index
    %c0_288 = arith.constant 0 : index
    %c0_289 = arith.constant 0 : index
    %590 = vector.load %arg35[%c3_287, %c0_288, %c0_289] : memref<4x32x32xf32, #tpu.memory_space<vmem>>, vector<1x32x32xf32>
    %591 = vector.shape_cast %590 : vector<1x32x32xf32> to vector<32x32xf32>
    %592 = vector.shape_cast %589 : vector<32x32xf32> to vector<1x32x32xf32>
    tpu.vector_store %arg35[%c3_287, %c0_288, %c0_289], %592 {strides = array<i32>} : memref<4x32x32xf32, #tpu.memory_space<vmem>>, vector<1x32x32xf32>,
    %c0_290 = arith.constant 0 : index
    %c0_291 = arith.constant 0 : index
    %c0_292 = arith.constant 0 : index
    %593 = vector.load %arg35[%c0_290, %c0_291, %c0_292] : memref<4x32x32xf32, #tpu.memory_space<vmem>>, vector<4x32x32xf32>
    %cst_293 = arith.constant dense<0xFF800000> : vector<4x32xf32>
    %594 = vector.multi_reduction <maximumf>, %593, %cst_293 [2] : vector<4x32x32xf32> to vector<4x32xf32>
    %595 = vector.shape_cast %594 : vector<4x32xf32> to vector<4x32x1xf32>
    %596 = vector.broadcast %595 : vector<4x32x1xf32> to vector<4x32x32xf32>
    %597 = arith.subf %593, %596 : vector<4x32x32xf32>
    %598 = math.exp %597 : vector<4x32x32xf32>
    %cst_294 = arith.constant dense<0.000000e+00> : vector<4x32xf32>
    %599 = vector.multi_reduction <add>, %598, %cst_294 [2] : vector<4x32x32xf32> to vector<4x32xf32>
    %600 = vector.shape_cast %599 : vector<4x32xf32> to vector<4x32x1xf32>
    %cst_295 = arith.constant 9.99999968E-21 : f32
    %601 = vector.broadcast %cst_295 : f32 to vector<4x32x1xf32>
    %602 = arith.maximumf %600, %601 : vector<4x32x1xf32>
    %603 = vector.broadcast %602 : vector<4x32x1xf32> to vector<4x32x32xf32>
    %604 = arith.divf %598, %603 : vector<4x32x32xf32>
    %cst_296 = arith.constant 0.949999988 : f32
    %605 = vector.broadcast %cst_296 : f32 to vector<4x32x32xf32>
    %606 = arith.mulf %604, %605 : vector<4x32x32xf32>
    %cst_297 = arith.constant 5.000000e-02 : f32
    %607 = vector.broadcast %cst_297 : f32 to vector<4x32x32xf32>
    %608 = arith.mulf %176, %607 : vector<4x32x32xf32>
    %609 = arith.addf %606, %608 : vector<4x32x32xf32>
    %c0_298 = arith.constant 0 : index
    %c0_299 = arith.constant 0 : index
    %c0_300 = arith.constant 0 : index
    %610 = vector.load %arg35[%c0_298, %c0_299, %c0_300] : memref<4x32x32xf32, #tpu.memory_space<vmem>>, vector<4x32x32xf32>
    tpu.vector_store %arg35[%c0_298, %c0_299, %c0_300], %609 {strides = array<i32>} : memref<4x32x32xf32, #tpu.memory_space<vmem>>, vector<4x32x32xf32>,
    %611 = tpu.iota {dimensions = array<i32: 1>} : vector<1x32xi32>
    %c0_i32_301 = arith.constant 0 : i32
    %612 = vector.broadcast %c0_i32_301 : i32 to vector<1x32xi32>
    %613 = arith.cmpi sge, %611, %612 : vector<1x32xi32>
    %c8_i32_302 = arith.constant 8 : i32
    %614 = vector.broadcast %c8_i32_302 : i32 to vector<1x32xi32>
    %615 = arith.cmpi slt, %611, %614 : vector<1x32xi32>
    %616 = arith.andi %613, %615 : vector<1x32xi1>
    %c0_303 = arith.constant 0 : index
    %c0_304 = arith.constant 0 : index
    %c0_305 = arith.constant 0 : index
    %617 = vector.load %arg35[%c0_303, %c0_304, %c0_305] : memref<4x32x32xf32, #tpu.memory_space<vmem>>, vector<1x32x32xf32>
    %618 = vector.shape_cast %617 : vector<1x32x32xf32> to vector<32x32xf32>
    %cst_306 = arith.constant 0.000000e+00 : f32
    %619 = vector.shape_cast %616 : vector<1x32xi1> to vector<1x32xi1>
    %620 = vector.broadcast %619 : vector<1x32xi1> to vector<32x32xi1>
    %621 = vector.broadcast %cst_306 : f32 to vector<32x32xf32>
    %622 = arith.select %620, %460, %621 : vector<32x32xi1>, vector<32x32xf32>
    %cst_307 = arith.constant dense<0.000000e+00> : vector<32x32xf32>
    %623 = tpu.matmul %618, %622, %cst_307 {dimension_numbers = #tpu.dot_dimension_numbers<[1], [0], [0], [1], [0, 0, 1, 1], [], []>} : vector<32x32xf32>, vector<32x32xf32>, vector<32x32xf32> -> vector<32x32xf32>
    %624 = arith.addf %239, %623 : vector<32x32xf32>
    %c8_i32_308 = arith.constant 8 : i32
    %625 = vector.broadcast %c8_i32_308 : i32 to vector<1x32xi32>
    %626 = arith.cmpi sge, %611, %625 : vector<1x32xi32>
    %c16_i32_309 = arith.constant 16 : i32
    %627 = vector.broadcast %c16_i32_309 : i32 to vector<1x32xi32>
    %628 = arith.cmpi slt, %611, %627 : vector<1x32xi32>
    %629 = arith.andi %626, %628 : vector<1x32xi1>
    %c1_310 = arith.constant 1 : index
    %c0_311 = arith.constant 0 : index
    %c0_312 = arith.constant 0 : index
    %630 = vector.load %arg35[%c1_310, %c0_311, %c0_312] : memref<4x32x32xf32, #tpu.memory_space<vmem>>, vector<1x32x32xf32>
    %631 = vector.shape_cast %630 : vector<1x32x32xf32> to vector<32x32xf32>
    %cst_313 = arith.constant 0.000000e+00 : f32
    %632 = vector.shape_cast %629 : vector<1x32xi1> to vector<1x32xi1>
    %633 = vector.broadcast %632 : vector<1x32xi1> to vector<32x32xi1>
    %634 = vector.broadcast %cst_313 : f32 to vector<32x32xf32>
    %635 = arith.select %633, %460, %634 : vector<32x32xi1>, vector<32x32xf32>
    %cst_314 = arith.constant dense<0.000000e+00> : vector<32x32xf32>
    %636 = tpu.matmul %631, %635, %cst_314 {dimension_numbers = #tpu.dot_dimension_numbers<[1], [0], [0], [1], [0, 0, 1, 1], [], []>} : vector<32x32xf32>, vector<32x32xf32>, vector<32x32xf32> -> vector<32x32xf32>
    %637 = arith.addf %624, %636 : vector<32x32xf32>
    %c16_i32_315 = arith.constant 16 : i32
    %638 = vector.broadcast %c16_i32_315 : i32 to vector<1x32xi32>
    %639 = arith.cmpi sge, %611, %638 : vector<1x32xi32>
    %c24_i32_316 = arith.constant 24 : i32
    %640 = vector.broadcast %c24_i32_316 : i32 to vector<1x32xi32>
    %641 = arith.cmpi slt, %611, %640 : vector<1x32xi32>
    %642 = arith.andi %639, %641 : vector<1x32xi1>
    %c2_317 = arith.constant 2 : index
    %c0_318 = arith.constant 0 : index
    %c0_319 = arith.constant 0 : index
    %643 = vector.load %arg35[%c2_317, %c0_318, %c0_319] : memref<4x32x32xf32, #tpu.memory_space<vmem>>, vector<1x32x32xf32>
    %644 = vector.shape_cast %643 : vector<1x32x32xf32> to vector<32x32xf32>
    %cst_320 = arith.constant 0.000000e+00 : f32
    %645 = vector.shape_cast %642 : vector<1x32xi1> to vector<1x32xi1>
    %646 = vector.broadcast %645 : vector<1x32xi1> to vector<32x32xi1>
    %647 = vector.broadcast %cst_320 : f32 to vector<32x32xf32>
    %648 = arith.select %646, %460, %647 : vector<32x32xi1>, vector<32x32xf32>
    %cst_321 = arith.constant dense<0.000000e+00> : vector<32x32xf32>
    %649 = tpu.matmul %644, %648, %cst_321 {dimension_numbers = #tpu.dot_dimension_numbers<[1], [0], [0], [1], [0, 0, 1, 1], [], []>} : vector<32x32xf32>, vector<32x32xf32>, vector<32x32xf32> -> vector<32x32xf32>
    %650 = arith.addf %637, %649 : vector<32x32xf32>
    %c24_i32_322 = arith.constant 24 : i32
    %651 = vector.broadcast %c24_i32_322 : i32 to vector<1x32xi32>
    %652 = arith.cmpi sge, %611, %651 : vector<1x32xi32>
    %c32_i32_323 = arith.constant 32 : i32
    %653 = vector.broadcast %c32_i32_323 : i32 to vector<1x32xi32>
    %654 = arith.cmpi slt, %611, %653 : vector<1x32xi32>
    %655 = arith.andi %652, %654 : vector<1x32xi1>
    %c3_324 = arith.constant 3 : index
    %c0_325 = arith.constant 0 : index
    %c0_326 = arith.constant 0 : index
    %656 = vector.load %arg35[%c3_324, %c0_325, %c0_326] : memref<4x32x32xf32, #tpu.memory_space<vmem>>, vector<1x32x32xf32>
    %657 = vector.shape_cast %656 : vector<1x32x32xf32> to vector<32x32xf32>
    %cst_327 = arith.constant 0.000000e+00 : f32
    %658 = vector.shape_cast %655 : vector<1x32xi1> to vector<1x32xi1>
    %659 = vector.broadcast %658 : vector<1x32xi1> to vector<32x32xi1>
    %660 = vector.broadcast %cst_327 : f32 to vector<32x32xf32>
    %661 = arith.select %659, %460, %660 : vector<32x32xi1>, vector<32x32xf32>
    %cst_328 = arith.constant dense<0.000000e+00> : vector<32x32xf32>
    %662 = tpu.matmul %657, %661, %cst_328 {dimension_numbers = #tpu.dot_dimension_numbers<[1], [0], [0], [1], [0, 0, 1, 1], [], []>} : vector<32x32xf32>, vector<32x32xf32>, vector<32x32xf32> -> vector<32x32xf32>
    %663 = arith.addf %650, %662 : vector<32x32xf32>
    %cst_329 = arith.constant 0.000000e+00 : f32
    %664 = vector.broadcast %cst_329 : f32 to vector<32x32xf32>
    %665 = arith.cmpf ogt, %663, %664 : vector<32x32xf32>
    %cst_330 = arith.constant 0.000000e+00 : f32
    %666 = vector.broadcast %cst_330 : f32 to vector<32x32xf32>
    %667 = arith.minimumf %663, %666 : vector<32x32xf32>
    %668 = math.exp %667 : vector<32x32xf32>
    %cst_331 = arith.constant 1.000000e+00 : f32
    %669 = vector.broadcast %cst_331 : f32 to vector<32x32xf32>
    %670 = arith.subf %668, %669 : vector<32x32xf32>
    %671 = arith.select %665, %663, %670 : vector<32x32xi1>, vector<32x32xf32>
    %c0_332 = arith.constant 0 : index
    %c0_333 = arith.constant 0 : index
    %672 = vector.load %arg25[%c0_332, %c0_333] : memref<32x32xf32, #tpu.memory_space<vmem>>, vector<32x32xf32>
    %cst_334 = arith.constant dense<0.000000e+00> : vector<32x32xf32>
    %673 = tpu.matmul %458, %672, %cst_334 {dimension_numbers = #tpu.dot_dimension_numbers<[1], [0], [0], [1], [0, 0, 1, 1], [], []>} : vector<32x32xf32>, vector<32x32xf32>, vector<32x32xf32> -> vector<32x32xf32>
    %c0_335 = arith.constant 0 : index
    %c0_336 = arith.constant 0 : index
    %674 = vector.load %arg26[%c0_335, %c0_336] : memref<4x32xf32, #tpu.memory_space<vmem>>, vector<4x32xf32>
    %cst_337 = arith.constant dense<0.000000e+00> : vector<4x32xf32>
    %675 = tpu.matmul %674, %673, %cst_337 {dimension_numbers = #tpu.dot_dimension_numbers<[1], [1], [0], [0], [0, 0, 1, 0], [], []>} : vector<4x32xf32>, vector<32x32xf32>, vector<4x32xf32> -> vector<4x32xf32>
    %c0_338 = arith.constant 0 : index
    %c0_339 = arith.constant 0 : index
    %676 = vector.load %arg27[%c0_338, %c0_339] : memref<32x4xf32, #tpu.memory_space<vmem>>, vector<32x4xf32>
    %cst_340 = arith.constant dense<0.000000e+00> : vector<32x4xf32>
    %677 = tpu.matmul %673, %676, %cst_340 {dimension_numbers = #tpu.dot_dimension_numbers<[1], [0], [0], [1], [0, 0, 1, 1], [], []>} : vector<32x32xf32>, vector<32x4xf32>, vector<32x4xf32> -> vector<32x4xf32>
    %cst_341 = arith.constant 0.000000e+00 : f32
    %678 = vector.broadcast %cst_341 : f32 to vector<32x32xf32>
    %c0_342 = arith.constant 0 : index
    %679 = memref.load %arg28[%c0_342] : memref<12xf32, #tpu.memory_space<smem>>
    %680 = vector.broadcast %679 : f32 to vector<32x32xf32>
    %681 = arith.addf %678, %680 : vector<32x32xf32>
    %c1_i32_343 = arith.constant 1 : i32
    %682 = vector.broadcast %c1_i32_343 : i32 to vector<32x32xi32>
    %683 = arith.cmpi eq, %30, %682 : vector<32x32xi32>
    %c4_344 = arith.constant 4 : index
    %684 = memref.load %arg28[%c4_344] : memref<12xf32, #tpu.memory_space<smem>>
    %685 = vector.broadcast %684 : f32 to vector<32x32xf32>
    %686 = arith.select %683, %685, %681 : vector<32x32xi1>, vector<32x32xf32>
    %c2_i32_345 = arith.constant 2 : i32
    %687 = vector.broadcast %c2_i32_345 : i32 to vector<32x32xi32>
    %688 = arith.cmpi eq, %30, %687 : vector<32x32xi32>
    %c8_346 = arith.constant 8 : index
    %689 = memref.load %arg28[%c8_346] : memref<12xf32, #tpu.memory_space<smem>>
    %690 = vector.broadcast %689 : f32 to vector<32x32xf32>
    %691 = arith.select %688, %690, %686 : vector<32x32xi1>, vector<32x32xf32>
    %692 = vector.extract_strided_slice %677 {offsets = [0, 0], sizes = [32, 1], strides = [1, 1]} : vector<32x4xf32> to vector<32x1xf32>
    %693 = vector.extract_strided_slice %675 {offsets = [0, 0], sizes = [1, 32], strides = [1, 1]} : vector<4x32xf32> to vector<1x32xf32>
    %694 = vector.broadcast %692 : vector<32x1xf32> to vector<32x32xf32>
    %695 = vector.broadcast %693 : vector<1x32xf32> to vector<32x32xf32>
    %696 = arith.addf %694, %695 : vector<32x32xf32>
    %697 = arith.addf %696, %691 : vector<32x32xf32>
    %cst_347 = arith.constant 0.000000e+00 : f32
    %698 = vector.broadcast %cst_347 : f32 to vector<32x32xf32>
    %699 = arith.cmpf oge, %697, %698 : vector<32x32xf32>
    %cst_348 = arith.constant 5.000000e-02 : f32
    %700 = vector.broadcast %cst_348 : f32 to vector<32x32xf32>
    %701 = arith.mulf %700, %697 : vector<32x32xf32>
    %702 = arith.select %699, %697, %701 : vector<32x32xi1>, vector<32x32xf32>
    %cst_349 = arith.constant 0.000000e+00 : f32
    %703 = vector.broadcast %cst_349 : f32 to vector<32x32xf32>
    %704 = arith.cmpf ogt, %29, %703 : vector<32x32xf32>
    %cst_350 = arith.constant -1.000000e+30 : f32
    %705 = vector.broadcast %cst_350 : f32 to vector<32x32xf32>
    %706 = arith.select %704, %702, %705 : vector<32x32xi1>, vector<32x32xf32>
    %c0_351 = arith.constant 0 : index
    %c0_352 = arith.constant 0 : index
    %c0_353 = arith.constant 0 : index
    %707 = vector.load %arg35[%c0_351, %c0_352, %c0_353] : memref<4x32x32xf32, #tpu.memory_space<vmem>>, vector<1x32x32xf32>
    %708 = vector.shape_cast %707 : vector<1x32x32xf32> to vector<32x32xf32>
    %709 = vector.shape_cast %706 : vector<32x32xf32> to vector<1x32x32xf32>
    tpu.vector_store %arg35[%c0_351, %c0_352, %c0_353], %709 {strides = array<i32>} : memref<4x32x32xf32, #tpu.memory_space<vmem>>, vector<1x32x32xf32>,
    %cst_354 = arith.constant 0.000000e+00 : f32
    %710 = vector.broadcast %cst_354 : f32 to vector<32x32xf32>
    %c1_355 = arith.constant 1 : index
    %711 = memref.load %arg28[%c1_355] : memref<12xf32, #tpu.memory_space<smem>>
    %712 = vector.broadcast %711 : f32 to vector<32x32xf32>
    %713 = arith.addf %710, %712 : vector<32x32xf32>
    %c1_i32_356 = arith.constant 1 : i32
    %714 = vector.broadcast %c1_i32_356 : i32 to vector<32x32xi32>
    %715 = arith.cmpi eq, %30, %714 : vector<32x32xi32>
    %c5_357 = arith.constant 5 : index
    %716 = memref.load %arg28[%c5_357] : memref<12xf32, #tpu.memory_space<smem>>
    %717 = vector.broadcast %716 : f32 to vector<32x32xf32>
    %718 = arith.select %715, %717, %713 : vector<32x32xi1>, vector<32x32xf32>
    %c2_i32_358 = arith.constant 2 : i32
    %719 = vector.broadcast %c2_i32_358 : i32 to vector<32x32xi32>
    %720 = arith.cmpi eq, %30, %719 : vector<32x32xi32>
    %c9_359 = arith.constant 9 : index
    %721 = memref.load %arg28[%c9_359] : memref<12xf32, #tpu.memory_space<smem>>
    %722 = vector.broadcast %721 : f32 to vector<32x32xf32>
    %723 = arith.select %720, %722, %718 : vector<32x32xi1>, vector<32x32xf32>
    %724 = vector.extract_strided_slice %677 {offsets = [0, 1], sizes = [32, 1], strides = [1, 1]} : vector<32x4xf32> to vector<32x1xf32>
    %725 = vector.extract_strided_slice %675 {offsets = [1, 0], sizes = [1, 32], strides = [1, 1]} : vector<4x32xf32> to vector<1x32xf32>
    %726 = vector.broadcast %724 : vector<32x1xf32> to vector<32x32xf32>
    %727 = vector.broadcast %725 : vector<1x32xf32> to vector<32x32xf32>
    %728 = arith.addf %726, %727 : vector<32x32xf32>
    %729 = arith.addf %728, %723 : vector<32x32xf32>
    %cst_360 = arith.constant 0.000000e+00 : f32
    %730 = vector.broadcast %cst_360 : f32 to vector<32x32xf32>
    %731 = arith.cmpf oge, %729, %730 : vector<32x32xf32>
    %cst_361 = arith.constant 5.000000e-02 : f32
    %732 = vector.broadcast %cst_361 : f32 to vector<32x32xf32>
    %733 = arith.mulf %732, %729 : vector<32x32xf32>
    %734 = arith.select %731, %729, %733 : vector<32x32xi1>, vector<32x32xf32>
    %cst_362 = arith.constant 0.000000e+00 : f32
    %735 = vector.broadcast %cst_362 : f32 to vector<32x32xf32>
    %736 = arith.cmpf ogt, %29, %735 : vector<32x32xf32>
    %cst_363 = arith.constant -1.000000e+30 : f32
    %737 = vector.broadcast %cst_363 : f32 to vector<32x32xf32>
    %738 = arith.select %736, %734, %737 : vector<32x32xi1>, vector<32x32xf32>
    %c1_364 = arith.constant 1 : index
    %c0_365 = arith.constant 0 : index
    %c0_366 = arith.constant 0 : index
    %739 = vector.load %arg35[%c1_364, %c0_365, %c0_366] : memref<4x32x32xf32, #tpu.memory_space<vmem>>, vector<1x32x32xf32>
    %740 = vector.shape_cast %739 : vector<1x32x32xf32> to vector<32x32xf32>
    %741 = vector.shape_cast %738 : vector<32x32xf32> to vector<1x32x32xf32>
    tpu.vector_store %arg35[%c1_364, %c0_365, %c0_366], %741 {strides = array<i32>} : memref<4x32x32xf32, #tpu.memory_space<vmem>>, vector<1x32x32xf32>,
    %cst_367 = arith.constant 0.000000e+00 : f32
    %742 = vector.broadcast %cst_367 : f32 to vector<32x32xf32>
    %c2_368 = arith.constant 2 : index
    %743 = memref.load %arg28[%c2_368] : memref<12xf32, #tpu.memory_space<smem>>
    %744 = vector.broadcast %743 : f32 to vector<32x32xf32>
    %745 = arith.addf %742, %744 : vector<32x32xf32>
    %c1_i32_369 = arith.constant 1 : i32
    %746 = vector.broadcast %c1_i32_369 : i32 to vector<32x32xi32>
    %747 = arith.cmpi eq, %30, %746 : vector<32x32xi32>
    %c6_370 = arith.constant 6 : index
    %748 = memref.load %arg28[%c6_370] : memref<12xf32, #tpu.memory_space<smem>>
    %749 = vector.broadcast %748 : f32 to vector<32x32xf32>
    %750 = arith.select %747, %749, %745 : vector<32x32xi1>, vector<32x32xf32>
    %c2_i32_371 = arith.constant 2 : i32
    %751 = vector.broadcast %c2_i32_371 : i32 to vector<32x32xi32>
    %752 = arith.cmpi eq, %30, %751 : vector<32x32xi32>
    %c10_372 = arith.constant 10 : index
    %753 = memref.load %arg28[%c10_372] : memref<12xf32, #tpu.memory_space<smem>>
    %754 = vector.broadcast %753 : f32 to vector<32x32xf32>
    %755 = arith.select %752, %754, %750 : vector<32x32xi1>, vector<32x32xf32>
    %756 = vector.extract_strided_slice %677 {offsets = [0, 2], sizes = [32, 1], strides = [1, 1]} : vector<32x4xf32> to vector<32x1xf32>
    %757 = vector.extract_strided_slice %675 {offsets = [2, 0], sizes = [1, 32], strides = [1, 1]} : vector<4x32xf32> to vector<1x32xf32>
    %758 = vector.broadcast %756 : vector<32x1xf32> to vector<32x32xf32>
    %759 = vector.broadcast %757 : vector<1x32xf32> to vector<32x32xf32>
    %760 = arith.addf %758, %759 : vector<32x32xf32>
    %761 = arith.addf %760, %755 : vector<32x32xf32>
    %cst_373 = arith.constant 0.000000e+00 : f32
    %762 = vector.broadcast %cst_373 : f32 to vector<32x32xf32>
    %763 = arith.cmpf oge, %761, %762 : vector<32x32xf32>
    %cst_374 = arith.constant 5.000000e-02 : f32
    %764 = vector.broadcast %cst_374 : f32 to vector<32x32xf32>
    %765 = arith.mulf %764, %761 : vector<32x32xf32>
    %766 = arith.select %763, %761, %765 : vector<32x32xi1>, vector<32x32xf32>
    %cst_375 = arith.constant 0.000000e+00 : f32
    %767 = vector.broadcast %cst_375 : f32 to vector<32x32xf32>
    %768 = arith.cmpf ogt, %29, %767 : vector<32x32xf32>
    %cst_376 = arith.constant -1.000000e+30 : f32
    %769 = vector.broadcast %cst_376 : f32 to vector<32x32xf32>
    %770 = arith.select %768, %766, %769 : vector<32x32xi1>, vector<32x32xf32>
    %c2_377 = arith.constant 2 : index
    %c0_378 = arith.constant 0 : index
    %c0_379 = arith.constant 0 : index
    %771 = vector.load %arg35[%c2_377, %c0_378, %c0_379] : memref<4x32x32xf32, #tpu.memory_space<vmem>>, vector<1x32x32xf32>
    %772 = vector.shape_cast %771 : vector<1x32x32xf32> to vector<32x32xf32>
    %773 = vector.shape_cast %770 : vector<32x32xf32> to vector<1x32x32xf32>
    tpu.vector_store %arg35[%c2_377, %c0_378, %c0_379], %773 {strides = array<i32>} : memref<4x32x32xf32, #tpu.memory_space<vmem>>, vector<1x32x32xf32>,
    %cst_380 = arith.constant 0.000000e+00 : f32
    %774 = vector.broadcast %cst_380 : f32 to vector<32x32xf32>
    %c3_381 = arith.constant 3 : index
    %775 = memref.load %arg28[%c3_381] : memref<12xf32, #tpu.memory_space<smem>>
    %776 = vector.broadcast %775 : f32 to vector<32x32xf32>
    %777 = arith.addf %774, %776 : vector<32x32xf32>
    %c1_i32_382 = arith.constant 1 : i32
    %778 = vector.broadcast %c1_i32_382 : i32 to vector<32x32xi32>
    %779 = arith.cmpi eq, %30, %778 : vector<32x32xi32>
    %c7_383 = arith.constant 7 : index
    %780 = memref.load %arg28[%c7_383] : memref<12xf32, #tpu.memory_space<smem>>
    %781 = vector.broadcast %780 : f32 to vector<32x32xf32>
    %782 = arith.select %779, %781, %777 : vector<32x32xi1>, vector<32x32xf32>
    %c2_i32_384 = arith.constant 2 : i32
    %783 = vector.broadcast %c2_i32_384 : i32 to vector<32x32xi32>
    %784 = arith.cmpi eq, %30, %783 : vector<32x32xi32>
    %c11_385 = arith.constant 11 : index
    %785 = memref.load %arg28[%c11_385] : memref<12xf32, #tpu.memory_space<smem>>
    %786 = vector.broadcast %785 : f32 to vector<32x32xf32>
    %787 = arith.select %784, %786, %782 : vector<32x32xi1>, vector<32x32xf32>
    %788 = vector.extract_strided_slice %677 {offsets = [0, 3], sizes = [32, 1], strides = [1, 1]} : vector<32x4xf32> to vector<32x1xf32>
    %789 = vector.extract_strided_slice %675 {offsets = [3, 0], sizes = [1, 32], strides = [1, 1]} : vector<4x32xf32> to vector<1x32xf32>
    %790 = vector.broadcast %788 : vector<32x1xf32> to vector<32x32xf32>
    %791 = vector.broadcast %789 : vector<1x32xf32> to vector<32x32xf32>
    %792 = arith.addf %790, %791 : vector<32x32xf32>
    %793 = arith.addf %792, %787 : vector<32x32xf32>
    %cst_386 = arith.constant 0.000000e+00 : f32
    %794 = vector.broadcast %cst_386 : f32 to vector<32x32xf32>
    %795 = arith.cmpf oge, %793, %794 : vector<32x32xf32>
    %cst_387 = arith.constant 5.000000e-02 : f32
    %796 = vector.broadcast %cst_387 : f32 to vector<32x32xf32>
    %797 = arith.mulf %796, %793 : vector<32x32xf32>
    %798 = arith.select %795, %793, %797 : vector<32x32xi1>, vector<32x32xf32>
    %cst_388 = arith.constant 0.000000e+00 : f32
    %799 = vector.broadcast %cst_388 : f32 to vector<32x32xf32>
    %800 = arith.cmpf ogt, %29, %799 : vector<32x32xf32>
    %cst_389 = arith.constant -1.000000e+30 : f32
    %801 = vector.broadcast %cst_389 : f32 to vector<32x32xf32>
    %802 = arith.select %800, %798, %801 : vector<32x32xi1>, vector<32x32xf32>
    %c3_390 = arith.constant 3 : index
    %c0_391 = arith.constant 0 : index
    %c0_392 = arith.constant 0 : index
    %803 = vector.load %arg35[%c3_390, %c0_391, %c0_392] : memref<4x32x32xf32, #tpu.memory_space<vmem>>, vector<1x32x32xf32>
    %804 = vector.shape_cast %803 : vector<1x32x32xf32> to vector<32x32xf32>
    %805 = vector.shape_cast %802 : vector<32x32xf32> to vector<1x32x32xf32>
    tpu.vector_store %arg35[%c3_390, %c0_391, %c0_392], %805 {strides = array<i32>} : memref<4x32x32xf32, #tpu.memory_space<vmem>>, vector<1x32x32xf32>,
    %c0_393 = arith.constant 0 : index
    %c0_394 = arith.constant 0 : index
    %c0_395 = arith.constant 0 : index
    %806 = vector.load %arg35[%c0_393, %c0_394, %c0_395] : memref<4x32x32xf32, #tpu.memory_space<vmem>>, vector<4x32x32xf32>
    %cst_396 = arith.constant dense<0xFF800000> : vector<4x32xf32>
    %807 = vector.multi_reduction <maximumf>, %806, %cst_396 [2] : vector<4x32x32xf32> to vector<4x32xf32>
    %808 = vector.shape_cast %807 : vector<4x32xf32> to vector<4x32x1xf32>
    %809 = vector.broadcast %808 : vector<4x32x1xf32> to vector<4x32x32xf32>
    %810 = arith.subf %806, %809 : vector<4x32x32xf32>
    %811 = math.exp %810 : vector<4x32x32xf32>
    %cst_397 = arith.constant dense<0.000000e+00> : vector<4x32xf32>
    %812 = vector.multi_reduction <add>, %811, %cst_397 [2] : vector<4x32x32xf32> to vector<4x32xf32>
    %813 = vector.shape_cast %812 : vector<4x32xf32> to vector<4x32x1xf32>
    %cst_398 = arith.constant 9.99999968E-21 : f32
    %814 = vector.broadcast %cst_398 : f32 to vector<4x32x1xf32>
    %815 = arith.maximumf %813, %814 : vector<4x32x1xf32>
    %816 = vector.broadcast %815 : vector<4x32x1xf32> to vector<4x32x32xf32>
    %817 = arith.divf %811, %816 : vector<4x32x32xf32>
    %cst_399 = arith.constant 0.949999988 : f32
    %818 = vector.broadcast %cst_399 : f32 to vector<4x32x32xf32>
    %819 = arith.mulf %817, %818 : vector<4x32x32xf32>
    %cst_400 = arith.constant 5.000000e-02 : f32
    %820 = vector.broadcast %cst_400 : f32 to vector<4x32x32xf32>
    %821 = arith.mulf %385, %820 : vector<4x32x32xf32>
    %822 = arith.addf %819, %821 : vector<4x32x32xf32>
    %c0_401 = arith.constant 0 : index
    %c0_402 = arith.constant 0 : index
    %c0_403 = arith.constant 0 : index
    %823 = vector.load %arg35[%c0_401, %c0_402, %c0_403] : memref<4x32x32xf32, #tpu.memory_space<vmem>>, vector<4x32x32xf32>
    tpu.vector_store %arg35[%c0_401, %c0_402, %c0_403], %822 {strides = array<i32>} : memref<4x32x32xf32, #tpu.memory_space<vmem>>, vector<4x32x32xf32>,
    %824 = tpu.iota {dimensions = array<i32: 1>} : vector<1x32xi32>
    %c0_i32_404 = arith.constant 0 : i32
    %825 = vector.broadcast %c0_i32_404 : i32 to vector<1x32xi32>
    %826 = arith.cmpi sge, %824, %825 : vector<1x32xi32>
    %c8_i32_405 = arith.constant 8 : i32
    %827 = vector.broadcast %c8_i32_405 : i32 to vector<1x32xi32>
    %828 = arith.cmpi slt, %824, %827 : vector<1x32xi32>
    %829 = arith.andi %826, %828 : vector<1x32xi1>
    %c0_406 = arith.constant 0 : index
    %c0_407 = arith.constant 0 : index
    %c0_408 = arith.constant 0 : index
    %830 = vector.load %arg35[%c0_406, %c0_407, %c0_408] : memref<4x32x32xf32, #tpu.memory_space<vmem>>, vector<1x32x32xf32>
    %831 = vector.shape_cast %830 : vector<1x32x32xf32> to vector<32x32xf32>
    %cst_409 = arith.constant 0.000000e+00 : f32
    %832 = vector.shape_cast %829 : vector<1x32xi1> to vector<1x32xi1>
    %833 = vector.broadcast %832 : vector<1x32xi1> to vector<32x32xi1>
    %834 = vector.broadcast %cst_409 : f32 to vector<32x32xf32>
    %835 = arith.select %833, %673, %834 : vector<32x32xi1>, vector<32x32xf32>
    %cst_410 = arith.constant dense<0.000000e+00> : vector<32x32xf32>
    %836 = tpu.matmul %831, %835, %cst_410 {dimension_numbers = #tpu.dot_dimension_numbers<[1], [0], [0], [1], [0, 0, 1, 1], [], []>} : vector<32x32xf32>, vector<32x32xf32>, vector<32x32xf32> -> vector<32x32xf32>
    %837 = arith.addf %458, %836 : vector<32x32xf32>
    %c8_i32_411 = arith.constant 8 : i32
    %838 = vector.broadcast %c8_i32_411 : i32 to vector<1x32xi32>
    %839 = arith.cmpi sge, %824, %838 : vector<1x32xi32>
    %c16_i32_412 = arith.constant 16 : i32
    %840 = vector.broadcast %c16_i32_412 : i32 to vector<1x32xi32>
    %841 = arith.cmpi slt, %824, %840 : vector<1x32xi32>
    %842 = arith.andi %839, %841 : vector<1x32xi1>
    %c1_413 = arith.constant 1 : index
    %c0_414 = arith.constant 0 : index
    %c0_415 = arith.constant 0 : index
    %843 = vector.load %arg35[%c1_413, %c0_414, %c0_415] : memref<4x32x32xf32, #tpu.memory_space<vmem>>, vector<1x32x32xf32>
    %844 = vector.shape_cast %843 : vector<1x32x32xf32> to vector<32x32xf32>
    %cst_416 = arith.constant 0.000000e+00 : f32
    %845 = vector.shape_cast %842 : vector<1x32xi1> to vector<1x32xi1>
    %846 = vector.broadcast %845 : vector<1x32xi1> to vector<32x32xi1>
    %847 = vector.broadcast %cst_416 : f32 to vector<32x32xf32>
    %848 = arith.select %846, %673, %847 : vector<32x32xi1>, vector<32x32xf32>
    %cst_417 = arith.constant dense<0.000000e+00> : vector<32x32xf32>
    %849 = tpu.matmul %844, %848, %cst_417 {dimension_numbers = #tpu.dot_dimension_numbers<[1], [0], [0], [1], [0, 0, 1, 1], [], []>} : vector<32x32xf32>, vector<32x32xf32>, vector<32x32xf32> -> vector<32x32xf32>
    %850 = arith.addf %837, %849 : vector<32x32xf32>
    %c16_i32_418 = arith.constant 16 : i32
    %851 = vector.broadcast %c16_i32_418 : i32 to vector<1x32xi32>
    %852 = arith.cmpi sge, %824, %851 : vector<1x32xi32>
    %c24_i32_419 = arith.constant 24 : i32
    %853 = vector.broadcast %c24_i32_419 : i32 to vector<1x32xi32>
    %854 = arith.cmpi slt, %824, %853 : vector<1x32xi32>
    %855 = arith.andi %852, %854 : vector<1x32xi1>
    %c2_420 = arith.constant 2 : index
    %c0_421 = arith.constant 0 : index
    %c0_422 = arith.constant 0 : index
    %856 = vector.load %arg35[%c2_420, %c0_421, %c0_422] : memref<4x32x32xf32, #tpu.memory_space<vmem>>, vector<1x32x32xf32>
    %857 = vector.shape_cast %856 : vector<1x32x32xf32> to vector<32x32xf32>
    %cst_423 = arith.constant 0.000000e+00 : f32
    %858 = vector.shape_cast %855 : vector<1x32xi1> to vector<1x32xi1>
    %859 = vector.broadcast %858 : vector<1x32xi1> to vector<32x32xi1>
    %860 = vector.broadcast %cst_423 : f32 to vector<32x32xf32>
    %861 = arith.select %859, %673, %860 : vector<32x32xi1>, vector<32x32xf32>
    %cst_424 = arith.constant dense<0.000000e+00> : vector<32x32xf32>
    %862 = tpu.matmul %857, %861, %cst_424 {dimension_numbers = #tpu.dot_dimension_numbers<[1], [0], [0], [1], [0, 0, 1, 1], [], []>} : vector<32x32xf32>, vector<32x32xf32>, vector<32x32xf32> -> vector<32x32xf32>
    %863 = arith.addf %850, %862 : vector<32x32xf32>
    %c24_i32_425 = arith.constant 24 : i32
    %864 = vector.broadcast %c24_i32_425 : i32 to vector<1x32xi32>
    %865 = arith.cmpi sge, %824, %864 : vector<1x32xi32>
    %c32_i32_426 = arith.constant 32 : i32
    %866 = vector.broadcast %c32_i32_426 : i32 to vector<1x32xi32>
    %867 = arith.cmpi slt, %824, %866 : vector<1x32xi32>
    %868 = arith.andi %865, %867 : vector<1x32xi1>
    %c3_427 = arith.constant 3 : index
    %c0_428 = arith.constant 0 : index
    %c0_429 = arith.constant 0 : index
    %869 = vector.load %arg35[%c3_427, %c0_428, %c0_429] : memref<4x32x32xf32, #tpu.memory_space<vmem>>, vector<1x32x32xf32>
    %870 = vector.shape_cast %869 : vector<1x32x32xf32> to vector<32x32xf32>
    %cst_430 = arith.constant 0.000000e+00 : f32
    %871 = vector.shape_cast %868 : vector<1x32xi1> to vector<1x32xi1>
    %872 = vector.broadcast %871 : vector<1x32xi1> to vector<32x32xi1>
    %873 = vector.broadcast %cst_430 : f32 to vector<32x32xf32>
    %874 = arith.select %872, %673, %873 : vector<32x32xi1>, vector<32x32xf32>
    %cst_431 = arith.constant dense<0.000000e+00> : vector<32x32xf32>
    %875 = tpu.matmul %870, %874, %cst_431 {dimension_numbers = #tpu.dot_dimension_numbers<[1], [0], [0], [1], [0, 0, 1, 1], [], []>} : vector<32x32xf32>, vector<32x32xf32>, vector<32x32xf32> -> vector<32x32xf32>
    %876 = arith.addf %863, %875 : vector<32x32xf32>
    %cst_432 = arith.constant 0.000000e+00 : f32
    %877 = vector.broadcast %cst_432 : f32 to vector<32x32xf32>
    %878 = arith.cmpf ogt, %876, %877 : vector<32x32xf32>
    %cst_433 = arith.constant 0.000000e+00 : f32
    %879 = vector.broadcast %cst_433 : f32 to vector<32x32xf32>
    %880 = arith.minimumf %876, %879 : vector<32x32xf32>
    %881 = math.exp %880 : vector<32x32xf32>
    %cst_434 = arith.constant 1.000000e+00 : f32
    %882 = vector.broadcast %cst_434 : f32 to vector<32x32xf32>
    %883 = arith.subf %881, %882 : vector<32x32xf32>
    %884 = arith.select %878, %876, %883 : vector<32x32xi1>, vector<32x32xf32>
    %c0_435 = arith.constant 0 : index
    %c0_436 = arith.constant 0 : index
    %885 = vector.load %arg31[%c0_435, %c0_436] : memref<64x3xf32, #tpu.memory_space<vmem>>, vector<32x3xf32>
    %cst_437 = arith.constant dense<0.000000e+00> : vector<32x3xf32>
    %886 = tpu.matmul %671, %885, %cst_437 {dimension_numbers = #tpu.dot_dimension_numbers<[1], [0], [0], [1], [0, 0, 1, 1], [], []>} : vector<32x32xf32>, vector<32x3xf32>, vector<32x3xf32> -> vector<32x3xf32>
    %c32_438 = arith.constant 32 : index
    %c0_439 = arith.constant 0 : index
    %887 = vector.load %arg31[%c32_438, %c0_439] : memref<64x3xf32, #tpu.memory_space<vmem>>, vector<32x3xf32>
    %cst_440 = arith.constant dense<0.000000e+00> : vector<32x3xf32>
    %888 = tpu.matmul %884, %887, %cst_440 {dimension_numbers = #tpu.dot_dimension_numbers<[1], [0], [0], [1], [0, 0, 1, 1], [], []>} : vector<32x32xf32>, vector<32x3xf32>, vector<32x3xf32> -> vector<32x3xf32>
    %889 = arith.addf %886, %888 : vector<32x3xf32>
    %c0_441 = arith.constant 0 : index
    %c0_442 = arith.constant 0 : index
    %890 = vector.load %arg32[%c0_441, %c0_442] : memref<1x3xf32, #tpu.memory_space<vmem>>, vector<1x3xf32>
    %891 = vector.broadcast %890 : vector<1x3xf32> to vector<32x3xf32>
    %892 = arith.addf %889, %891 : vector<32x3xf32>
    %c0_443 = arith.constant 0 : index
    %c0_444 = arith.constant 0 : index
    %893 = vector.load %arg33[%c0_443, %c0_444] : memref<32x3xf32, #tpu.memory_space<vmem>>, vector<32x3xf32>
    tpu.vector_store %arg33[%c0_443, %c0_444], %892 {strides = array<i32>} : memref<32x3xf32, #tpu.memory_space<vmem>>, vector<32x3xf32>,
    return
  }
  func.func @transform_0(%arg0: i32) -> (i32, i32) {
    %c0_i32 = arith.constant 0 : i32
    %c0_i32_0 = arith.constant 0 : i32
    %c0_i32_1 = arith.constant 0 : i32
    return %c0_i32, %c0_i32_0 : i32, i32
  }
  func.func @transform_1(%arg0: i32) -> (i32, i32) {
    %c0_i32 = arith.constant 0 : i32
    %c0_i32_0 = arith.constant 0 : i32
    %c0_i32_1 = arith.constant 0 : i32
    return %c0_i32, %c0_i32_0 : i32, i32
  }
  func.func @transform_2(%arg0: i32) -> (i32, i32) {
    %c0_i32 = arith.constant 0 : i32
    %c0_i32_0 = arith.constant 0 : i32
    %c0_i32_1 = arith.constant 0 : i32
    return %c0_i32, %c0_i32_0 : i32, i32
  }
  func.func @transform_3(%arg0: i32) -> (i32, i32) {
    %c0_i32 = arith.constant 0 : i32
    %c0_i32_0 = arith.constant 0 : i32
    %c0_i32_1 = arith.constant 0 : i32
    return %c0_i32, %c0_i32_0 : i32, i32
  }
  func.func @transform_4(%arg0: i32) -> (i32, i32) {
    %c0_i32 = arith.constant 0 : i32
    %c0_i32_0 = arith.constant 0 : i32
    %c0_i32_1 = arith.constant 0 : i32
    return %c0_i32, %c0_i32_0 : i32, i32
  }
  func.func @transform_5(%arg0: i32) -> (i32, i32) {
    %c0_i32 = arith.constant 0 : i32
    %c0_i32_0 = arith.constant 0 : i32
    %c0_i32_1 = arith.constant 0 : i32
    return %c0_i32, %c0_i32_0 : i32, i32
  }
  func.func @transform_6(%arg0: i32) -> (i32, i32) {
    %c0_i32 = arith.constant 0 : i32
    %c0_i32_0 = arith.constant 0 : i32
    %c0_i32_1 = arith.constant 0 : i32
    return %c0_i32, %c0_i32_0 : i32, i32
  }
  func.func @transform_7(%arg0: i32) -> (i32, i32) {
    %c0_i32 = arith.constant 0 : i32
    %c0_i32_0 = arith.constant 0 : i32
    %c0_i32_1 = arith.constant 0 : i32
    return %c0_i32, %c0_i32_0 : i32, i32
  }
  func.func @transform_8(%arg0: i32) -> (i32, i32) {
    %c0_i32 = arith.constant 0 : i32
    %c0_i32_0 = arith.constant 0 : i32
    %c0_i32_1 = arith.constant 0 : i32
    return %c0_i32, %c0_i32_0 : i32, i32
  }
  func.func @transform_9(%arg0: i32) -> (i32, i32) {
    %c0_i32 = arith.constant 0 : i32
    %c0_i32_0 = arith.constant 0 : i32
    %c0_i32_1 = arith.constant 0 : i32
    return %c0_i32, %c0_i32_0 : i32, i32
  }
  func.func @transform_10(%arg0: i32) -> (i32, i32) {
    %c0_i32 = arith.constant 0 : i32
    %c0_i32_0 = arith.constant 0 : i32
    %c0_i32_1 = arith.constant 0 : i32
    return %c0_i32, %c0_i32_0 : i32, i32
  }
  func.func @transform_11(%arg0: i32) -> (i32, i32) {
    %c0_i32 = arith.constant 0 : i32
    %c0_i32_0 = arith.constant 0 : i32
    %c0_i32_1 = arith.constant 0 : i32
    return %c0_i32, %c0_i32_0 : i32, i32
  }
  func.func @transform_12(%arg0: i32) -> (i32, i32) {
    %c0_i32 = arith.constant 0 : i32
    %c0_i32_0 = arith.constant 0 : i32
    %c0_i32_1 = arith.constant 0 : i32
    return %c0_i32, %c0_i32_0 : i32, i32
  }
  func.func @transform_13(%arg0: i32) -> (i32, i32) {
    %c0_i32 = arith.constant 0 : i32
    %c0_i32_0 = arith.constant 0 : i32
    %c0_i32_1 = arith.constant 0 : i32
    return %c0_i32, %c0_i32_0 : i32, i32
  }
  func.func @transform_14(%arg0: i32) -> (i32, i32) {
    %c0_i32 = arith.constant 0 : i32
    %c0_i32_0 = arith.constant 0 : i32
    %c0_i32_1 = arith.constant 0 : i32
    return %c0_i32, %c0_i32_0 : i32, i32
  }
  func.func @transform_15(%arg0: i32) -> i32 {
    %c0_i32 = arith.constant 0 : i32
    %c0_i32_0 = arith.constant 0 : i32
    return %c0_i32 : i32
  }
  func.func @transform_16(%arg0: i32) -> (i32, i32) {
    %c0_i32 = arith.constant 0 : i32
    %c0_i32_0 = arith.constant 0 : i32
    %c0_i32_1 = arith.constant 0 : i32
    return %c0_i32, %c0_i32_0 : i32, i32
  }
  func.func @transform_17(%arg0: i32) -> (i32, i32) {
    %c0_i32 = arith.constant 0 : i32
    %c0_i32_0 = arith.constant 0 : i32
    %c0_i32_1 = arith.constant 0 : i32
    return %c0_i32, %c0_i32_0 : i32, i32
  }
  func.func @transform_18(%arg0: i32) -> (i32, i32) {
    %c0_i32 = arith.constant 0 : i32
    %c0_i32_0 = arith.constant 0 : i32
    %c0_i32_1 = arith.constant 0 : i32
    return %c0_i32, %c0_i32_0 : i32, i32
  }
  func.func @transform_19(%arg0: i32) -> i32 {
    %c0_i32 = arith.constant 0 : i32
    %c0_i32_0 = arith.constant 0 : i32
    return %c0_i32 : i32
  }
  func.func @transform_20(%arg0: i32) -> (i32, i32) {
    %c0_i32 = arith.constant 0 : i32
    %c0_i32_0 = arith.constant 0 : i32
    %c0_i32_1 = arith.constant 0 : i32
    return %c0_i32, %c0_i32_0 : i32, i32
  }
  func.func @transform_21(%arg0: i32) -> (i32, i32) {
    %c0_i32 = arith.constant 0 : i32
    %c0_i32_0 = arith.constant 0 : i32
    %c0_i32_1 = arith.constant 0 : i32
    return %c0_i32, %c0_i32_0 : i32, i32
  }
  func.func @transform_22(%arg0: i32) -> (i32, i32) {
    %c0_i32 = arith.constant 0 : i32
    %c0_i32_0 = arith.constant 0 : i32
    %c0_i32_1 = arith.constant 0 : i32
    return %c0_i32, %c0_i32_0 : i32, i32
  }
  func.func @transform_23(%arg0: i32) -> i32 {
    %c0_i32 = arith.constant 0 : i32
    %c0_i32_0 = arith.constant 0 : i32
    return %c0_i32 : i32
  }
  func.func @transform_24(%arg0: i32) -> (i32, i32) {
    %c0_i32 = arith.constant 0 : i32
    %c0_i32_0 = arith.constant 0 : i32
    %c0_i32_1 = arith.constant 0 : i32
    return %c0_i32, %c0_i32_0 : i32, i32
  }
  func.func @transform_25(%arg0: i32) -> (i32, i32) {
    %c0_i32 = arith.constant 0 : i32
    %c0_i32_0 = arith.constant 0 : i32
    %c0_i32_1 = arith.constant 0 : i32
    return %c0_i32, %c0_i32_0 : i32, i32
  }
  func.func @transform_26(%arg0: i32) -> (i32, i32) {
    %c0_i32 = arith.constant 0 : i32
    %c0_i32_0 = arith.constant 0 : i32
    %c0_i32_1 = arith.constant 0 : i32
    return %c0_i32, %c0_i32_0 : i32, i32
  }
  func.func @transform_27(%arg0: i32) -> i32 {
    %c0_i32 = arith.constant 0 : i32
    %c0_i32_0 = arith.constant 0 : i32
    return %c0_i32 : i32
  }
  func.func @transform_28(%arg0: i32) -> (i32, i32) {
    %c0_i32 = arith.constant 0 : i32
    %c0_i32_0 = arith.constant 0 : i32
    %c0_i32_1 = arith.constant 0 : i32
    return %c0_i32, %c0_i32_0 : i32, i32
  }
  func.func @transform_29(%arg0: i32) -> (i32, i32) {
    %c0_i32 = arith.constant 0 : i32
    %c0_i32_0 = arith.constant 0 : i32
    %c0_i32_1 = arith.constant 0 : i32
    return %c0_i32, %c0_i32_0 : i32, i32
  }
  func.func @transform_30(%arg0: i32) -> (i32, i32) {
    %c0_i32 = arith.constant 0 : i32
    %c0_i32_0 = arith.constant 0 : i32
    %c0_i32_1 = arith.constant 0 : i32
    return %c0_i32, %c0_i32_0 : i32, i32
  }
  func.func @transform_31(%arg0: i32) -> (i32, i32) {
    %c0_i32 = arith.constant 0 : i32
    %c0_i32_0 = arith.constant 0 : i32
    %c0_i32_1 = arith.constant 0 : i32
    return %c0_i32, %c0_i32_0 : i32, i32
  }
  func.func @transform_32(%arg0: i32) -> (i32, i32) {
    %c0_i32 = arith.constant 0 : i32
    %c0_i32_0 = arith.constant 0 : i32
    %c0_i32_1 = arith.constant 0 : i32
    return %c0_i32, %c0_i32_0 : i32, i32
  }
}

</mosaic_0001>

<llo_original>
// kernel: v1_forward.1
$region0: #{v1_forward.1}
  #allocation0 [shape = 'u32[]', space=smem, size = 0x4, offset = 0x4, fixed_abs, tag = 'smem constant byte address 0x4 - core index']
  #allocation1 [shape = 'u32[144,128]{1,0:T(1,128)}', space=vmem, size = 0x12000, scoped, tag = 'internal scratch']
  #allocation2 [shape = 'f32[32,32]{1,0:T(8,128)}', space=vmem, size = 0x4000, scoped, tag = 'scratch operand']
  #allocation3 [shape = 'f32[4,32,32]{2,1,0:T(8,128)}', space=vmem, size = 0x10000, scoped, tag = 'scratch operand']
  %s0 = inlined_call_operand.smem [shape: u32[33], index: -1, kind: input, shape index: {}]
  %s1 = sld [smem:[%s0]]
  %s2 = scalar_lea.smem %s0, 1
  %s3 = sld [smem:[%s2]]
  %s4 = scalar_lea.smem %s0, 2
  %s5 = sld [smem:[%s4]]
  %s6 = scalar_lea.smem %s0, 3
  %s7 = sld [smem:[%s6]]
  %s8 = scalar_lea.smem %s0, 4
  %s9 = sld [smem:[%s8]]
  %s10 = scalar_lea.smem %s0, 5
  %s11 = sld [smem:[%s10]]
  %s12 = scalar_lea.smem %s0, 6
  %s13 = sld [smem:[%s12]]
  %s14 = scalar_lea.smem %s0, 7
  %s15 = sld [smem:[%s14]]
  %s16 = scalar_lea.smem %s0, 8
  %s17 = sld [smem:[%s16]]
  %s18 = scalar_lea.smem %s0, 9
  %s19 = sld [smem:[%s18]]
  %s20 = scalar_lea.smem %s0, 10
  %s21 = sld [smem:[%s20]]
  %s22 = scalar_lea.smem %s0, 11
  %s23 = sld [smem:[%s22]]
  %s24 = scalar_lea.smem %s0, 12
  %s25 = sld [smem:[%s24]]
  %s26 = scalar_lea.smem %s0, 13
  %s27 = sld [smem:[%s26]]
  %s28 = scalar_lea.smem %s0, 14
  %s29 = sld [smem:[%s28]]
  %s30 = scalar_lea.smem %s0, 15
  %s31 = sld [smem:[%s30]]
  %s32 = scalar_lea.smem %s0, 16
  %s33 = sld [smem:[%s32]]
  %s34 = scalar_lea.smem %s0, 17
  %s35 = sld [smem:[%s34]]
  %s36 = scalar_lea.smem %s0, 18
  %s37 = sld [smem:[%s36]]
  %s38 = scalar_lea.smem %s0, 19
  %s39 = sld [smem:[%s38]]
  %s40 = scalar_lea.smem %s0, 20
  %s41 = sld [smem:[%s40]]
  %s42 = scalar_lea.smem %s0, 21
  %s43 = sld [smem:[%s42]]
  %s44 = scalar_lea.smem %s0, 22
  %s45 = sld [smem:[%s44]]
  %s46 = scalar_lea.smem %s0, 23
  %s47 = sld [smem:[%s46]]
  %s48 = scalar_lea.smem %s0, 24
  %s49 = sld [smem:[%s48]]
  %s50 = scalar_lea.smem %s0, 25
  %s51 = sld [smem:[%s50]]
  %s52 = scalar_lea.smem %s0, 26
  %s53 = sld [smem:[%s52]]
  %s54 = scalar_lea.smem %s0, 27
  %s55 = sld [smem:[%s54]]
  %s56 = scalar_lea.smem %s0, 28
  %s57 = sld [smem:[%s56]]
  %s58 = scalar_lea.smem %s0, 29
  %s59 = sld [smem:[%s58]]
  %s60 = scalar_lea.smem %s0, 30
  %s61 = sld [smem:[%s60]]
  %s62 = scalar_lea.smem %s0, 31
  %s63 = sld [smem:[%s62]]
  %s64 = scalar_lea.smem %s0, 32
  %s65 = sld [smem:[%s64]]
  %s66 = sld [smem:[#allocation0]]
  $region154: #{v1_forward.1} parent=0
    _
  %s68 = ssub.s32 1, %s66
  %s69 = scalar_select 0, %s68, %s66
  $region1: #{v1_forward.1} parent=0
    #allocation4 [shape = 'u8[512]{0}', space=smem, size = 0x200, scoped, tag = 'input window, operand 15, single buffered']
    #allocation5 [shape = 's32[1]{0}', space=sflag, size = 0x4, scoped, tag = 'scoped memory for v1_forward.1']
    #allocation6 [shape = 'u8[512]{0}', space=smem, size = 0x200, scoped, tag = 'input window, operand 19, single buffered']
    #allocation7 [shape = 's32[1]{0}', space=sflag, size = 0x4, scoped, tag = 'scoped memory for v1_forward.1']
    #allocation8 [shape = 'u8[512]{0}', space=smem, size = 0x200, scoped, tag = 'input window, operand 23, single buffered']
    #allocation9 [shape = 'u8[512]{0}', space=smem, size = 0x200, scoped, tag = 'input window, operand 27, single buffered']
    #allocation10 [shape = 's32[1]{0}', space=sflag, size = 0x4, scoped, tag = 'scoped memory for v1_forward.1']
    %70 = vsyncpa [#allocation5], 0
    %71 = vsyncpa [#allocation7], 0
    %72 = vsyncpa [#allocation10], 0
    // Predicated region
    $region2: #{v1_forward.1} parent=1 // pred_check
      _
    $region3: #{v1_forward.1} parent=1 // pred_check_branch
      %74 = sbr.rel (0) target = $region5
    $region4: #{v1_forward.1} parent=1 // pred_region
      _
    $region5: #{v1_forward.1} parent=1 // pred_fallthru
      _
    // Predicated region
    $region6: #{v1_forward.1} parent=1 // pred_check
      _
    $region7: #{v1_forward.1} parent=1 // pred_check_branch
      %76 = sbr.rel (0) target = $region9
    $region8: #{v1_forward.1} parent=1 // pred_region
      _
    $region9: #{v1_forward.1} parent=1 // pred_fallthru
      _
    // Predicated region
    $region10: #{v1_forward.1} parent=1 // pred_check
      _
    $region11: #{v1_forward.1} parent=1 // pred_check_branch
      %78 = sbr.rel (0) target = $region13
    $region12: #{v1_forward.1} parent=1 // pred_region
      _
    $region13: #{v1_forward.1} parent=1 // pred_fallthru
      _
    // Predicated region
    $region14: #{v1_forward.1} parent=1 // pred_check
      _
    $region15: #{v1_forward.1} parent=1 // pred_check_branch
      %80 = sbr.rel (0) target = $region17
    $region16: #{v1_forward.1} parent=1 // pred_region
      _
    $region17: #{v1_forward.1} parent=1 // pred_fallthru
      _
    // Predicated region
    $region18: #{v1_forward.1} parent=1 // pred_check
      _
    $region19: #{v1_forward.1} parent=1 // pred_check_branch
      %82 = sbr.rel (0) target = $region21
    $region20: #{v1_forward.1} parent=1 // pred_region
      _
    $region21: #{v1_forward.1} parent=1 // pred_fallthru
      _
    // Predicated region
    $region22: #{v1_forward.1} parent=1 // pred_check
      _
    $region23: #{v1_forward.1} parent=1 // pred_check_branch
      %84 = sbr.rel (0) target = $region25
    $region24: #{v1_forward.1} parent=1 // pred_region
      _
    $region25: #{v1_forward.1} parent=1 // pred_fallthru
      _
    // Predicated region
    $region26: #{v1_forward.1} parent=1 // pred_check
      _
    $region27: #{v1_forward.1} parent=1 // pred_check_branch
      %86 = sbr.rel (0) target = $region29
    $region28: #{v1_forward.1} parent=1 // pred_region
      _
    $region29: #{v1_forward.1} parent=1 // pred_fallthru
      _
    // Predicated region
    $region30: #{v1_forward.1} parent=1 // pred_check
      _
    $region31: #{v1_forward.1} parent=1 // pred_check_branch
      %88 = sbr.rel (0) target = $region33
    $region32: #{v1_forward.1} parent=1 // pred_region
      _
    $region33: #{v1_forward.1} parent=1 // pred_fallthru
      _
    // Predicated region
    $region34: #{v1_forward.1} parent=1 // pred_check
      _
    $region35: #{v1_forward.1} parent=1 // pred_check_branch
      %90 = sbr.rel (0) target = $region37
    $region36: #{v1_forward.1} parent=1 // pred_region
      _
    $region37: #{v1_forward.1} parent=1 // pred_fallthru
      _
    // Predicated region
    $region38: #{v1_forward.1} parent=1 // pred_check
      _
    $region39: #{v1_forward.1} parent=1 // pred_check_branch
      %92 = sbr.rel (0) target = $region41
    $region40: #{v1_forward.1} parent=1 // pred_region
      _
    $region41: #{v1_forward.1} parent=1 // pred_fallthru
      _
    // Predicated region
    $region42: #{v1_forward.1} parent=1 // pred_check
      _
    $region43: #{v1_forward.1} parent=1 // pred_check_branch
      %94 = sbr.rel (0) target = $region45
    $region44: #{v1_forward.1} parent=1 // pred_region
      _
    $region45: #{v1_forward.1} parent=1 // pred_fallthru
      _
    // Predicated region
    $region46: #{v1_forward.1} parent=1 // pred_check
      _
    $region47: #{v1_forward.1} parent=1 // pred_check_branch
      %96 = sbr.rel (0) target = $region49
    $region48: #{v1_forward.1} parent=1 // pred_region
      _
    $region49: #{v1_forward.1} parent=1 // pred_fallthru
      _
    // Predicated region
    $region50: #{v1_forward.1} parent=1 // pred_check
      _
    $region51: #{v1_forward.1} parent=1 // pred_check_branch
      %98 = sbr.rel (0) target = $region53
    $region52: #{v1_forward.1} parent=1 // pred_region
      _
    $region53: #{v1_forward.1} parent=1 // pred_fallthru
      _
    // Predicated region
    $region54: #{v1_forward.1} parent=1 // pred_check
      _
    $region55: #{v1_forward.1} parent=1 // pred_check_branch
      %100 = sbr.rel (0) target = $region57
    $region56: #{v1_forward.1} parent=1 // pred_region
      _
    $region57: #{v1_forward.1} parent=1 // pred_fallthru
      _
    // Predicated region
    $region58: #{v1_forward.1} parent=1 // pred_check
      _
    $region59: #{v1_forward.1} parent=1 // pred_check_branch
      %102 = sbr.rel (0) target = $region61
    $region60: #{v1_forward.1} parent=1 // pred_region
      _
    $region61: #{v1_forward.1} parent=1 // pred_fallthru
      _
    // Predicated region
    $region62: #{v1_forward.1} parent=1 // pred_check
      _
    $region63: #{v1_forward.1} parent=1 // pred_check_branch
      %104 = sbr.rel (0) target = $region65
    $region64: #{v1_forward.1} parent=1 // pred_region
      %s106 = ssub.s32 16, 16
      %107 = vsyncadd [#allocation5], %s106
      %s109 = sshll.u32 %s31, 4
      %s110 = int_to_ptr.vmem [resolvable:$true] %s109
      %112 = dma.vmem_to_smem %s110, 16, [#allocation4], [#allocation5]
    $region65: #{v1_forward.1} parent=1 // pred_fallthru
      _
    // Predicated region
    $region66: #{v1_forward.1} parent=1 // pred_check
      _
    $region67: #{v1_forward.1} parent=1 // pred_check_branch
      %114 = sbr.rel (0) target = $region69
    $region68: #{v1_forward.1} parent=1 // pred_region
      _
    $region69: #{v1_forward.1} parent=1 // pred_fallthru
      _
    // Predicated region
    $region70: #{v1_forward.1} parent=1 // pred_check
      _
    $region71: #{v1_forward.1} parent=1 // pred_check_branch
      %116 = sbr.rel (0) target = $region73
    $region72: #{v1_forward.1} parent=1 // pred_region
      _
    $region73: #{v1_forward.1} parent=1 // pred_fallthru
      _
    // Predicated region
    $region74: #{v1_forward.1} parent=1 // pred_check
      _
    $region75: #{v1_forward.1} parent=1 // pred_check_branch
      %118 = sbr.rel (0) target = $region77
    $region76: #{v1_forward.1} parent=1 // pred_region
      _
    $region77: #{v1_forward.1} parent=1 // pred_fallthru
      _
    // Predicated region
    $region78: #{v1_forward.1} parent=1 // pred_check
      _
    $region79: #{v1_forward.1} parent=1 // pred_check_branch
      %120 = sbr.rel (0) target = $region81
    $region80: #{v1_forward.1} parent=1 // pred_region
      %s122 = ssub.s32 16, 16
      %123 = vsyncadd [#allocation7], %s122
      %s125 = sshll.u32 %s39, 4
      %s126 = int_to_ptr.vmem [resolvable:$true] %s125
      %128 = dma.vmem_to_smem %s126, 16, [#allocation6], [#allocation7]
    $region81: #{v1_forward.1} parent=1 // pred_fallthru
      _
    // Predicated region
    $region82: #{v1_forward.1} parent=1 // pred_check
      _
    $region83: #{v1_forward.1} parent=1 // pred_check_branch
      %130 = sbr.rel (0) target = $region85
    $region84: #{v1_forward.1} parent=1 // pred_region
      _
    $region85: #{v1_forward.1} parent=1 // pred_fallthru
      _
    // Predicated region
    $region86: #{v1_forward.1} parent=1 // pred_check
      _
    $region87: #{v1_forward.1} parent=1 // pred_check_branch
      %132 = sbr.rel (0) target = $region89
    $region88: #{v1_forward.1} parent=1 // pred_region
      _
    $region89: #{v1_forward.1} parent=1 // pred_fallthru
      _
    // Predicated region
    $region90: #{v1_forward.1} parent=1 // pred_check
      _
    $region91: #{v1_forward.1} parent=1 // pred_check_branch
      %134 = sbr.rel (0) target = $region93
    $region92: #{v1_forward.1} parent=1 // pred_region
      _
    $region93: #{v1_forward.1} parent=1 // pred_fallthru
      _
    // Predicated region
    $region94: #{v1_forward.1} parent=1 // pred_check
      _
    $region95: #{v1_forward.1} parent=1 // pred_check_branch
      %136 = sbr.rel (0) target = $region97
    $region96: #{v1_forward.1} parent=1 // pred_region
      %s138 = ssub.s32 16, 16
      %139 = vsyncadd [#allocation7], %s138
      %s141 = sshll.u32 %s47, 4
      %s142 = int_to_ptr.vmem [resolvable:$true] %s141
      %144 = dma.vmem_to_smem %s142, 16, [#allocation8], [#allocation7]
    $region97: #{v1_forward.1} parent=1 // pred_fallthru
      _
    // Predicated region
    $region98: #{v1_forward.1} parent=1 // pred_check
      _
    $region99: #{v1_forward.1} parent=1 // pred_check_branch
      %146 = sbr.rel (0) target = $region101
    $region100: #{v1_forward.1} parent=1 // pred_region
      _
    $region101: #{v1_forward.1} parent=1 // pred_fallthru
      _
    // Predicated region
    $region102: #{v1_forward.1} parent=1 // pred_check
      _
    $region103: #{v1_forward.1} parent=1 // pred_check_branch
      %148 = sbr.rel (0) target = $region105
    $region104: #{v1_forward.1} parent=1 // pred_region
      _
    $region105: #{v1_forward.1} parent=1 // pred_fallthru
      _
    // Predicated region
    $region106: #{v1_forward.1} parent=1 // pred_check
      _
    $region107: #{v1_forward.1} parent=1 // pred_check_branch
      %150 = sbr.rel (0) target = $region109
    $region108: #{v1_forward.1} parent=1 // pred_region
      _
    $region109: #{v1_forward.1} parent=1 // pred_fallthru
      _
    // Predicated region
    $region110: #{v1_forward.1} parent=1 // pred_check
      _
    $region111: #{v1_forward.1} parent=1 // pred_check_branch
      %152 = sbr.rel (0) target = $region113
    $region112: #{v1_forward.1} parent=1 // pred_region
      %s154 = ssub.s32 16, 16
      %155 = vsyncadd [#allocation10], %s154
      %s157 = sshll.u32 %s55, 4
      %s158 = int_to_ptr.vmem [resolvable:$true] %s157
      %160 = dma.vmem_to_smem %s158, 16, [#allocation9], [#allocation10]
    $region113: #{v1_forward.1} parent=1 // pred_fallthru
      _
    // Predicated region
    $region114: #{v1_forward.1} parent=1 // pred_check
      _
    $region115: #{v1_forward.1} parent=1 // pred_check_branch
      %162 = sbr.rel (0) target = $region117
    $region116: #{v1_forward.1} parent=1 // pred_region
      _
    $region117: #{v1_forward.1} parent=1 // pred_fallthru
      _
    // Predicated region
    $region118: #{v1_forward.1} parent=1 // pred_check
      _
    $region119: #{v1_forward.1} parent=1 // pred_check_branch
      %164 = sbr.rel (0) target = $region121
    $region120: #{v1_forward.1} parent=1 // pred_region
      _
    $region121: #{v1_forward.1} parent=1 // pred_fallthru
      _
    // Predicated region
    $region122: #{v1_forward.1} parent=1 // pred_check
      _
    $region123: #{v1_forward.1} parent=1 // pred_check_branch
      %166 = sbr.rel (0) target = $region125
    $region124: #{v1_forward.1} parent=1 // pred_region
      _
    $region125: #{v1_forward.1} parent=1 // pred_fallthru
      _
    // Predicated region
    $region126: #{v1_forward.1} parent=1 // pred_check
      _
    $region127: #{v1_forward.1} parent=1 // pred_check_branch
      %168 = sbr.rel (0) target = $region129
    $region128: #{v1_forward.1} parent=1 // pred_region
      _
    $region129: #{v1_forward.1} parent=1 // pred_fallthru
      _
    // Predicated region
    $region130: #{v1_forward.1} parent=1 // pred_check
      _
    $region131: #{v1_forward.1} parent=1 // pred_check_branch
      %170 = sbr.rel (0) target = $region133
    $region132: #{v1_forward.1} parent=1 // pred_region
      %171 = dma.done [#allocation5], 16
    $region133: #{v1_forward.1} parent=1 // pred_fallthru
      _
    // Predicated region
    $region134: #{v1_forward.1} parent=1 // pred_check
      _
    $region135: #{v1_forward.1} parent=1 // pred_check_branch
      %173 = sbr.rel (0) target = $region137
    $region136: #{v1_forward.1} parent=1 // pred_region
      %174 = dma.done [#allocation7], 16
    $region137: #{v1_forward.1} parent=1 // pred_fallthru
      _
    // Predicated region
    $region138: #{v1_forward.1} parent=1 // pred_check
      _
    $region139: #{v1_forward.1} parent=1 // pred_check_branch
      %176 = sbr.rel (0) target = $region141
    $region140: #{v1_forward.1} parent=1 // pred_region
      %177 = dma.done [#allocation7], 16
    $region141: #{v1_forward.1} parent=1 // pred_fallthru
      _
    // Predicated region
    $region142: #{v1_forward.1} parent=1 // pred_check
      _
    $region143: #{v1_forward.1} parent=1 // pred_check_branch
      %179 = sbr.rel (0) target = $region145
    $region144: #{v1_forward.1} parent=1 // pred_region
      %180 = dma.done [#allocation10], 16
    $region145: #{v1_forward.1} parent=1 // pred_fallthru
      _
    %181 = sfence
    %v182 = vld [vmem:[%s1] sm:$0xff]
    %v183 = vld [vmem:[%s7] sm:$0xff]
    %v184 = vld [vmem:[%s9] sm:$0x1]
    %v186 = vlaneseq
    %v187 = vshrl.u32 %v186, 7
    %v188 = vsub.s32 0, %v187
    %v189 = vrot.slane %v184, %v188
    %vm191 = vcmask 64512
    %v193 = vsel %vm191, %v182, 0
    %195 = vmatprep.subr.mxu0 0.0
    %196 = vmatpush1.msra.mxu0 %v183
    %197 = vmatprep.subr.mxu0 0.0
    %198 = vmatpush1.msra.mxu0 0.0
    %199 = vmatprep.subr.mxu0 0.0
    %200 = vmatpush1.msra.mxu0 0.0
    %201 = vmatprep.subr.mxu0 0.0
    %202 = vmatpush1.msra.mxu0 0.0
    %203 = vmatprep.subr.mxu0 0.0
    %204 = vmatpush1.msra.mxu0 0.0
    %205 = vmatprep.subr.mxu0 0.0
    %206 = vmatpush1.msra.mxu0 0.0
    %207 = vmatprep.subr.mxu0 0.0
    %208 = vmatpush1.msra.mxu0 0.0
    %209 = vmatprep.subr.mxu0 0.0
    %210 = vmatpush1.msra.mxu0 0.0
    %211 = vmatprep.subr.mxu0 0.0
    %212 = vmatpush1.msra.mxu0 0.0
    %213 = vmatprep.subr.mxu0 0.0
    %214 = vmatpush1.msra.mxu0 0.0
    %215 = vmatprep.subr.mxu0 0.0
    %216 = vmatpush1.msra.mxu0 0.0
    %217 = vmatprep.subr.mxu0 0.0
    %218 = vmatpush1.msra.mxu0 0.0
    %219 = vmatprep.subr.mxu0 0.0
    %220 = vmatpush1.msra.mxu0 0.0
    %221 = vmatprep.subr.mxu0 0.0
    %222 = vmatpush1.msra.mxu0 0.0
    %223 = vmatprep.subr.mxu0 0.0
    %224 = vmatpush1.msra.mxu0 0.0
    %225 = vmatprep.subr.mxu0 0.0
    %226 = vmatpush1.msra.mxu0 0.0
    %227 = vmatprep.subr.mxu0 0.0
    %228 = vmatpush1.msra.mxu0 0.0
    %229 = vmatprep.subr.mxu0 0.0
    %230 = vmatpush1.msra.mxu0 0.0
    %231 = vmatprep.subr.mxu0 0.0
    %232 = vmatpush1.msra.mxu0 0.0
    %233 = vmatprep.subr.mxu0 0.0
    %234 = vmatpush1.msra.mxu0 0.0
    %235 = vmatprep.subr.mxu0 0.0
    %236 = vmatpush1.msra.mxu0 0.0
    %237 = vmatprep.subr.mxu0 0.0
    %238 = vmatpush1.msra.mxu0 0.0
    %239 = vmatprep.subr.mxu0 0.0
    %240 = vmatpush1.msra.mxu0 0.0
    %241 = vmatprep.subr.mxu0 0.0
    %242 = vmatpush1.msra.mxu0 0.0
    %243 = vmatprep.subr.mxu0 0.0
    %244 = vmatpush1.msra.mxu0 0.0
    %245 = vmatprep.subr.mxu0 0.0
    %246 = vmatpush1.msra.mxu0 0.0
    %247 = vmatprep.subr.mxu0 0.0
    %248 = vmatpush1.msra.mxu0 0.0
    %249 = vmatprep.subr.mxu0 0.0
    %250 = vmatpush1.msra.mxu0 0.0
    %251 = vmatprep.subr.mxu0 0.0
    %252 = vmatpush1.msra.mxu0 0.0
    %253 = vmatprep.subr.mxu0 0.0
    %254 = vmatpush1.msra.mxu0 0.0
    %255 = vmatprep.subr.mxu0 0.0
    %256 = vmatpush1.msra.mxu0 0.0
    %257 = vmatprep.subr.mxu0 0.0
    %258 = vmatpush1.msra.mxu0 0.0
    %259 = vmatprep.mubr.f32.mxu0 0.0
    %260 = vmatmul.mubr.f32.gmra.mrb[0].mxu0 %v193
    %v261 = vpop.f32.mrb[0].mxu0
    %v262 = vadd.f32 %v189, %v261
    %v263 = vpop.f32.mrb[0].mxu0
    %264 = vdwg.mxu0
    %v265 = vmax.f32 %v262, 0.0
    %vm266 = vcmask 261120
    %267 = vst.msk [vmem:[#allocation2] sm:$0xff] %vm266, %v265
    %v268 = vld [vmem:[%s3] sm:$0xff]
    %v269 = vld [vmem:[%s11] sm:$0xff]
    %v270 = vld [vmem:[%s11 + $0x8] sm:$0xf]
    %v271 = vld [vmem:[%s13] sm:$0x1]
    %v273 = vlaneseq
    %v274 = vshrl.u32 %v273, 7
    %v275 = vsub.s32 0, %v274
    %v276 = vrot.slane %v271, %v275
    %vm278 = vcmask 97280
    %v280 = vsel %vm278, %v268, 0
    %vm282 = vcmask 1043456
    %v284 = vsel %vm282, %v270, 0
    %286 = vmatprep.subr.mxu0 0.0
    %287 = vmatpush1.msra.mxu0 %v269
    %288 = vmatprep.subr.mxu0 0.0
    %289 = vmatpush1.msra.mxu0 %v284
    %290 = vmatprep.subr.mxu0 0.0
    %291 = vmatpush1.msra.mxu0 0.0
    %292 = vmatprep.subr.mxu0 0.0
    %293 = vmatpush1.msra.mxu0 0.0
    %294 = vmatprep.subr.mxu0 0.0
    %295 = vmatpush1.msra.mxu0 0.0
    %296 = vmatprep.subr.mxu0 0.0
    %297 = vmatpush1.msra.mxu0 0.0
    %298 = vmatprep.subr.mxu0 0.0
    %299 = vmatpush1.msra.mxu0 0.0
    %300 = vmatprep.subr.mxu0 0.0
    %301 = vmatpush1.msra.mxu0 0.0
    %302 = vmatprep.subr.mxu0 0.0
    %303 = vmatpush1.msra.mxu0 0.0
    %304 = vmatprep.subr.mxu0 0.0
    %305 = vmatpush1.msra.mxu0 0.0
    %306 = vmatprep.subr.mxu0 0.0
    %307 = vmatpush1.msra.mxu0 0.0
    %308 = vmatprep.subr.mxu0 0.0
    %309 = vmatpush1.msra.mxu0 0.0
    %310 = vmatprep.subr.mxu0 0.0
    %311 = vmatpush1.msra.mxu0 0.0
    %312 = vmatprep.subr.mxu0 0.0
    %313 = vmatpush1.msra.mxu0 0.0
    %314 = vmatprep.subr.mxu0 0.0
    %315 = vmatpush1.msra.mxu0 0.0
    %316 = vmatprep.subr.mxu0 0.0
    %317 = vmatpush1.msra.mxu0 0.0
    %318 = vmatprep.subr.mxu0 0.0
    %319 = vmatpush1.msra.mxu0 0.0
    %320 = vmatprep.subr.mxu0 0.0
    %321 = vmatpush1.msra.mxu0 0.0
    %322 = vmatprep.subr.mxu0 0.0
    %323 = vmatpush1.msra.mxu0 0.0
    %324 = vmatprep.subr.mxu0 0.0
    %325 = vmatpush1.msra.mxu0 0.0
    %326 = vmatprep.subr.mxu0 0.0
    %327 = vmatpush1.msra.mxu0 0.0
    %328 = vmatprep.subr.mxu0 0.0
    %329 = vmatpush1.msra.mxu0 0.0
    %330 = vmatprep.subr.mxu0 0.0
    %331 = vmatpush1.msra.mxu0 0.0
    %332 = vmatprep.subr.mxu0 0.0
    %333 = vmatpush1.msra.mxu0 0.0
    %334 = vmatprep.subr.mxu0 0.0
    %335 = vmatpush1.msra.mxu0 0.0
    %336 = vmatprep.subr.mxu0 0.0
    %337 = vmatpush1.msra.mxu0 0.0
    %338 = vmatprep.subr.mxu0 0.0
    %339 = vmatpush1.msra.mxu0 0.0
    %340 = vmatprep.subr.mxu0 0.0
    %341 = vmatpush1.msra.mxu0 0.0
    %342 = vmatprep.subr.mxu0 0.0
    %343 = vmatpush1.msra.mxu0 0.0
    %344 = vmatprep.subr.mxu0 0.0
    %345 = vmatpush1.msra.mxu0 0.0
    %346 = vmatprep.subr.mxu0 0.0
    %347 = vmatpush1.msra.mxu0 0.0
    %348 = vmatprep.subr.mxu0 0.0
    %349 = vmatpush1.msra.mxu0 0.0
    %350 = vmatprep.mubr.f32.mxu0 0.0
    %351 = vmatmul.mubr.f32.gmra.mrb[0].mxu0 %v280
    %v352 = vpop.f32.mrb[0].mxu0
    %v353 = vadd.f32 %v276, %v352
    %v354 = vpop.f32.mrb[0].mxu0
    %355 = vdwg.mxu0
    %v356 = vmax.f32 %v353, 0.0
    %357 = vst.msk [vmem:[#allocation2 + $0x8] sm:$0xff] %vm266, %v356
    %v358 = vld [vmem:[%s5] sm:$0xff]
    %v359 = vld [vmem:[%s5 + $0x8] sm:$0xff]
    %v360 = vld [vmem:[%s15] sm:$0xff]
    %v361 = vld [vmem:[%s15 + $0x8] sm:$0xff]
    %v362 = vld [vmem:[%s17] sm:$0x1]
    %v364 = vlaneseq
    %v365 = vshrl.u32 %v364, 7
    %v366 = vsub.s32 0, %v365
    %v367 = vrot.slane %v362, %v366
    %vm369 = vcmask 130048
    %v371 = vsel %vm369, %v358, 0
    %v374 = vsel %vm369, %v359, 0
    %376 = vmatprep.subr.mxu0 0.0
    %377 = vmatpush1.msra.mxu0 %v360
    %378 = vmatprep.subr.mxu0 0.0
    %379 = vmatpush1.msra.mxu0 %v361
    %380 = vmatprep.subr.mxu0 0.0
    %381 = vmatpush1.msra.mxu0 0.0
    %382 = vmatprep.subr.mxu0 0.0
    %383 = vmatpush1.msra.mxu0 0.0
    %384 = vmatprep.subr.mxu0 0.0
    %385 = vmatpush1.msra.mxu0 0.0
    %386 = vmatprep.subr.mxu0 0.0
    %387 = vmatpush1.msra.mxu0 0.0
    %388 = vmatprep.subr.mxu0 0.0
    %389 = vmatpush1.msra.mxu0 0.0
    %390 = vmatprep.subr.mxu0 0.0
    %391 = vmatpush1.msra.mxu0 0.0
    %392 = vmatprep.subr.mxu0 0.0
    %393 = vmatpush1.msra.mxu0 0.0
    %394 = vmatprep.subr.mxu0 0.0
    %395 = vmatpush1.msra.mxu0 0.0
    %396 = vmatprep.subr.mxu0 0.0
    %397 = vmatpush1.msra.mxu0 0.0
    %398 = vmatprep.subr.mxu0 0.0
    %399 = vmatpush1.msra.mxu0 0.0
    %400 = vmatprep.subr.mxu0 0.0
    %401 = vmatpush1.msra.mxu0 0.0
    %402 = vmatprep.subr.mxu0 0.0
    %403 = vmatpush1.msra.mxu0 0.0
    %404 = vmatprep.subr.mxu0 0.0
    %405 = vmatpush1.msra.mxu0 0.0
    %406 = vmatprep.subr.mxu0 0.0
    %407 = vmatpush1.msra.mxu0 0.0
    %408 = vmatprep.subr.mxu0 0.0
    %409 = vmatpush1.msra.mxu0 0.0
    %410 = vmatprep.subr.mxu0 0.0
    %411 = vmatpush1.msra.mxu0 0.0
    %412 = vmatprep.subr.mxu0 0.0
    %413 = vmatpush1.msra.mxu0 0.0
    %414 = vmatprep.subr.mxu0 0.0
    %415 = vmatpush1.msra.mxu0 0.0
    %416 = vmatprep.subr.mxu0 0.0
    %417 = vmatpush1.msra.mxu0 0.0
    %418 = vmatprep.subr.mxu0 0.0
    %419 = vmatpush1.msra.mxu0 0.0
    %420 = vmatprep.subr.mxu0 0.0
    %421 = vmatpush1.msra.mxu0 0.0
    %422 = vmatprep.subr.mxu0 0.0
    %423 = vmatpush1.msra.mxu0 0.0
    %424 = vmatprep.subr.mxu0 0.0
    %425 = vmatpush1.msra.mxu0 0.0
    %426 = vmatprep.subr.mxu0 0.0
    %427 = vmatpush1.msra.mxu0 0.0
    %428 = vmatprep.subr.mxu0 0.0
    %429 = vmatpush1.msra.mxu0 0.0
    %430 = vmatprep.subr.mxu0 0.0
    %431 = vmatpush1.msra.mxu0 0.0
    %432 = vmatprep.subr.mxu0 0.0
    %433 = vmatpush1.msra.mxu0 0.0
    %434 = vmatprep.subr.mxu0 0.0
    %435 = vmatpush1.msra.mxu0 0.0
    %436 = vmatprep.subr.mxu0 0.0
    %437 = vmatpush1.msra.mxu0 0.0
    %438 = vmatprep.subr.mxu0 0.0
    %439 = vmatpush1.msra.mxu0 0.0
    %440 = vmatprep.mubr.f32.mxu0 0.0
    %441 = vmatmul.mubr.f32.gmra.mrb[0].mxu0 %v371
    %v442 = vpop.f32.mrb[0].mxu0
    %v443 = vadd.f32 %v367, %v442
    %v444 = vpop.f32.mrb[0].mxu0
    %445 = vmatprep.mubr.f32.mxu0 0.0
    %446 = vmatmul.mubr.f32.gmra.mrb[0].mxu0 %v374
    %v447 = vpop.f32.mrb[0].mxu0
    %v448 = vadd.f32 %v367, %v447
    %v449 = vpop.f32.mrb[0].mxu0
    %450 = vdwg.mxu0
    %v451 = vmax.f32 %v443, 0.0
    %v452 = vmax.f32 %v448, 0.0
    %453 = vst.msk [vmem:[#allocation2 + $0x10] sm:$0xff] %vm266, %v451
    %454 = vst.msk [vmem:[#allocation2 + $0x18] sm:$0xff] %vm266, %v452
    %v455 = vld [vmem:[#allocation2] sm:$0xff]
    %v456 = vld [vmem:[#allocation2 + $0x8] sm:$0xff]
    %v457 = vld [vmem:[#allocation2 + $0x10] sm:$0xff]
    %v458 = vld [vmem:[#allocation2 + $0x18] sm:$0xff]
    %v459 = vld [vmem:[%s19] sm:$0xff]
    %v460 = vld [vmem:[%s19 + $0x8] sm:$0xff]
    %v461 = vld [vmem:[%s19 + $0x10] sm:$0xff]
    %v462 = vld [vmem:[%s19 + $0x18] sm:$0xff]
    %v463 = vld [vmem:[%s21] sm:$0xff]
    %v464 = vld [vmem:[%s21 + $0x8] sm:$0xff]
    %v465 = vld [vmem:[%s21 + $0x10] sm:$0xff]
    %v466 = vld [vmem:[%s21 + $0x18] sm:$0xff]
    %v467 = vld [vmem:[%s23] sm:$0xff]
    %v468 = vld [vmem:[%s23 + $0x8] sm:$0xff]
    %v469 = vld [vmem:[%s23 + $0x10] sm:$0xff]
    %v470 = vld [vmem:[%s23 + $0x18] sm:$0xff]
    %v471 = vld [vmem:[%s25] sm:$0xff]
    %v472 = vld [vmem:[%s25 + $0x8] sm:$0xff]
    %v473 = vld [vmem:[%s25 + $0x10] sm:$0xff]
    %v474 = vld [vmem:[%s25 + $0x18] sm:$0xff]
    %v476 = vsel %vm266, %v455, 0
    %v479 = vsel %vm266, %v456, 0
    %v482 = vsel %vm266, %v457, 0
    %v485 = vsel %vm266, %v458, 0
    %487 = vmatprep.subr.mxu0 0.0
    %488 = vmatpush1.msra.mxu0 %v471
    %489 = vmatprep.subr.mxu0 0.0
    %490 = vmatpush1.msra.mxu0 %v472
    %491 = vmatprep.subr.mxu0 0.0
    %492 = vmatpush1.msra.mxu0 %v473
    %493 = vmatprep.subr.mxu0 0.0
    %494 = vmatpush1.msra.mxu0 %v474
    %495 = vmatprep.subr.mxu0 0.0
    %496 = vmatpush1.msra.mxu0 0.0
    %497 = vmatprep.subr.mxu0 0.0
    %498 = vmatpush1.msra.mxu0 0.0
    %499 = vmatprep.subr.mxu0 0.0
    %500 = vmatpush1.msra.mxu0 0.0
    %501 = vmatprep.subr.mxu0 0.0
    %502 = vmatpush1.msra.mxu0 0.0
    %503 = vmatprep.subr.mxu0 0.0
    %504 = vmatpush1.msra.mxu0 0.0
    %505 = vmatprep.subr.mxu0 0.0
    %506 = vmatpush1.msra.mxu0 0.0
    %507 = vmatprep.subr.mxu0 0.0
    %508 = vmatpush1.msra.mxu0 0.0
    %509 = vmatprep.subr.mxu0 0.0
    %510 = vmatpush1.msra.mxu0 0.0
    %511 = vmatprep.subr.mxu0 0.0
    %512 = vmatpush1.msra.mxu0 0.0
    %513 = vmatprep.subr.mxu0 0.0
    %514 = vmatpush1.msra.mxu0 0.0
    %515 = vmatprep.subr.mxu0 0.0
    %516 = vmatpush1.msra.mxu0 0.0
    %517 = vmatprep.subr.mxu0 0.0
    %518 = vmatpush1.msra.mxu0 0.0
    %519 = vmatprep.subr.mxu0 0.0
    %520 = vmatpush1.msra.mxu0 0.0
    %521 = vmatprep.subr.mxu0 0.0
    %522 = vmatpush1.msra.mxu0 0.0
    %523 = vmatprep.subr.mxu0 0.0
    %524 = vmatpush1.msra.mxu0 0.0
    %525 = vmatprep.subr.mxu0 0.0
    %526 = vmatpush1.msra.mxu0 0.0
    %527 = vmatprep.subr.mxu0 0.0
    %528 = vmatpush1.msra.mxu0 0.0
    %529 = vmatprep.subr.mxu0 0.0
    %530 = vmatpush1.msra.mxu0 0.0
    %531 = vmatprep.subr.mxu0 0.0
    %532 = vmatpush1.msra.mxu0 0.0
    %533 = vmatprep.subr.mxu0 0.0
    %534 = vmatpush1.msra.mxu0 0.0
    %535 = vmatprep.subr.mxu0 0.0
    %536 = vmatpush1.msra.mxu0 0.0
    %537 = vmatprep.subr.mxu0 0.0
    %538 = vmatpush1.msra.mxu0 0.0
    %539 = vmatprep.subr.mxu0 0.0
    %540 = vmatpush1.msra.mxu0 0.0
    %541 = vmatprep.subr.mxu0 0.0
    %542 = vmatpush1.msra.mxu0 0.0
    %543 = vmatprep.subr.mxu0 0.0
    %544 = vmatpush1.msra.mxu0 0.0
    %545 = vmatprep.subr.mxu0 0.0
    %546 = vmatpush1.msra.mxu0 0.0
    %547 = vmatprep.subr.mxu0 0.0
    %548 = vmatpush1.msra.mxu0 0.0
    %549 = vmatprep.subr.mxu0 0.0
    %550 = vmatpush1.msra.mxu0 0.0
    %551 = vmatprep.mubr.f32.mxu0 0.0
    %552 = vmatmul.mubr.f32.gmra.mrb[0].mxu0 %v476
    %v553 = vpop.f32.mrb[0].mxu0
    %v554 = vadd.f32 0.0, %v553
    %v555 = vpop.f32.mrb[0].mxu0
    %556 = vmatprep.mubr.f32.mxu0 0.0
    %557 = vmatmul.mubr.f32.gmra.mrb[0].mxu0 %v479
    %v558 = vpop.f32.mrb[0].mxu0
    %v559 = vadd.f32 0.0, %v558
    %v560 = vpop.f32.mrb[0].mxu0
    %561 = vmatprep.mubr.f32.mxu0 0.0
    %562 = vmatmul.mubr.f32.gmra.mrb[0].mxu0 %v482
    %v563 = vpop.f32.mrb[0].mxu0
    %v564 = vadd.f32 0.0, %v563
    %v565 = vpop.f32.mrb[0].mxu0
    %566 = vmatprep.mubr.f32.mxu0 0.0
    %567 = vmatmul.mubr.f32.gmra.mrb[0].mxu0 %v485
    %v568 = vpop.f32.mrb[0].mxu0
    %v569 = vadd.f32 0.0, %v568
    %v570 = vpop.f32.mrb[0].mxu0
    %571 = vdwg.mxu0
    %v572 = vld [vmem:[%s27] sm:$0xf]
    %v574 = vsel %vm266, %v572, 0
    %v577 = vsel %vm266, %v554, 0
    %v580 = vsel %vm266, %v559, 0
    %v583 = vsel %vm266, %v564, 0
    %v586 = vsel %vm266, %v569, 0
    %588 = vmatprep.subr.mxu0 0.0
    %589 = vmatpush1.xpose.msra.mxu0 %v577
    %590 = vmatprep.subr.mxu0 0.0
    %591 = vmatpush1.xpose.msra.mxu0 %v580
    %592 = vmatprep.subr.mxu0 0.0
    %593 = vmatpush1.xpose.msra.mxu0 %v583
    %594 = vmatprep.subr.mxu0 0.0
    %595 = vmatpush1.xpose.msra.mxu0 %v586
    %596 = vmatprep.subr.mxu0 0.0
    %597 = vmatpush1.xpose.msra.mxu0 0.0
    %598 = vmatprep.subr.mxu0 0.0
    %599 = vmatpush1.xpose.msra.mxu0 0.0
    %600 = vmatprep.subr.mxu0 0.0
    %601 = vmatpush1.xpose.msra.mxu0 0.0
    %602 = vmatprep.subr.mxu0 0.0
    %603 = vmatpush1.xpose.msra.mxu0 0.0
    %604 = vmatprep.subr.mxu0 0.0
    %605 = vmatpush1.xpose.msra.mxu0 0.0
    %606 = vmatprep.subr.mxu0 0.0
    %607 = vmatpush1.xpose.msra.mxu0 0.0
    %608 = vmatprep.subr.mxu0 0.0
    %609 = vmatpush1.xpose.msra.mxu0 0.0
    %610 = vmatprep.subr.mxu0 0.0
    %611 = vmatpush1.xpose.msra.mxu0 0.0
    %612 = vmatprep.subr.mxu0 0.0
    %613 = vmatpush1.xpose.msra.mxu0 0.0
    %614 = vmatprep.subr.mxu0 0.0
    %615 = vmatpush1.xpose.msra.mxu0 0.0
    %616 = vmatprep.subr.mxu0 0.0
    %617 = vmatpush1.xpose.msra.mxu0 0.0
    %618 = vmatprep.subr.mxu0 0.0
    %619 = vmatpush1.xpose.msra.mxu0 0.0
    %620 = vmatprep.subr.mxu0 0.0
    %621 = vmatpush1.xpose.msra.mxu0 0.0
    %622 = vmatprep.subr.mxu0 0.0
    %623 = vmatpush1.xpose.msra.mxu0 0.0
    %624 = vmatprep.subr.mxu0 0.0
    %625 = vmatpush1.xpose.msra.mxu0 0.0
    %626 = vmatprep.subr.mxu0 0.0
    %627 = vmatpush1.xpose.msra.mxu0 0.0
    %628 = vmatprep.subr.mxu0 0.0
    %629 = vmatpush1.xpose.msra.mxu0 0.0
    %630 = vmatprep.subr.mxu0 0.0
    %631 = vmatpush1.xpose.msra.mxu0 0.0
    %632 = vmatprep.subr.mxu0 0.0
    %633 = vmatpush1.xpose.msra.mxu0 0.0
    %634 = vmatprep.subr.mxu0 0.0
    %635 = vmatpush1.xpose.msra.mxu0 0.0
    %636 = vmatprep.subr.mxu0 0.0
    %637 = vmatpush1.xpose.msra.mxu0 0.0
    %638 = vmatprep.subr.mxu0 0.0
    %639 = vmatpush1.xpose.msra.mxu0 0.0
    %640 = vmatprep.subr.mxu0 0.0
    %641 = vmatpush1.xpose.msra.mxu0 0.0
    %642 = vmatprep.subr.mxu0 0.0
    %643 = vmatpush1.xpose.msra.mxu0 0.0
    %644 = vmatprep.subr.mxu0 0.0
    %645 = vmatpush1.xpose.msra.mxu0 0.0
    %646 = vmatprep.subr.mxu0 0.0
    %647 = vmatpush1.xpose.msra.mxu0 0.0
    %648 = vmatprep.subr.mxu0 0.0
    %649 = vmatpush1.xpose.msra.mxu0 0.0
    %650 = vmatprep.subr.mxu0 0.0
    %651 = vmatpush1.xpose.msra.mxu0 0.0
    %652 = vmatprep.mubr.f32.mxu0 0.0
    %653 = vmatmul.mubr.f32.gmra.mrb[0].mxu0 %v574
    %v654 = vpop.f32.mrb[0].mxu0
    %v655 = vadd.f32 0.0, %v654
    %v656 = vpop.f32.mrb[0].mxu0
    %657 = vdwg.mxu0
    %v658 = vld [vmem:[%s29] sm:$0xff]
    %v659 = vld [vmem:[%s29 + $0x8] sm:$0xff]
    %v660 = vld [vmem:[%s29 + $0x10] sm:$0xff]
    %v661 = vld [vmem:[%s29 + $0x18] sm:$0xff]
    %662 = vmatprep.subr.mxu0 0.0
    %663 = vmatpush1.msra.mxu0 %v658
    %664 = vmatprep.subr.mxu0 0.0
    %665 = vmatpush1.msra.mxu0 %v659
    %666 = vmatprep.subr.mxu0 0.0
    %667 = vmatpush1.msra.mxu0 %v660
    %668 = vmatprep.subr.mxu0 0.0
    %669 = vmatpush1.msra.mxu0 %v661
    %670 = vmatprep.subr.mxu0 0.0
    %671 = vmatpush1.msra.mxu0 0.0
    %672 = vmatprep.subr.mxu0 0.0
    %673 = vmatpush1.msra.mxu0 0.0
    %674 = vmatprep.subr.mxu0 0.0
    %675 = vmatpush1.msra.mxu0 0.0
    %676 = vmatprep.subr.mxu0 0.0
    %677 = vmatpush1.msra.mxu0 0.0
    %678 = vmatprep.subr.mxu0 0.0
    %679 = vmatpush1.msra.mxu0 0.0
    %680 = vmatprep.subr.mxu0 0.0
    %681 = vmatpush1.msra.mxu0 0.0
    %682 = vmatprep.subr.mxu0 0.0
    %683 = vmatpush1.msra.mxu0 0.0
    %684 = vmatprep.subr.mxu0 0.0
    %685 = vmatpush1.msra.mxu0 0.0
    %686 = vmatprep.subr.mxu0 0.0
    %687 = vmatpush1.msra.mxu0 0.0
    %688 = vmatprep.subr.mxu0 0.0
    %689 = vmatpush1.msra.mxu0 0.0
    %690 = vmatprep.subr.mxu0 0.0
    %691 = vmatpush1.msra.mxu0 0.0
    %692 = vmatprep.subr.mxu0 0.0
    %693 = vmatpush1.msra.mxu0 0.0
    %694 = vmatprep.subr.mxu0 0.0
    %695 = vmatpush1.msra.mxu0 0.0
    %696 = vmatprep.subr.mxu0 0.0
    %697 = vmatpush1.msra.mxu0 0.0
    %698 = vmatprep.subr.mxu0 0.0
    %699 = vmatpush1.msra.mxu0 0.0
    %700 = vmatprep.subr.mxu0 0.0
    %701 = vmatpush1.msra.mxu0 0.0
    %702 = vmatprep.subr.mxu0 0.0
    %703 = vmatpush1.msra.mxu0 0.0
    %704 = vmatprep.subr.mxu0 0.0
    %705 = vmatpush1.msra.mxu0 0.0
    %706 = vmatprep.subr.mxu0 0.0
    %707 = vmatpush1.msra.mxu0 0.0
    %708 = vmatprep.subr.mxu0 0.0
    %709 = vmatpush1.msra.mxu0 0.0
    %710 = vmatprep.subr.mxu0 0.0
    %711 = vmatpush1.msra.mxu0 0.0
    %712 = vmatprep.subr.mxu0 0.0
    %713 = vmatpush1.msra.mxu0 0.0
    %714 = vmatprep.subr.mxu0 0.0
    %715 = vmatpush1.msra.mxu0 0.0
    %716 = vmatprep.subr.mxu0 0.0
    %717 = vmatpush1.msra.mxu0 0.0
    %718 = vmatprep.subr.mxu0 0.0
    %719 = vmatpush1.msra.mxu0 0.0
    %720 = vmatprep.subr.mxu0 0.0
    %721 = vmatpush1.msra.mxu0 0.0
    %722 = vmatprep.subr.mxu0 0.0
    %723 = vmatpush1.msra.mxu0 0.0
    %724 = vmatprep.subr.mxu0 0.0
    %725 = vmatpush1.msra.mxu0 0.0
    %726 = vmatprep.mubr.f32.mxu0 0.0
    %727 = vmatmul.mubr.f32.gmra.mrb[0].mxu0 %v577
    %v728 = vpop.f32.mrb[0].mxu0
    %v729 = vadd.f32 0.0, %v728
    %v730 = vpop.f32.mrb[0].mxu0
    %731 = vmatprep.mubr.f32.mxu0 0.0
    %732 = vmatmul.mubr.f32.gmra.mrb[0].mxu0 %v580
    %v733 = vpop.f32.mrb[0].mxu0
    %v734 = vadd.f32 0.0, %v733
    %v735 = vpop.f32.mrb[0].mxu0
    %736 = vmatprep.mubr.f32.mxu0 0.0
    %737 = vmatmul.mubr.f32.gmra.mrb[0].mxu0 %v583
    %v738 = vpop.f32.mrb[0].mxu0
    %v739 = vadd.f32 0.0, %v738
    %v740 = vpop.f32.mrb[0].mxu0
    %741 = vmatprep.mubr.f32.mxu0 0.0
    %742 = vmatmul.mubr.f32.gmra.mrb[0].mxu0 %v586
    %v743 = vpop.f32.mrb[0].mxu0
    %v744 = vadd.f32 0.0, %v743
    %v745 = vpop.f32.mrb[0].mxu0
    %746 = vdwg.mxu0
    %s747 = sld [smem:[#allocation4]]
    %v748 = vstv %s747
    %v749 = vadd.f32 %v748, 0.0
    %vm750 = vcmp.eq.s32.totalorder %v467, 1
    %vm751 = vcmp.eq.s32.totalorder %v468, 1
    %vm752 = vcmp.eq.s32.totalorder %v469, 1
    %vm753 = vcmp.eq.s32.totalorder %v470, 1
    %s754 = sld [smem:[#allocation4 + $0x4]]
    %v755 = vstv %s754
    %v756 = vsel %vm750, %v755, %v749
    %v757 = vsel %vm751, %v755, %v749
    %v758 = vsel %vm752, %v755, %v749
    %v759 = vsel %vm753, %v755, %v749
    %vm760 = vcmp.eq.s32.totalorder %v467, 2
    %vm761 = vcmp.eq.s32.totalorder %v468, 2
    %vm762 = vcmp.eq.s32.totalorder %v469, 2
    %vm763 = vcmp.eq.s32.totalorder %v470, 2
    %s764 = sld [smem:[#allocation4 + $0x8]]
    %v765 = vstv %s764
    %v766 = vsel %vm760, %v765, %v756
    %v767 = vsel %vm761, %v765, %v757
    %v768 = vsel %vm762, %v765, %v758
    %v769 = vsel %vm763, %v765, %v759
    %771 = vset.pattern.permute.xlu0 0
    %772 = vperm.xlu0 %771, %v729
    %v773 = vpop.permute.xlu0 %772
    %776 = vset.pattern.permute.xlu0 0
    %777 = vperm.xlu0 %776, %v734
    %v778 = vpop.permute.xlu0 %777
    %781 = vset.pattern.permute.xlu0 0
    %782 = vperm.xlu0 %781, %v739
    %v783 = vpop.permute.xlu0 %782
    %786 = vset.pattern.permute.xlu0 0
    %787 = vperm.xlu0 %786, %v744
    %v788 = vpop.permute.xlu0 %787
    %v790 = vlaneseq
    %v791 = vshrl.u32 %v790, 7
    %v792 = vsub.s32 0, %v791
    %v793 = vrot.slane %v655, %v792
    %v794 = vadd.f32 %v773, %v793
    %v795 = vadd.f32 %v778, %v793
    %v796 = vadd.f32 %v783, %v793
    %v797 = vadd.f32 %v788, %v793
    %v798 = vadd.f32 %v794, %v766
    %v799 = vadd.f32 %v795, %v767
    %v800 = vadd.f32 %v796, %v768
    %v801 = vadd.f32 %v797, %v769
    %vm802 = vcmp.ge.f32.partialorder %v798, 0.0
    %vm803 = vcmp.ge.f32.partialorder %v799, 0.0
    %vm804 = vcmp.ge.f32.partialorder %v800, 0.0
    %vm805 = vcmp.ge.f32.partialorder %v801, 0.0
    %v806 = vmul.f32 %v798, 0.05
    %v807 = vmul.f32 %v799, 0.05
    %v808 = vmul.f32 %v800, 0.05
    %v809 = vmul.f32 %v801, 0.05
    %v810 = vsel %vm802, %v798, %v806
    %v811 = vsel %vm803, %v799, %v807
    %v812 = vsel %vm804, %v800, %v808
    %v813 = vsel %vm805, %v801, %v809
    %vm814 = vcmp.gt.f32.partialorder %v463, 0.0
    %vm815 = vcmp.gt.f32.partialorder %v464, 0.0
    %vm816 = vcmp.gt.f32.partialorder %v465, 0.0
    %vm817 = vcmp.gt.f32.partialorder %v466, 0.0
    %v818 = vsel %vm814, %v810, -1e+30
    %v819 = vsel %vm815, %v811, -1e+30
    %v820 = vsel %vm816, %v812, -1e+30
    %v821 = vsel %vm817, %v813, -1e+30
    %822 = vst.msk [vmem:[#allocation3] sm:$0xff] %vm266, %v818
    %823 = vst.msk [vmem:[#allocation3 + $0x8] sm:$0xff] %vm266, %v819
    %824 = vst.msk [vmem:[#allocation3 + $0x10] sm:$0xff] %vm266, %v820
    %825 = vst.msk [vmem:[#allocation3 + $0x18] sm:$0xff] %vm266, %v821
    %s826 = sld [smem:[#allocation4 + $0x1]]
    %v827 = vstv %s826
    %v828 = vadd.f32 %v827, 0.0
    %s829 = sld [smem:[#allocation4 + $0x5]]
    %v830 = vstv %s829
    %v831 = vsel %vm750, %v830, %v828
    %v832 = vsel %vm751, %v830, %v828
    %v833 = vsel %vm752, %v830, %v828
    %v834 = vsel %vm753, %v830, %v828
    %s835 = sld [smem:[#allocation4 + $0x9]]
    %v836 = vstv %s835
    %v837 = vsel %vm760, %v836, %v831
    %v838 = vsel %vm761, %v836, %v832
    %v839 = vsel %vm762, %v836, %v833
    %v840 = vsel %vm763, %v836, %v834
    %841 = vset.pattern.permute.xlu0 1
    %842 = vperm.xlu0 %841, %v729
    %v843 = vpop.permute.xlu0 %842
    %845 = vset.pattern.permute.xlu0 1
    %846 = vperm.xlu0 %845, %v734
    %v847 = vpop.permute.xlu0 %846
    %849 = vset.pattern.permute.xlu0 1
    %850 = vperm.xlu0 %849, %v739
    %v851 = vpop.permute.xlu0 %850
    %853 = vset.pattern.permute.xlu0 1
    %854 = vperm.xlu0 %853, %v744
    %v855 = vpop.permute.xlu0 %854
    %v857 = vlaneseq
    %v858 = vshrl.u32 %v857, 7
    %v859 = vsub.s32 1, %v858
    %v860 = vrot.slane %v655, %v859
    %v861 = vadd.f32 %v843, %v860
    %v862 = vadd.f32 %v847, %v860
    %v863 = vadd.f32 %v851, %v860
    %v864 = vadd.f32 %v855, %v860
    %v865 = vadd.f32 %v861, %v837
    %v866 = vadd.f32 %v862, %v838
    %v867 = vadd.f32 %v863, %v839
    %v868 = vadd.f32 %v864, %v840
    %vm869 = vcmp.ge.f32.partialorder %v865, 0.0
    %vm870 = vcmp.ge.f32.partialorder %v866, 0.0
    %vm871 = vcmp.ge.f32.partialorder %v867, 0.0
    %vm872 = vcmp.ge.f32.partialorder %v868, 0.0
    %v873 = vmul.f32 %v865, 0.05
    %v874 = vmul.f32 %v866, 0.05
    %v875 = vmul.f32 %v867, 0.05
    %v876 = vmul.f32 %v868, 0.05
    %v877 = vsel %vm869, %v865, %v873
    %v878 = vsel %vm870, %v866, %v874
    %v879 = vsel %vm871, %v867, %v875
    %v880 = vsel %vm872, %v868, %v876
    %v881 = vsel %vm814, %v877, -1e+30
    %v882 = vsel %vm815, %v878, -1e+30
    %v883 = vsel %vm816, %v879, -1e+30
    %v884 = vsel %vm817, %v880, -1e+30
    %s885 = scalar_lea.vmem [#allocation3], 32
    %886 = vst.msk [vmem:[%s885] sm:$0xff] %vm266, %v881
    %887 = vst.msk [vmem:[%s885 + $0x8] sm:$0xff] %vm266, %v882
    %888 = vst.msk [vmem:[%s885 + $0x10] sm:$0xff] %vm266, %v883
    %889 = vst.msk [vmem:[%s885 + $0x18] sm:$0xff] %vm266, %v884
    %s890 = sld [smem:[#allocation4 + $0x2]]
    %v891 = vstv %s890
    %v892 = vadd.f32 %v891, 0.0
    %s893 = sld [smem:[#allocation4 + $0x6]]
    %v894 = vstv %s893
    %v895 = vsel %vm750, %v894, %v892
    %v896 = vsel %vm751, %v894, %v892
    %v897 = vsel %vm752, %v894, %v892
    %v898 = vsel %vm753, %v894, %v892
    %s899 = sld [smem:[#allocation4 + $0xa]]
    %v900 = vstv %s899
    %v901 = vsel %vm760, %v900, %v895
    %v902 = vsel %vm761, %v900, %v896
    %v903 = vsel %vm762, %v900, %v897
    %v904 = vsel %vm763, %v900, %v898
    %905 = vset.pattern.permute.xlu0 2
    %906 = vperm.xlu0 %905, %v729
    %v907 = vpop.permute.xlu0 %906
    %909 = vset.pattern.permute.xlu0 2
    %910 = vperm.xlu0 %909, %v734
    %v911 = vpop.permute.xlu0 %910
    %913 = vset.pattern.permute.xlu0 2
    %914 = vperm.xlu0 %913, %v739
    %v915 = vpop.permute.xlu0 %914
    %917 = vset.pattern.permute.xlu0 2
    %918 = vperm.xlu0 %917, %v744
    %v919 = vpop.permute.xlu0 %918
    %v921 = vlaneseq
    %v922 = vshrl.u32 %v921, 7
    %v923 = vsub.s32 2, %v922
    %v924 = vrot.slane %v655, %v923
    %v925 = vadd.f32 %v907, %v924
    %v926 = vadd.f32 %v911, %v924
    %v927 = vadd.f32 %v915, %v924
    %v928 = vadd.f32 %v919, %v924
    %v929 = vadd.f32 %v925, %v901
    %v930 = vadd.f32 %v926, %v902
    %v931 = vadd.f32 %v927, %v903
    %v932 = vadd.f32 %v928, %v904
    %vm933 = vcmp.ge.f32.partialorder %v929, 0.0
    %vm934 = vcmp.ge.f32.partialorder %v930, 0.0
    %vm935 = vcmp.ge.f32.partialorder %v931, 0.0
    %vm936 = vcmp.ge.f32.partialorder %v932, 0.0
    %v937 = vmul.f32 %v929, 0.05
    %v938 = vmul.f32 %v930, 0.05
    %v939 = vmul.f32 %v931, 0.05
    %v940 = vmul.f32 %v932, 0.05
    %v941 = vsel %vm933, %v929, %v937
    %v942 = vsel %vm934, %v930, %v938
    %v943 = vsel %vm935, %v931, %v939
    %v944 = vsel %vm936, %v932, %v940
    %v945 = vsel %vm814, %v941, -1e+30
    %v946 = vsel %vm815, %v942, -1e+30
    %v947 = vsel %vm816, %v943, -1e+30
    %v948 = vsel %vm817, %v944, -1e+30
    %s949 = scalar_lea.vmem [#allocation3], 64
    %950 = vst.msk [vmem:[%s949] sm:$0xff] %vm266, %v945
    %951 = vst.msk [vmem:[%s949 + $0x8] sm:$0xff] %vm266, %v946
    %952 = vst.msk [vmem:[%s949 + $0x10] sm:$0xff] %vm266, %v947
    %953 = vst.msk [vmem:[%s949 + $0x18] sm:$0xff] %vm266, %v948
    %s954 = sld [smem:[#allocation4 + $0x3]]
    %v955 = vstv %s954
    %v956 = vadd.f32 %v955, 0.0
    %s957 = sld [smem:[#allocation4 + $0x7]]
    %v958 = vstv %s957
    %v959 = vsel %vm750, %v958, %v956
    %v960 = vsel %vm751, %v958, %v956
    %v961 = vsel %vm752, %v958, %v956
    %v962 = vsel %vm753, %v958, %v956
    %s963 = sld [smem:[#allocation4 + $0xb]]
    %v964 = vstv %s963
    %v965 = vsel %vm760, %v964, %v959
    %v966 = vsel %vm761, %v964, %v960
    %v967 = vsel %vm762, %v964, %v961
    %v968 = vsel %vm763, %v964, %v962
    %969 = vset.pattern.permute.xlu0 3
    %970 = vperm.xlu0 %969, %v729
    %v971 = vpop.permute.xlu0 %970
    %973 = vset.pattern.permute.xlu0 3
    %974 = vperm.xlu0 %973, %v734
    %v975 = vpop.permute.xlu0 %974
    %977 = vset.pattern.permute.xlu0 3
    %978 = vperm.xlu0 %977, %v739
    %v979 = vpop.permute.xlu0 %978
    %981 = vset.pattern.permute.xlu0 3
    %982 = vperm.xlu0 %981, %v744
    %v983 = vpop.permute.xlu0 %982
    %v985 = vlaneseq
    %v986 = vshrl.u32 %v985, 7
    %v987 = vsub.s32 3, %v986
    %v988 = vrot.slane %v655, %v987
    %v989 = vadd.f32 %v971, %v988
    %v990 = vadd.f32 %v975, %v988
    %v991 = vadd.f32 %v979, %v988
    %v992 = vadd.f32 %v983, %v988
    %v993 = vadd.f32 %v989, %v965
    %v994 = vadd.f32 %v990, %v966
    %v995 = vadd.f32 %v991, %v967
    %v996 = vadd.f32 %v992, %v968
    %vm997 = vcmp.ge.f32.partialorder %v993, 0.0
    %vm998 = vcmp.ge.f32.partialorder %v994, 0.0
    %vm999 = vcmp.ge.f32.partialorder %v995, 0.0
    %vm1000 = vcmp.ge.f32.partialorder %v996, 0.0
    %v1001 = vmul.f32 %v993, 0.05
    %v1002 = vmul.f32 %v994, 0.05
    %v1003 = vmul.f32 %v995, 0.05
    %v1004 = vmul.f32 %v996, 0.05
    %v1005 = vsel %vm997, %v993, %v1001
    %v1006 = vsel %vm998, %v994, %v1002
    %v1007 = vsel %vm999, %v995, %v1003
    %v1008 = vsel %vm1000, %v996, %v1004
    %v1009 = vsel %vm814, %v1005, -1e+30
    %v1010 = vsel %vm815, %v1006, -1e+30
    %v1011 = vsel %vm816, %v1007, -1e+30
    %v1012 = vsel %vm817, %v1008, -1e+30
    %s1013 = scalar_lea.vmem [#allocation3], 96
    %1014 = vst.msk [vmem:[%s1013] sm:$0xff] %vm266, %v1009
    %1015 = vst.msk [vmem:[%s1013 + $0x8] sm:$0xff] %vm266, %v1010
    %1016 = vst.msk [vmem:[%s1013 + $0x10] sm:$0xff] %vm266, %v1011
    %1017 = vst.msk [vmem:[%s1013 + $0x18] sm:$0xff] %vm266, %v1012
    %v1018 = vld [vmem:[#allocation3] sm:$0xff]
    %v1019 = vld [vmem:[#allocation3 + $0x8] sm:$0xff]
    %v1020 = vld [vmem:[#allocation3 + $0x10] sm:$0xff]
    %v1021 = vld [vmem:[#allocation3 + $0x18] sm:$0xff]
    %v1022 = vld [vmem:[#allocation3 + $0x20] sm:$0xff]
    %v1023 = vld [vmem:[#allocation3 + $0x28] sm:$0xff]
    %v1024 = vld [vmem:[#allocation3 + $0x30] sm:$0xff]
    %v1025 = vld [vmem:[#allocation3 + $0x38] sm:$0xff]
    %v1026 = vld [vmem:[#allocation3 + $0x40] sm:$0xff]
    %v1027 = vld [vmem:[#allocation3 + $0x48] sm:$0xff]
    %v1028 = vld [vmem:[#allocation3 + $0x50] sm:$0xff]
    %v1029 = vld [vmem:[#allocation3 + $0x58] sm:$0xff]
    %v1030 = vld [vmem:[#allocation3 + $0x60] sm:$0xff]
    %v1031 = vld [vmem:[#allocation3 + $0x68] sm:$0xff]
    %v1032 = vld [vmem:[#allocation3 + $0x70] sm:$0xff]
    %v1033 = vld [vmem:[#allocation3 + $0x78] sm:$0xff]
    %v1034 = vsel %vm266, %v1018, -inf
    %1035 = vmax.xlane.f32.xlu0 %v1034
    %v1036 = vpop.xlane.xlu0 %1035
    %v1037 = vsel %vm266, %v1019, -inf
    %1038 = vmax.xlane.f32.xlu0 %v1037
    %v1039 = vpop.xlane.xlu0 %1038
    %v1040 = vsel %vm266, %v1020, -inf
    %1041 = vmax.xlane.f32.xlu0 %v1040
    %v1042 = vpop.xlane.xlu0 %1041
    %v1043 = vsel %vm266, %v1021, -inf
    %1044 = vmax.xlane.f32.xlu0 %v1043
    %v1045 = vpop.xlane.xlu0 %1044
    %v1046 = vsel %vm266, %v1022, -inf
    %1047 = vmax.xlane.f32.xlu0 %v1046
    %v1048 = vpop.xlane.xlu0 %1047
    %v1049 = vsel %vm266, %v1023, -inf
    %1050 = vmax.xlane.f32.xlu0 %v1049
    %v1051 = vpop.xlane.xlu0 %1050
    %v1052 = vsel %vm266, %v1024, -inf
    %1053 = vmax.xlane.f32.xlu0 %v1052
    %v1054 = vpop.xlane.xlu0 %1053
    %v1055 = vsel %vm266, %v1025, -inf
    %1056 = vmax.xlane.f32.xlu0 %v1055
    %v1057 = vpop.xlane.xlu0 %1056
    %v1058 = vsel %vm266, %v1026, -inf
    %1059 = vmax.xlane.f32.xlu0 %v1058
    %v1060 = vpop.xlane.xlu0 %1059
    %v1061 = vsel %vm266, %v1027, -inf
    %1062 = vmax.xlane.f32.xlu0 %v1061
    %v1063 = vpop.xlane.xlu0 %1062
    %v1064 = vsel %vm266, %v1028, -inf
    %1065 = vmax.xlane.f32.xlu0 %v1064
    %v1066 = vpop.xlane.xlu0 %1065
    %v1067 = vsel %vm266, %v1029, -inf
    %1068 = vmax.xlane.f32.xlu0 %v1067
    %v1069 = vpop.xlane.xlu0 %1068
    %v1070 = vsel %vm266, %v1030, -inf
    %1071 = vmax.xlane.f32.xlu0 %v1070
    %v1072 = vpop.xlane.xlu0 %1071
    %v1073 = vsel %vm266, %v1031, -inf
    %1074 = vmax.xlane.f32.xlu0 %v1073
    %v1075 = vpop.xlane.xlu0 %1074
    %v1076 = vsel %vm266, %v1032, -inf
    %1077 = vmax.xlane.f32.xlu0 %v1076
    %v1078 = vpop.xlane.xlu0 %1077
    %v1079 = vsel %vm266, %v1033, -inf
    %1080 = vmax.xlane.f32.xlu0 %v1079
    %v1081 = vpop.xlane.xlu0 %1080
    %v1082 = vsub.f32 %v1018, %v1036
    %v1083 = vsub.f32 %v1019, %v1039
    %v1084 = vsub.f32 %v1020, %v1042
    %v1085 = vsub.f32 %v1021, %v1045
    %v1086 = vsub.f32 %v1022, %v1048
    %v1087 = vsub.f32 %v1023, %v1051
    %v1088 = vsub.f32 %v1024, %v1054
    %v1089 = vsub.f32 %v1025, %v1057
    %v1090 = vsub.f32 %v1026, %v1060
    %v1091 = vsub.f32 %v1027, %v1063
    %v1092 = vsub.f32 %v1028, %v1066
    %v1093 = vsub.f32 %v1029, %v1069
    %v1094 = vsub.f32 %v1030, %v1072
    %v1095 = vsub.f32 %v1031, %v1075
    %v1096 = vsub.f32 %v1032, %v1078
    %v1097 = vsub.f32 %v1033, %v1081
    %v1098 = vmul.f32 %v1082, 1.442695
    %v1099 = vpow.pop %v1098
    %v1100 = vmul.f32 %v1083, 1.442695
    %v1101 = vpow.pop %v1100
    %v1102 = vmul.f32 %v1084, 1.442695
    %v1103 = vpow.pop %v1102
    %v1104 = vmul.f32 %v1085, 1.442695
    %v1105 = vpow.pop %v1104
    %v1106 = vmul.f32 %v1086, 1.442695
    %v1107 = vpow.pop %v1106
    %v1108 = vmul.f32 %v1087, 1.442695
    %v1109 = vpow.pop %v1108
    %v1110 = vmul.f32 %v1088, 1.442695
    %v1111 = vpow.pop %v1110
    %v1112 = vmul.f32 %v1089, 1.442695
    %v1113 = vpow.pop %v1112
    %v1114 = vmul.f32 %v1090, 1.442695
    %v1115 = vpow.pop %v1114
    %v1116 = vmul.f32 %v1091, 1.442695
    %v1117 = vpow.pop %v1116
    %v1118 = vmul.f32 %v1092, 1.442695
    %v1119 = vpow.pop %v1118
    %v1120 = vmul.f32 %v1093, 1.442695
    %v1121 = vpow.pop %v1120
    %v1122 = vmul.f32 %v1094, 1.442695
    %v1123 = vpow.pop %v1122
    %v1124 = vmul.f32 %v1095, 1.442695
    %v1125 = vpow.pop %v1124
    %v1126 = vmul.f32 %v1096, 1.442695
    %v1127 = vpow.pop %v1126
    %v1128 = vmul.f32 %v1097, 1.442695
    %v1129 = vpow.pop %v1128
    %v1130 = vsel %vm266, %v1099, 0.0
    %1131 = vadd.xlane.f32.xlu0 %v1130
    %v1132 = vpop.xlane.xlu0 %1131
    %v1133 = vsel %vm266, %v1101, 0.0
    %1134 = vadd.xlane.f32.xlu0 %v1133
    %v1135 = vpop.xlane.xlu0 %1134
    %v1136 = vsel %vm266, %v1103, 0.0
    %1137 = vadd.xlane.f32.xlu0 %v1136
    %v1138 = vpop.xlane.xlu0 %1137
    %v1139 = vsel %vm266, %v1105, 0.0
    %1140 = vadd.xlane.f32.xlu0 %v1139
    %v1141 = vpop.xlane.xlu0 %1140
    %v1142 = vsel %vm266, %v1107, 0.0
    %1143 = vadd.xlane.f32.xlu0 %v1142
    %v1144 = vpop.xlane.xlu0 %1143
    %v1145 = vsel %vm266, %v1109, 0.0
    %1146 = vadd.xlane.f32.xlu0 %v1145
    %v1147 = vpop.xlane.xlu0 %1146
    %v1148 = vsel %vm266, %v1111, 0.0
    %1149 = vadd.xlane.f32.xlu0 %v1148
    %v1150 = vpop.xlane.xlu0 %1149
    %v1151 = vsel %vm266, %v1113, 0.0
    %1152 = vadd.xlane.f32.xlu0 %v1151
    %v1153 = vpop.xlane.xlu0 %1152
    %v1154 = vsel %vm266, %v1115, 0.0
    %1155 = vadd.xlane.f32.xlu0 %v1154
    %v1156 = vpop.xlane.xlu0 %1155
    %v1157 = vsel %vm266, %v1117, 0.0
    %1158 = vadd.xlane.f32.xlu0 %v1157
    %v1159 = vpop.xlane.xlu0 %1158
    %v1160 = vsel %vm266, %v1119, 0.0
    %1161 = vadd.xlane.f32.xlu0 %v1160
    %v1162 = vpop.xlane.xlu0 %1161
    %v1163 = vsel %vm266, %v1121, 0.0
    %1164 = vadd.xlane.f32.xlu0 %v1163
    %v1165 = vpop.xlane.xlu0 %1164
    %v1166 = vsel %vm266, %v1123, 0.0
    %1167 = vadd.xlane.f32.xlu0 %v1166
    %v1168 = vpop.xlane.xlu0 %1167
    %v1169 = vsel %vm266, %v1125, 0.0
    %1170 = vadd.xlane.f32.xlu0 %v1169
    %v1171 = vpop.xlane.xlu0 %1170
    %v1172 = vsel %vm266, %v1127, 0.0
    %1173 = vadd.xlane.f32.xlu0 %v1172
    %v1174 = vpop.xlane.xlu0 %1173
    %v1175 = vsel %vm266, %v1129, 0.0
    %1176 = vadd.xlane.f32.xlu0 %v1175
    %v1177 = vpop.xlane.xlu0 %1176
    %v1178 = vmax.f32 %v1132, 1e-20
    %v1179 = vmax.f32 %v1135, 1e-20
    %v1180 = vmax.f32 %v1138, 1e-20
    %v1181 = vmax.f32 %v1141, 1e-20
    %v1182 = vmax.f32 %v1144, 1e-20
    %v1183 = vmax.f32 %v1147, 1e-20
    %v1184 = vmax.f32 %v1150, 1e-20
    %v1185 = vmax.f32 %v1153, 1e-20
    %v1186 = vmax.f32 %v1156, 1e-20
    %v1187 = vmax.f32 %v1159, 1e-20
    %v1188 = vmax.f32 %v1162, 1e-20
    %v1189 = vmax.f32 %v1165, 1e-20
    %v1190 = vmax.f32 %v1168, 1e-20
    %v1191 = vmax.f32 %v1171, 1e-20
    %v1192 = vmax.f32 %v1174, 1e-20
    %v1193 = vmax.f32 %v1177, 1e-20
    %v1194 = vrcp.pop %v1178
    %v1195 = vmul.f32 %v1099, %v1194
    %v1196 = vrcp.pop %v1179
    %v1197 = vmul.f32 %v1101, %v1196
    %v1198 = vrcp.pop %v1180
    %v1199 = vmul.f32 %v1103, %v1198
    %v1200 = vrcp.pop %v1181
    %v1201 = vmul.f32 %v1105, %v1200
    %v1202 = vrcp.pop %v1182
    %v1203 = vmul.f32 %v1107, %v1202
    %v1204 = vrcp.pop %v1183
    %v1205 = vmul.f32 %v1109, %v1204
    %v1206 = vrcp.pop %v1184
    %v1207 = vmul.f32 %v1111, %v1206
    %v1208 = vrcp.pop %v1185
    %v1209 = vmul.f32 %v1113, %v1208
    %v1210 = vrcp.pop %v1186
    %v1211 = vmul.f32 %v1115, %v1210
    %v1212 = vrcp.pop %v1187
    %v1213 = vmul.f32 %v1117, %v1212
    %v1214 = vrcp.pop %v1188
    %v1215 = vmul.f32 %v1119, %v1214
    %v1216 = vrcp.pop %v1189
    %v1217 = vmul.f32 %v1121, %v1216
    %v1218 = vrcp.pop %v1190
    %v1219 = vmul.f32 %v1123, %v1218
    %v1220 = vrcp.pop %v1191
    %v1221 = vmul.f32 %v1125, %v1220
    %v1222 = vrcp.pop %v1192
    %v1223 = vmul.f32 %v1127, %v1222
    %v1224 = vrcp.pop %v1193
    %v1225 = vmul.f32 %v1129, %v1224
    %1226 = vst.msk [vmem:[#allocation3] sm:$0xff] %vm266, %v1195
    %1227 = vst.msk [vmem:[#allocation3 + $0x8] sm:$0xff] %vm266, %v1197
    %1228 = vst.msk [vmem:[#allocation3 + $0x10] sm:$0xff] %vm266, %v1199
    %1229 = vst.msk [vmem:[#allocation3 + $0x18] sm:$0xff] %vm266, %v1201
    %1230 = vst.msk [vmem:[#allocation3 + $0x20] sm:$0xff] %vm266, %v1203
    %1231 = vst.msk [vmem:[#allocation3 + $0x28] sm:$0xff] %vm266, %v1205
    %1232 = vst.msk [vmem:[#allocation3 + $0x30] sm:$0xff] %vm266, %v1207
    %1233 = vst.msk [vmem:[#allocation3 + $0x38] sm:$0xff] %vm266, %v1209
    %1234 = vst.msk [vmem:[#allocation3 + $0x40] sm:$0xff] %vm266, %v1211
    %1235 = vst.msk [vmem:[#allocation3 + $0x48] sm:$0xff] %vm266, %v1213
    %1236 = vst.msk [vmem:[#allocation3 + $0x50] sm:$0xff] %vm266, %v1215
    %1237 = vst.msk [vmem:[#allocation3 + $0x58] sm:$0xff] %vm266, %v1217
    %1238 = vst.msk [vmem:[#allocation3 + $0x60] sm:$0xff] %vm266, %v1219
    %1239 = vst.msk [vmem:[#allocation3 + $0x68] sm:$0xff] %vm266, %v1221
    %1240 = vst.msk [vmem:[#allocation3 + $0x70] sm:$0xff] %vm266, %v1223
    %1241 = vst.msk [vmem:[#allocation3 + $0x78] sm:$0xff] %vm266, %v1225
    %v1242 = vlaneseq
    %v1243 = vand.u32 %v1242, 127
    %vm1244 = vcmp.ge.s32.totalorder %v1243, 0
    %vm1245 = vcmp.lt.s32.totalorder %v1243, 8
    %vm1246 = vmand %vm1244, %vm1245
    %v1247 = vld [vmem:[#allocation3] sm:$0xff]
    %v1248 = vld [vmem:[#allocation3 + $0x8] sm:$0xff]
    %v1249 = vld [vmem:[#allocation3 + $0x10] sm:$0xff]
    %v1250 = vld [vmem:[#allocation3 + $0x18] sm:$0xff]
    %v1251 = vsel %vm1246, 1, 0
    %vm1252 = vcmp.eq.s32.totalorder %v1251, 1
    %v1253 = vsel %vm1252, %v554, 0.0
    %v1254 = vsel %vm1252, %v559, 0.0
    %v1255 = vsel %vm1252, %v564, 0.0
    %v1256 = vsel %vm1252, %v569, 0.0
    %vm1257 = vcmp.ge.s32.totalorder %v1243, 8
    %vm1258 = vcmp.lt.s32.totalorder %v1243, 16
    %vm1259 = vmand %vm1257, %vm1258
    %v1260 = vld [vmem:[%s885] sm:$0xff]
    %v1261 = vld [vmem:[%s885 + $0x8] sm:$0xff]
    %v1262 = vld [vmem:[%s885 + $0x10] sm:$0xff]
    %v1263 = vld [vmem:[%s885 + $0x18] sm:$0xff]
    %v1264 = vsel %vm1259, 1, 0
    %vm1265 = vcmp.eq.s32.totalorder %v1264, 1
    %v1266 = vsel %vm1265, %v554, 0.0
    %v1267 = vsel %vm1265, %v559, 0.0
    %v1268 = vsel %vm1265, %v564, 0.0
    %v1269 = vsel %vm1265, %v569, 0.0
    %v1271 = vsel %vm266, %v1260, 0
    %v1274 = vsel %vm266, %v1261, 0
    %v1277 = vsel %vm266, %v1262, 0
    %v1280 = vsel %vm266, %v1263, 0
    %1282 = vmatprep.subr.mxu0 0.0
    %1283 = vmatpush1.msra.mxu0 %v1266
    %1284 = vmatprep.subr.mxu0 0.0
    %1285 = vmatpush1.msra.mxu0 %v1267
    %1286 = vmatprep.subr.mxu0 0.0
    %1287 = vmatpush1.msra.mxu0 %v1268
    %1288 = vmatprep.subr.mxu0 0.0
    %1289 = vmatpush1.msra.mxu0 %v1269
    %1290 = vmatprep.subr.mxu0 0.0
    %1291 = vmatpush1.msra.mxu0 0.0
    %1292 = vmatprep.subr.mxu0 0.0
    %1293 = vmatpush1.msra.mxu0 0.0
    %1294 = vmatprep.subr.mxu0 0.0
    %1295 = vmatpush1.msra.mxu0 0.0
    %1296 = vmatprep.subr.mxu0 0.0
    %1297 = vmatpush1.msra.mxu0 0.0
    %1298 = vmatprep.subr.mxu0 0.0
    %1299 = vmatpush1.msra.mxu0 0.0
    %1300 = vmatprep.subr.mxu0 0.0
    %1301 = vmatpush1.msra.mxu0 0.0
    %1302 = vmatprep.subr.mxu0 0.0
    %1303 = vmatpush1.msra.mxu0 0.0
    %1304 = vmatprep.subr.mxu0 0.0
    %1305 = vmatpush1.msra.mxu0 0.0
    %1306 = vmatprep.subr.mxu0 0.0
    %1307 = vmatpush1.msra.mxu0 0.0
    %1308 = vmatprep.subr.mxu0 0.0
    %1309 = vmatpush1.msra.mxu0 0.0
    %1310 = vmatprep.subr.mxu0 0.0
    %1311 = vmatpush1.msra.mxu0 0.0
    %1312 = vmatprep.subr.mxu0 0.0
    %1313 = vmatpush1.msra.mxu0 0.0
    %1314 = vmatprep.subr.mxu0 0.0
    %1315 = vmatpush1.msra.mxu0 0.0
    %1316 = vmatprep.subr.mxu0 0.0
    %1317 = vmatpush1.msra.mxu0 0.0
    %1318 = vmatprep.subr.mxu0 0.0
    %1319 = vmatpush1.msra.mxu0 0.0
    %1320 = vmatprep.subr.mxu0 0.0
    %1321 = vmatpush1.msra.mxu0 0.0
    %1322 = vmatprep.subr.mxu0 0.0
    %1323 = vmatpush1.msra.mxu0 0.0
    %1324 = vmatprep.subr.mxu0 0.0
    %1325 = vmatpush1.msra.mxu0 0.0
    %1326 = vmatprep.subr.mxu0 0.0
    %1327 = vmatpush1.msra.mxu0 0.0
    %1328 = vmatprep.subr.mxu0 0.0
    %1329 = vmatpush1.msra.mxu0 0.0
    %1330 = vmatprep.subr.mxu0 0.0
    %1331 = vmatpush1.msra.mxu0 0.0
    %1332 = vmatprep.subr.mxu0 0.0
    %1333 = vmatpush1.msra.mxu0 0.0
    %1334 = vmatprep.subr.mxu0 0.0
    %1335 = vmatpush1.msra.mxu0 0.0
    %1336 = vmatprep.subr.mxu0 0.0
    %1337 = vmatpush1.msra.mxu0 0.0
    %1338 = vmatprep.subr.mxu0 0.0
    %1339 = vmatpush1.msra.mxu0 0.0
    %1340 = vmatprep.subr.mxu0 0.0
    %1341 = vmatpush1.msra.mxu0 0.0
    %1342 = vmatprep.subr.mxu0 0.0
    %1343 = vmatpush1.msra.mxu0 0.0
    %1344 = vmatprep.subr.mxu0 0.0
    %1345 = vmatpush1.msra.mxu0 0.0
    %1346 = vmatprep.mubr.f32.mxu0 0.0
    %1347 = vmatmul.mubr.f32.gmra.mrb[0].mxu0 %v1271
    %v1348 = vpop.f32.mrb[0].mxu0
    %v1349 = vadd.f32 0.0, %v1348
    %v1350 = vpop.f32.mrb[0].mxu0
    %1351 = vmatprep.mubr.f32.mxu0 0.0
    %1352 = vmatmul.mubr.f32.gmra.mrb[0].mxu0 %v1274
    %v1353 = vpop.f32.mrb[0].mxu0
    %v1354 = vadd.f32 0.0, %v1353
    %v1355 = vpop.f32.mrb[0].mxu0
    %1356 = vmatprep.mubr.f32.mxu0 0.0
    %1357 = vmatmul.mubr.f32.gmra.mrb[0].mxu0 %v1277
    %v1358 = vpop.f32.mrb[0].mxu0
    %v1359 = vadd.f32 0.0, %v1358
    %v1360 = vpop.f32.mrb[0].mxu0
    %1361 = vmatprep.mubr.f32.mxu0 0.0
    %1362 = vmatmul.mubr.f32.gmra.mrb[0].mxu0 %v1280
    %v1363 = vpop.f32.mrb[0].mxu0
    %v1364 = vadd.f32 0.0, %v1363
    %v1365 = vpop.f32.mrb[0].mxu0
    %1366 = vdwg.mxu0
    %v1368 = vsel %vm266, %v1247, 0
    %v1371 = vsel %vm266, %v1248, 0
    %v1374 = vsel %vm266, %v1249, 0
    %v1377 = vsel %vm266, %v1250, 0
    %1379 = vmatprep.subr.mxu0 0.0
    %1380 = vmatpush1.msra.mxu0 %v1253
    %1381 = vmatprep.subr.mxu0 0.0
    %1382 = vmatpush1.msra.mxu0 %v1254
    %1383 = vmatprep.subr.mxu0 0.0
    %1384 = vmatpush1.msra.mxu0 %v1255
    %1385 = vmatprep.subr.mxu0 0.0
    %1386 = vmatpush1.msra.mxu0 %v1256
    %1387 = vmatprep.subr.mxu0 0.0
    %1388 = vmatpush1.msra.mxu0 0.0
    %1389 = vmatprep.subr.mxu0 0.0
    %1390 = vmatpush1.msra.mxu0 0.0
    %1391 = vmatprep.subr.mxu0 0.0
    %1392 = vmatpush1.msra.mxu0 0.0
    %1393 = vmatprep.subr.mxu0 0.0
    %1394 = vmatpush1.msra.mxu0 0.0
    %1395 = vmatprep.subr.mxu0 0.0
    %1396 = vmatpush1.msra.mxu0 0.0
    %1397 = vmatprep.subr.mxu0 0.0
    %1398 = vmatpush1.msra.mxu0 0.0
    %1399 = vmatprep.subr.mxu0 0.0
    %1400 = vmatpush1.msra.mxu0 0.0
    %1401 = vmatprep.subr.mxu0 0.0
    %1402 = vmatpush1.msra.mxu0 0.0
    %1403 = vmatprep.subr.mxu0 0.0
    %1404 = vmatpush1.msra.mxu0 0.0
    %1405 = vmatprep.subr.mxu0 0.0
    %1406 = vmatpush1.msra.mxu0 0.0
    %1407 = vmatprep.subr.mxu0 0.0
    %1408 = vmatpush1.msra.mxu0 0.0
    %1409 = vmatprep.subr.mxu0 0.0
    %1410 = vmatpush1.msra.mxu0 0.0
    %1411 = vmatprep.subr.mxu0 0.0
    %1412 = vmatpush1.msra.mxu0 0.0
    %1413 = vmatprep.subr.mxu0 0.0
    %1414 = vmatpush1.msra.mxu0 0.0
    %1415 = vmatprep.subr.mxu0 0.0
    %1416 = vmatpush1.msra.mxu0 0.0
    %1417 = vmatprep.subr.mxu0 0.0
    %1418 = vmatpush1.msra.mxu0 0.0
    %1419 = vmatprep.subr.mxu0 0.0
    %1420 = vmatpush1.msra.mxu0 0.0
    %1421 = vmatprep.subr.mxu0 0.0
    %1422 = vmatpush1.msra.mxu0 0.0
    %1423 = vmatprep.subr.mxu0 0.0
    %1424 = vmatpush1.msra.mxu0 0.0
    %1425 = vmatprep.subr.mxu0 0.0
    %1426 = vmatpush1.msra.mxu0 0.0
    %1427 = vmatprep.subr.mxu0 0.0
    %1428 = vmatpush1.msra.mxu0 0.0
    %1429 = vmatprep.subr.mxu0 0.0
    %1430 = vmatpush1.msra.mxu0 0.0
    %1431 = vmatprep.subr.mxu0 0.0
    %1432 = vmatpush1.msra.mxu0 0.0
    %1433 = vmatprep.subr.mxu0 0.0
    %1434 = vmatpush1.msra.mxu0 0.0
    %1435 = vmatprep.subr.mxu0 0.0
    %1436 = vmatpush1.msra.mxu0 0.0
    %1437 = vmatprep.subr.mxu0 0.0
    %1438 = vmatpush1.msra.mxu0 0.0
    %1439 = vmatprep.subr.mxu0 0.0
    %1440 = vmatpush1.msra.mxu0 0.0
    %1441 = vmatprep.subr.mxu0 0.0
    %1442 = vmatpush1.msra.mxu0 0.0
    %1443 = vmatprep.mubr.f32.mxu0 0.0
    %1444 = vmatmul.mubr.f32.gmra.mrb[0].mxu0 %v1368
    %v1445 = vpop.f32.mrb[0].mxu0
    %v1446 = vadd.f32 %v1349, %v1445
    %v1447 = vpop.f32.mrb[0].mxu0
    %1448 = vmatprep.mubr.f32.mxu0 0.0
    %1449 = vmatmul.mubr.f32.gmra.mrb[0].mxu0 %v1371
    %v1450 = vpop.f32.mrb[0].mxu0
    %v1451 = vadd.f32 %v1354, %v1450
    %v1452 = vpop.f32.mrb[0].mxu0
    %1453 = vmatprep.mubr.f32.mxu0 0.0
    %1454 = vmatmul.mubr.f32.gmra.mrb[0].mxu0 %v1374
    %v1455 = vpop.f32.mrb[0].mxu0
    %v1456 = vadd.f32 %v1359, %v1455
    %v1457 = vpop.f32.mrb[0].mxu0
    %1458 = vmatprep.mubr.f32.mxu0 0.0
    %1459 = vmatmul.mubr.f32.gmra.mrb[0].mxu0 %v1377
    %v1460 = vpop.f32.mrb[0].mxu0
    %v1461 = vadd.f32 %v1364, %v1460
    %v1462 = vpop.f32.mrb[0].mxu0
    %1463 = vdwg.mxu0
    %vm1464 = vcmp.ge.s32.totalorder %v1243, 16
    %vm1465 = vcmp.lt.s32.totalorder %v1243, 24
    %vm1466 = vmand %vm1464, %vm1465
    %v1467 = vld [vmem:[%s949] sm:$0xff]
    %v1468 = vld [vmem:[%s949 + $0x8] sm:$0xff]
    %v1469 = vld [vmem:[%s949 + $0x10] sm:$0xff]
    %v1470 = vld [vmem:[%s949 + $0x18] sm:$0xff]
    %v1471 = vsel %vm1466, 1, 0
    %vm1472 = vcmp.eq.s32.totalorder %v1471, 1
    %v1473 = vsel %vm1472, %v554, 0.0
    %v1474 = vsel %vm1472, %v559, 0.0
    %v1475 = vsel %vm1472, %v564, 0.0
    %v1476 = vsel %vm1472, %v569, 0.0
    %v1478 = vsel %vm266, %v1467, 0
    %v1481 = vsel %vm266, %v1468, 0
    %v1484 = vsel %vm266, %v1469, 0
    %v1487 = vsel %vm266, %v1470, 0
    %1489 = vmatprep.subr.mxu0 0.0
    %1490 = vmatpush1.msra.mxu0 %v1473
    %1491 = vmatprep.subr.mxu0 0.0
    %1492 = vmatpush1.msra.mxu0 %v1474
    %1493 = vmatprep.subr.mxu0 0.0
    %1494 = vmatpush1.msra.mxu0 %v1475
    %1495 = vmatprep.subr.mxu0 0.0
    %1496 = vmatpush1.msra.mxu0 %v1476
    %1497 = vmatprep.subr.mxu0 0.0
    %1498 = vmatpush1.msra.mxu0 0.0
    %1499 = vmatprep.subr.mxu0 0.0
    %1500 = vmatpush1.msra.mxu0 0.0
    %1501 = vmatprep.subr.mxu0 0.0
    %1502 = vmatpush1.msra.mxu0 0.0
    %1503 = vmatprep.subr.mxu0 0.0
    %1504 = vmatpush1.msra.mxu0 0.0
    %1505 = vmatprep.subr.mxu0 0.0
    %1506 = vmatpush1.msra.mxu0 0.0
    %1507 = vmatprep.subr.mxu0 0.0
    %1508 = vmatpush1.msra.mxu0 0.0
    %1509 = vmatprep.subr.mxu0 0.0
    %1510 = vmatpush1.msra.mxu0 0.0
    %1511 = vmatprep.subr.mxu0 0.0
    %1512 = vmatpush1.msra.mxu0 0.0
    %1513 = vmatprep.subr.mxu0 0.0
    %1514 = vmatpush1.msra.mxu0 0.0
    %1515 = vmatprep.subr.mxu0 0.0
    %1516 = vmatpush1.msra.mxu0 0.0
    %1517 = vmatprep.subr.mxu0 0.0
    %1518 = vmatpush1.msra.mxu0 0.0
    %1519 = vmatprep.subr.mxu0 0.0
    %1520 = vmatpush1.msra.mxu0 0.0
    %1521 = vmatprep.subr.mxu0 0.0
    %1522 = vmatpush1.msra.mxu0 0.0
    %1523 = vmatprep.subr.mxu0 0.0
    %1524 = vmatpush1.msra.mxu0 0.0
    %1525 = vmatprep.subr.mxu0 0.0
    %1526 = vmatpush1.msra.mxu0 0.0
    %1527 = vmatprep.subr.mxu0 0.0
    %1528 = vmatpush1.msra.mxu0 0.0
    %1529 = vmatprep.subr.mxu0 0.0
    %1530 = vmatpush1.msra.mxu0 0.0
    %1531 = vmatprep.subr.mxu0 0.0
    %1532 = vmatpush1.msra.mxu0 0.0
    %1533 = vmatprep.subr.mxu0 0.0
    %1534 = vmatpush1.msra.mxu0 0.0
    %1535 = vmatprep.subr.mxu0 0.0
    %1536 = vmatpush1.msra.mxu0 0.0
    %1537 = vmatprep.subr.mxu0 0.0
    %1538 = vmatpush1.msra.mxu0 0.0
    %1539 = vmatprep.subr.mxu0 0.0
    %1540 = vmatpush1.msra.mxu0 0.0
    %1541 = vmatprep.subr.mxu0 0.0
    %1542 = vmatpush1.msra.mxu0 0.0
    %1543 = vmatprep.subr.mxu0 0.0
    %1544 = vmatpush1.msra.mxu0 0.0
    %1545 = vmatprep.subr.mxu0 0.0
    %1546 = vmatpush1.msra.mxu0 0.0
    %1547 = vmatprep.subr.mxu0 0.0
    %1548 = vmatpush1.msra.mxu0 0.0
    %1549 = vmatprep.subr.mxu0 0.0
    %1550 = vmatpush1.msra.mxu0 0.0
    %1551 = vmatprep.subr.mxu0 0.0
    %1552 = vmatpush1.msra.mxu0 0.0
    %1553 = vmatprep.mubr.f32.mxu0 0.0
    %1554 = vmatmul.mubr.f32.gmra.mrb[0].mxu0 %v1478
    %v1555 = vpop.f32.mrb[0].mxu0
    %v1556 = vadd.f32 0.0, %v1555
    %v1557 = vpop.f32.mrb[0].mxu0
    %1558 = vmatprep.mubr.f32.mxu0 0.0
    %1559 = vmatmul.mubr.f32.gmra.mrb[0].mxu0 %v1481
    %v1560 = vpop.f32.mrb[0].mxu0
    %v1561 = vadd.f32 0.0, %v1560
    %v1562 = vpop.f32.mrb[0].mxu0
    %1563 = vmatprep.mubr.f32.mxu0 0.0
    %1564 = vmatmul.mubr.f32.gmra.mrb[0].mxu0 %v1484
    %v1565 = vpop.f32.mrb[0].mxu0
    %v1566 = vadd.f32 0.0, %v1565
    %v1567 = vpop.f32.mrb[0].mxu0
    %1568 = vmatprep.mubr.f32.mxu0 0.0
    %1569 = vmatmul.mubr.f32.gmra.mrb[0].mxu0 %v1487
    %v1570 = vpop.f32.mrb[0].mxu0
    %v1571 = vadd.f32 0.0, %v1570
    %v1572 = vpop.f32.mrb[0].mxu0
    %1573 = vdwg.mxu0
    %v1574 = vadd.f32 %v1446, %v1556
    %v1575 = vadd.f32 %v1451, %v1561
    %v1576 = vadd.f32 %v1456, %v1566
    %v1577 = vadd.f32 %v1461, %v1571
    %vm1578 = vcmp.ge.s32.totalorder %v1243, 24
    %vm1579 = vcmp.lt.s32.totalorder %v1243, 32
    %vm1580 = vmand %vm1578, %vm1579
    %v1581 = vld [vmem:[%s1013] sm:$0xff]
    %v1582 = vld [vmem:[%s1013 + $0x8] sm:$0xff]
    %v1583 = vld [vmem:[%s1013 + $0x10] sm:$0xff]
    %v1584 = vld [vmem:[%s1013 + $0x18] sm:$0xff]
    %v1585 = vsel %vm1580, 1, 0
    %vm1586 = vcmp.eq.s32.totalorder %v1585, 1
    %v1587 = vsel %vm1586, %v554, 0.0
    %v1588 = vsel %vm1586, %v559, 0.0
    %v1589 = vsel %vm1586, %v564, 0.0
    %v1590 = vsel %vm1586, %v569, 0.0
    %v1592 = vsel %vm266, %v1581, 0
    %v1595 = vsel %vm266, %v1582, 0
    %v1598 = vsel %vm266, %v1583, 0
    %v1601 = vsel %vm266, %v1584, 0
    %1603 = vmatprep.subr.mxu0 0.0
    %1604 = vmatpush1.msra.mxu0 %v1587
    %1605 = vmatprep.subr.mxu0 0.0
    %1606 = vmatpush1.msra.mxu0 %v1588
    %1607 = vmatprep.subr.mxu0 0.0
    %1608 = vmatpush1.msra.mxu0 %v1589
    %1609 = vmatprep.subr.mxu0 0.0
    %1610 = vmatpush1.msra.mxu0 %v1590
    %1611 = vmatprep.subr.mxu0 0.0
    %1612 = vmatpush1.msra.mxu0 0.0
    %1613 = vmatprep.subr.mxu0 0.0
    %1614 = vmatpush1.msra.mxu0 0.0
    %1615 = vmatprep.subr.mxu0 0.0
    %1616 = vmatpush1.msra.mxu0 0.0
    %1617 = vmatprep.subr.mxu0 0.0
    %1618 = vmatpush1.msra.mxu0 0.0
    %1619 = vmatprep.subr.mxu0 0.0
    %1620 = vmatpush1.msra.mxu0 0.0
    %1621 = vmatprep.subr.mxu0 0.0
    %1622 = vmatpush1.msra.mxu0 0.0
    %1623 = vmatprep.subr.mxu0 0.0
    %1624 = vmatpush1.msra.mxu0 0.0
    %1625 = vmatprep.subr.mxu0 0.0
    %1626 = vmatpush1.msra.mxu0 0.0
    %1627 = vmatprep.subr.mxu0 0.0
    %1628 = vmatpush1.msra.mxu0 0.0
    %1629 = vmatprep.subr.mxu0 0.0
    %1630 = vmatpush1.msra.mxu0 0.0
    %1631 = vmatprep.subr.mxu0 0.0
    %1632 = vmatpush1.msra.mxu0 0.0
    %1633 = vmatprep.subr.mxu0 0.0
    %1634 = vmatpush1.msra.mxu0 0.0
    %1635 = vmatprep.subr.mxu0 0.0
    %1636 = vmatpush1.msra.mxu0 0.0
    %1637 = vmatprep.subr.mxu0 0.0
    %1638 = vmatpush1.msra.mxu0 0.0
    %1639 = vmatprep.subr.mxu0 0.0
    %1640 = vmatpush1.msra.mxu0 0.0
    %1641 = vmatprep.subr.mxu0 0.0
    %1642 = vmatpush1.msra.mxu0 0.0
    %1643 = vmatprep.subr.mxu0 0.0
    %1644 = vmatpush1.msra.mxu0 0.0
    %1645 = vmatprep.subr.mxu0 0.0
    %1646 = vmatpush1.msra.mxu0 0.0
    %1647 = vmatprep.subr.mxu0 0.0
    %1648 = vmatpush1.msra.mxu0 0.0
    %1649 = vmatprep.subr.mxu0 0.0
    %1650 = vmatpush1.msra.mxu0 0.0
    %1651 = vmatprep.subr.mxu0 0.0
    %1652 = vmatpush1.msra.mxu0 0.0
    %1653 = vmatprep.subr.mxu0 0.0
    %1654 = vmatpush1.msra.mxu0 0.0
    %1655 = vmatprep.subr.mxu0 0.0
    %1656 = vmatpush1.msra.mxu0 0.0
    %1657 = vmatprep.subr.mxu0 0.0
    %1658 = vmatpush1.msra.mxu0 0.0
    %1659 = vmatprep.subr.mxu0 0.0
    %1660 = vmatpush1.msra.mxu0 0.0
    %1661 = vmatprep.subr.mxu0 0.0
    %1662 = vmatpush1.msra.mxu0 0.0
    %1663 = vmatprep.subr.mxu0 0.0
    %1664 = vmatpush1.msra.mxu0 0.0
    %1665 = vmatprep.subr.mxu0 0.0
    %1666 = vmatpush1.msra.mxu0 0.0
    %1667 = vmatprep.mubr.f32.mxu0 0.0
    %1668 = vmatmul.mubr.f32.gmra.mrb[0].mxu0 %v1592
    %v1669 = vpop.f32.mrb[0].mxu0
    %v1670 = vadd.f32 0.0, %v1669
    %v1671 = vpop.f32.mrb[0].mxu0
    %1672 = vmatprep.mubr.f32.mxu0 0.0
    %1673 = vmatmul.mubr.f32.gmra.mrb[0].mxu0 %v1595
    %v1674 = vpop.f32.mrb[0].mxu0
    %v1675 = vadd.f32 0.0, %v1674
    %v1676 = vpop.f32.mrb[0].mxu0
    %1677 = vmatprep.mubr.f32.mxu0 0.0
    %1678 = vmatmul.mubr.f32.gmra.mrb[0].mxu0 %v1598
    %v1679 = vpop.f32.mrb[0].mxu0
    %v1680 = vadd.f32 0.0, %v1679
    %v1681 = vpop.f32.mrb[0].mxu0
    %1682 = vmatprep.mubr.f32.mxu0 0.0
    %1683 = vmatmul.mubr.f32.gmra.mrb[0].mxu0 %v1601
    %v1684 = vpop.f32.mrb[0].mxu0
    %v1685 = vadd.f32 0.0, %v1684
    %v1686 = vpop.f32.mrb[0].mxu0
    %1687 = vdwg.mxu0
    %v1688 = vadd.f32 %v1574, %v1670
    %v1689 = vadd.f32 %v1575, %v1675
    %v1690 = vadd.f32 %v1576, %v1680
    %v1691 = vadd.f32 %v1577, %v1685
    %vm1692 = vcmp.gt.f32.partialorder %v1688, 0.0
    %vm1693 = vcmp.gt.f32.partialorder %v1689, 0.0
    %vm1694 = vcmp.gt.f32.partialorder %v1690, 0.0
    %vm1695 = vcmp.gt.f32.partialorder %v1691, 0.0
    %v1696 = vmin.f32 %v1688, 0.0
    %v1697 = vmin.f32 %v1689, 0.0
    %v1698 = vmin.f32 %v1690, 0.0
    %v1699 = vmin.f32 %v1691, 0.0
    %v1700 = vmul.f32 %v1696, 1.442695
    %v1701 = vpow.pop %v1700
    %v1702 = vmul.f32 %v1697, 1.442695
    %v1703 = vpow.pop %v1702
    %v1704 = vmul.f32 %v1698, 1.442695
    %v1705 = vpow.pop %v1704
    %v1706 = vmul.f32 %v1699, 1.442695
    %v1707 = vpow.pop %v1706
    %v1708 = vsub.f32 %v1701, 1.0
    %v1709 = vsub.f32 %v1703, 1.0
    %v1710 = vsub.f32 %v1705, 1.0
    %v1711 = vsub.f32 %v1707, 1.0
    %v1712 = vsel %vm1692, %v1688, %v1708
    %v1713 = vsel %vm1693, %v1689, %v1709
    %v1714 = vsel %vm1694, %v1690, %v1710
    %v1715 = vsel %vm1695, %v1691, %v1711
    %v1716 = vld [vmem:[%s41] sm:$0x1]
    %vm1717 = vcmask 7168
    %v1719 = vsel %vm1717, %v459, 0
    %v1722 = vsel %vm1717, %v460, 0
    %v1725 = vsel %vm1717, %v461, 0
    %v1728 = vsel %vm1717, %v462, 0
    %vm1730 = vcmask 1040384
    %v1732 = vsel %vm1730, %v1716, 0
    %1734 = vmatprep.subr.mxu0 0.0
    %1735 = vmatpush1.msra.mxu0 %v1732
    %1736 = vmatprep.subr.mxu0 0.0
    %1737 = vmatpush1.msra.mxu0 0.0
    %1738 = vmatprep.subr.mxu0 0.0
    %1739 = vmatpush1.msra.mxu0 0.0
    %1740 = vmatprep.subr.mxu0 0.0
    %1741 = vmatpush1.msra.mxu0 0.0
    %1742 = vmatprep.subr.mxu0 0.0
    %1743 = vmatpush1.msra.mxu0 0.0
    %1744 = vmatprep.subr.mxu0 0.0
    %1745 = vmatpush1.msra.mxu0 0.0
    %1746 = vmatprep.subr.mxu0 0.0
    %1747 = vmatpush1.msra.mxu0 0.0
    %1748 = vmatprep.subr.mxu0 0.0
    %1749 = vmatpush1.msra.mxu0 0.0
    %1750 = vmatprep.subr.mxu0 0.0
    %1751 = vmatpush1.msra.mxu0 0.0
    %1752 = vmatprep.subr.mxu0 0.0
    %1753 = vmatpush1.msra.mxu0 0.0
    %1754 = vmatprep.subr.mxu0 0.0
    %1755 = vmatpush1.msra.mxu0 0.0
    %1756 = vmatprep.subr.mxu0 0.0
    %1757 = vmatpush1.msra.mxu0 0.0
    %1758 = vmatprep.subr.mxu0 0.0
    %1759 = vmatpush1.msra.mxu0 0.0
    %1760 = vmatprep.subr.mxu0 0.0
    %1761 = vmatpush1.msra.mxu0 0.0
    %1762 = vmatprep.subr.mxu0 0.0
    %1763 = vmatpush1.msra.mxu0 0.0
    %1764 = vmatprep.subr.mxu0 0.0
    %1765 = vmatpush1.msra.mxu0 0.0
    %1766 = vmatprep.subr.mxu0 0.0
    %1767 = vmatpush1.msra.mxu0 0.0
    %1768 = vmatprep.subr.mxu0 0.0
    %1769 = vmatpush1.msra.mxu0 0.0
    %1770 = vmatprep.subr.mxu0 0.0
    %1771 = vmatpush1.msra.mxu0 0.0
    %1772 = vmatprep.subr.mxu0 0.0
    %1773 = vmatpush1.msra.mxu0 0.0
    %1774 = vmatprep.subr.mxu0 0.0
    %1775 = vmatpush1.msra.mxu0 0.0
    %1776 = vmatprep.subr.mxu0 0.0
    %1777 = vmatpush1.msra.mxu0 0.0
    %1778 = vmatprep.subr.mxu0 0.0
    %1779 = vmatpush1.msra.mxu0 0.0
    %1780 = vmatprep.subr.mxu0 0.0
    %1781 = vmatpush1.msra.mxu0 0.0
    %1782 = vmatprep.subr.mxu0 0.0
    %1783 = vmatpush1.msra.mxu0 0.0
    %1784 = vmatprep.subr.mxu0 0.0
    %1785 = vmatpush1.msra.mxu0 0.0
    %1786 = vmatprep.subr.mxu0 0.0
    %1787 = vmatpush1.msra.mxu0 0.0
    %1788 = vmatprep.subr.mxu0 0.0
    %1789 = vmatpush1.msra.mxu0 0.0
    %1790 = vmatprep.subr.mxu0 0.0
    %1791 = vmatpush1.msra.mxu0 0.0
    %1792 = vmatprep.subr.mxu0 0.0
    %1793 = vmatpush1.msra.mxu0 0.0
    %1794 = vmatprep.subr.mxu0 0.0
    %1795 = vmatpush1.msra.mxu0 0.0
    %1796 = vmatprep.subr.mxu0 0.0
    %1797 = vmatpush1.msra.mxu0 0.0
    %1798 = vmatprep.mubr.f32.mxu0 0.0
    %1799 = vmatmul.mubr.f32.gmra.mrb[0].mxu0 %v1719
    %v1800 = vpop.f32.mrb[0].mxu0
    %v1801 = vadd.f32 0.0, %v1800
    %v1802 = vpop.f32.mrb[0].mxu0
    %1803 = vmatprep.mubr.f32.mxu0 0.0
    %1804 = vmatmul.mubr.f32.gmra.mrb[0].mxu0 %v1722
    %v1805 = vpop.f32.mrb[0].mxu0
    %v1806 = vadd.f32 0.0, %v1805
    %v1807 = vpop.f32.mrb[0].mxu0
    %1808 = vmatprep.mubr.f32.mxu0 0.0
    %1809 = vmatmul.mubr.f32.gmra.mrb[0].mxu0 %v1725
    %v1810 = vpop.f32.mrb[0].mxu0
    %v1811 = vadd.f32 0.0, %v1810
    %v1812 = vpop.f32.mrb[0].mxu0
    %1813 = vmatprep.mubr.f32.mxu0 0.0
    %1814 = vmatmul.mubr.f32.gmra.mrb[0].mxu0 %v1728
    %v1815 = vpop.f32.mrb[0].mxu0
    %v1816 = vadd.f32 0.0, %v1815
    %v1817 = vpop.f32.mrb[0].mxu0
    %1818 = vdwg.mxu0
    %v1819 = vld [vmem:[%s43] sm:$0xf]
    %v1821 = vsel %vm266, %v1819, 0
    %v1824 = vsel %vm266, %v1801, 0
    %v1827 = vsel %vm266, %v1806, 0
    %v1830 = vsel %vm266, %v1811, 0
    %v1833 = vsel %vm266, %v1816, 0
    %1835 = vmatprep.subr.mxu0 0.0
    %1836 = vmatpush1.xpose.msra.mxu0 %v1824
    %1837 = vmatprep.subr.mxu0 0.0
    %1838 = vmatpush1.xpose.msra.mxu0 %v1827
    %1839 = vmatprep.subr.mxu0 0.0
    %1840 = vmatpush1.xpose.msra.mxu0 %v1830
    %1841 = vmatprep.subr.mxu0 0.0
    %1842 = vmatpush1.xpose.msra.mxu0 %v1833
    %1843 = vmatprep.subr.mxu0 0.0
    %1844 = vmatpush1.xpose.msra.mxu0 0.0
    %1845 = vmatprep.subr.mxu0 0.0
    %1846 = vmatpush1.xpose.msra.mxu0 0.0
    %1847 = vmatprep.subr.mxu0 0.0
    %1848 = vmatpush1.xpose.msra.mxu0 0.0
    %1849 = vmatprep.subr.mxu0 0.0
    %1850 = vmatpush1.xpose.msra.mxu0 0.0
    %1851 = vmatprep.subr.mxu0 0.0
    %1852 = vmatpush1.xpose.msra.mxu0 0.0
    %1853 = vmatprep.subr.mxu0 0.0
    %1854 = vmatpush1.xpose.msra.mxu0 0.0
    %1855 = vmatprep.subr.mxu0 0.0
    %1856 = vmatpush1.xpose.msra.mxu0 0.0
    %1857 = vmatprep.subr.mxu0 0.0
    %1858 = vmatpush1.xpose.msra.mxu0 0.0
    %1859 = vmatprep.subr.mxu0 0.0
    %1860 = vmatpush1.xpose.msra.mxu0 0.0
    %1861 = vmatprep.subr.mxu0 0.0
    %1862 = vmatpush1.xpose.msra.mxu0 0.0
    %1863 = vmatprep.subr.mxu0 0.0
    %1864 = vmatpush1.xpose.msra.mxu0 0.0
    %1865 = vmatprep.subr.mxu0 0.0
    %1866 = vmatpush1.xpose.msra.mxu0 0.0
    %1867 = vmatprep.subr.mxu0 0.0
    %1868 = vmatpush1.xpose.msra.mxu0 0.0
    %1869 = vmatprep.subr.mxu0 0.0
    %1870 = vmatpush1.xpose.msra.mxu0 0.0
    %1871 = vmatprep.subr.mxu0 0.0
    %1872 = vmatpush1.xpose.msra.mxu0 0.0
    %1873 = vmatprep.subr.mxu0 0.0
    %1874 = vmatpush1.xpose.msra.mxu0 0.0
    %1875 = vmatprep.subr.mxu0 0.0
    %1876 = vmatpush1.xpose.msra.mxu0 0.0
    %1877 = vmatprep.subr.mxu0 0.0
    %1878 = vmatpush1.xpose.msra.mxu0 0.0
    %1879 = vmatprep.subr.mxu0 0.0
    %1880 = vmatpush1.xpose.msra.mxu0 0.0
    %1881 = vmatprep.subr.mxu0 0.0
    %1882 = vmatpush1.xpose.msra.mxu0 0.0
    %1883 = vmatprep.subr.mxu0 0.0
    %1884 = vmatpush1.xpose.msra.mxu0 0.0
    %1885 = vmatprep.subr.mxu0 0.0
    %1886 = vmatpush1.xpose.msra.mxu0 0.0
    %1887 = vmatprep.subr.mxu0 0.0
    %1888 = vmatpush1.xpose.msra.mxu0 0.0
    %1889 = vmatprep.subr.mxu0 0.0
    %1890 = vmatpush1.xpose.msra.mxu0 0.0
    %1891 = vmatprep.subr.mxu0 0.0
    %1892 = vmatpush1.xpose.msra.mxu0 0.0
    %1893 = vmatprep.subr.mxu0 0.0
    %1894 = vmatpush1.xpose.msra.mxu0 0.0
    %1895 = vmatprep.subr.mxu0 0.0
    %1896 = vmatpush1.xpose.msra.mxu0 0.0
    %1897 = vmatprep.subr.mxu0 0.0
    %1898 = vmatpush1.xpose.msra.mxu0 0.0
    %1899 = vmatprep.mubr.f32.mxu0 0.0
    %1900 = vmatmul.mubr.f32.gmra.mrb[0].mxu0 %v1821
    %v1901 = vpop.f32.mrb[0].mxu0
    %v1902 = vadd.f32 0.0, %v1901
    %v1903 = vpop.f32.mrb[0].mxu0
    %1904 = vdwg.mxu0
    %v1905 = vld [vmem:[%s45] sm:$0xff]
    %v1906 = vld [vmem:[%s45 + $0x8] sm:$0xff]
    %v1907 = vld [vmem:[%s45 + $0x10] sm:$0xff]
    %v1908 = vld [vmem:[%s45 + $0x18] sm:$0xff]
    %1909 = vmatprep.subr.mxu0 0.0
    %1910 = vmatpush1.msra.mxu0 %v1905
    %1911 = vmatprep.subr.mxu0 0.0
    %1912 = vmatpush1.msra.mxu0 %v1906
    %1913 = vmatprep.subr.mxu0 0.0
    %1914 = vmatpush1.msra.mxu0 %v1907
    %1915 = vmatprep.subr.mxu0 0.0
    %1916 = vmatpush1.msra.mxu0 %v1908
    %1917 = vmatprep.subr.mxu0 0.0
    %1918 = vmatpush1.msra.mxu0 0.0
    %1919 = vmatprep.subr.mxu0 0.0
    %1920 = vmatpush1.msra.mxu0 0.0
    %1921 = vmatprep.subr.mxu0 0.0
    %1922 = vmatpush1.msra.mxu0 0.0
    %1923 = vmatprep.subr.mxu0 0.0
    %1924 = vmatpush1.msra.mxu0 0.0
    %1925 = vmatprep.subr.mxu0 0.0
    %1926 = vmatpush1.msra.mxu0 0.0
    %1927 = vmatprep.subr.mxu0 0.0
    %1928 = vmatpush1.msra.mxu0 0.0
    %1929 = vmatprep.subr.mxu0 0.0
    %1930 = vmatpush1.msra.mxu0 0.0
    %1931 = vmatprep.subr.mxu0 0.0
    %1932 = vmatpush1.msra.mxu0 0.0
    %1933 = vmatprep.subr.mxu0 0.0
    %1934 = vmatpush1.msra.mxu0 0.0
    %1935 = vmatprep.subr.mxu0 0.0
    %1936 = vmatpush1.msra.mxu0 0.0
    %1937 = vmatprep.subr.mxu0 0.0
    %1938 = vmatpush1.msra.mxu0 0.0
    %1939 = vmatprep.subr.mxu0 0.0
    %1940 = vmatpush1.msra.mxu0 0.0
    %1941 = vmatprep.subr.mxu0 0.0
    %1942 = vmatpush1.msra.mxu0 0.0
    %1943 = vmatprep.subr.mxu0 0.0
    %1944 = vmatpush1.msra.mxu0 0.0
    %1945 = vmatprep.subr.mxu0 0.0
    %1946 = vmatpush1.msra.mxu0 0.0
    %1947 = vmatprep.subr.mxu0 0.0
    %1948 = vmatpush1.msra.mxu0 0.0
    %1949 = vmatprep.subr.mxu0 0.0
    %1950 = vmatpush1.msra.mxu0 0.0
    %1951 = vmatprep.subr.mxu0 0.0
    %1952 = vmatpush1.msra.mxu0 0.0
    %1953 = vmatprep.subr.mxu0 0.0
    %1954 = vmatpush1.msra.mxu0 0.0
    %1955 = vmatprep.subr.mxu0 0.0
    %1956 = vmatpush1.msra.mxu0 0.0
    %1957 = vmatprep.subr.mxu0 0.0
    %1958 = vmatpush1.msra.mxu0 0.0
    %1959 = vmatprep.subr.mxu0 0.0
    %1960 = vmatpush1.msra.mxu0 0.0
    %1961 = vmatprep.subr.mxu0 0.0
    %1962 = vmatpush1.msra.mxu0 0.0
    %1963 = vmatprep.subr.mxu0 0.0
    %1964 = vmatpush1.msra.mxu0 0.0
    %1965 = vmatprep.subr.mxu0 0.0
    %1966 = vmatpush1.msra.mxu0 0.0
    %1967 = vmatprep.subr.mxu0 0.0
    %1968 = vmatpush1.msra.mxu0 0.0
    %1969 = vmatprep.subr.mxu0 0.0
    %1970 = vmatpush1.msra.mxu0 0.0
    %1971 = vmatprep.subr.mxu0 0.0
    %1972 = vmatpush1.msra.mxu0 0.0
    %1973 = vmatprep.mubr.f32.mxu0 0.0
    %1974 = vmatmul.mubr.f32.gmra.mrb[0].mxu0 %v1824
    %v1975 = vpop.f32.mrb[0].mxu0
    %v1976 = vadd.f32 0.0, %v1975
    %v1977 = vpop.f32.mrb[0].mxu0
    %1978 = vmatprep.mubr.f32.mxu0 0.0
    %1979 = vmatmul.mubr.f32.gmra.mrb[0].mxu0 %v1827
    %v1980 = vpop.f32.mrb[0].mxu0
    %v1981 = vadd.f32 0.0, %v1980
    %v1982 = vpop.f32.mrb[0].mxu0
    %1983 = vmatprep.mubr.f32.mxu0 0.0
    %1984 = vmatmul.mubr.f32.gmra.mrb[0].mxu0 %v1830
    %v1985 = vpop.f32.mrb[0].mxu0
    %v1986 = vadd.f32 0.0, %v1985
    %v1987 = vpop.f32.mrb[0].mxu0
    %1988 = vmatprep.mubr.f32.mxu0 0.0
    %1989 = vmatmul.mubr.f32.gmra.mrb[0].mxu0 %v1833
    %v1990 = vpop.f32.mrb[0].mxu0
    %v1991 = vadd.f32 0.0, %v1990
    %v1992 = vpop.f32.mrb[0].mxu0
    %1993 = vdwg.mxu0
    %s1994 = sld [smem:[#allocation8]]
    %v1995 = vstv %s1994
    %v1996 = vadd.f32 %v1995, 0.0
    %s1997 = sld [smem:[#allocation8 + $0x4]]
    %v1998 = vstv %s1997
    %v1999 = vsel %vm750, %v1998, %v1996
    %v2000 = vsel %vm751, %v1998, %v1996
    %v2001 = vsel %vm752, %v1998, %v1996
    %v2002 = vsel %vm753, %v1998, %v1996
    %s2003 = sld [smem:[#allocation8 + $0x8]]
    %v2004 = vstv %s2003
    %v2005 = vsel %vm760, %v2004, %v1999
    %v2006 = vsel %vm761, %v2004, %v2000
    %v2007 = vsel %vm762, %v2004, %v2001
    %v2008 = vsel %vm763, %v2004, %v2002
    %2010 = vset.pattern.permute.xlu0 0
    %2011 = vperm.xlu0 %2010, %v1976
    %v2012 = vpop.permute.xlu0 %2011
    %2015 = vset.pattern.permute.xlu0 0
    %2016 = vperm.xlu0 %2015, %v1981
    %v2017 = vpop.permute.xlu0 %2016
    %2020 = vset.pattern.permute.xlu0 0
    %2021 = vperm.xlu0 %2020, %v1986
    %v2022 = vpop.permute.xlu0 %2021
    %2025 = vset.pattern.permute.xlu0 0
    %2026 = vperm.xlu0 %2025, %v1991
    %v2027 = vpop.permute.xlu0 %2026
    %v2029 = vlaneseq
    %v2030 = vshrl.u32 %v2029, 7
    %v2031 = vsub.s32 0, %v2030
    %v2032 = vrot.slane %v1902, %v2031
    %v2033 = vadd.f32 %v2012, %v2032
    %v2034 = vadd.f32 %v2017, %v2032
    %v2035 = vadd.f32 %v2022, %v2032
    %v2036 = vadd.f32 %v2027, %v2032
    %v2037 = vadd.f32 %v2033, %v2005
    %v2038 = vadd.f32 %v2034, %v2006
    %v2039 = vadd.f32 %v2035, %v2007
    %v2040 = vadd.f32 %v2036, %v2008
    %vm2041 = vcmp.ge.f32.partialorder %v2037, 0.0
    %vm2042 = vcmp.ge.f32.partialorder %v2038, 0.0
    %vm2043 = vcmp.ge.f32.partialorder %v2039, 0.0
    %vm2044 = vcmp.ge.f32.partialorder %v2040, 0.0
    %v2045 = vmul.f32 %v2037, 0.05
    %v2046 = vmul.f32 %v2038, 0.05
    %v2047 = vmul.f32 %v2039, 0.05
    %v2048 = vmul.f32 %v2040, 0.05
    %v2049 = vsel %vm2041, %v2037, %v2045
    %v2050 = vsel %vm2042, %v2038, %v2046
    %v2051 = vsel %vm2043, %v2039, %v2047
    %v2052 = vsel %vm2044, %v2040, %v2048
    %v2053 = vsel %vm814, %v2049, -1e+30
    %v2054 = vsel %vm815, %v2050, -1e+30
    %v2055 = vsel %vm816, %v2051, -1e+30
    %v2056 = vsel %vm817, %v2052, -1e+30
    %2057 = vst.msk [vmem:[#allocation3] sm:$0xff] %vm266, %v2053
    %2058 = vst.msk [vmem:[#allocation3 + $0x8] sm:$0xff] %vm266, %v2054
    %2059 = vst.msk [vmem:[#allocation3 + $0x10] sm:$0xff] %vm266, %v2055
    %2060 = vst.msk [vmem:[#allocation3 + $0x18] sm:$0xff] %vm266, %v2056
    %s2061 = sld [smem:[#allocation8 + $0x1]]
    %v2062 = vstv %s2061
    %v2063 = vadd.f32 %v2062, 0.0
    %s2064 = sld [smem:[#allocation8 + $0x5]]
    %v2065 = vstv %s2064
    %v2066 = vsel %vm750, %v2065, %v2063
    %v2067 = vsel %vm751, %v2065, %v2063
    %v2068 = vsel %vm752, %v2065, %v2063
    %v2069 = vsel %vm753, %v2065, %v2063
    %s2070 = sld [smem:[#allocation8 + $0x9]]
    %v2071 = vstv %s2070
    %v2072 = vsel %vm760, %v2071, %v2066
    %v2073 = vsel %vm761, %v2071, %v2067
    %v2074 = vsel %vm762, %v2071, %v2068
    %v2075 = vsel %vm763, %v2071, %v2069
    %2076 = vset.pattern.permute.xlu0 1
    %2077 = vperm.xlu0 %2076, %v1976
    %v2078 = vpop.permute.xlu0 %2077
    %2080 = vset.pattern.permute.xlu0 1
    %2081 = vperm.xlu0 %2080, %v1981
    %v2082 = vpop.permute.xlu0 %2081
    %2084 = vset.pattern.permute.xlu0 1
    %2085 = vperm.xlu0 %2084, %v1986
    %v2086 = vpop.permute.xlu0 %2085
    %2088 = vset.pattern.permute.xlu0 1
    %2089 = vperm.xlu0 %2088, %v1991
    %v2090 = vpop.permute.xlu0 %2089
    %v2092 = vlaneseq
    %v2093 = vshrl.u32 %v2092, 7
    %v2094 = vsub.s32 1, %v2093
    %v2095 = vrot.slane %v1902, %v2094
    %v2096 = vadd.f32 %v2078, %v2095
    %v2097 = vadd.f32 %v2082, %v2095
    %v2098 = vadd.f32 %v2086, %v2095
    %v2099 = vadd.f32 %v2090, %v2095
    %v2100 = vadd.f32 %v2096, %v2072
    %v2101 = vadd.f32 %v2097, %v2073
    %v2102 = vadd.f32 %v2098, %v2074
    %v2103 = vadd.f32 %v2099, %v2075
    %vm2104 = vcmp.ge.f32.partialorder %v2100, 0.0
    %vm2105 = vcmp.ge.f32.partialorder %v2101, 0.0
    %vm2106 = vcmp.ge.f32.partialorder %v2102, 0.0
    %vm2107 = vcmp.ge.f32.partialorder %v2103, 0.0
    %v2108 = vmul.f32 %v2100, 0.05
    %v2109 = vmul.f32 %v2101, 0.05
    %v2110 = vmul.f32 %v2102, 0.05
    %v2111 = vmul.f32 %v2103, 0.05
    %v2112 = vsel %vm2104, %v2100, %v2108
    %v2113 = vsel %vm2105, %v2101, %v2109
    %v2114 = vsel %vm2106, %v2102, %v2110
    %v2115 = vsel %vm2107, %v2103, %v2111
    %v2116 = vsel %vm814, %v2112, -1e+30
    %v2117 = vsel %vm815, %v2113, -1e+30
    %v2118 = vsel %vm816, %v2114, -1e+30
    %v2119 = vsel %vm817, %v2115, -1e+30
    %2120 = vst.msk [vmem:[%s885] sm:$0xff] %vm266, %v2116
    %2121 = vst.msk [vmem:[%s885 + $0x8] sm:$0xff] %vm266, %v2117
    %2122 = vst.msk [vmem:[%s885 + $0x10] sm:$0xff] %vm266, %v2118
    %2123 = vst.msk [vmem:[%s885 + $0x18] sm:$0xff] %vm266, %v2119
    %s2124 = sld [smem:[#allocation8 + $0x2]]
    %v2125 = vstv %s2124
    %v2126 = vadd.f32 %v2125, 0.0
    %s2127 = sld [smem:[#allocation8 + $0x6]]
    %v2128 = vstv %s2127
    %v2129 = vsel %vm750, %v2128, %v2126
    %v2130 = vsel %vm751, %v2128, %v2126
    %v2131 = vsel %vm752, %v2128, %v2126
    %v2132 = vsel %vm753, %v2128, %v2126
    %s2133 = sld [smem:[#allocation8 + $0xa]]
    %v2134 = vstv %s2133
    %v2135 = vsel %vm760, %v2134, %v2129
    %v2136 = vsel %vm761, %v2134, %v2130
    %v2137 = vsel %vm762, %v2134, %v2131
    %v2138 = vsel %vm763, %v2134, %v2132
    %2139 = vset.pattern.permute.xlu0 2
    %2140 = vperm.xlu0 %2139, %v1976
    %v2141 = vpop.permute.xlu0 %2140
    %2143 = vset.pattern.permute.xlu0 2
    %2144 = vperm.xlu0 %2143, %v1981
    %v2145 = vpop.permute.xlu0 %2144
    %2147 = vset.pattern.permute.xlu0 2
    %2148 = vperm.xlu0 %2147, %v1986
    %v2149 = vpop.permute.xlu0 %2148
    %2151 = vset.pattern.permute.xlu0 2
    %2152 = vperm.xlu0 %2151, %v1991
    %v2153 = vpop.permute.xlu0 %2152
    %v2155 = vlaneseq
    %v2156 = vshrl.u32 %v2155, 7
    %v2157 = vsub.s32 2, %v2156
    %v2158 = vrot.slane %v1902, %v2157
    %v2159 = vadd.f32 %v2141, %v2158
    %v2160 = vadd.f32 %v2145, %v2158
    %v2161 = vadd.f32 %v2149, %v2158
    %v2162 = vadd.f32 %v2153, %v2158
    %v2163 = vadd.f32 %v2159, %v2135
    %v2164 = vadd.f32 %v2160, %v2136
    %v2165 = vadd.f32 %v2161, %v2137
    %v2166 = vadd.f32 %v2162, %v2138
    %vm2167 = vcmp.ge.f32.partialorder %v2163, 0.0
    %vm2168 = vcmp.ge.f32.partialorder %v2164, 0.0
    %vm2169 = vcmp.ge.f32.partialorder %v2165, 0.0
    %vm2170 = vcmp.ge.f32.partialorder %v2166, 0.0
    %v2171 = vmul.f32 %v2163, 0.05
    %v2172 = vmul.f32 %v2164, 0.05
    %v2173 = vmul.f32 %v2165, 0.05
    %v2174 = vmul.f32 %v2166, 0.05
    %v2175 = vsel %vm2167, %v2163, %v2171
    %v2176 = vsel %vm2168, %v2164, %v2172
    %v2177 = vsel %vm2169, %v2165, %v2173
    %v2178 = vsel %vm2170, %v2166, %v2174
    %v2179 = vsel %vm814, %v2175, -1e+30
    %v2180 = vsel %vm815, %v2176, -1e+30
    %v2181 = vsel %vm816, %v2177, -1e+30
    %v2182 = vsel %vm817, %v2178, -1e+30
    %2183 = vst.msk [vmem:[%s949] sm:$0xff] %vm266, %v2179
    %2184 = vst.msk [vmem:[%s949 + $0x8] sm:$0xff] %vm266, %v2180
    %2185 = vst.msk [vmem:[%s949 + $0x10] sm:$0xff] %vm266, %v2181
    %2186 = vst.msk [vmem:[%s949 + $0x18] sm:$0xff] %vm266, %v2182
    %s2187 = sld [smem:[#allocation8 + $0x3]]
    %v2188 = vstv %s2187
    %v2189 = vadd.f32 %v2188, 0.0
    %s2190 = sld [smem:[#allocation8 + $0x7]]
    %v2191 = vstv %s2190
    %v2192 = vsel %vm750, %v2191, %v2189
    %v2193 = vsel %vm751, %v2191, %v2189
    %v2194 = vsel %vm752, %v2191, %v2189
    %v2195 = vsel %vm753, %v2191, %v2189
    %s2196 = sld [smem:[#allocation8 + $0xb]]
    %v2197 = vstv %s2196
    %v2198 = vsel %vm760, %v2197, %v2192
    %v2199 = vsel %vm761, %v2197, %v2193
    %v2200 = vsel %vm762, %v2197, %v2194
    %v2201 = vsel %vm763, %v2197, %v2195
    %2202 = vset.pattern.permute.xlu0 3
    %2203 = vperm.xlu0 %2202, %v1976
    %v2204 = vpop.permute.xlu0 %2203
    %2206 = vset.pattern.permute.xlu0 3
    %2207 = vperm.xlu0 %2206, %v1981
    %v2208 = vpop.permute.xlu0 %2207
    %2210 = vset.pattern.permute.xlu0 3
    %2211 = vperm.xlu0 %2210, %v1986
    %v2212 = vpop.permute.xlu0 %2211
    %2214 = vset.pattern.permute.xlu0 3
    %2215 = vperm.xlu0 %2214, %v1991
    %v2216 = vpop.permute.xlu0 %2215
    %v2218 = vlaneseq
    %v2219 = vshrl.u32 %v2218, 7
    %v2220 = vsub.s32 3, %v2219
    %v2221 = vrot.slane %v1902, %v2220
    %v2222 = vadd.f32 %v2204, %v2221
    %v2223 = vadd.f32 %v2208, %v2221
    %v2224 = vadd.f32 %v2212, %v2221
    %v2225 = vadd.f32 %v2216, %v2221
    %v2226 = vadd.f32 %v2222, %v2198
    %v2227 = vadd.f32 %v2223, %v2199
    %v2228 = vadd.f32 %v2224, %v2200
    %v2229 = vadd.f32 %v2225, %v2201
    %vm2230 = vcmp.ge.f32.partialorder %v2226, 0.0
    %vm2231 = vcmp.ge.f32.partialorder %v2227, 0.0
    %vm2232 = vcmp.ge.f32.partialorder %v2228, 0.0
    %vm2233 = vcmp.ge.f32.partialorder %v2229, 0.0
    %v2234 = vmul.f32 %v2226, 0.05
    %v2235 = vmul.f32 %v2227, 0.05
    %v2236 = vmul.f32 %v2228, 0.05
    %v2237 = vmul.f32 %v2229, 0.05
    %v2238 = vsel %vm2230, %v2226, %v2234
    %v2239 = vsel %vm2231, %v2227, %v2235
    %v2240 = vsel %vm2232, %v2228, %v2236
    %v2241 = vsel %vm2233, %v2229, %v2237
    %v2242 = vsel %vm814, %v2238, -1e+30
    %v2243 = vsel %vm815, %v2239, -1e+30
    %v2244 = vsel %vm816, %v2240, -1e+30
    %v2245 = vsel %vm817, %v2241, -1e+30
    %2246 = vst.msk [vmem:[%s1013] sm:$0xff] %vm266, %v2242
    %2247 = vst.msk [vmem:[%s1013 + $0x8] sm:$0xff] %vm266, %v2243
    %2248 = vst.msk [vmem:[%s1013 + $0x10] sm:$0xff] %vm266, %v2244
    %2249 = vst.msk [vmem:[%s1013 + $0x18] sm:$0xff] %vm266, %v2245
    %v2250 = vld [vmem:[#allocation3] sm:$0xff]
    %v2251 = vld [vmem:[#allocation3 + $0x8] sm:$0xff]
    %v2252 = vld [vmem:[#allocation3 + $0x10] sm:$0xff]
    %v2253 = vld [vmem:[#allocation3 + $0x18] sm:$0xff]
    %v2254 = vld [vmem:[#allocation3 + $0x20] sm:$0xff]
    %v2255 = vld [vmem:[#allocation3 + $0x28] sm:$0xff]
    %v2256 = vld [vmem:[#allocation3 + $0x30] sm:$0xff]
    %v2257 = vld [vmem:[#allocation3 + $0x38] sm:$0xff]
    %v2258 = vld [vmem:[#allocation3 + $0x40] sm:$0xff]
    %v2259 = vld [vmem:[#allocation3 + $0x48] sm:$0xff]
    %v2260 = vld [vmem:[#allocation3 + $0x50] sm:$0xff]
    %v2261 = vld [vmem:[#allocation3 + $0x58] sm:$0xff]
    %v2262 = vld [vmem:[#allocation3 + $0x60] sm:$0xff]
    %v2263 = vld [vmem:[#allocation3 + $0x68] sm:$0xff]
    %v2264 = vld [vmem:[#allocation3 + $0x70] sm:$0xff]
    %v2265 = vld [vmem:[#allocation3 + $0x78] sm:$0xff]
    %v2266 = vsel %vm266, %v2250, -inf
    %2267 = vmax.xlane.f32.xlu0 %v2266
    %v2268 = vpop.xlane.xlu0 %2267
    %v2269 = vsel %vm266, %v2251, -inf
    %2270 = vmax.xlane.f32.xlu0 %v2269
    %v2271 = vpop.xlane.xlu0 %2270
    %v2272 = vsel %vm266, %v2252, -inf
    %2273 = vmax.xlane.f32.xlu0 %v2272
    %v2274 = vpop.xlane.xlu0 %2273
    %v2275 = vsel %vm266, %v2253, -inf
    %2276 = vmax.xlane.f32.xlu0 %v2275
    %v2277 = vpop.xlane.xlu0 %2276
    %v2278 = vsel %vm266, %v2254, -inf
    %2279 = vmax.xlane.f32.xlu0 %v2278
    %v2280 = vpop.xlane.xlu0 %2279
    %v2281 = vsel %vm266, %v2255, -inf
    %2282 = vmax.xlane.f32.xlu0 %v2281
    %v2283 = vpop.xlane.xlu0 %2282
    %v2284 = vsel %vm266, %v2256, -inf
    %2285 = vmax.xlane.f32.xlu0 %v2284
    %v2286 = vpop.xlane.xlu0 %2285
    %v2287 = vsel %vm266, %v2257, -inf
    %2288 = vmax.xlane.f32.xlu0 %v2287
    %v2289 = vpop.xlane.xlu0 %2288
    %v2290 = vsel %vm266, %v2258, -inf
    %2291 = vmax.xlane.f32.xlu0 %v2290
    %v2292 = vpop.xlane.xlu0 %2291
    %v2293 = vsel %vm266, %v2259, -inf
    %2294 = vmax.xlane.f32.xlu0 %v2293
    %v2295 = vpop.xlane.xlu0 %2294
    %v2296 = vsel %vm266, %v2260, -inf
    %2297 = vmax.xlane.f32.xlu0 %v2296
    %v2298 = vpop.xlane.xlu0 %2297
    %v2299 = vsel %vm266, %v2261, -inf
    %2300 = vmax.xlane.f32.xlu0 %v2299
    %v2301 = vpop.xlane.xlu0 %2300
    %v2302 = vsel %vm266, %v2262, -inf
    %2303 = vmax.xlane.f32.xlu0 %v2302
    %v2304 = vpop.xlane.xlu0 %2303
    %v2305 = vsel %vm266, %v2263, -inf
    %2306 = vmax.xlane.f32.xlu0 %v2305
    %v2307 = vpop.xlane.xlu0 %2306
    %v2308 = vsel %vm266, %v2264, -inf
    %2309 = vmax.xlane.f32.xlu0 %v2308
    %v2310 = vpop.xlane.xlu0 %2309
    %v2311 = vsel %vm266, %v2265, -inf
    %2312 = vmax.xlane.f32.xlu0 %v2311
    %v2313 = vpop.xlane.xlu0 %2312
    %v2314 = vsub.f32 %v2250, %v2268
    %v2315 = vsub.f32 %v2251, %v2271
    %v2316 = vsub.f32 %v2252, %v2274
    %v2317 = vsub.f32 %v2253, %v2277
    %v2318 = vsub.f32 %v2254, %v2280
    %v2319 = vsub.f32 %v2255, %v2283
    %v2320 = vsub.f32 %v2256, %v2286
    %v2321 = vsub.f32 %v2257, %v2289
    %v2322 = vsub.f32 %v2258, %v2292
    %v2323 = vsub.f32 %v2259, %v2295
    %v2324 = vsub.f32 %v2260, %v2298
    %v2325 = vsub.f32 %v2261, %v2301
    %v2326 = vsub.f32 %v2262, %v2304
    %v2327 = vsub.f32 %v2263, %v2307
    %v2328 = vsub.f32 %v2264, %v2310
    %v2329 = vsub.f32 %v2265, %v2313
    %v2330 = vmul.f32 %v2314, 1.442695
    %v2331 = vpow.pop %v2330
    %v2332 = vmul.f32 %v2315, 1.442695
    %v2333 = vpow.pop %v2332
    %v2334 = vmul.f32 %v2316, 1.442695
    %v2335 = vpow.pop %v2334
    %v2336 = vmul.f32 %v2317, 1.442695
    %v2337 = vpow.pop %v2336
    %v2338 = vmul.f32 %v2318, 1.442695
    %v2339 = vpow.pop %v2338
    %v2340 = vmul.f32 %v2319, 1.442695
    %v2341 = vpow.pop %v2340
    %v2342 = vmul.f32 %v2320, 1.442695
    %v2343 = vpow.pop %v2342
    %v2344 = vmul.f32 %v2321, 1.442695
    %v2345 = vpow.pop %v2344
    %v2346 = vmul.f32 %v2322, 1.442695
    %v2347 = vpow.pop %v2346
    %v2348 = vmul.f32 %v2323, 1.442695
    %v2349 = vpow.pop %v2348
    %v2350 = vmul.f32 %v2324, 1.442695
    %v2351 = vpow.pop %v2350
    %v2352 = vmul.f32 %v2325, 1.442695
    %v2353 = vpow.pop %v2352
    %v2354 = vmul.f32 %v2326, 1.442695
    %v2355 = vpow.pop %v2354
    %v2356 = vmul.f32 %v2327, 1.442695
    %v2357 = vpow.pop %v2356
    %v2358 = vmul.f32 %v2328, 1.442695
    %v2359 = vpow.pop %v2358
    %v2360 = vmul.f32 %v2329, 1.442695
    %v2361 = vpow.pop %v2360
    %v2362 = vsel %vm266, %v2331, 0.0
    %2363 = vadd.xlane.f32.xlu0 %v2362
    %v2364 = vpop.xlane.xlu0 %2363
    %v2365 = vsel %vm266, %v2333, 0.0
    %2366 = vadd.xlane.f32.xlu0 %v2365
    %v2367 = vpop.xlane.xlu0 %2366
    %v2368 = vsel %vm266, %v2335, 0.0
    %2369 = vadd.xlane.f32.xlu0 %v2368
    %v2370 = vpop.xlane.xlu0 %2369
    %v2371 = vsel %vm266, %v2337, 0.0
    %2372 = vadd.xlane.f32.xlu0 %v2371
    %v2373 = vpop.xlane.xlu0 %2372
    %v2374 = vsel %vm266, %v2339, 0.0
    %2375 = vadd.xlane.f32.xlu0 %v2374
    %v2376 = vpop.xlane.xlu0 %2375
    %v2377 = vsel %vm266, %v2341, 0.0
    %2378 = vadd.xlane.f32.xlu0 %v2377
    %v2379 = vpop.xlane.xlu0 %2378
    %v2380 = vsel %vm266, %v2343, 0.0
    %2381 = vadd.xlane.f32.xlu0 %v2380
    %v2382 = vpop.xlane.xlu0 %2381
    %v2383 = vsel %vm266, %v2345, 0.0
    %2384 = vadd.xlane.f32.xlu0 %v2383
    %v2385 = vpop.xlane.xlu0 %2384
    %v2386 = vsel %vm266, %v2347, 0.0
    %2387 = vadd.xlane.f32.xlu0 %v2386
    %v2388 = vpop.xlane.xlu0 %2387
    %v2389 = vsel %vm266, %v2349, 0.0
    %2390 = vadd.xlane.f32.xlu0 %v2389
    %v2391 = vpop.xlane.xlu0 %2390
    %v2392 = vsel %vm266, %v2351, 0.0
    %2393 = vadd.xlane.f32.xlu0 %v2392
    %v2394 = vpop.xlane.xlu0 %2393
    %v2395 = vsel %vm266, %v2353, 0.0
    %2396 = vadd.xlane.f32.xlu0 %v2395
    %v2397 = vpop.xlane.xlu0 %2396
    %v2398 = vsel %vm266, %v2355, 0.0
    %2399 = vadd.xlane.f32.xlu0 %v2398
    %v2400 = vpop.xlane.xlu0 %2399
    %v2401 = vsel %vm266, %v2357, 0.0
    %2402 = vadd.xlane.f32.xlu0 %v2401
    %v2403 = vpop.xlane.xlu0 %2402
    %v2404 = vsel %vm266, %v2359, 0.0
    %2405 = vadd.xlane.f32.xlu0 %v2404
    %v2406 = vpop.xlane.xlu0 %2405
    %v2407 = vsel %vm266, %v2361, 0.0
    %2408 = vadd.xlane.f32.xlu0 %v2407
    %v2409 = vpop.xlane.xlu0 %2408
    %v2410 = vmax.f32 %v2364, 1e-20
    %v2411 = vmax.f32 %v2367, 1e-20
    %v2412 = vmax.f32 %v2370, 1e-20
    %v2413 = vmax.f32 %v2373, 1e-20
    %v2414 = vmax.f32 %v2376, 1e-20
    %v2415 = vmax.f32 %v2379, 1e-20
    %v2416 = vmax.f32 %v2382, 1e-20
    %v2417 = vmax.f32 %v2385, 1e-20
    %v2418 = vmax.f32 %v2388, 1e-20
    %v2419 = vmax.f32 %v2391, 1e-20
    %v2420 = vmax.f32 %v2394, 1e-20
    %v2421 = vmax.f32 %v2397, 1e-20
    %v2422 = vmax.f32 %v2400, 1e-20
    %v2423 = vmax.f32 %v2403, 1e-20
    %v2424 = vmax.f32 %v2406, 1e-20
    %v2425 = vmax.f32 %v2409, 1e-20
    %v2426 = vrcp.pop %v2410
    %v2427 = vmul.f32 %v2331, %v2426
    %v2428 = vrcp.pop %v2411
    %v2429 = vmul.f32 %v2333, %v2428
    %v2430 = vrcp.pop %v2412
    %v2431 = vmul.f32 %v2335, %v2430
    %v2432 = vrcp.pop %v2413
    %v2433 = vmul.f32 %v2337, %v2432
    %v2434 = vrcp.pop %v2414
    %v2435 = vmul.f32 %v2339, %v2434
    %v2436 = vrcp.pop %v2415
    %v2437 = vmul.f32 %v2341, %v2436
    %v2438 = vrcp.pop %v2416
    %v2439 = vmul.f32 %v2343, %v2438
    %v2440 = vrcp.pop %v2417
    %v2441 = vmul.f32 %v2345, %v2440
    %v2442 = vrcp.pop %v2418
    %v2443 = vmul.f32 %v2347, %v2442
    %v2444 = vrcp.pop %v2419
    %v2445 = vmul.f32 %v2349, %v2444
    %v2446 = vrcp.pop %v2420
    %v2447 = vmul.f32 %v2351, %v2446
    %v2448 = vrcp.pop %v2421
    %v2449 = vmul.f32 %v2353, %v2448
    %v2450 = vrcp.pop %v2422
    %v2451 = vmul.f32 %v2355, %v2450
    %v2452 = vrcp.pop %v2423
    %v2453 = vmul.f32 %v2357, %v2452
    %v2454 = vrcp.pop %v2424
    %v2455 = vmul.f32 %v2359, %v2454
    %v2456 = vrcp.pop %v2425
    %v2457 = vmul.f32 %v2361, %v2456
    %2458 = vst.msk [vmem:[#allocation3] sm:$0xff] %vm266, %v2427
    %2459 = vst.msk [vmem:[#allocation3 + $0x8] sm:$0xff] %vm266, %v2429
    %2460 = vst.msk [vmem:[#allocation3 + $0x10] sm:$0xff] %vm266, %v2431
    %2461 = vst.msk [vmem:[#allocation3 + $0x18] sm:$0xff] %vm266, %v2433
    %2462 = vst.msk [vmem:[#allocation3 + $0x20] sm:$0xff] %vm266, %v2435
    %2463 = vst.msk [vmem:[#allocation3 + $0x28] sm:$0xff] %vm266, %v2437
    %2464 = vst.msk [vmem:[#allocation3 + $0x30] sm:$0xff] %vm266, %v2439
    %2465 = vst.msk [vmem:[#allocation3 + $0x38] sm:$0xff] %vm266, %v2441
    %2466 = vst.msk [vmem:[#allocation3 + $0x40] sm:$0xff] %vm266, %v2443
    %2467 = vst.msk [vmem:[#allocation3 + $0x48] sm:$0xff] %vm266, %v2445
    %2468 = vst.msk [vmem:[#allocation3 + $0x50] sm:$0xff] %vm266, %v2447
    %2469 = vst.msk [vmem:[#allocation3 + $0x58] sm:$0xff] %vm266, %v2449
    %2470 = vst.msk [vmem:[#allocation3 + $0x60] sm:$0xff] %vm266, %v2451
    %2471 = vst.msk [vmem:[#allocation3 + $0x68] sm:$0xff] %vm266, %v2453
    %2472 = vst.msk [vmem:[#allocation3 + $0x70] sm:$0xff] %vm266, %v2455
    %2473 = vst.msk [vmem:[#allocation3 + $0x78] sm:$0xff] %vm266, %v2457
    %v2474 = vld [vmem:[#allocation3] sm:$0xff]
    %v2475 = vld [vmem:[#allocation3 + $0x8] sm:$0xff]
    %v2476 = vld [vmem:[#allocation3 + $0x10] sm:$0xff]
    %v2477 = vld [vmem:[#allocation3 + $0x18] sm:$0xff]
    %v2478 = vsel %vm1252, %v1801, 0.0
    %v2479 = vsel %vm1252, %v1806, 0.0
    %v2480 = vsel %vm1252, %v1811, 0.0
    %v2481 = vsel %vm1252, %v1816, 0.0
    %v2482 = vld [vmem:[%s885] sm:$0xff]
    %v2483 = vld [vmem:[%s885 + $0x8] sm:$0xff]
    %v2484 = vld [vmem:[%s885 + $0x10] sm:$0xff]
    %v2485 = vld [vmem:[%s885 + $0x18] sm:$0xff]
    %v2486 = vsel %vm1265, %v1801, 0.0
    %v2487 = vsel %vm1265, %v1806, 0.0
    %v2488 = vsel %vm1265, %v1811, 0.0
    %v2489 = vsel %vm1265, %v1816, 0.0
    %v2491 = vsel %vm266, %v2482, 0
    %v2494 = vsel %vm266, %v2483, 0
    %v2497 = vsel %vm266, %v2484, 0
    %v2500 = vsel %vm266, %v2485, 0
    %2502 = vmatprep.subr.mxu0 0.0
    %2503 = vmatpush1.msra.mxu0 %v2486
    %2504 = vmatprep.subr.mxu0 0.0
    %2505 = vmatpush1.msra.mxu0 %v2487
    %2506 = vmatprep.subr.mxu0 0.0
    %2507 = vmatpush1.msra.mxu0 %v2488
    %2508 = vmatprep.subr.mxu0 0.0
    %2509 = vmatpush1.msra.mxu0 %v2489
    %2510 = vmatprep.subr.mxu0 0.0
    %2511 = vmatpush1.msra.mxu0 0.0
    %2512 = vmatprep.subr.mxu0 0.0
    %2513 = vmatpush1.msra.mxu0 0.0
    %2514 = vmatprep.subr.mxu0 0.0
    %2515 = vmatpush1.msra.mxu0 0.0
    %2516 = vmatprep.subr.mxu0 0.0
    %2517 = vmatpush1.msra.mxu0 0.0
    %2518 = vmatprep.subr.mxu0 0.0
    %2519 = vmatpush1.msra.mxu0 0.0
    %2520 = vmatprep.subr.mxu0 0.0
    %2521 = vmatpush1.msra.mxu0 0.0
    %2522 = vmatprep.subr.mxu0 0.0
    %2523 = vmatpush1.msra.mxu0 0.0
    %2524 = vmatprep.subr.mxu0 0.0
    %2525 = vmatpush1.msra.mxu0 0.0
    %2526 = vmatprep.subr.mxu0 0.0
    %2527 = vmatpush1.msra.mxu0 0.0
    %2528 = vmatprep.subr.mxu0 0.0
    %2529 = vmatpush1.msra.mxu0 0.0
    %2530 = vmatprep.subr.mxu0 0.0
    %2531 = vmatpush1.msra.mxu0 0.0
    %2532 = vmatprep.subr.mxu0 0.0
    %2533 = vmatpush1.msra.mxu0 0.0
    %2534 = vmatprep.subr.mxu0 0.0
    %2535 = vmatpush1.msra.mxu0 0.0
    %2536 = vmatprep.subr.mxu0 0.0
    %2537 = vmatpush1.msra.mxu0 0.0
    %2538 = vmatprep.subr.mxu0 0.0
    %2539 = vmatpush1.msra.mxu0 0.0
    %2540 = vmatprep.subr.mxu0 0.0
    %2541 = vmatpush1.msra.mxu0 0.0
    %2542 = vmatprep.subr.mxu0 0.0
    %2543 = vmatpush1.msra.mxu0 0.0
    %2544 = vmatprep.subr.mxu0 0.0
    %2545 = vmatpush1.msra.mxu0 0.0
    %2546 = vmatprep.subr.mxu0 0.0
    %2547 = vmatpush1.msra.mxu0 0.0
    %2548 = vmatprep.subr.mxu0 0.0
    %2549 = vmatpush1.msra.mxu0 0.0
    %2550 = vmatprep.subr.mxu0 0.0
    %2551 = vmatpush1.msra.mxu0 0.0
    %2552 = vmatprep.subr.mxu0 0.0
    %2553 = vmatpush1.msra.mxu0 0.0
    %2554 = vmatprep.subr.mxu0 0.0
    %2555 = vmatpush1.msra.mxu0 0.0
    %2556 = vmatprep.subr.mxu0 0.0
    %2557 = vmatpush1.msra.mxu0 0.0
    %2558 = vmatprep.subr.mxu0 0.0
    %2559 = vmatpush1.msra.mxu0 0.0
    %2560 = vmatprep.subr.mxu0 0.0
    %2561 = vmatpush1.msra.mxu0 0.0
    %2562 = vmatprep.subr.mxu0 0.0
    %2563 = vmatpush1.msra.mxu0 0.0
    %2564 = vmatprep.subr.mxu0 0.0
    %2565 = vmatpush1.msra.mxu0 0.0
    %2566 = vmatprep.mubr.f32.mxu0 0.0
    %2567 = vmatmul.mubr.f32.gmra.mrb[0].mxu0 %v2491
    %v2568 = vpop.f32.mrb[0].mxu0
    %v2569 = vadd.f32 0.0, %v2568
    %v2570 = vpop.f32.mrb[0].mxu0
    %2571 = vmatprep.mubr.f32.mxu0 0.0
    %2572 = vmatmul.mubr.f32.gmra.mrb[0].mxu0 %v2494
    %v2573 = vpop.f32.mrb[0].mxu0
    %v2574 = vadd.f32 0.0, %v2573
    %v2575 = vpop.f32.mrb[0].mxu0
    %2576 = vmatprep.mubr.f32.mxu0 0.0
    %2577 = vmatmul.mubr.f32.gmra.mrb[0].mxu0 %v2497
    %v2578 = vpop.f32.mrb[0].mxu0
    %v2579 = vadd.f32 0.0, %v2578
    %v2580 = vpop.f32.mrb[0].mxu0
    %2581 = vmatprep.mubr.f32.mxu0 0.0
    %2582 = vmatmul.mubr.f32.gmra.mrb[0].mxu0 %v2500
    %v2583 = vpop.f32.mrb[0].mxu0
    %v2584 = vadd.f32 0.0, %v2583
    %v2585 = vpop.f32.mrb[0].mxu0
    %2586 = vdwg.mxu0
    %v2588 = vsel %vm266, %v2474, 0
    %v2591 = vsel %vm266, %v2475, 0
    %v2594 = vsel %vm266, %v2476, 0
    %v2597 = vsel %vm266, %v2477, 0
    %2599 = vmatprep.subr.mxu0 0.0
    %2600 = vmatpush1.msra.mxu0 %v2478
    %2601 = vmatprep.subr.mxu0 0.0
    %2602 = vmatpush1.msra.mxu0 %v2479
    %2603 = vmatprep.subr.mxu0 0.0
    %2604 = vmatpush1.msra.mxu0 %v2480
    %2605 = vmatprep.subr.mxu0 0.0
    %2606 = vmatpush1.msra.mxu0 %v2481
    %2607 = vmatprep.subr.mxu0 0.0
    %2608 = vmatpush1.msra.mxu0 0.0
    %2609 = vmatprep.subr.mxu0 0.0
    %2610 = vmatpush1.msra.mxu0 0.0
    %2611 = vmatprep.subr.mxu0 0.0
    %2612 = vmatpush1.msra.mxu0 0.0
    %2613 = vmatprep.subr.mxu0 0.0
    %2614 = vmatpush1.msra.mxu0 0.0
    %2615 = vmatprep.subr.mxu0 0.0
    %2616 = vmatpush1.msra.mxu0 0.0
    %2617 = vmatprep.subr.mxu0 0.0
    %2618 = vmatpush1.msra.mxu0 0.0
    %2619 = vmatprep.subr.mxu0 0.0
    %2620 = vmatpush1.msra.mxu0 0.0
    %2621 = vmatprep.subr.mxu0 0.0
    %2622 = vmatpush1.msra.mxu0 0.0
    %2623 = vmatprep.subr.mxu0 0.0
    %2624 = vmatpush1.msra.mxu0 0.0
    %2625 = vmatprep.subr.mxu0 0.0
    %2626 = vmatpush1.msra.mxu0 0.0
    %2627 = vmatprep.subr.mxu0 0.0
    %2628 = vmatpush1.msra.mxu0 0.0
    %2629 = vmatprep.subr.mxu0 0.0
    %2630 = vmatpush1.msra.mxu0 0.0
    %2631 = vmatprep.subr.mxu0 0.0
    %2632 = vmatpush1.msra.mxu0 0.0
    %2633 = vmatprep.subr.mxu0 0.0
    %2634 = vmatpush1.msra.mxu0 0.0
    %2635 = vmatprep.subr.mxu0 0.0
    %2636 = vmatpush1.msra.mxu0 0.0
    %2637 = vmatprep.subr.mxu0 0.0
    %2638 = vmatpush1.msra.mxu0 0.0
    %2639 = vmatprep.subr.mxu0 0.0
    %2640 = vmatpush1.msra.mxu0 0.0
    %2641 = vmatprep.subr.mxu0 0.0
    %2642 = vmatpush1.msra.mxu0 0.0
    %2643 = vmatprep.subr.mxu0 0.0
    %2644 = vmatpush1.msra.mxu0 0.0
    %2645 = vmatprep.subr.mxu0 0.0
    %2646 = vmatpush1.msra.mxu0 0.0
    %2647 = vmatprep.subr.mxu0 0.0
    %2648 = vmatpush1.msra.mxu0 0.0
    %2649 = vmatprep.subr.mxu0 0.0
    %2650 = vmatpush1.msra.mxu0 0.0
    %2651 = vmatprep.subr.mxu0 0.0
    %2652 = vmatpush1.msra.mxu0 0.0
    %2653 = vmatprep.subr.mxu0 0.0
    %2654 = vmatpush1.msra.mxu0 0.0
    %2655 = vmatprep.subr.mxu0 0.0
    %2656 = vmatpush1.msra.mxu0 0.0
    %2657 = vmatprep.subr.mxu0 0.0
    %2658 = vmatpush1.msra.mxu0 0.0
    %2659 = vmatprep.subr.mxu0 0.0
    %2660 = vmatpush1.msra.mxu0 0.0
    %2661 = vmatprep.subr.mxu0 0.0
    %2662 = vmatpush1.msra.mxu0 0.0
    %2663 = vmatprep.mubr.f32.mxu0 0.0
    %2664 = vmatmul.mubr.f32.gmra.mrb[0].mxu0 %v2588
    %v2665 = vpop.f32.mrb[0].mxu0
    %v2666 = vadd.f32 %v2569, %v2665
    %v2667 = vpop.f32.mrb[0].mxu0
    %2668 = vmatprep.mubr.f32.mxu0 0.0
    %2669 = vmatmul.mubr.f32.gmra.mrb[0].mxu0 %v2591
    %v2670 = vpop.f32.mrb[0].mxu0
    %v2671 = vadd.f32 %v2574, %v2670
    %v2672 = vpop.f32.mrb[0].mxu0
    %2673 = vmatprep.mubr.f32.mxu0 0.0
    %2674 = vmatmul.mubr.f32.gmra.mrb[0].mxu0 %v2594
    %v2675 = vpop.f32.mrb[0].mxu0
    %v2676 = vadd.f32 %v2579, %v2675
    %v2677 = vpop.f32.mrb[0].mxu0
    %2678 = vmatprep.mubr.f32.mxu0 0.0
    %2679 = vmatmul.mubr.f32.gmra.mrb[0].mxu0 %v2597
    %v2680 = vpop.f32.mrb[0].mxu0
    %v2681 = vadd.f32 %v2584, %v2680
    %v2682 = vpop.f32.mrb[0].mxu0
    %2683 = vdwg.mxu0
    %v2684 = vld [vmem:[%s949] sm:$0xff]
    %v2685 = vld [vmem:[%s949 + $0x8] sm:$0xff]
    %v2686 = vld [vmem:[%s949 + $0x10] sm:$0xff]
    %v2687 = vld [vmem:[%s949 + $0x18] sm:$0xff]
    %v2688 = vsel %vm1472, %v1801, 0.0
    %v2689 = vsel %vm1472, %v1806, 0.0
    %v2690 = vsel %vm1472, %v1811, 0.0
    %v2691 = vsel %vm1472, %v1816, 0.0
    %v2693 = vsel %vm266, %v2684, 0
    %v2696 = vsel %vm266, %v2685, 0
    %v2699 = vsel %vm266, %v2686, 0
    %v2702 = vsel %vm266, %v2687, 0
    %2704 = vmatprep.subr.mxu0 0.0
    %2705 = vmatpush1.msra.mxu0 %v2688
    %2706 = vmatprep.subr.mxu0 0.0
    %2707 = vmatpush1.msra.mxu0 %v2689
    %2708 = vmatprep.subr.mxu0 0.0
    %2709 = vmatpush1.msra.mxu0 %v2690
    %2710 = vmatprep.subr.mxu0 0.0
    %2711 = vmatpush1.msra.mxu0 %v2691
    %2712 = vmatprep.subr.mxu0 0.0
    %2713 = vmatpush1.msra.mxu0 0.0
    %2714 = vmatprep.subr.mxu0 0.0
    %2715 = vmatpush1.msra.mxu0 0.0
    %2716 = vmatprep.subr.mxu0 0.0
    %2717 = vmatpush1.msra.mxu0 0.0
    %2718 = vmatprep.subr.mxu0 0.0
    %2719 = vmatpush1.msra.mxu0 0.0
    %2720 = vmatprep.subr.mxu0 0.0
    %2721 = vmatpush1.msra.mxu0 0.0
    %2722 = vmatprep.subr.mxu0 0.0
    %2723 = vmatpush1.msra.mxu0 0.0
    %2724 = vmatprep.subr.mxu0 0.0
    %2725 = vmatpush1.msra.mxu0 0.0
    %2726 = vmatprep.subr.mxu0 0.0
    %2727 = vmatpush1.msra.mxu0 0.0
    %2728 = vmatprep.subr.mxu0 0.0
    %2729 = vmatpush1.msra.mxu0 0.0
    %2730 = vmatprep.subr.mxu0 0.0
    %2731 = vmatpush1.msra.mxu0 0.0
    %2732 = vmatprep.subr.mxu0 0.0
    %2733 = vmatpush1.msra.mxu0 0.0
    %2734 = vmatprep.subr.mxu0 0.0
    %2735 = vmatpush1.msra.mxu0 0.0
    %2736 = vmatprep.subr.mxu0 0.0
    %2737 = vmatpush1.msra.mxu0 0.0
    %2738 = vmatprep.subr.mxu0 0.0
    %2739 = vmatpush1.msra.mxu0 0.0
    %2740 = vmatprep.subr.mxu0 0.0
    %2741 = vmatpush1.msra.mxu0 0.0
    %2742 = vmatprep.subr.mxu0 0.0
    %2743 = vmatpush1.msra.mxu0 0.0
    %2744 = vmatprep.subr.mxu0 0.0
    %2745 = vmatpush1.msra.mxu0 0.0
    %2746 = vmatprep.subr.mxu0 0.0
    %2747 = vmatpush1.msra.mxu0 0.0
    %2748 = vmatprep.subr.mxu0 0.0
    %2749 = vmatpush1.msra.mxu0 0.0
    %2750 = vmatprep.subr.mxu0 0.0
    %2751 = vmatpush1.msra.mxu0 0.0
    %2752 = vmatprep.subr.mxu0 0.0
    %2753 = vmatpush1.msra.mxu0 0.0
    %2754 = vmatprep.subr.mxu0 0.0
    %2755 = vmatpush1.msra.mxu0 0.0
    %2756 = vmatprep.subr.mxu0 0.0
    %2757 = vmatpush1.msra.mxu0 0.0
    %2758 = vmatprep.subr.mxu0 0.0
    %2759 = vmatpush1.msra.mxu0 0.0
    %2760 = vmatprep.subr.mxu0 0.0
    %2761 = vmatpush1.msra.mxu0 0.0
    %2762 = vmatprep.subr.mxu0 0.0
    %2763 = vmatpush1.msra.mxu0 0.0
    %2764 = vmatprep.subr.mxu0 0.0
    %2765 = vmatpush1.msra.mxu0 0.0
    %2766 = vmatprep.subr.mxu0 0.0
    %2767 = vmatpush1.msra.mxu0 0.0
    %2768 = vmatprep.mubr.f32.mxu0 0.0
    %2769 = vmatmul.mubr.f32.gmra.mrb[0].mxu0 %v2693
    %v2770 = vpop.f32.mrb[0].mxu0
    %v2771 = vadd.f32 0.0, %v2770
    %v2772 = vpop.f32.mrb[0].mxu0
    %2773 = vmatprep.mubr.f32.mxu0 0.0
    %2774 = vmatmul.mubr.f32.gmra.mrb[0].mxu0 %v2696
    %v2775 = vpop.f32.mrb[0].mxu0
    %v2776 = vadd.f32 0.0, %v2775
    %v2777 = vpop.f32.mrb[0].mxu0
    %2778 = vmatprep.mubr.f32.mxu0 0.0
    %2779 = vmatmul.mubr.f32.gmra.mrb[0].mxu0 %v2699
    %v2780 = vpop.f32.mrb[0].mxu0
    %v2781 = vadd.f32 0.0, %v2780
    %v2782 = vpop.f32.mrb[0].mxu0
    %2783 = vmatprep.mubr.f32.mxu0 0.0
    %2784 = vmatmul.mubr.f32.gmra.mrb[0].mxu0 %v2702
    %v2785 = vpop.f32.mrb[0].mxu0
    %v2786 = vadd.f32 0.0, %v2785
    %v2787 = vpop.f32.mrb[0].mxu0
    %2788 = vdwg.mxu0
    %v2789 = vadd.f32 %v2666, %v2771
    %v2790 = vadd.f32 %v2671, %v2776
    %v2791 = vadd.f32 %v2676, %v2781
    %v2792 = vadd.f32 %v2681, %v2786
    %v2793 = vld [vmem:[%s1013] sm:$0xff]
    %v2794 = vld [vmem:[%s1013 + $0x8] sm:$0xff]
    %v2795 = vld [vmem:[%s1013 + $0x10] sm:$0xff]
    %v2796 = vld [vmem:[%s1013 + $0x18] sm:$0xff]
    %v2797 = vsel %vm1586, %v1801, 0.0
    %v2798 = vsel %vm1586, %v1806, 0.0
    %v2799 = vsel %vm1586, %v1811, 0.0
    %v2800 = vsel %vm1586, %v1816, 0.0
    %v2802 = vsel %vm266, %v2793, 0
    %v2805 = vsel %vm266, %v2794, 0
    %v2808 = vsel %vm266, %v2795, 0
    %v2811 = vsel %vm266, %v2796, 0
    %2813 = vmatprep.subr.mxu0 0.0
    %2814 = vmatpush1.msra.mxu0 %v2797
    %2815 = vmatprep.subr.mxu0 0.0
    %2816 = vmatpush1.msra.mxu0 %v2798
    %2817 = vmatprep.subr.mxu0 0.0
    %2818 = vmatpush1.msra.mxu0 %v2799
    %2819 = vmatprep.subr.mxu0 0.0
    %2820 = vmatpush1.msra.mxu0 %v2800
    %2821 = vmatprep.subr.mxu0 0.0
    %2822 = vmatpush1.msra.mxu0 0.0
    %2823 = vmatprep.subr.mxu0 0.0
    %2824 = vmatpush1.msra.mxu0 0.0
    %2825 = vmatprep.subr.mxu0 0.0
    %2826 = vmatpush1.msra.mxu0 0.0
    %2827 = vmatprep.subr.mxu0 0.0
    %2828 = vmatpush1.msra.mxu0 0.0
    %2829 = vmatprep.subr.mxu0 0.0
    %2830 = vmatpush1.msra.mxu0 0.0
    %2831 = vmatprep.subr.mxu0 0.0
    %2832 = vmatpush1.msra.mxu0 0.0
    %2833 = vmatprep.subr.mxu0 0.0
    %2834 = vmatpush1.msra.mxu0 0.0
    %2835 = vmatprep.subr.mxu0 0.0
    %2836 = vmatpush1.msra.mxu0 0.0
    %2837 = vmatprep.subr.mxu0 0.0
    %2838 = vmatpush1.msra.mxu0 0.0
    %2839 = vmatprep.subr.mxu0 0.0
    %2840 = vmatpush1.msra.mxu0 0.0
    %2841 = vmatprep.subr.mxu0 0.0
    %2842 = vmatpush1.msra.mxu0 0.0
    %2843 = vmatprep.subr.mxu0 0.0
    %2844 = vmatpush1.msra.mxu0 0.0
    %2845 = vmatprep.subr.mxu0 0.0
    %2846 = vmatpush1.msra.mxu0 0.0
    %2847 = vmatprep.subr.mxu0 0.0
    %2848 = vmatpush1.msra.mxu0 0.0
    %2849 = vmatprep.subr.mxu0 0.0
    %2850 = vmatpush1.msra.mxu0 0.0
    %2851 = vmatprep.subr.mxu0 0.0
    %2852 = vmatpush1.msra.mxu0 0.0
    %2853 = vmatprep.subr.mxu0 0.0
    %2854 = vmatpush1.msra.mxu0 0.0
    %2855 = vmatprep.subr.mxu0 0.0
    %2856 = vmatpush1.msra.mxu0 0.0
    %2857 = vmatprep.subr.mxu0 0.0
    %2858 = vmatpush1.msra.mxu0 0.0
    %2859 = vmatprep.subr.mxu0 0.0
    %2860 = vmatpush1.msra.mxu0 0.0
    %2861 = vmatprep.subr.mxu0 0.0
    %2862 = vmatpush1.msra.mxu0 0.0
    %2863 = vmatprep.subr.mxu0 0.0
    %2864 = vmatpush1.msra.mxu0 0.0
    %2865 = vmatprep.subr.mxu0 0.0
    %2866 = vmatpush1.msra.mxu0 0.0
    %2867 = vmatprep.subr.mxu0 0.0
    %2868 = vmatpush1.msra.mxu0 0.0
    %2869 = vmatprep.subr.mxu0 0.0
    %2870 = vmatpush1.msra.mxu0 0.0
    %2871 = vmatprep.subr.mxu0 0.0
    %2872 = vmatpush1.msra.mxu0 0.0
    %2873 = vmatprep.subr.mxu0 0.0
    %2874 = vmatpush1.msra.mxu0 0.0
    %2875 = vmatprep.subr.mxu0 0.0
    %2876 = vmatpush1.msra.mxu0 0.0
    %2877 = vmatprep.mubr.f32.mxu0 0.0
    %2878 = vmatmul.mubr.f32.gmra.mrb[0].mxu0 %v2802
    %v2879 = vpop.f32.mrb[0].mxu0
    %v2880 = vadd.f32 0.0, %v2879
    %v2881 = vpop.f32.mrb[0].mxu0
    %2882 = vmatprep.mubr.f32.mxu0 0.0
    %2883 = vmatmul.mubr.f32.gmra.mrb[0].mxu0 %v2805
    %v2884 = vpop.f32.mrb[0].mxu0
    %v2885 = vadd.f32 0.0, %v2884
    %v2886 = vpop.f32.mrb[0].mxu0
    %2887 = vmatprep.mubr.f32.mxu0 0.0
    %2888 = vmatmul.mubr.f32.gmra.mrb[0].mxu0 %v2808
    %v2889 = vpop.f32.mrb[0].mxu0
    %v2890 = vadd.f32 0.0, %v2889
    %v2891 = vpop.f32.mrb[0].mxu0
    %2892 = vmatprep.mubr.f32.mxu0 0.0
    %2893 = vmatmul.mubr.f32.gmra.mrb[0].mxu0 %v2811
    %v2894 = vpop.f32.mrb[0].mxu0
    %v2895 = vadd.f32 0.0, %v2894
    %v2896 = vpop.f32.mrb[0].mxu0
    %2897 = vdwg.mxu0
    %v2898 = vadd.f32 %v2789, %v2880
    %v2899 = vadd.f32 %v2790, %v2885
    %v2900 = vadd.f32 %v2791, %v2890
    %v2901 = vadd.f32 %v2792, %v2895
    %vm2902 = vcmp.gt.f32.partialorder %v2898, 0.0
    %vm2903 = vcmp.gt.f32.partialorder %v2899, 0.0
    %vm2904 = vcmp.gt.f32.partialorder %v2900, 0.0
    %vm2905 = vcmp.gt.f32.partialorder %v2901, 0.0
    %v2906 = vmin.f32 %v2898, 0.0
    %v2907 = vmin.f32 %v2899, 0.0
    %v2908 = vmin.f32 %v2900, 0.0
    %v2909 = vmin.f32 %v2901, 0.0
    %v2910 = vmul.f32 %v2906, 1.442695
    %v2911 = vpow.pop %v2910
    %v2912 = vmul.f32 %v2907, 1.442695
    %v2913 = vpow.pop %v2912
    %v2914 = vmul.f32 %v2908, 1.442695
    %v2915 = vpow.pop %v2914
    %v2916 = vmul.f32 %v2909, 1.442695
    %v2917 = vpow.pop %v2916
    %v2918 = vsub.f32 %v2911, 1.0
    %v2919 = vsub.f32 %v2913, 1.0
    %v2920 = vsub.f32 %v2915, 1.0
    %v2921 = vsub.f32 %v2917, 1.0
    %v2922 = vsel %vm2902, %v2898, %v2918
    %v2923 = vsel %vm2903, %v2899, %v2919
    %v2924 = vsel %vm2904, %v2900, %v2920
    %v2925 = vsel %vm2905, %v2901, %v2921
    %v2926 = vld [vmem:[%s57] sm:$0xff]
    %v2927 = vld [vmem:[%s57 + $0x8] sm:$0xff]
    %v2928 = vld [vmem:[%s57 + $0x10] sm:$0xff]
    %v2929 = vld [vmem:[%s57 + $0x18] sm:$0xff]
    %v2930 = vld [vmem:[%s57 + $0x20] sm:$0xff]
    %v2931 = vld [vmem:[%s57 + $0x28] sm:$0xff]
    %v2932 = vld [vmem:[%s57 + $0x30] sm:$0xff]
    %v2933 = vld [vmem:[%s57 + $0x38] sm:$0xff]
    %v2935 = vsel %vm266, %v2922, 0
    %v2938 = vsel %vm266, %v2923, 0
    %v2941 = vsel %vm266, %v2924, 0
    %v2944 = vsel %vm266, %v2925, 0
    %2946 = vmatprep.subr.mxu0 0.0
    %2947 = vmatpush1.msra.mxu0 %v2930
    %2948 = vmatprep.subr.mxu0 0.0
    %2949 = vmatpush1.msra.mxu0 %v2931
    %2950 = vmatprep.subr.mxu0 0.0
    %2951 = vmatpush1.msra.mxu0 %v2932
    %2952 = vmatprep.subr.mxu0 0.0
    %2953 = vmatpush1.msra.mxu0 %v2933
    %2954 = vmatprep.subr.mxu0 0.0
    %2955 = vmatpush1.msra.mxu0 0.0
    %2956 = vmatprep.subr.mxu0 0.0
    %2957 = vmatpush1.msra.mxu0 0.0
    %2958 = vmatprep.subr.mxu0 0.0
    %2959 = vmatpush1.msra.mxu0 0.0
    %2960 = vmatprep.subr.mxu0 0.0
    %2961 = vmatpush1.msra.mxu0 0.0
    %2962 = vmatprep.subr.mxu0 0.0
    %2963 = vmatpush1.msra.mxu0 0.0
    %2964 = vmatprep.subr.mxu0 0.0
    %2965 = vmatpush1.msra.mxu0 0.0
    %2966 = vmatprep.subr.mxu0 0.0
    %2967 = vmatpush1.msra.mxu0 0.0
    %2968 = vmatprep.subr.mxu0 0.0
    %2969 = vmatpush1.msra.mxu0 0.0
    %2970 = vmatprep.subr.mxu0 0.0
    %2971 = vmatpush1.msra.mxu0 0.0
    %2972 = vmatprep.subr.mxu0 0.0
    %2973 = vmatpush1.msra.mxu0 0.0
    %2974 = vmatprep.subr.mxu0 0.0
    %2975 = vmatpush1.msra.mxu0 0.0
    %2976 = vmatprep.subr.mxu0 0.0
    %2977 = vmatpush1.msra.mxu0 0.0
    %2978 = vmatprep.subr.mxu0 0.0
    %2979 = vmatpush1.msra.mxu0 0.0
    %2980 = vmatprep.subr.mxu0 0.0
    %2981 = vmatpush1.msra.mxu0 0.0
    %2982 = vmatprep.subr.mxu0 0.0
    %2983 = vmatpush1.msra.mxu0 0.0
    %2984 = vmatprep.subr.mxu0 0.0
    %2985 = vmatpush1.msra.mxu0 0.0
    %2986 = vmatprep.subr.mxu0 0.0
    %2987 = vmatpush1.msra.mxu0 0.0
    %2988 = vmatprep.subr.mxu0 0.0
    %2989 = vmatpush1.msra.mxu0 0.0
    %2990 = vmatprep.subr.mxu0 0.0
    %2991 = vmatpush1.msra.mxu0 0.0
    %2992 = vmatprep.subr.mxu0 0.0
    %2993 = vmatpush1.msra.mxu0 0.0
    %2994 = vmatprep.subr.mxu0 0.0
    %2995 = vmatpush1.msra.mxu0 0.0
    %2996 = vmatprep.subr.mxu0 0.0
    %2997 = vmatpush1.msra.mxu0 0.0
    %2998 = vmatprep.subr.mxu0 0.0
    %2999 = vmatpush1.msra.mxu0 0.0
    %3000 = vmatprep.subr.mxu0 0.0
    %3001 = vmatpush1.msra.mxu0 0.0
    %3002 = vmatprep.subr.mxu0 0.0
    %3003 = vmatpush1.msra.mxu0 0.0
    %3004 = vmatprep.subr.mxu0 0.0
    %3005 = vmatpush1.msra.mxu0 0.0
    %3006 = vmatprep.subr.mxu0 0.0
    %3007 = vmatpush1.msra.mxu0 0.0
    %3008 = vmatprep.subr.mxu0 0.0
    %3009 = vmatpush1.msra.mxu0 0.0
    %3010 = vmatprep.mubr.f32.mxu0 0.0
    %3011 = vmatmul.mubr.f32.gmra.mrb[0].mxu0 %v2935
    %v3012 = vpop.f32.mrb[0].mxu0
    %v3013 = vadd.f32 0.0, %v3012
    %v3014 = vpop.f32.mrb[0].mxu0
    %3015 = vmatprep.mubr.f32.mxu0 0.0
    %3016 = vmatmul.mubr.f32.gmra.mrb[0].mxu0 %v2938
    %v3017 = vpop.f32.mrb[0].mxu0
    %v3018 = vadd.f32 0.0, %v3017
    %v3019 = vpop.f32.mrb[0].mxu0
    %3020 = vmatprep.mubr.f32.mxu0 0.0
    %3021 = vmatmul.mubr.f32.gmra.mrb[0].mxu0 %v2941
    %v3022 = vpop.f32.mrb[0].mxu0
    %v3023 = vadd.f32 0.0, %v3022
    %v3024 = vpop.f32.mrb[0].mxu0
    %3025 = vmatprep.mubr.f32.mxu0 0.0
    %3026 = vmatmul.mubr.f32.gmra.mrb[0].mxu0 %v2944
    %v3027 = vpop.f32.mrb[0].mxu0
    %v3028 = vadd.f32 0.0, %v3027
    %v3029 = vpop.f32.mrb[0].mxu0
    %3030 = vdwg.mxu0
    %v3032 = vsel %vm266, %v1712, 0
    %v3035 = vsel %vm266, %v1713, 0
    %v3038 = vsel %vm266, %v1714, 0
    %v3041 = vsel %vm266, %v1715, 0
    %3043 = vmatprep.subr.mxu0 0.0
    %3044 = vmatpush1.msra.mxu0 %v2926
    %3045 = vmatprep.subr.mxu0 0.0
    %3046 = vmatpush1.msra.mxu0 %v2927
    %3047 = vmatprep.subr.mxu0 0.0
    %3048 = vmatpush1.msra.mxu0 %v2928
    %3049 = vmatprep.subr.mxu0 0.0
    %3050 = vmatpush1.msra.mxu0 %v2929
    %3051 = vmatprep.subr.mxu0 0.0
    %3052 = vmatpush1.msra.mxu0 0.0
    %3053 = vmatprep.subr.mxu0 0.0
    %3054 = vmatpush1.msra.mxu0 0.0
    %3055 = vmatprep.subr.mxu0 0.0
    %3056 = vmatpush1.msra.mxu0 0.0
    %3057 = vmatprep.subr.mxu0 0.0
    %3058 = vmatpush1.msra.mxu0 0.0
    %3059 = vmatprep.subr.mxu0 0.0
    %3060 = vmatpush1.msra.mxu0 0.0
    %3061 = vmatprep.subr.mxu0 0.0
    %3062 = vmatpush1.msra.mxu0 0.0
    %3063 = vmatprep.subr.mxu0 0.0
    %3064 = vmatpush1.msra.mxu0 0.0
    %3065 = vmatprep.subr.mxu0 0.0
    %3066 = vmatpush1.msra.mxu0 0.0
    %3067 = vmatprep.subr.mxu0 0.0
    %3068 = vmatpush1.msra.mxu0 0.0
    %3069 = vmatprep.subr.mxu0 0.0
    %3070 = vmatpush1.msra.mxu0 0.0
    %3071 = vmatprep.subr.mxu0 0.0
    %3072 = vmatpush1.msra.mxu0 0.0
    %3073 = vmatprep.subr.mxu0 0.0
    %3074 = vmatpush1.msra.mxu0 0.0
    %3075 = vmatprep.subr.mxu0 0.0
    %3076 = vmatpush1.msra.mxu0 0.0
    %3077 = vmatprep.subr.mxu0 0.0
    %3078 = vmatpush1.msra.mxu0 0.0
    %3079 = vmatprep.subr.mxu0 0.0
    %3080 = vmatpush1.msra.mxu0 0.0
    %3081 = vmatprep.subr.mxu0 0.0
    %3082 = vmatpush1.msra.mxu0 0.0
    %3083 = vmatprep.subr.mxu0 0.0
    %3084 = vmatpush1.msra.mxu0 0.0
    %3085 = vmatprep.subr.mxu0 0.0
    %3086 = vmatpush1.msra.mxu0 0.0
    %3087 = vmatprep.subr.mxu0 0.0
    %3088 = vmatpush1.msra.mxu0 0.0
    %3089 = vmatprep.subr.mxu0 0.0
    %3090 = vmatpush1.msra.mxu0 0.0
    %3091 = vmatprep.subr.mxu0 0.0
    %3092 = vmatpush1.msra.mxu0 0.0
    %3093 = vmatprep.subr.mxu0 0.0
    %3094 = vmatpush1.msra.mxu0 0.0
    %3095 = vmatprep.subr.mxu0 0.0
    %3096 = vmatpush1.msra.mxu0 0.0
    %3097 = vmatprep.subr.mxu0 0.0
    %3098 = vmatpush1.msra.mxu0 0.0
    %3099 = vmatprep.subr.mxu0 0.0
    %3100 = vmatpush1.msra.mxu0 0.0
    %3101 = vmatprep.subr.mxu0 0.0
    %3102 = vmatpush1.msra.mxu0 0.0
    %3103 = vmatprep.subr.mxu0 0.0
    %3104 = vmatpush1.msra.mxu0 0.0
    %3105 = vmatprep.subr.mxu0 0.0
    %3106 = vmatpush1.msra.mxu0 0.0
    %3107 = vmatprep.mubr.f32.mxu0 0.0
    %3108 = vmatmul.mubr.f32.gmra.mrb[0].mxu0 %v3032
    %v3109 = vpop.f32.mrb[0].mxu0
    %v3110 = vadd.f32 %v3013, %v3109
    %v3111 = vpop.f32.mrb[0].mxu0
    %3112 = vmatprep.mubr.f32.mxu0 0.0
    %3113 = vmatmul.mubr.f32.gmra.mrb[0].mxu0 %v3035
    %v3114 = vpop.f32.mrb[0].mxu0
    %v3115 = vadd.f32 %v3018, %v3114
    %v3116 = vpop.f32.mrb[0].mxu0
    %3117 = vmatprep.mubr.f32.mxu0 0.0
    %3118 = vmatmul.mubr.f32.gmra.mrb[0].mxu0 %v3038
    %v3119 = vpop.f32.mrb[0].mxu0
    %v3120 = vadd.f32 %v3023, %v3119
    %v3121 = vpop.f32.mrb[0].mxu0
    %3122 = vmatprep.mubr.f32.mxu0 0.0
    %3123 = vmatmul.mubr.f32.gmra.mrb[0].mxu0 %v3041
    %v3124 = vpop.f32.mrb[0].mxu0
    %v3125 = vadd.f32 %v3028, %v3124
    %v3126 = vpop.f32.mrb[0].mxu0
    %3127 = vdwg.mxu0
    %v3128 = vld [vmem:[%s59] sm:$0x1]
    %v3130 = vlaneseq
    %v3131 = vshrl.u32 %v3130, 7
    %v3132 = vsub.s32 0, %v3131
    %v3133 = vrot.slane %v3128, %v3132
    %v3135 = vadd.f32 %v3110, %v3133
    %v3136 = vadd.f32 %v3115, %v3133
    %v3137 = vadd.f32 %v3120, %v3133
    %v3138 = vadd.f32 %v3125, %v3133
    %v3139 = vmax.f32 %v3135, 0.0
    %v3140 = vmax.f32 %v3136, 0.0
    %v3141 = vmax.f32 %v3137, 0.0
    %v3142 = vmax.f32 %v3138, 0.0
    %v3143 = vld [vmem:[%s33] sm:$0xff]
    %v3144 = vld [vmem:[%s33 + $0x8] sm:$0xff]
    %v3145 = vld [vmem:[%s33 + $0x10] sm:$0xff]
    %v3146 = vld [vmem:[%s33 + $0x18] sm:$0xff]
    %3147 = vmatprep.subr.mxu0 0.0
    %3148 = vmatpush1.msra.mxu0 %v3143
    %3149 = vmatprep.subr.mxu0 0.0
    %3150 = vmatpush1.msra.mxu0 %v3144
    %3151 = vmatprep.subr.mxu0 0.0
    %3152 = vmatpush1.msra.mxu0 %v3145
    %3153 = vmatprep.subr.mxu0 0.0
    %3154 = vmatpush1.msra.mxu0 %v3146
    %3155 = vmatprep.subr.mxu0 0.0
    %3156 = vmatpush1.msra.mxu0 0.0
    %3157 = vmatprep.subr.mxu0 0.0
    %3158 = vmatpush1.msra.mxu0 0.0
    %3159 = vmatprep.subr.mxu0 0.0
    %3160 = vmatpush1.msra.mxu0 0.0
    %3161 = vmatprep.subr.mxu0 0.0
    %3162 = vmatpush1.msra.mxu0 0.0
    %3163 = vmatprep.subr.mxu0 0.0
    %3164 = vmatpush1.msra.mxu0 0.0
    %3165 = vmatprep.subr.mxu0 0.0
    %3166 = vmatpush1.msra.mxu0 0.0
    %3167 = vmatprep.subr.mxu0 0.0
    %3168 = vmatpush1.msra.mxu0 0.0
    %3169 = vmatprep.subr.mxu0 0.0
    %3170 = vmatpush1.msra.mxu0 0.0
    %3171 = vmatprep.subr.mxu0 0.0
    %3172 = vmatpush1.msra.mxu0 0.0
    %3173 = vmatprep.subr.mxu0 0.0
    %3174 = vmatpush1.msra.mxu0 0.0
    %3175 = vmatprep.subr.mxu0 0.0
    %3176 = vmatpush1.msra.mxu0 0.0
    %3177 = vmatprep.subr.mxu0 0.0
    %3178 = vmatpush1.msra.mxu0 0.0
    %3179 = vmatprep.subr.mxu0 0.0
    %3180 = vmatpush1.msra.mxu0 0.0
    %3181 = vmatprep.subr.mxu0 0.0
    %3182 = vmatpush1.msra.mxu0 0.0
    %3183 = vmatprep.subr.mxu0 0.0
    %3184 = vmatpush1.msra.mxu0 0.0
    %3185 = vmatprep.subr.mxu0 0.0
    %3186 = vmatpush1.msra.mxu0 0.0
    %3187 = vmatprep.subr.mxu0 0.0
    %3188 = vmatpush1.msra.mxu0 0.0
    %3189 = vmatprep.subr.mxu0 0.0
    %3190 = vmatpush1.msra.mxu0 0.0
    %3191 = vmatprep.subr.mxu0 0.0
    %3192 = vmatpush1.msra.mxu0 0.0
    %3193 = vmatprep.subr.mxu0 0.0
    %3194 = vmatpush1.msra.mxu0 0.0
    %3195 = vmatprep.subr.mxu0 0.0
    %3196 = vmatpush1.msra.mxu0 0.0
    %3197 = vmatprep.subr.mxu0 0.0
    %3198 = vmatpush1.msra.mxu0 0.0
    %3199 = vmatprep.subr.mxu0 0.0
    %3200 = vmatpush1.msra.mxu0 0.0
    %3201 = vmatprep.subr.mxu0 0.0
    %3202 = vmatpush1.msra.mxu0 0.0
    %3203 = vmatprep.subr.mxu0 0.0
    %3204 = vmatpush1.msra.mxu0 0.0
    %3205 = vmatprep.subr.mxu0 0.0
    %3206 = vmatpush1.msra.mxu0 0.0
    %3207 = vmatprep.subr.mxu0 0.0
    %3208 = vmatpush1.msra.mxu0 0.0
    %3209 = vmatprep.subr.mxu0 0.0
    %3210 = vmatpush1.msra.mxu0 0.0
    %3211 = vmatprep.mubr.f32.mxu0 0.0
    %3212 = vmatmul.mubr.f32.gmra.mrb[0].mxu0 %v3032
    %v3213 = vpop.f32.mrb[0].mxu0
    %v3214 = vadd.f32 0.0, %v3213
    %v3215 = vpop.f32.mrb[0].mxu0
    %3216 = vmatprep.mubr.f32.mxu0 0.0
    %3217 = vmatmul.mubr.f32.gmra.mrb[0].mxu0 %v3035
    %v3218 = vpop.f32.mrb[0].mxu0
    %v3219 = vadd.f32 0.0, %v3218
    %v3220 = vpop.f32.mrb[0].mxu0
    %3221 = vmatprep.mubr.f32.mxu0 0.0
    %3222 = vmatmul.mubr.f32.gmra.mrb[0].mxu0 %v3038
    %v3223 = vpop.f32.mrb[0].mxu0
    %v3224 = vadd.f32 0.0, %v3223
    %v3225 = vpop.f32.mrb[0].mxu0
    %3226 = vmatprep.mubr.f32.mxu0 0.0
    %3227 = vmatmul.mubr.f32.gmra.mrb[0].mxu0 %v3041
    %v3228 = vpop.f32.mrb[0].mxu0
    %v3229 = vadd.f32 0.0, %v3228
    %v3230 = vpop.f32.mrb[0].mxu0
    %3231 = vdwg.mxu0
    %v3232 = vld [vmem:[%s35] sm:$0xf]
    %v3234 = vsel %vm266, %v3232, 0
    %v3237 = vsel %vm266, %v3214, 0
    %v3240 = vsel %vm266, %v3219, 0
    %v3243 = vsel %vm266, %v3224, 0
    %v3246 = vsel %vm266, %v3229, 0
    %3248 = vmatprep.subr.mxu0 0.0
    %3249 = vmatpush1.xpose.msra.mxu0 %v3237
    %3250 = vmatprep.subr.mxu0 0.0
    %3251 = vmatpush1.xpose.msra.mxu0 %v3240
    %3252 = vmatprep.subr.mxu0 0.0
    %3253 = vmatpush1.xpose.msra.mxu0 %v3243
    %3254 = vmatprep.subr.mxu0 0.0
    %3255 = vmatpush1.xpose.msra.mxu0 %v3246
    %3256 = vmatprep.subr.mxu0 0.0
    %3257 = vmatpush1.xpose.msra.mxu0 0.0
    %3258 = vmatprep.subr.mxu0 0.0
    %3259 = vmatpush1.xpose.msra.mxu0 0.0
    %3260 = vmatprep.subr.mxu0 0.0
    %3261 = vmatpush1.xpose.msra.mxu0 0.0
    %3262 = vmatprep.subr.mxu0 0.0
    %3263 = vmatpush1.xpose.msra.mxu0 0.0
    %3264 = vmatprep.subr.mxu0 0.0
    %3265 = vmatpush1.xpose.msra.mxu0 0.0
    %3266 = vmatprep.subr.mxu0 0.0
    %3267 = vmatpush1.xpose.msra.mxu0 0.0
    %3268 = vmatprep.subr.mxu0 0.0
    %3269 = vmatpush1.xpose.msra.mxu0 0.0
    %3270 = vmatprep.subr.mxu0 0.0
    %3271 = vmatpush1.xpose.msra.mxu0 0.0
    %3272 = vmatprep.subr.mxu0 0.0
    %3273 = vmatpush1.xpose.msra.mxu0 0.0
    %3274 = vmatprep.subr.mxu0 0.0
    %3275 = vmatpush1.xpose.msra.mxu0 0.0
    %3276 = vmatprep.subr.mxu0 0.0
    %3277 = vmatpush1.xpose.msra.mxu0 0.0
    %3278 = vmatprep.subr.mxu0 0.0
    %3279 = vmatpush1.xpose.msra.mxu0 0.0
    %3280 = vmatprep.subr.mxu0 0.0
    %3281 = vmatpush1.xpose.msra.mxu0 0.0
    %3282 = vmatprep.subr.mxu0 0.0
    %3283 = vmatpush1.xpose.msra.mxu0 0.0
    %3284 = vmatprep.subr.mxu0 0.0
    %3285 = vmatpush1.xpose.msra.mxu0 0.0
    %3286 = vmatprep.subr.mxu0 0.0
    %3287 = vmatpush1.xpose.msra.mxu0 0.0
    %3288 = vmatprep.subr.mxu0 0.0
    %3289 = vmatpush1.xpose.msra.mxu0 0.0
    %3290 = vmatprep.subr.mxu0 0.0
    %3291 = vmatpush1.xpose.msra.mxu0 0.0
    %3292 = vmatprep.subr.mxu0 0.0
    %3293 = vmatpush1.xpose.msra.mxu0 0.0
    %3294 = vmatprep.subr.mxu0 0.0
    %3295 = vmatpush1.xpose.msra.mxu0 0.0
    %3296 = vmatprep.subr.mxu0 0.0
    %3297 = vmatpush1.xpose.msra.mxu0 0.0
    %3298 = vmatprep.subr.mxu0 0.0
    %3299 = vmatpush1.xpose.msra.mxu0 0.0
    %3300 = vmatprep.subr.mxu0 0.0
    %3301 = vmatpush1.xpose.msra.mxu0 0.0
    %3302 = vmatprep.subr.mxu0 0.0
    %3303 = vmatpush1.xpose.msra.mxu0 0.0
    %3304 = vmatprep.subr.mxu0 0.0
    %3305 = vmatpush1.xpose.msra.mxu0 0.0
    %3306 = vmatprep.subr.mxu0 0.0
    %3307 = vmatpush1.xpose.msra.mxu0 0.0
    %3308 = vmatprep.subr.mxu0 0.0
    %3309 = vmatpush1.xpose.msra.mxu0 0.0
    %3310 = vmatprep.subr.mxu0 0.0
    %3311 = vmatpush1.xpose.msra.mxu0 0.0
    %3312 = vmatprep.mubr.f32.mxu0 0.0
    %3313 = vmatmul.mubr.f32.gmra.mrb[0].mxu0 %v3234
    %v3314 = vpop.f32.mrb[0].mxu0
    %v3315 = vadd.f32 0.0, %v3314
    %v3316 = vpop.f32.mrb[0].mxu0
    %3317 = vdwg.mxu0
    %v3318 = vld [vmem:[%s37] sm:$0xff]
    %v3319 = vld [vmem:[%s37 + $0x8] sm:$0xff]
    %v3320 = vld [vmem:[%s37 + $0x10] sm:$0xff]
    %v3321 = vld [vmem:[%s37 + $0x18] sm:$0xff]
    %3322 = vmatprep.subr.mxu0 0.0
    %3323 = vmatpush1.msra.mxu0 %v3318
    %3324 = vmatprep.subr.mxu0 0.0
    %3325 = vmatpush1.msra.mxu0 %v3319
    %3326 = vmatprep.subr.mxu0 0.0
    %3327 = vmatpush1.msra.mxu0 %v3320
    %3328 = vmatprep.subr.mxu0 0.0
    %3329 = vmatpush1.msra.mxu0 %v3321
    %3330 = vmatprep.subr.mxu0 0.0
    %3331 = vmatpush1.msra.mxu0 0.0
    %3332 = vmatprep.subr.mxu0 0.0
    %3333 = vmatpush1.msra.mxu0 0.0
    %3334 = vmatprep.subr.mxu0 0.0
    %3335 = vmatpush1.msra.mxu0 0.0
    %3336 = vmatprep.subr.mxu0 0.0
    %3337 = vmatpush1.msra.mxu0 0.0
    %3338 = vmatprep.subr.mxu0 0.0
    %3339 = vmatpush1.msra.mxu0 0.0
    %3340 = vmatprep.subr.mxu0 0.0
    %3341 = vmatpush1.msra.mxu0 0.0
    %3342 = vmatprep.subr.mxu0 0.0
    %3343 = vmatpush1.msra.mxu0 0.0
    %3344 = vmatprep.subr.mxu0 0.0
    %3345 = vmatpush1.msra.mxu0 0.0
    %3346 = vmatprep.subr.mxu0 0.0
    %3347 = vmatpush1.msra.mxu0 0.0
    %3348 = vmatprep.subr.mxu0 0.0
    %3349 = vmatpush1.msra.mxu0 0.0
    %3350 = vmatprep.subr.mxu0 0.0
    %3351 = vmatpush1.msra.mxu0 0.0
    %3352 = vmatprep.subr.mxu0 0.0
    %3353 = vmatpush1.msra.mxu0 0.0
    %3354 = vmatprep.subr.mxu0 0.0
    %3355 = vmatpush1.msra.mxu0 0.0
    %3356 = vmatprep.subr.mxu0 0.0
    %3357 = vmatpush1.msra.mxu0 0.0
    %3358 = vmatprep.subr.mxu0 0.0
    %3359 = vmatpush1.msra.mxu0 0.0
    %3360 = vmatprep.subr.mxu0 0.0
    %3361 = vmatpush1.msra.mxu0 0.0
    %3362 = vmatprep.subr.mxu0 0.0
    %3363 = vmatpush1.msra.mxu0 0.0
    %3364 = vmatprep.subr.mxu0 0.0
    %3365 = vmatpush1.msra.mxu0 0.0
    %3366 = vmatprep.subr.mxu0 0.0
    %3367 = vmatpush1.msra.mxu0 0.0
    %3368 = vmatprep.subr.mxu0 0.0
    %3369 = vmatpush1.msra.mxu0 0.0
    %3370 = vmatprep.subr.mxu0 0.0
    %3371 = vmatpush1.msra.mxu0 0.0
    %3372 = vmatprep.subr.mxu0 0.0
    %3373 = vmatpush1.msra.mxu0 0.0
    %3374 = vmatprep.subr.mxu0 0.0
    %3375 = vmatpush1.msra.mxu0 0.0
    %3376 = vmatprep.subr.mxu0 0.0
    %3377 = vmatpush1.msra.mxu0 0.0
    %3378 = vmatprep.subr.mxu0 0.0
    %3379 = vmatpush1.msra.mxu0 0.0
    %3380 = vmatprep.subr.mxu0 0.0
    %3381 = vmatpush1.msra.mxu0 0.0
    %3382 = vmatprep.subr.mxu0 0.0
    %3383 = vmatpush1.msra.mxu0 0.0
    %3384 = vmatprep.subr.mxu0 0.0
    %3385 = vmatpush1.msra.mxu0 0.0
    %3386 = vmatprep.mubr.f32.mxu0 0.0
    %3387 = vmatmul.mubr.f32.gmra.mrb[0].mxu0 %v3237
    %v3388 = vpop.f32.mrb[0].mxu0
    %v3389 = vadd.f32 0.0, %v3388
    %v3390 = vpop.f32.mrb[0].mxu0
    %3391 = vmatprep.mubr.f32.mxu0 0.0
    %3392 = vmatmul.mubr.f32.gmra.mrb[0].mxu0 %v3240
    %v3393 = vpop.f32.mrb[0].mxu0
    %v3394 = vadd.f32 0.0, %v3393
    %v3395 = vpop.f32.mrb[0].mxu0
    %3396 = vmatprep.mubr.f32.mxu0 0.0
    %3397 = vmatmul.mubr.f32.gmra.mrb[0].mxu0 %v3243
    %v3398 = vpop.f32.mrb[0].mxu0
    %v3399 = vadd.f32 0.0, %v3398
    %v3400 = vpop.f32.mrb[0].mxu0
    %3401 = vmatprep.mubr.f32.mxu0 0.0
    %3402 = vmatmul.mubr.f32.gmra.mrb[0].mxu0 %v3246
    %v3403 = vpop.f32.mrb[0].mxu0
    %v3404 = vadd.f32 0.0, %v3403
    %v3405 = vpop.f32.mrb[0].mxu0
    %3406 = vdwg.mxu0
    %s3407 = sld [smem:[#allocation6]]
    %v3408 = vstv %s3407
    %v3409 = vadd.f32 %v3408, 0.0
    %s3410 = sld [smem:[#allocation6 + $0x4]]
    %v3411 = vstv %s3410
    %v3412 = vsel %vm750, %v3411, %v3409
    %v3413 = vsel %vm751, %v3411, %v3409
    %v3414 = vsel %vm752, %v3411, %v3409
    %v3415 = vsel %vm753, %v3411, %v3409
    %s3416 = sld [smem:[#allocation6 + $0x8]]
    %v3417 = vstv %s3416
    %v3418 = vsel %vm760, %v3417, %v3412
    %v3419 = vsel %vm761, %v3417, %v3413
    %v3420 = vsel %vm762, %v3417, %v3414
    %v3421 = vsel %vm763, %v3417, %v3415
    %3423 = vset.pattern.permute.xlu0 0
    %3424 = vperm.xlu0 %3423, %v3389
    %v3425 = vpop.permute.xlu0 %3424
    %3428 = vset.pattern.permute.xlu0 0
    %3429 = vperm.xlu0 %3428, %v3394
    %v3430 = vpop.permute.xlu0 %3429
    %3433 = vset.pattern.permute.xlu0 0
    %3434 = vperm.xlu0 %3433, %v3399
    %v3435 = vpop.permute.xlu0 %3434
    %3438 = vset.pattern.permute.xlu0 0
    %3439 = vperm.xlu0 %3438, %v3404
    %v3440 = vpop.permute.xlu0 %3439
    %v3442 = vlaneseq
    %v3443 = vshrl.u32 %v3442, 7
    %v3444 = vsub.s32 0, %v3443
    %v3445 = vrot.slane %v3315, %v3444
    %v3446 = vadd.f32 %v3425, %v3445
    %v3447 = vadd.f32 %v3430, %v3445
    %v3448 = vadd.f32 %v3435, %v3445
    %v3449 = vadd.f32 %v3440, %v3445
    %v3450 = vadd.f32 %v3446, %v3418
    %v3451 = vadd.f32 %v3447, %v3419
    %v3452 = vadd.f32 %v3448, %v3420
    %v3453 = vadd.f32 %v3449, %v3421
    %vm3454 = vcmp.ge.f32.partialorder %v3450, 0.0
    %vm3455 = vcmp.ge.f32.partialorder %v3451, 0.0
    %vm3456 = vcmp.ge.f32.partialorder %v3452, 0.0
    %vm3457 = vcmp.ge.f32.partialorder %v3453, 0.0
    %v3458 = vmul.f32 %v3450, 0.05
    %v3459 = vmul.f32 %v3451, 0.05
    %v3460 = vmul.f32 %v3452, 0.05
    %v3461 = vmul.f32 %v3453, 0.05
    %v3462 = vsel %vm3454, %v3450, %v3458
    %v3463 = vsel %vm3455, %v3451, %v3459
    %v3464 = vsel %vm3456, %v3452, %v3460
    %v3465 = vsel %vm3457, %v3453, %v3461
    %v3466 = vsel %vm814, %v3462, -1e+30
    %v3467 = vsel %vm815, %v3463, -1e+30
    %v3468 = vsel %vm816, %v3464, -1e+30
    %v3469 = vsel %vm817, %v3465, -1e+30
    %3470 = vst.msk [vmem:[#allocation3] sm:$0xff] %vm266, %v3466
    %3471 = vst.msk [vmem:[#allocation3 + $0x8] sm:$0xff] %vm266, %v3467
    %3472 = vst.msk [vmem:[#allocation3 + $0x10] sm:$0xff] %vm266, %v3468
    %3473 = vst.msk [vmem:[#allocation3 + $0x18] sm:$0xff] %vm266, %v3469
    %s3474 = sld [smem:[#allocation6 + $0x1]]
    %v3475 = vstv %s3474
    %v3476 = vadd.f32 %v3475, 0.0
    %s3477 = sld [smem:[#allocation6 + $0x5]]
    %v3478 = vstv %s3477
    %v3479 = vsel %vm750, %v3478, %v3476
    %v3480 = vsel %vm751, %v3478, %v3476
    %v3481 = vsel %vm752, %v3478, %v3476
    %v3482 = vsel %vm753, %v3478, %v3476
    %s3483 = sld [smem:[#allocation6 + $0x9]]
    %v3484 = vstv %s3483
    %v3485 = vsel %vm760, %v3484, %v3479
    %v3486 = vsel %vm761, %v3484, %v3480
    %v3487 = vsel %vm762, %v3484, %v3481
    %v3488 = vsel %vm763, %v3484, %v3482
    %3489 = vset.pattern.permute.xlu0 1
    %3490 = vperm.xlu0 %3489, %v3389
    %v3491 = vpop.permute.xlu0 %3490
    %3493 = vset.pattern.permute.xlu0 1
    %3494 = vperm.xlu0 %3493, %v3394
    %v3495 = vpop.permute.xlu0 %3494
    %3497 = vset.pattern.permute.xlu0 1
    %3498 = vperm.xlu0 %3497, %v3399
    %v3499 = vpop.permute.xlu0 %3498
    %3501 = vset.pattern.permute.xlu0 1
    %3502 = vperm.xlu0 %3501, %v3404
    %v3503 = vpop.permute.xlu0 %3502
    %v3505 = vlaneseq
    %v3506 = vshrl.u32 %v3505, 7
    %v3507 = vsub.s32 1, %v3506
    %v3508 = vrot.slane %v3315, %v3507
    %v3509 = vadd.f32 %v3491, %v3508
    %v3510 = vadd.f32 %v3495, %v3508
    %v3511 = vadd.f32 %v3499, %v3508
    %v3512 = vadd.f32 %v3503, %v3508
    %v3513 = vadd.f32 %v3509, %v3485
    %v3514 = vadd.f32 %v3510, %v3486
    %v3515 = vadd.f32 %v3511, %v3487
    %v3516 = vadd.f32 %v3512, %v3488
    %vm3517 = vcmp.ge.f32.partialorder %v3513, 0.0
    %vm3518 = vcmp.ge.f32.partialorder %v3514, 0.0
    %vm3519 = vcmp.ge.f32.partialorder %v3515, 0.0
    %vm3520 = vcmp.ge.f32.partialorder %v3516, 0.0
    %v3521 = vmul.f32 %v3513, 0.05
    %v3522 = vmul.f32 %v3514, 0.05
    %v3523 = vmul.f32 %v3515, 0.05
    %v3524 = vmul.f32 %v3516, 0.05
    %v3525 = vsel %vm3517, %v3513, %v3521
    %v3526 = vsel %vm3518, %v3514, %v3522
    %v3527 = vsel %vm3519, %v3515, %v3523
    %v3528 = vsel %vm3520, %v3516, %v3524
    %v3529 = vsel %vm814, %v3525, -1e+30
    %v3530 = vsel %vm815, %v3526, -1e+30
    %v3531 = vsel %vm816, %v3527, -1e+30
    %v3532 = vsel %vm817, %v3528, -1e+30
    %3533 = vst.msk [vmem:[%s885] sm:$0xff] %vm266, %v3529
    %3534 = vst.msk [vmem:[%s885 + $0x8] sm:$0xff] %vm266, %v3530
    %3535 = vst.msk [vmem:[%s885 + $0x10] sm:$0xff] %vm266, %v3531
    %3536 = vst.msk [vmem:[%s885 + $0x18] sm:$0xff] %vm266, %v3532
    %s3537 = sld [smem:[#allocation6 + $0x2]]
    %v3538 = vstv %s3537
    %v3539 = vadd.f32 %v3538, 0.0
    %s3540 = sld [smem:[#allocation6 + $0x6]]
    %v3541 = vstv %s3540
    %v3542 = vsel %vm750, %v3541, %v3539
    %v3543 = vsel %vm751, %v3541, %v3539
    %v3544 = vsel %vm752, %v3541, %v3539
    %v3545 = vsel %vm753, %v3541, %v3539
    %s3546 = sld [smem:[#allocation6 + $0xa]]
    %v3547 = vstv %s3546
    %v3548 = vsel %vm760, %v3547, %v3542
    %v3549 = vsel %vm761, %v3547, %v3543
    %v3550 = vsel %vm762, %v3547, %v3544
    %v3551 = vsel %vm763, %v3547, %v3545
    %3552 = vset.pattern.permute.xlu0 2
    %3553 = vperm.xlu0 %3552, %v3389
    %v3554 = vpop.permute.xlu0 %3553
    %3556 = vset.pattern.permute.xlu0 2
    %3557 = vperm.xlu0 %3556, %v3394
    %v3558 = vpop.permute.xlu0 %3557
    %3560 = vset.pattern.permute.xlu0 2
    %3561 = vperm.xlu0 %3560, %v3399
    %v3562 = vpop.permute.xlu0 %3561
    %3564 = vset.pattern.permute.xlu0 2
    %3565 = vperm.xlu0 %3564, %v3404
    %v3566 = vpop.permute.xlu0 %3565
    %v3568 = vlaneseq
    %v3569 = vshrl.u32 %v3568, 7
    %v3570 = vsub.s32 2, %v3569
    %v3571 = vrot.slane %v3315, %v3570
    %v3572 = vadd.f32 %v3554, %v3571
    %v3573 = vadd.f32 %v3558, %v3571
    %v3574 = vadd.f32 %v3562, %v3571
    %v3575 = vadd.f32 %v3566, %v3571
    %v3576 = vadd.f32 %v3572, %v3548
    %v3577 = vadd.f32 %v3573, %v3549
    %v3578 = vadd.f32 %v3574, %v3550
    %v3579 = vadd.f32 %v3575, %v3551
    %vm3580 = vcmp.ge.f32.partialorder %v3576, 0.0
    %vm3581 = vcmp.ge.f32.partialorder %v3577, 0.0
    %vm3582 = vcmp.ge.f32.partialorder %v3578, 0.0
    %vm3583 = vcmp.ge.f32.partialorder %v3579, 0.0
    %v3584 = vmul.f32 %v3576, 0.05
    %v3585 = vmul.f32 %v3577, 0.05
    %v3586 = vmul.f32 %v3578, 0.05
    %v3587 = vmul.f32 %v3579, 0.05
    %v3588 = vsel %vm3580, %v3576, %v3584
    %v3589 = vsel %vm3581, %v3577, %v3585
    %v3590 = vsel %vm3582, %v3578, %v3586
    %v3591 = vsel %vm3583, %v3579, %v3587
    %v3592 = vsel %vm814, %v3588, -1e+30
    %v3593 = vsel %vm815, %v3589, -1e+30
    %v3594 = vsel %vm816, %v3590, -1e+30
    %v3595 = vsel %vm817, %v3591, -1e+30
    %3596 = vst.msk [vmem:[%s949] sm:$0xff] %vm266, %v3592
    %3597 = vst.msk [vmem:[%s949 + $0x8] sm:$0xff] %vm266, %v3593
    %3598 = vst.msk [vmem:[%s949 + $0x10] sm:$0xff] %vm266, %v3594
    %3599 = vst.msk [vmem:[%s949 + $0x18] sm:$0xff] %vm266, %v3595
    %s3600 = sld [smem:[#allocation6 + $0x3]]
    %v3601 = vstv %s3600
    %v3602 = vadd.f32 %v3601, 0.0
    %s3603 = sld [smem:[#allocation6 + $0x7]]
    %v3604 = vstv %s3603
    %v3605 = vsel %vm750, %v3604, %v3602
    %v3606 = vsel %vm751, %v3604, %v3602
    %v3607 = vsel %vm752, %v3604, %v3602
    %v3608 = vsel %vm753, %v3604, %v3602
    %s3609 = sld [smem:[#allocation6 + $0xb]]
    %v3610 = vstv %s3609
    %v3611 = vsel %vm760, %v3610, %v3605
    %v3612 = vsel %vm761, %v3610, %v3606
    %v3613 = vsel %vm762, %v3610, %v3607
    %v3614 = vsel %vm763, %v3610, %v3608
    %3615 = vset.pattern.permute.xlu0 3
    %3616 = vperm.xlu0 %3615, %v3389
    %v3617 = vpop.permute.xlu0 %3616
    %3619 = vset.pattern.permute.xlu0 3
    %3620 = vperm.xlu0 %3619, %v3394
    %v3621 = vpop.permute.xlu0 %3620
    %3623 = vset.pattern.permute.xlu0 3
    %3624 = vperm.xlu0 %3623, %v3399
    %v3625 = vpop.permute.xlu0 %3624
    %3627 = vset.pattern.permute.xlu0 3
    %3628 = vperm.xlu0 %3627, %v3404
    %v3629 = vpop.permute.xlu0 %3628
    %v3631 = vlaneseq
    %v3632 = vshrl.u32 %v3631, 7
    %v3633 = vsub.s32 3, %v3632
    %v3634 = vrot.slane %v3315, %v3633
    %v3635 = vadd.f32 %v3617, %v3634
    %v3636 = vadd.f32 %v3621, %v3634
    %v3637 = vadd.f32 %v3625, %v3634
    %v3638 = vadd.f32 %v3629, %v3634
    %v3639 = vadd.f32 %v3635, %v3611
    %v3640 = vadd.f32 %v3636, %v3612
    %v3641 = vadd.f32 %v3637, %v3613
    %v3642 = vadd.f32 %v3638, %v3614
    %vm3643 = vcmp.ge.f32.partialorder %v3639, 0.0
    %vm3644 = vcmp.ge.f32.partialorder %v3640, 0.0
    %vm3645 = vcmp.ge.f32.partialorder %v3641, 0.0
    %vm3646 = vcmp.ge.f32.partialorder %v3642, 0.0
    %v3647 = vmul.f32 %v3639, 0.05
    %v3648 = vmul.f32 %v3640, 0.05
    %v3649 = vmul.f32 %v3641, 0.05
    %v3650 = vmul.f32 %v3642, 0.05
    %v3651 = vsel %vm3643, %v3639, %v3647
    %v3652 = vsel %vm3644, %v3640, %v3648
    %v3653 = vsel %vm3645, %v3641, %v3649
    %v3654 = vsel %vm3646, %v3642, %v3650
    %v3655 = vsel %vm814, %v3651, -1e+30
    %v3656 = vsel %vm815, %v3652, -1e+30
    %v3657 = vsel %vm816, %v3653, -1e+30
    %v3658 = vsel %vm817, %v3654, -1e+30
    %3659 = vst.msk [vmem:[%s1013] sm:$0xff] %vm266, %v3655
    %3660 = vst.msk [vmem:[%s1013 + $0x8] sm:$0xff] %vm266, %v3656
    %3661 = vst.msk [vmem:[%s1013 + $0x10] sm:$0xff] %vm266, %v3657
    %3662 = vst.msk [vmem:[%s1013 + $0x18] sm:$0xff] %vm266, %v3658
    %v3663 = vld [vmem:[#allocation3] sm:$0xff]
    %v3664 = vld [vmem:[#allocation3 + $0x8] sm:$0xff]
    %v3665 = vld [vmem:[#allocation3 + $0x10] sm:$0xff]
    %v3666 = vld [vmem:[#allocation3 + $0x18] sm:$0xff]
    %v3667 = vld [vmem:[#allocation3 + $0x20] sm:$0xff]
    %v3668 = vld [vmem:[#allocation3 + $0x28] sm:$0xff]
    %v3669 = vld [vmem:[#allocation3 + $0x30] sm:$0xff]
    %v3670 = vld [vmem:[#allocation3 + $0x38] sm:$0xff]
    %v3671 = vld [vmem:[#allocation3 + $0x40] sm:$0xff]
    %v3672 = vld [vmem:[#allocation3 + $0x48] sm:$0xff]
    %v3673 = vld [vmem:[#allocation3 + $0x50] sm:$0xff]
    %v3674 = vld [vmem:[#allocation3 + $0x58] sm:$0xff]
    %v3675 = vld [vmem:[#allocation3 + $0x60] sm:$0xff]
    %v3676 = vld [vmem:[#allocation3 + $0x68] sm:$0xff]
    %v3677 = vld [vmem:[#allocation3 + $0x70] sm:$0xff]
    %v3678 = vld [vmem:[#allocation3 + $0x78] sm:$0xff]
    %v3679 = vsel %vm266, %v3663, -inf
    %3680 = vmax.xlane.f32.xlu0 %v3679
    %v3681 = vpop.xlane.xlu0 %3680
    %v3682 = vsel %vm266, %v3664, -inf
    %3683 = vmax.xlane.f32.xlu0 %v3682
    %v3684 = vpop.xlane.xlu0 %3683
    %v3685 = vsel %vm266, %v3665, -inf
    %3686 = vmax.xlane.f32.xlu0 %v3685
    %v3687 = vpop.xlane.xlu0 %3686
    %v3688 = vsel %vm266, %v3666, -inf
    %3689 = vmax.xlane.f32.xlu0 %v3688
    %v3690 = vpop.xlane.xlu0 %3689
    %v3691 = vsel %vm266, %v3667, -inf
    %3692 = vmax.xlane.f32.xlu0 %v3691
    %v3693 = vpop.xlane.xlu0 %3692
    %v3694 = vsel %vm266, %v3668, -inf
    %3695 = vmax.xlane.f32.xlu0 %v3694
    %v3696 = vpop.xlane.xlu0 %3695
    %v3697 = vsel %vm266, %v3669, -inf
    %3698 = vmax.xlane.f32.xlu0 %v3697
    %v3699 = vpop.xlane.xlu0 %3698
    %v3700 = vsel %vm266, %v3670, -inf
    %3701 = vmax.xlane.f32.xlu0 %v3700
    %v3702 = vpop.xlane.xlu0 %3701
    %v3703 = vsel %vm266, %v3671, -inf
    %3704 = vmax.xlane.f32.xlu0 %v3703
    %v3705 = vpop.xlane.xlu0 %3704
    %v3706 = vsel %vm266, %v3672, -inf
    %3707 = vmax.xlane.f32.xlu0 %v3706
    %v3708 = vpop.xlane.xlu0 %3707
    %v3709 = vsel %vm266, %v3673, -inf
    %3710 = vmax.xlane.f32.xlu0 %v3709
    %v3711 = vpop.xlane.xlu0 %3710
    %v3712 = vsel %vm266, %v3674, -inf
    %3713 = vmax.xlane.f32.xlu0 %v3712
    %v3714 = vpop.xlane.xlu0 %3713
    %v3715 = vsel %vm266, %v3675, -inf
    %3716 = vmax.xlane.f32.xlu0 %v3715
    %v3717 = vpop.xlane.xlu0 %3716
    %v3718 = vsel %vm266, %v3676, -inf
    %3719 = vmax.xlane.f32.xlu0 %v3718
    %v3720 = vpop.xlane.xlu0 %3719
    %v3721 = vsel %vm266, %v3677, -inf
    %3722 = vmax.xlane.f32.xlu0 %v3721
    %v3723 = vpop.xlane.xlu0 %3722
    %v3724 = vsel %vm266, %v3678, -inf
    %3725 = vmax.xlane.f32.xlu0 %v3724
    %v3726 = vpop.xlane.xlu0 %3725
    %v3727 = vsub.f32 %v3663, %v3681
    %v3728 = vsub.f32 %v3664, %v3684
    %v3729 = vsub.f32 %v3665, %v3687
    %v3730 = vsub.f32 %v3666, %v3690
    %v3731 = vsub.f32 %v3667, %v3693
    %v3732 = vsub.f32 %v3668, %v3696
    %v3733 = vsub.f32 %v3669, %v3699
    %v3734 = vsub.f32 %v3670, %v3702
    %v3735 = vsub.f32 %v3671, %v3705
    %v3736 = vsub.f32 %v3672, %v3708
    %v3737 = vsub.f32 %v3673, %v3711
    %v3738 = vsub.f32 %v3674, %v3714
    %v3739 = vsub.f32 %v3675, %v3717
    %v3740 = vsub.f32 %v3676, %v3720
    %v3741 = vsub.f32 %v3677, %v3723
    %v3742 = vsub.f32 %v3678, %v3726
    %v3743 = vmul.f32 %v3727, 1.442695
    %v3744 = vpow.pop %v3743
    %v3745 = vmul.f32 %v3728, 1.442695
    %v3746 = vpow.pop %v3745
    %v3747 = vmul.f32 %v3729, 1.442695
    %v3748 = vpow.pop %v3747
    %v3749 = vmul.f32 %v3730, 1.442695
    %v3750 = vpow.pop %v3749
    %v3751 = vmul.f32 %v3731, 1.442695
    %v3752 = vpow.pop %v3751
    %v3753 = vmul.f32 %v3732, 1.442695
    %v3754 = vpow.pop %v3753
    %v3755 = vmul.f32 %v3733, 1.442695
    %v3756 = vpow.pop %v3755
    %v3757 = vmul.f32 %v3734, 1.442695
    %v3758 = vpow.pop %v3757
    %v3759 = vmul.f32 %v3735, 1.442695
    %v3760 = vpow.pop %v3759
    %v3761 = vmul.f32 %v3736, 1.442695
    %v3762 = vpow.pop %v3761
    %v3763 = vmul.f32 %v3737, 1.442695
    %v3764 = vpow.pop %v3763
    %v3765 = vmul.f32 %v3738, 1.442695
    %v3766 = vpow.pop %v3765
    %v3767 = vmul.f32 %v3739, 1.442695
    %v3768 = vpow.pop %v3767
    %v3769 = vmul.f32 %v3740, 1.442695
    %v3770 = vpow.pop %v3769
    %v3771 = vmul.f32 %v3741, 1.442695
    %v3772 = vpow.pop %v3771
    %v3773 = vmul.f32 %v3742, 1.442695
    %v3774 = vpow.pop %v3773
    %v3775 = vsel %vm266, %v3744, 0.0
    %3776 = vadd.xlane.f32.xlu0 %v3775
    %v3777 = vpop.xlane.xlu0 %3776
    %v3778 = vsel %vm266, %v3746, 0.0
    %3779 = vadd.xlane.f32.xlu0 %v3778
    %v3780 = vpop.xlane.xlu0 %3779
    %v3781 = vsel %vm266, %v3748, 0.0
    %3782 = vadd.xlane.f32.xlu0 %v3781
    %v3783 = vpop.xlane.xlu0 %3782
    %v3784 = vsel %vm266, %v3750, 0.0
    %3785 = vadd.xlane.f32.xlu0 %v3784
    %v3786 = vpop.xlane.xlu0 %3785
    %v3787 = vsel %vm266, %v3752, 0.0
    %3788 = vadd.xlane.f32.xlu0 %v3787
    %v3789 = vpop.xlane.xlu0 %3788
    %v3790 = vsel %vm266, %v3754, 0.0
    %3791 = vadd.xlane.f32.xlu0 %v3790
    %v3792 = vpop.xlane.xlu0 %3791
    %v3793 = vsel %vm266, %v3756, 0.0
    %3794 = vadd.xlane.f32.xlu0 %v3793
    %v3795 = vpop.xlane.xlu0 %3794
    %v3796 = vsel %vm266, %v3758, 0.0
    %3797 = vadd.xlane.f32.xlu0 %v3796
    %v3798 = vpop.xlane.xlu0 %3797
    %v3799 = vsel %vm266, %v3760, 0.0
    %3800 = vadd.xlane.f32.xlu0 %v3799
    %v3801 = vpop.xlane.xlu0 %3800
    %v3802 = vsel %vm266, %v3762, 0.0
    %3803 = vadd.xlane.f32.xlu0 %v3802
    %v3804 = vpop.xlane.xlu0 %3803
    %v3805 = vsel %vm266, %v3764, 0.0
    %3806 = vadd.xlane.f32.xlu0 %v3805
    %v3807 = vpop.xlane.xlu0 %3806
    %v3808 = vsel %vm266, %v3766, 0.0
    %3809 = vadd.xlane.f32.xlu0 %v3808
    %v3810 = vpop.xlane.xlu0 %3809
    %v3811 = vsel %vm266, %v3768, 0.0
    %3812 = vadd.xlane.f32.xlu0 %v3811
    %v3813 = vpop.xlane.xlu0 %3812
    %v3814 = vsel %vm266, %v3770, 0.0
    %3815 = vadd.xlane.f32.xlu0 %v3814
    %v3816 = vpop.xlane.xlu0 %3815
    %v3817 = vsel %vm266, %v3772, 0.0
    %3818 = vadd.xlane.f32.xlu0 %v3817
    %v3819 = vpop.xlane.xlu0 %3818
    %v3820 = vsel %vm266, %v3774, 0.0
    %3821 = vadd.xlane.f32.xlu0 %v3820
    %v3822 = vpop.xlane.xlu0 %3821
    %v3823 = vmax.f32 %v3777, 1e-20
    %v3824 = vmax.f32 %v3780, 1e-20
    %v3825 = vmax.f32 %v3783, 1e-20
    %v3826 = vmax.f32 %v3786, 1e-20
    %v3827 = vmax.f32 %v3789, 1e-20
    %v3828 = vmax.f32 %v3792, 1e-20
    %v3829 = vmax.f32 %v3795, 1e-20
    %v3830 = vmax.f32 %v3798, 1e-20
    %v3831 = vmax.f32 %v3801, 1e-20
    %v3832 = vmax.f32 %v3804, 1e-20
    %v3833 = vmax.f32 %v3807, 1e-20
    %v3834 = vmax.f32 %v3810, 1e-20
    %v3835 = vmax.f32 %v3813, 1e-20
    %v3836 = vmax.f32 %v3816, 1e-20
    %v3837 = vmax.f32 %v3819, 1e-20
    %v3838 = vmax.f32 %v3822, 1e-20
    %v3839 = vrcp.pop %v3823
    %v3840 = vmul.f32 %v3744, %v3839
    %v3841 = vrcp.pop %v3824
    %v3842 = vmul.f32 %v3746, %v3841
    %v3843 = vrcp.pop %v3825
    %v3844 = vmul.f32 %v3748, %v3843
    %v3845 = vrcp.pop %v3826
    %v3846 = vmul.f32 %v3750, %v3845
    %v3847 = vrcp.pop %v3827
    %v3848 = vmul.f32 %v3752, %v3847
    %v3849 = vrcp.pop %v3828
    %v3850 = vmul.f32 %v3754, %v3849
    %v3851 = vrcp.pop %v3829
    %v3852 = vmul.f32 %v3756, %v3851
    %v3853 = vrcp.pop %v3830
    %v3854 = vmul.f32 %v3758, %v3853
    %v3855 = vrcp.pop %v3831
    %v3856 = vmul.f32 %v3760, %v3855
    %v3857 = vrcp.pop %v3832
    %v3858 = vmul.f32 %v3762, %v3857
    %v3859 = vrcp.pop %v3833
    %v3860 = vmul.f32 %v3764, %v3859
    %v3861 = vrcp.pop %v3834
    %v3862 = vmul.f32 %v3766, %v3861
    %v3863 = vrcp.pop %v3835
    %v3864 = vmul.f32 %v3768, %v3863
    %v3865 = vrcp.pop %v3836
    %v3866 = vmul.f32 %v3770, %v3865
    %v3867 = vrcp.pop %v3837
    %v3868 = vmul.f32 %v3772, %v3867
    %v3869 = vrcp.pop %v3838
    %v3870 = vmul.f32 %v3774, %v3869
    %v3871 = vmul.f32 %v3840, 0.95
    %v3872 = vmul.f32 %v3842, 0.95
    %v3873 = vmul.f32 %v3844, 0.95
    %v3874 = vmul.f32 %v3846, 0.95
    %v3875 = vmul.f32 %v3848, 0.95
    %v3876 = vmul.f32 %v3850, 0.95
    %v3877 = vmul.f32 %v3852, 0.95
    %v3878 = vmul.f32 %v3854, 0.95
    %v3879 = vmul.f32 %v3856, 0.95
    %v3880 = vmul.f32 %v3858, 0.95
    %v3881 = vmul.f32 %v3860, 0.95
    %v3882 = vmul.f32 %v3862, 0.95
    %v3883 = vmul.f32 %v3864, 0.95
    %v3884 = vmul.f32 %v3866, 0.95
    %v3885 = vmul.f32 %v3868, 0.95
    %v3886 = vmul.f32 %v3870, 0.95
    %v3887 = vmul.f32 %v1195, 0.05
    %v3888 = vmul.f32 %v1197, 0.05
    %v3889 = vmul.f32 %v1199, 0.05
    %v3890 = vmul.f32 %v1201, 0.05
    %v3891 = vmul.f32 %v1203, 0.05
    %v3892 = vmul.f32 %v1205, 0.05
    %v3893 = vmul.f32 %v1207, 0.05
    %v3894 = vmul.f32 %v1209, 0.05
    %v3895 = vmul.f32 %v1211, 0.05
    %v3896 = vmul.f32 %v1213, 0.05
    %v3897 = vmul.f32 %v1215, 0.05
    %v3898 = vmul.f32 %v1217, 0.05
    %v3899 = vmul.f32 %v1219, 0.05
    %v3900 = vmul.f32 %v1221, 0.05
    %v3901 = vmul.f32 %v1223, 0.05
    %v3902 = vmul.f32 %v1225, 0.05
    %v3903 = vadd.f32 %v3871, %v3887
    %v3904 = vadd.f32 %v3872, %v3888
    %v3905 = vadd.f32 %v3873, %v3889
    %v3906 = vadd.f32 %v3874, %v3890
    %v3907 = vadd.f32 %v3875, %v3891
    %v3908 = vadd.f32 %v3876, %v3892
    %v3909 = vadd.f32 %v3877, %v3893
    %v3910 = vadd.f32 %v3878, %v3894
    %v3911 = vadd.f32 %v3879, %v3895
    %v3912 = vadd.f32 %v3880, %v3896
    %v3913 = vadd.f32 %v3881, %v3897
    %v3914 = vadd.f32 %v3882, %v3898
    %v3915 = vadd.f32 %v3883, %v3899
    %v3916 = vadd.f32 %v3884, %v3900
    %v3917 = vadd.f32 %v3885, %v3901
    %v3918 = vadd.f32 %v3886, %v3902
    %3919 = vst.msk [vmem:[#allocation3] sm:$0xff] %vm266, %v3903
    %3920 = vst.msk [vmem:[#allocation3 + $0x8] sm:$0xff] %vm266, %v3904
    %3921 = vst.msk [vmem:[#allocation3 + $0x10] sm:$0xff] %vm266, %v3905
    %3922 = vst.msk [vmem:[#allocation3 + $0x18] sm:$0xff] %vm266, %v3906
    %3923 = vst.msk [vmem:[#allocation3 + $0x20] sm:$0xff] %vm266, %v3907
    %3924 = vst.msk [vmem:[#allocation3 + $0x28] sm:$0xff] %vm266, %v3908
    %3925 = vst.msk [vmem:[#allocation3 + $0x30] sm:$0xff] %vm266, %v3909
    %3926 = vst.msk [vmem:[#allocation3 + $0x38] sm:$0xff] %vm266, %v3910
    %3927 = vst.msk [vmem:[#allocation3 + $0x40] sm:$0xff] %vm266, %v3911
    %3928 = vst.msk [vmem:[#allocation3 + $0x48] sm:$0xff] %vm266, %v3912
    %3929 = vst.msk [vmem:[#allocation3 + $0x50] sm:$0xff] %vm266, %v3913
    %3930 = vst.msk [vmem:[#allocation3 + $0x58] sm:$0xff] %vm266, %v3914
    %3931 = vst.msk [vmem:[#allocation3 + $0x60] sm:$0xff] %vm266, %v3915
    %3932 = vst.msk [vmem:[#allocation3 + $0x68] sm:$0xff] %vm266, %v3916
    %3933 = vst.msk [vmem:[#allocation3 + $0x70] sm:$0xff] %vm266, %v3917
    %3934 = vst.msk [vmem:[#allocation3 + $0x78] sm:$0xff] %vm266, %v3918
    %v3935 = vld [vmem:[#allocation3] sm:$0xff]
    %v3936 = vld [vmem:[#allocation3 + $0x8] sm:$0xff]
    %v3937 = vld [vmem:[#allocation3 + $0x10] sm:$0xff]
    %v3938 = vld [vmem:[#allocation3 + $0x18] sm:$0xff]
    %v3939 = vsel %vm1252, %v3214, 0.0
    %v3940 = vsel %vm1252, %v3219, 0.0
    %v3941 = vsel %vm1252, %v3224, 0.0
    %v3942 = vsel %vm1252, %v3229, 0.0
    %v3944 = vsel %vm266, %v3935, 0
    %v3947 = vsel %vm266, %v3936, 0
    %v3950 = vsel %vm266, %v3937, 0
    %v3953 = vsel %vm266, %v3938, 0
    %3955 = vmatprep.subr.mxu0 0.0
    %3956 = vmatpush1.msra.mxu0 %v3939
    %3957 = vmatprep.subr.mxu0 0.0
    %3958 = vmatpush1.msra.mxu0 %v3940
    %3959 = vmatprep.subr.mxu0 0.0
    %3960 = vmatpush1.msra.mxu0 %v3941
    %3961 = vmatprep.subr.mxu0 0.0
    %3962 = vmatpush1.msra.mxu0 %v3942
    %3963 = vmatprep.subr.mxu0 0.0
    %3964 = vmatpush1.msra.mxu0 0.0
    %3965 = vmatprep.subr.mxu0 0.0
    %3966 = vmatpush1.msra.mxu0 0.0
    %3967 = vmatprep.subr.mxu0 0.0
    %3968 = vmatpush1.msra.mxu0 0.0
    %3969 = vmatprep.subr.mxu0 0.0
    %3970 = vmatpush1.msra.mxu0 0.0
    %3971 = vmatprep.subr.mxu0 0.0
    %3972 = vmatpush1.msra.mxu0 0.0
    %3973 = vmatprep.subr.mxu0 0.0
    %3974 = vmatpush1.msra.mxu0 0.0
    %3975 = vmatprep.subr.mxu0 0.0
    %3976 = vmatpush1.msra.mxu0 0.0
    %3977 = vmatprep.subr.mxu0 0.0
    %3978 = vmatpush1.msra.mxu0 0.0
    %3979 = vmatprep.subr.mxu0 0.0
    %3980 = vmatpush1.msra.mxu0 0.0
    %3981 = vmatprep.subr.mxu0 0.0
    %3982 = vmatpush1.msra.mxu0 0.0
    %3983 = vmatprep.subr.mxu0 0.0
    %3984 = vmatpush1.msra.mxu0 0.0
    %3985 = vmatprep.subr.mxu0 0.0
    %3986 = vmatpush1.msra.mxu0 0.0
    %3987 = vmatprep.subr.mxu0 0.0
    %3988 = vmatpush1.msra.mxu0 0.0
    %3989 = vmatprep.subr.mxu0 0.0
    %3990 = vmatpush1.msra.mxu0 0.0
    %3991 = vmatprep.subr.mxu0 0.0
    %3992 = vmatpush1.msra.mxu0 0.0
    %3993 = vmatprep.subr.mxu0 0.0
    %3994 = vmatpush1.msra.mxu0 0.0
    %3995 = vmatprep.subr.mxu0 0.0
    %3996 = vmatpush1.msra.mxu0 0.0
    %3997 = vmatprep.subr.mxu0 0.0
    %3998 = vmatpush1.msra.mxu0 0.0
    %3999 = vmatprep.subr.mxu0 0.0
    %4000 = vmatpush1.msra.mxu0 0.0
    %4001 = vmatprep.subr.mxu0 0.0
    %4002 = vmatpush1.msra.mxu0 0.0
    %4003 = vmatprep.subr.mxu0 0.0
    %4004 = vmatpush1.msra.mxu0 0.0
    %4005 = vmatprep.subr.mxu0 0.0
    %4006 = vmatpush1.msra.mxu0 0.0
    %4007 = vmatprep.subr.mxu0 0.0
    %4008 = vmatpush1.msra.mxu0 0.0
    %4009 = vmatprep.subr.mxu0 0.0
    %4010 = vmatpush1.msra.mxu0 0.0
    %4011 = vmatprep.subr.mxu0 0.0
    %4012 = vmatpush1.msra.mxu0 0.0
    %4013 = vmatprep.subr.mxu0 0.0
    %4014 = vmatpush1.msra.mxu0 0.0
    %4015 = vmatprep.subr.mxu0 0.0
    %4016 = vmatpush1.msra.mxu0 0.0
    %4017 = vmatprep.subr.mxu0 0.0
    %4018 = vmatpush1.msra.mxu0 0.0
    %4019 = vmatprep.mubr.f32.mxu0 0.0
    %4020 = vmatmul.mubr.f32.gmra.mrb[0].mxu0 %v3944
    %v4021 = vpop.f32.mrb[0].mxu0
    %v4022 = vadd.f32 0.0, %v4021
    %v4023 = vpop.f32.mrb[0].mxu0
    %4024 = vmatprep.mubr.f32.mxu0 0.0
    %4025 = vmatmul.mubr.f32.gmra.mrb[0].mxu0 %v3947
    %v4026 = vpop.f32.mrb[0].mxu0
    %v4027 = vadd.f32 0.0, %v4026
    %v4028 = vpop.f32.mrb[0].mxu0
    %4029 = vmatprep.mubr.f32.mxu0 0.0
    %4030 = vmatmul.mubr.f32.gmra.mrb[0].mxu0 %v3950
    %v4031 = vpop.f32.mrb[0].mxu0
    %v4032 = vadd.f32 0.0, %v4031
    %v4033 = vpop.f32.mrb[0].mxu0
    %4034 = vmatprep.mubr.f32.mxu0 0.0
    %4035 = vmatmul.mubr.f32.gmra.mrb[0].mxu0 %v3953
    %v4036 = vpop.f32.mrb[0].mxu0
    %v4037 = vadd.f32 0.0, %v4036
    %v4038 = vpop.f32.mrb[0].mxu0
    %4039 = vdwg.mxu0
    %v4040 = vadd.f32 %v1712, %v4022
    %v4041 = vadd.f32 %v1713, %v4027
    %v4042 = vadd.f32 %v1714, %v4032
    %v4043 = vadd.f32 %v1715, %v4037
    %v4044 = vld [vmem:[%s885] sm:$0xff]
    %v4045 = vld [vmem:[%s885 + $0x8] sm:$0xff]
    %v4046 = vld [vmem:[%s885 + $0x10] sm:$0xff]
    %v4047 = vld [vmem:[%s885 + $0x18] sm:$0xff]
    %v4048 = vsel %vm1265, %v3214, 0.0
    %v4049 = vsel %vm1265, %v3219, 0.0
    %v4050 = vsel %vm1265, %v3224, 0.0
    %v4051 = vsel %vm1265, %v3229, 0.0
    %v4053 = vsel %vm266, %v4044, 0
    %v4056 = vsel %vm266, %v4045, 0
    %v4059 = vsel %vm266, %v4046, 0
    %v4062 = vsel %vm266, %v4047, 0
    %4064 = vmatprep.subr.mxu0 0.0
    %4065 = vmatpush1.msra.mxu0 %v4048
    %4066 = vmatprep.subr.mxu0 0.0
    %4067 = vmatpush1.msra.mxu0 %v4049
    %4068 = vmatprep.subr.mxu0 0.0
    %4069 = vmatpush1.msra.mxu0 %v4050
    %4070 = vmatprep.subr.mxu0 0.0
    %4071 = vmatpush1.msra.mxu0 %v4051
    %4072 = vmatprep.subr.mxu0 0.0
    %4073 = vmatpush1.msra.mxu0 0.0
    %4074 = vmatprep.subr.mxu0 0.0
    %4075 = vmatpush1.msra.mxu0 0.0
    %4076 = vmatprep.subr.mxu0 0.0
    %4077 = vmatpush1.msra.mxu0 0.0
    %4078 = vmatprep.subr.mxu0 0.0
    %4079 = vmatpush1.msra.mxu0 0.0
    %4080 = vmatprep.subr.mxu0 0.0
    %4081 = vmatpush1.msra.mxu0 0.0
    %4082 = vmatprep.subr.mxu0 0.0
    %4083 = vmatpush1.msra.mxu0 0.0
    %4084 = vmatprep.subr.mxu0 0.0
    %4085 = vmatpush1.msra.mxu0 0.0
    %4086 = vmatprep.subr.mxu0 0.0
    %4087 = vmatpush1.msra.mxu0 0.0
    %4088 = vmatprep.subr.mxu0 0.0
    %4089 = vmatpush1.msra.mxu0 0.0
    %4090 = vmatprep.subr.mxu0 0.0
    %4091 = vmatpush1.msra.mxu0 0.0
    %4092 = vmatprep.subr.mxu0 0.0
    %4093 = vmatpush1.msra.mxu0 0.0
    %4094 = vmatprep.subr.mxu0 0.0
    %4095 = vmatpush1.msra.mxu0 0.0
    %4096 = vmatprep.subr.mxu0 0.0
    %4097 = vmatpush1.msra.mxu0 0.0
    %4098 = vmatprep.subr.mxu0 0.0
    %4099 = vmatpush1.msra.mxu0 0.0
    %4100 = vmatprep.subr.mxu0 0.0
    %4101 = vmatpush1.msra.mxu0 0.0
    %4102 = vmatprep.subr.mxu0 0.0
    %4103 = vmatpush1.msra.mxu0 0.0
    %4104 = vmatprep.subr.mxu0 0.0
    %4105 = vmatpush1.msra.mxu0 0.0
    %4106 = vmatprep.subr.mxu0 0.0
    %4107 = vmatpush1.msra.mxu0 0.0
    %4108 = vmatprep.subr.mxu0 0.0
    %4109 = vmatpush1.msra.mxu0 0.0
    %4110 = vmatprep.subr.mxu0 0.0
    %4111 = vmatpush1.msra.mxu0 0.0
    %4112 = vmatprep.subr.mxu0 0.0
    %4113 = vmatpush1.msra.mxu0 0.0
    %4114 = vmatprep.subr.mxu0 0.0
    %4115 = vmatpush1.msra.mxu0 0.0
    %4116 = vmatprep.subr.mxu0 0.0
    %4117 = vmatpush1.msra.mxu0 0.0
    %4118 = vmatprep.subr.mxu0 0.0
    %4119 = vmatpush1.msra.mxu0 0.0
    %4120 = vmatprep.subr.mxu0 0.0
    %4121 = vmatpush1.msra.mxu0 0.0
    %4122 = vmatprep.subr.mxu0 0.0
    %4123 = vmatpush1.msra.mxu0 0.0
    %4124 = vmatprep.subr.mxu0 0.0
    %4125 = vmatpush1.msra.mxu0 0.0
    %4126 = vmatprep.subr.mxu0 0.0
    %4127 = vmatpush1.msra.mxu0 0.0
    %4128 = vmatprep.mubr.f32.mxu0 0.0
    %4129 = vmatmul.mubr.f32.gmra.mrb[0].mxu0 %v4053
    %v4130 = vpop.f32.mrb[0].mxu0
    %v4131 = vadd.f32 0.0, %v4130
    %v4132 = vpop.f32.mrb[0].mxu0
    %4133 = vmatprep.mubr.f32.mxu0 0.0
    %4134 = vmatmul.mubr.f32.gmra.mrb[0].mxu0 %v4056
    %v4135 = vpop.f32.mrb[0].mxu0
    %v4136 = vadd.f32 0.0, %v4135
    %v4137 = vpop.f32.mrb[0].mxu0
    %4138 = vmatprep.mubr.f32.mxu0 0.0
    %4139 = vmatmul.mubr.f32.gmra.mrb[0].mxu0 %v4059
    %v4140 = vpop.f32.mrb[0].mxu0
    %v4141 = vadd.f32 0.0, %v4140
    %v4142 = vpop.f32.mrb[0].mxu0
    %4143 = vmatprep.mubr.f32.mxu0 0.0
    %4144 = vmatmul.mubr.f32.gmra.mrb[0].mxu0 %v4062
    %v4145 = vpop.f32.mrb[0].mxu0
    %v4146 = vadd.f32 0.0, %v4145
    %v4147 = vpop.f32.mrb[0].mxu0
    %4148 = vdwg.mxu0
    %v4149 = vadd.f32 %v4040, %v4131
    %v4150 = vadd.f32 %v4041, %v4136
    %v4151 = vadd.f32 %v4042, %v4141
    %v4152 = vadd.f32 %v4043, %v4146
    %v4153 = vld [vmem:[%s949] sm:$0xff]
    %v4154 = vld [vmem:[%s949 + $0x8] sm:$0xff]
    %v4155 = vld [vmem:[%s949 + $0x10] sm:$0xff]
    %v4156 = vld [vmem:[%s949 + $0x18] sm:$0xff]
    %v4157 = vsel %vm1472, %v3214, 0.0
    %v4158 = vsel %vm1472, %v3219, 0.0
    %v4159 = vsel %vm1472, %v3224, 0.0
    %v4160 = vsel %vm1472, %v3229, 0.0
    %v4162 = vsel %vm266, %v4153, 0
    %v4165 = vsel %vm266, %v4154, 0
    %v4168 = vsel %vm266, %v4155, 0
    %v4171 = vsel %vm266, %v4156, 0
    %4173 = vmatprep.subr.mxu0 0.0
    %4174 = vmatpush1.msra.mxu0 %v4157
    %4175 = vmatprep.subr.mxu0 0.0
    %4176 = vmatpush1.msra.mxu0 %v4158
    %4177 = vmatprep.subr.mxu0 0.0
    %4178 = vmatpush1.msra.mxu0 %v4159
    %4179 = vmatprep.subr.mxu0 0.0
    %4180 = vmatpush1.msra.mxu0 %v4160
    %4181 = vmatprep.subr.mxu0 0.0
    %4182 = vmatpush1.msra.mxu0 0.0
    %4183 = vmatprep.subr.mxu0 0.0
    %4184 = vmatpush1.msra.mxu0 0.0
    %4185 = vmatprep.subr.mxu0 0.0
    %4186 = vmatpush1.msra.mxu0 0.0
    %4187 = vmatprep.subr.mxu0 0.0
    %4188 = vmatpush1.msra.mxu0 0.0
    %4189 = vmatprep.subr.mxu0 0.0
    %4190 = vmatpush1.msra.mxu0 0.0
    %4191 = vmatprep.subr.mxu0 0.0
    %4192 = vmatpush1.msra.mxu0 0.0
    %4193 = vmatprep.subr.mxu0 0.0
    %4194 = vmatpush1.msra.mxu0 0.0
    %4195 = vmatprep.subr.mxu0 0.0
    %4196 = vmatpush1.msra.mxu0 0.0
    %4197 = vmatprep.subr.mxu0 0.0
    %4198 = vmatpush1.msra.mxu0 0.0
    %4199 = vmatprep.subr.mxu0 0.0
    %4200 = vmatpush1.msra.mxu0 0.0
    %4201 = vmatprep.subr.mxu0 0.0
    %4202 = vmatpush1.msra.mxu0 0.0
    %4203 = vmatprep.subr.mxu0 0.0
    %4204 = vmatpush1.msra.mxu0 0.0
    %4205 = vmatprep.subr.mxu0 0.0
    %4206 = vmatpush1.msra.mxu0 0.0
    %4207 = vmatprep.subr.mxu0 0.0
    %4208 = vmatpush1.msra.mxu0 0.0
    %4209 = vmatprep.subr.mxu0 0.0
    %4210 = vmatpush1.msra.mxu0 0.0
    %4211 = vmatprep.subr.mxu0 0.0
    %4212 = vmatpush1.msra.mxu0 0.0
    %4213 = vmatprep.subr.mxu0 0.0
    %4214 = vmatpush1.msra.mxu0 0.0
    %4215 = vmatprep.subr.mxu0 0.0
    %4216 = vmatpush1.msra.mxu0 0.0
    %4217 = vmatprep.subr.mxu0 0.0
    %4218 = vmatpush1.msra.mxu0 0.0
    %4219 = vmatprep.subr.mxu0 0.0
    %4220 = vmatpush1.msra.mxu0 0.0
    %4221 = vmatprep.subr.mxu0 0.0
    %4222 = vmatpush1.msra.mxu0 0.0
    %4223 = vmatprep.subr.mxu0 0.0
    %4224 = vmatpush1.msra.mxu0 0.0
    %4225 = vmatprep.subr.mxu0 0.0
    %4226 = vmatpush1.msra.mxu0 0.0
    %4227 = vmatprep.subr.mxu0 0.0
    %4228 = vmatpush1.msra.mxu0 0.0
    %4229 = vmatprep.subr.mxu0 0.0
    %4230 = vmatpush1.msra.mxu0 0.0
    %4231 = vmatprep.subr.mxu0 0.0
    %4232 = vmatpush1.msra.mxu0 0.0
    %4233 = vmatprep.subr.mxu0 0.0
    %4234 = vmatpush1.msra.mxu0 0.0
    %4235 = vmatprep.subr.mxu0 0.0
    %4236 = vmatpush1.msra.mxu0 0.0
    %4237 = vmatprep.mubr.f32.mxu0 0.0
    %4238 = vmatmul.mubr.f32.gmra.mrb[0].mxu0 %v4162
    %v4239 = vpop.f32.mrb[0].mxu0
    %v4240 = vadd.f32 0.0, %v4239
    %v4241 = vpop.f32.mrb[0].mxu0
    %4242 = vmatprep.mubr.f32.mxu0 0.0
    %4243 = vmatmul.mubr.f32.gmra.mrb[0].mxu0 %v4165
    %v4244 = vpop.f32.mrb[0].mxu0
    %v4245 = vadd.f32 0.0, %v4244
    %v4246 = vpop.f32.mrb[0].mxu0
    %4247 = vmatprep.mubr.f32.mxu0 0.0
    %4248 = vmatmul.mubr.f32.gmra.mrb[0].mxu0 %v4168
    %v4249 = vpop.f32.mrb[0].mxu0
    %v4250 = vadd.f32 0.0, %v4249
    %v4251 = vpop.f32.mrb[0].mxu0
    %4252 = vmatprep.mubr.f32.mxu0 0.0
    %4253 = vmatmul.mubr.f32.gmra.mrb[0].mxu0 %v4171
    %v4254 = vpop.f32.mrb[0].mxu0
    %v4255 = vadd.f32 0.0, %v4254
    %v4256 = vpop.f32.mrb[0].mxu0
    %4257 = vdwg.mxu0
    %v4258 = vadd.f32 %v4149, %v4240
    %v4259 = vadd.f32 %v4150, %v4245
    %v4260 = vadd.f32 %v4151, %v4250
    %v4261 = vadd.f32 %v4152, %v4255
    %v4262 = vld [vmem:[%s1013] sm:$0xff]
    %v4263 = vld [vmem:[%s1013 + $0x8] sm:$0xff]
    %v4264 = vld [vmem:[%s1013 + $0x10] sm:$0xff]
    %v4265 = vld [vmem:[%s1013 + $0x18] sm:$0xff]
    %v4266 = vsel %vm1586, %v3214, 0.0
    %v4267 = vsel %vm1586, %v3219, 0.0
    %v4268 = vsel %vm1586, %v3224, 0.0
    %v4269 = vsel %vm1586, %v3229, 0.0
    %v4271 = vsel %vm266, %v4262, 0
    %v4274 = vsel %vm266, %v4263, 0
    %v4277 = vsel %vm266, %v4264, 0
    %v4280 = vsel %vm266, %v4265, 0
    %4282 = vmatprep.subr.mxu0 0.0
    %4283 = vmatpush1.msra.mxu0 %v4266
    %4284 = vmatprep.subr.mxu0 0.0
    %4285 = vmatpush1.msra.mxu0 %v4267
    %4286 = vmatprep.subr.mxu0 0.0
    %4287 = vmatpush1.msra.mxu0 %v4268
    %4288 = vmatprep.subr.mxu0 0.0
    %4289 = vmatpush1.msra.mxu0 %v4269
    %4290 = vmatprep.subr.mxu0 0.0
    %4291 = vmatpush1.msra.mxu0 0.0
    %4292 = vmatprep.subr.mxu0 0.0
    %4293 = vmatpush1.msra.mxu0 0.0
    %4294 = vmatprep.subr.mxu0 0.0
    %4295 = vmatpush1.msra.mxu0 0.0
    %4296 = vmatprep.subr.mxu0 0.0
    %4297 = vmatpush1.msra.mxu0 0.0
    %4298 = vmatprep.subr.mxu0 0.0
    %4299 = vmatpush1.msra.mxu0 0.0
    %4300 = vmatprep.subr.mxu0 0.0
    %4301 = vmatpush1.msra.mxu0 0.0
    %4302 = vmatprep.subr.mxu0 0.0
    %4303 = vmatpush1.msra.mxu0 0.0
    %4304 = vmatprep.subr.mxu0 0.0
    %4305 = vmatpush1.msra.mxu0 0.0
    %4306 = vmatprep.subr.mxu0 0.0
    %4307 = vmatpush1.msra.mxu0 0.0
    %4308 = vmatprep.subr.mxu0 0.0
    %4309 = vmatpush1.msra.mxu0 0.0
    %4310 = vmatprep.subr.mxu0 0.0
    %4311 = vmatpush1.msra.mxu0 0.0
    %4312 = vmatprep.subr.mxu0 0.0
    %4313 = vmatpush1.msra.mxu0 0.0
    %4314 = vmatprep.subr.mxu0 0.0
    %4315 = vmatpush1.msra.mxu0 0.0
    %4316 = vmatprep.subr.mxu0 0.0
    %4317 = vmatpush1.msra.mxu0 0.0
    %4318 = vmatprep.subr.mxu0 0.0
    %4319 = vmatpush1.msra.mxu0 0.0
    %4320 = vmatprep.subr.mxu0 0.0
    %4321 = vmatpush1.msra.mxu0 0.0
    %4322 = vmatprep.subr.mxu0 0.0
    %4323 = vmatpush1.msra.mxu0 0.0
    %4324 = vmatprep.subr.mxu0 0.0
    %4325 = vmatpush1.msra.mxu0 0.0
    %4326 = vmatprep.subr.mxu0 0.0
    %4327 = vmatpush1.msra.mxu0 0.0
    %4328 = vmatprep.subr.mxu0 0.0
    %4329 = vmatpush1.msra.mxu0 0.0
    %4330 = vmatprep.subr.mxu0 0.0
    %4331 = vmatpush1.msra.mxu0 0.0
    %4332 = vmatprep.subr.mxu0 0.0
    %4333 = vmatpush1.msra.mxu0 0.0
    %4334 = vmatprep.subr.mxu0 0.0
    %4335 = vmatpush1.msra.mxu0 0.0
    %4336 = vmatprep.subr.mxu0 0.0
    %4337 = vmatpush1.msra.mxu0 0.0
    %4338 = vmatprep.subr.mxu0 0.0
    %4339 = vmatpush1.msra.mxu0 0.0
    %4340 = vmatprep.subr.mxu0 0.0
    %4341 = vmatpush1.msra.mxu0 0.0
    %4342 = vmatprep.subr.mxu0 0.0
    %4343 = vmatpush1.msra.mxu0 0.0
    %4344 = vmatprep.subr.mxu0 0.0
    %4345 = vmatpush1.msra.mxu0 0.0
    %4346 = vmatprep.mubr.f32.mxu0 0.0
    %4347 = vmatmul.mubr.f32.gmra.mrb[0].mxu0 %v4271
    %v4348 = vpop.f32.mrb[0].mxu0
    %v4349 = vadd.f32 0.0, %v4348
    %v4350 = vpop.f32.mrb[0].mxu0
    %4351 = vmatprep.mubr.f32.mxu0 0.0
    %4352 = vmatmul.mubr.f32.gmra.mrb[0].mxu0 %v4274
    %v4353 = vpop.f32.mrb[0].mxu0
    %v4354 = vadd.f32 0.0, %v4353
    %v4355 = vpop.f32.mrb[0].mxu0
    %4356 = vmatprep.mubr.f32.mxu0 0.0
    %4357 = vmatmul.mubr.f32.gmra.mrb[0].mxu0 %v4277
    %v4358 = vpop.f32.mrb[0].mxu0
    %v4359 = vadd.f32 0.0, %v4358
    %v4360 = vpop.f32.mrb[0].mxu0
    %4361 = vmatprep.mubr.f32.mxu0 0.0
    %4362 = vmatmul.mubr.f32.gmra.mrb[0].mxu0 %v4280
    %v4363 = vpop.f32.mrb[0].mxu0
    %v4364 = vadd.f32 0.0, %v4363
    %v4365 = vpop.f32.mrb[0].mxu0
    %4366 = vdwg.mxu0
    %v4367 = vadd.f32 %v4258, %v4349
    %v4368 = vadd.f32 %v4259, %v4354
    %v4369 = vadd.f32 %v4260, %v4359
    %v4370 = vadd.f32 %v4261, %v4364
    %vm4371 = vcmp.gt.f32.partialorder %v4367, 0.0
    %vm4372 = vcmp.gt.f32.partialorder %v4368, 0.0
    %vm4373 = vcmp.gt.f32.partialorder %v4369, 0.0
    %vm4374 = vcmp.gt.f32.partialorder %v4370, 0.0
    %v4375 = vmin.f32 %v4367, 0.0
    %v4376 = vmin.f32 %v4368, 0.0
    %v4377 = vmin.f32 %v4369, 0.0
    %v4378 = vmin.f32 %v4370, 0.0
    %v4379 = vmul.f32 %v4375, 1.442695
    %v4380 = vpow.pop %v4379
    %v4381 = vmul.f32 %v4376, 1.442695
    %v4382 = vpow.pop %v4381
    %v4383 = vmul.f32 %v4377, 1.442695
    %v4384 = vpow.pop %v4383
    %v4385 = vmul.f32 %v4378, 1.442695
    %v4386 = vpow.pop %v4385
    %v4387 = vsub.f32 %v4380, 1.0
    %v4388 = vsub.f32 %v4382, 1.0
    %v4389 = vsub.f32 %v4384, 1.0
    %v4390 = vsub.f32 %v4386, 1.0
    %v4391 = vsel %vm4371, %v4367, %v4387
    %v4392 = vsel %vm4372, %v4368, %v4388
    %v4393 = vsel %vm4373, %v4369, %v4389
    %v4394 = vsel %vm4374, %v4370, %v4390
    %v4395 = vld [vmem:[%s49] sm:$0xff]
    %v4396 = vld [vmem:[%s49 + $0x8] sm:$0xff]
    %v4397 = vld [vmem:[%s49 + $0x10] sm:$0xff]
    %v4398 = vld [vmem:[%s49 + $0x18] sm:$0xff]
    %v4400 = vsel %vm266, %v3139, 0
    %v4403 = vsel %vm266, %v3140, 0
    %v4406 = vsel %vm266, %v3141, 0
    %v4409 = vsel %vm266, %v3142, 0
    %4411 = vmatprep.subr.mxu0 0.0
    %4412 = vmatpush1.msra.mxu0 %v4395
    %4413 = vmatprep.subr.mxu0 0.0
    %4414 = vmatpush1.msra.mxu0 %v4396
    %4415 = vmatprep.subr.mxu0 0.0
    %4416 = vmatpush1.msra.mxu0 %v4397
    %4417 = vmatprep.subr.mxu0 0.0
    %4418 = vmatpush1.msra.mxu0 %v4398
    %4419 = vmatprep.subr.mxu0 0.0
    %4420 = vmatpush1.msra.mxu0 0.0
    %4421 = vmatprep.subr.mxu0 0.0
    %4422 = vmatpush1.msra.mxu0 0.0
    %4423 = vmatprep.subr.mxu0 0.0
    %4424 = vmatpush1.msra.mxu0 0.0
    %4425 = vmatprep.subr.mxu0 0.0
    %4426 = vmatpush1.msra.mxu0 0.0
    %4427 = vmatprep.subr.mxu0 0.0
    %4428 = vmatpush1.msra.mxu0 0.0
    %4429 = vmatprep.subr.mxu0 0.0
    %4430 = vmatpush1.msra.mxu0 0.0
    %4431 = vmatprep.subr.mxu0 0.0
    %4432 = vmatpush1.msra.mxu0 0.0
    %4433 = vmatprep.subr.mxu0 0.0
    %4434 = vmatpush1.msra.mxu0 0.0
    %4435 = vmatprep.subr.mxu0 0.0
    %4436 = vmatpush1.msra.mxu0 0.0
    %4437 = vmatprep.subr.mxu0 0.0
    %4438 = vmatpush1.msra.mxu0 0.0
    %4439 = vmatprep.subr.mxu0 0.0
    %4440 = vmatpush1.msra.mxu0 0.0
    %4441 = vmatprep.subr.mxu0 0.0
    %4442 = vmatpush1.msra.mxu0 0.0
    %4443 = vmatprep.subr.mxu0 0.0
    %4444 = vmatpush1.msra.mxu0 0.0
    %4445 = vmatprep.subr.mxu0 0.0
    %4446 = vmatpush1.msra.mxu0 0.0
    %4447 = vmatprep.subr.mxu0 0.0
    %4448 = vmatpush1.msra.mxu0 0.0
    %4449 = vmatprep.subr.mxu0 0.0
    %4450 = vmatpush1.msra.mxu0 0.0
    %4451 = vmatprep.subr.mxu0 0.0
    %4452 = vmatpush1.msra.mxu0 0.0
    %4453 = vmatprep.subr.mxu0 0.0
    %4454 = vmatpush1.msra.mxu0 0.0
    %4455 = vmatprep.subr.mxu0 0.0
    %4456 = vmatpush1.msra.mxu0 0.0
    %4457 = vmatprep.subr.mxu0 0.0
    %4458 = vmatpush1.msra.mxu0 0.0
    %4459 = vmatprep.subr.mxu0 0.0
    %4460 = vmatpush1.msra.mxu0 0.0
    %4461 = vmatprep.subr.mxu0 0.0
    %4462 = vmatpush1.msra.mxu0 0.0
    %4463 = vmatprep.subr.mxu0 0.0
    %4464 = vmatpush1.msra.mxu0 0.0
    %4465 = vmatprep.subr.mxu0 0.0
    %4466 = vmatpush1.msra.mxu0 0.0
    %4467 = vmatprep.subr.mxu0 0.0
    %4468 = vmatpush1.msra.mxu0 0.0
    %4469 = vmatprep.subr.mxu0 0.0
    %4470 = vmatpush1.msra.mxu0 0.0
    %4471 = vmatprep.subr.mxu0 0.0
    %4472 = vmatpush1.msra.mxu0 0.0
    %4473 = vmatprep.subr.mxu0 0.0
    %4474 = vmatpush1.msra.mxu0 0.0
    %4475 = vmatprep.mubr.f32.mxu0 0.0
    %4476 = vmatmul.mubr.f32.gmra.mrb[0].mxu0 %v4400
    %v4477 = vpop.f32.mrb[0].mxu0
    %v4478 = vadd.f32 0.0, %v4477
    %v4479 = vpop.f32.mrb[0].mxu0
    %4480 = vmatprep.mubr.f32.mxu0 0.0
    %4481 = vmatmul.mubr.f32.gmra.mrb[0].mxu0 %v4403
    %v4482 = vpop.f32.mrb[0].mxu0
    %v4483 = vadd.f32 0.0, %v4482
    %v4484 = vpop.f32.mrb[0].mxu0
    %4485 = vmatprep.mubr.f32.mxu0 0.0
    %4486 = vmatmul.mubr.f32.gmra.mrb[0].mxu0 %v4406
    %v4487 = vpop.f32.mrb[0].mxu0
    %v4488 = vadd.f32 0.0, %v4487
    %v4489 = vpop.f32.mrb[0].mxu0
    %4490 = vmatprep.mubr.f32.mxu0 0.0
    %4491 = vmatmul.mubr.f32.gmra.mrb[0].mxu0 %v4409
    %v4492 = vpop.f32.mrb[0].mxu0
    %v4493 = vadd.f32 0.0, %v4492
    %v4494 = vpop.f32.mrb[0].mxu0
    %4495 = vdwg.mxu0
    %v4496 = vld [vmem:[%s51] sm:$0xf]
    %v4498 = vsel %vm266, %v4496, 0
    %v4501 = vsel %vm266, %v4478, 0
    %v4504 = vsel %vm266, %v4483, 0
    %v4507 = vsel %vm266, %v4488, 0
    %v4510 = vsel %vm266, %v4493, 0
    %4512 = vmatprep.subr.mxu0 0.0
    %4513 = vmatpush1.xpose.msra.mxu0 %v4501
    %4514 = vmatprep.subr.mxu0 0.0
    %4515 = vmatpush1.xpose.msra.mxu0 %v4504
    %4516 = vmatprep.subr.mxu0 0.0
    %4517 = vmatpush1.xpose.msra.mxu0 %v4507
    %4518 = vmatprep.subr.mxu0 0.0
    %4519 = vmatpush1.xpose.msra.mxu0 %v4510
    %4520 = vmatprep.subr.mxu0 0.0
    %4521 = vmatpush1.xpose.msra.mxu0 0.0
    %4522 = vmatprep.subr.mxu0 0.0
    %4523 = vmatpush1.xpose.msra.mxu0 0.0
    %4524 = vmatprep.subr.mxu0 0.0
    %4525 = vmatpush1.xpose.msra.mxu0 0.0
    %4526 = vmatprep.subr.mxu0 0.0
    %4527 = vmatpush1.xpose.msra.mxu0 0.0
    %4528 = vmatprep.subr.mxu0 0.0
    %4529 = vmatpush1.xpose.msra.mxu0 0.0
    %4530 = vmatprep.subr.mxu0 0.0
    %4531 = vmatpush1.xpose.msra.mxu0 0.0
    %4532 = vmatprep.subr.mxu0 0.0
    %4533 = vmatpush1.xpose.msra.mxu0 0.0
    %4534 = vmatprep.subr.mxu0 0.0
    %4535 = vmatpush1.xpose.msra.mxu0 0.0
    %4536 = vmatprep.subr.mxu0 0.0
    %4537 = vmatpush1.xpose.msra.mxu0 0.0
    %4538 = vmatprep.subr.mxu0 0.0
    %4539 = vmatpush1.xpose.msra.mxu0 0.0
    %4540 = vmatprep.subr.mxu0 0.0
    %4541 = vmatpush1.xpose.msra.mxu0 0.0
    %4542 = vmatprep.subr.mxu0 0.0
    %4543 = vmatpush1.xpose.msra.mxu0 0.0
    %4544 = vmatprep.subr.mxu0 0.0
    %4545 = vmatpush1.xpose.msra.mxu0 0.0
    %4546 = vmatprep.subr.mxu0 0.0
    %4547 = vmatpush1.xpose.msra.mxu0 0.0
    %4548 = vmatprep.subr.mxu0 0.0
    %4549 = vmatpush1.xpose.msra.mxu0 0.0
    %4550 = vmatprep.subr.mxu0 0.0
    %4551 = vmatpush1.xpose.msra.mxu0 0.0
    %4552 = vmatprep.subr.mxu0 0.0
    %4553 = vmatpush1.xpose.msra.mxu0 0.0
    %4554 = vmatprep.subr.mxu0 0.0
    %4555 = vmatpush1.xpose.msra.mxu0 0.0
    %4556 = vmatprep.subr.mxu0 0.0
    %4557 = vmatpush1.xpose.msra.mxu0 0.0
    %4558 = vmatprep.subr.mxu0 0.0
    %4559 = vmatpush1.xpose.msra.mxu0 0.0
    %4560 = vmatprep.subr.mxu0 0.0
    %4561 = vmatpush1.xpose.msra.mxu0 0.0
    %4562 = vmatprep.subr.mxu0 0.0
    %4563 = vmatpush1.xpose.msra.mxu0 0.0
    %4564 = vmatprep.subr.mxu0 0.0
    %4565 = vmatpush1.xpose.msra.mxu0 0.0
    %4566 = vmatprep.subr.mxu0 0.0
    %4567 = vmatpush1.xpose.msra.mxu0 0.0
    %4568 = vmatprep.subr.mxu0 0.0
    %4569 = vmatpush1.xpose.msra.mxu0 0.0
    %4570 = vmatprep.subr.mxu0 0.0
    %4571 = vmatpush1.xpose.msra.mxu0 0.0
    %4572 = vmatprep.subr.mxu0 0.0
    %4573 = vmatpush1.xpose.msra.mxu0 0.0
    %4574 = vmatprep.subr.mxu0 0.0
    %4575 = vmatpush1.xpose.msra.mxu0 0.0
    %4576 = vmatprep.mubr.f32.mxu0 0.0
    %4577 = vmatmul.mubr.f32.gmra.mrb[0].mxu0 %v4498
    %v4578 = vpop.f32.mrb[0].mxu0
    %v4579 = vadd.f32 0.0, %v4578
    %v4580 = vpop.f32.mrb[0].mxu0
    %4581 = vdwg.mxu0
    %v4582 = vld [vmem:[%s53] sm:$0xff]
    %v4583 = vld [vmem:[%s53 + $0x8] sm:$0xff]
    %v4584 = vld [vmem:[%s53 + $0x10] sm:$0xff]
    %v4585 = vld [vmem:[%s53 + $0x18] sm:$0xff]
    %4586 = vmatprep.subr.mxu0 0.0
    %4587 = vmatpush1.msra.mxu0 %v4582
    %4588 = vmatprep.subr.mxu0 0.0
    %4589 = vmatpush1.msra.mxu0 %v4583
    %4590 = vmatprep.subr.mxu0 0.0
    %4591 = vmatpush1.msra.mxu0 %v4584
    %4592 = vmatprep.subr.mxu0 0.0
    %4593 = vmatpush1.msra.mxu0 %v4585
    %4594 = vmatprep.subr.mxu0 0.0
    %4595 = vmatpush1.msra.mxu0 0.0
    %4596 = vmatprep.subr.mxu0 0.0
    %4597 = vmatpush1.msra.mxu0 0.0
    %4598 = vmatprep.subr.mxu0 0.0
    %4599 = vmatpush1.msra.mxu0 0.0
    %4600 = vmatprep.subr.mxu0 0.0
    %4601 = vmatpush1.msra.mxu0 0.0
    %4602 = vmatprep.subr.mxu0 0.0
    %4603 = vmatpush1.msra.mxu0 0.0
    %4604 = vmatprep.subr.mxu0 0.0
    %4605 = vmatpush1.msra.mxu0 0.0
    %4606 = vmatprep.subr.mxu0 0.0
    %4607 = vmatpush1.msra.mxu0 0.0
    %4608 = vmatprep.subr.mxu0 0.0
    %4609 = vmatpush1.msra.mxu0 0.0
    %4610 = vmatprep.subr.mxu0 0.0
    %4611 = vmatpush1.msra.mxu0 0.0
    %4612 = vmatprep.subr.mxu0 0.0
    %4613 = vmatpush1.msra.mxu0 0.0
    %4614 = vmatprep.subr.mxu0 0.0
    %4615 = vmatpush1.msra.mxu0 0.0
    %4616 = vmatprep.subr.mxu0 0.0
    %4617 = vmatpush1.msra.mxu0 0.0
    %4618 = vmatprep.subr.mxu0 0.0
    %4619 = vmatpush1.msra.mxu0 0.0
    %4620 = vmatprep.subr.mxu0 0.0
    %4621 = vmatpush1.msra.mxu0 0.0
    %4622 = vmatprep.subr.mxu0 0.0
    %4623 = vmatpush1.msra.mxu0 0.0
    %4624 = vmatprep.subr.mxu0 0.0
    %4625 = vmatpush1.msra.mxu0 0.0
    %4626 = vmatprep.subr.mxu0 0.0
    %4627 = vmatpush1.msra.mxu0 0.0
    %4628 = vmatprep.subr.mxu0 0.0
    %4629 = vmatpush1.msra.mxu0 0.0
    %4630 = vmatprep.subr.mxu0 0.0
    %4631 = vmatpush1.msra.mxu0 0.0
    %4632 = vmatprep.subr.mxu0 0.0
    %4633 = vmatpush1.msra.mxu0 0.0
    %4634 = vmatprep.subr.mxu0 0.0
    %4635 = vmatpush1.msra.mxu0 0.0
    %4636 = vmatprep.subr.mxu0 0.0
    %4637 = vmatpush1.msra.mxu0 0.0
    %4638 = vmatprep.subr.mxu0 0.0
    %4639 = vmatpush1.msra.mxu0 0.0
    %4640 = vmatprep.subr.mxu0 0.0
    %4641 = vmatpush1.msra.mxu0 0.0
    %4642 = vmatprep.subr.mxu0 0.0
    %4643 = vmatpush1.msra.mxu0 0.0
    %4644 = vmatprep.subr.mxu0 0.0
    %4645 = vmatpush1.msra.mxu0 0.0
    %4646 = vmatprep.subr.mxu0 0.0
    %4647 = vmatpush1.msra.mxu0 0.0
    %4648 = vmatprep.subr.mxu0 0.0
    %4649 = vmatpush1.msra.mxu0 0.0
    %4650 = vmatprep.mubr.f32.mxu0 0.0
    %4651 = vmatmul.mubr.f32.gmra.mrb[0].mxu0 %v4501
    %v4652 = vpop.f32.mrb[0].mxu0
    %v4653 = vadd.f32 0.0, %v4652
    %v4654 = vpop.f32.mrb[0].mxu0
    %4655 = vmatprep.mubr.f32.mxu0 0.0
    %4656 = vmatmul.mubr.f32.gmra.mrb[0].mxu0 %v4504
    %v4657 = vpop.f32.mrb[0].mxu0
    %v4658 = vadd.f32 0.0, %v4657
    %v4659 = vpop.f32.mrb[0].mxu0
    %4660 = vmatprep.mubr.f32.mxu0 0.0
    %4661 = vmatmul.mubr.f32.gmra.mrb[0].mxu0 %v4507
    %v4662 = vpop.f32.mrb[0].mxu0
    %v4663 = vadd.f32 0.0, %v4662
    %v4664 = vpop.f32.mrb[0].mxu0
    %4665 = vmatprep.mubr.f32.mxu0 0.0
    %4666 = vmatmul.mubr.f32.gmra.mrb[0].mxu0 %v4510
    %v4667 = vpop.f32.mrb[0].mxu0
    %v4668 = vadd.f32 0.0, %v4667
    %v4669 = vpop.f32.mrb[0].mxu0
    %4670 = vdwg.mxu0
    %s4671 = sld [smem:[#allocation9]]
    %v4672 = vstv %s4671
    %v4673 = vadd.f32 %v4672, 0.0
    %s4674 = sld [smem:[#allocation9 + $0x4]]
    %v4675 = vstv %s4674
    %v4676 = vsel %vm750, %v4675, %v4673
    %v4677 = vsel %vm751, %v4675, %v4673
    %v4678 = vsel %vm752, %v4675, %v4673
    %v4679 = vsel %vm753, %v4675, %v4673
    %s4680 = sld [smem:[#allocation9 + $0x8]]
    %v4681 = vstv %s4680
    %v4682 = vsel %vm760, %v4681, %v4676
    %v4683 = vsel %vm761, %v4681, %v4677
    %v4684 = vsel %vm762, %v4681, %v4678
    %v4685 = vsel %vm763, %v4681, %v4679
    %4687 = vset.pattern.permute.xlu0 0
    %4688 = vperm.xlu0 %4687, %v4653
    %v4689 = vpop.permute.xlu0 %4688
    %4692 = vset.pattern.permute.xlu0 0
    %4693 = vperm.xlu0 %4692, %v4658
    %v4694 = vpop.permute.xlu0 %4693
    %4697 = vset.pattern.permute.xlu0 0
    %4698 = vperm.xlu0 %4697, %v4663
    %v4699 = vpop.permute.xlu0 %4698
    %4702 = vset.pattern.permute.xlu0 0
    %4703 = vperm.xlu0 %4702, %v4668
    %v4704 = vpop.permute.xlu0 %4703
    %v4706 = vlaneseq
    %v4707 = vshrl.u32 %v4706, 7
    %v4708 = vsub.s32 0, %v4707
    %v4709 = vrot.slane %v4579, %v4708
    %v4710 = vadd.f32 %v4689, %v4709
    %v4711 = vadd.f32 %v4694, %v4709
    %v4712 = vadd.f32 %v4699, %v4709
    %v4713 = vadd.f32 %v4704, %v4709
    %v4714 = vadd.f32 %v4710, %v4682
    %v4715 = vadd.f32 %v4711, %v4683
    %v4716 = vadd.f32 %v4712, %v4684
    %v4717 = vadd.f32 %v4713, %v4685
    %vm4718 = vcmp.ge.f32.partialorder %v4714, 0.0
    %vm4719 = vcmp.ge.f32.partialorder %v4715, 0.0
    %vm4720 = vcmp.ge.f32.partialorder %v4716, 0.0
    %vm4721 = vcmp.ge.f32.partialorder %v4717, 0.0
    %v4722 = vmul.f32 %v4714, 0.05
    %v4723 = vmul.f32 %v4715, 0.05
    %v4724 = vmul.f32 %v4716, 0.05
    %v4725 = vmul.f32 %v4717, 0.05
    %v4726 = vsel %vm4718, %v4714, %v4722
    %v4727 = vsel %vm4719, %v4715, %v4723
    %v4728 = vsel %vm4720, %v4716, %v4724
    %v4729 = vsel %vm4721, %v4717, %v4725
    %v4730 = vsel %vm814, %v4726, -1e+30
    %v4731 = vsel %vm815, %v4727, -1e+30
    %v4732 = vsel %vm816, %v4728, -1e+30
    %v4733 = vsel %vm817, %v4729, -1e+30
    %4734 = vst.msk [vmem:[#allocation3] sm:$0xff] %vm266, %v4730
    %4735 = vst.msk [vmem:[#allocation3 + $0x8] sm:$0xff] %vm266, %v4731
    %4736 = vst.msk [vmem:[#allocation3 + $0x10] sm:$0xff] %vm266, %v4732
    %4737 = vst.msk [vmem:[#allocation3 + $0x18] sm:$0xff] %vm266, %v4733
    %s4738 = sld [smem:[#allocation9 + $0x1]]
    %v4739 = vstv %s4738
    %v4740 = vadd.f32 %v4739, 0.0
    %s4741 = sld [smem:[#allocation9 + $0x5]]
    %v4742 = vstv %s4741
    %v4743 = vsel %vm750, %v4742, %v4740
    %v4744 = vsel %vm751, %v4742, %v4740
    %v4745 = vsel %vm752, %v4742, %v4740
    %v4746 = vsel %vm753, %v4742, %v4740
    %s4747 = sld [smem:[#allocation9 + $0x9]]
    %v4748 = vstv %s4747
    %v4749 = vsel %vm760, %v4748, %v4743
    %v4750 = vsel %vm761, %v4748, %v4744
    %v4751 = vsel %vm762, %v4748, %v4745
    %v4752 = vsel %vm763, %v4748, %v4746
    %4753 = vset.pattern.permute.xlu0 1
    %4754 = vperm.xlu0 %4753, %v4653
    %v4755 = vpop.permute.xlu0 %4754
    %4757 = vset.pattern.permute.xlu0 1
    %4758 = vperm.xlu0 %4757, %v4658
    %v4759 = vpop.permute.xlu0 %4758
    %4761 = vset.pattern.permute.xlu0 1
    %4762 = vperm.xlu0 %4761, %v4663
    %v4763 = vpop.permute.xlu0 %4762
    %4765 = vset.pattern.permute.xlu0 1
    %4766 = vperm.xlu0 %4765, %v4668
    %v4767 = vpop.permute.xlu0 %4766
    %v4769 = vlaneseq
    %v4770 = vshrl.u32 %v4769, 7
    %v4771 = vsub.s32 1, %v4770
    %v4772 = vrot.slane %v4579, %v4771
    %v4773 = vadd.f32 %v4755, %v4772
    %v4774 = vadd.f32 %v4759, %v4772
    %v4775 = vadd.f32 %v4763, %v4772
    %v4776 = vadd.f32 %v4767, %v4772
    %v4777 = vadd.f32 %v4773, %v4749
    %v4778 = vadd.f32 %v4774, %v4750
    %v4779 = vadd.f32 %v4775, %v4751
    %v4780 = vadd.f32 %v4776, %v4752
    %vm4781 = vcmp.ge.f32.partialorder %v4777, 0.0
    %vm4782 = vcmp.ge.f32.partialorder %v4778, 0.0
    %vm4783 = vcmp.ge.f32.partialorder %v4779, 0.0
    %vm4784 = vcmp.ge.f32.partialorder %v4780, 0.0
    %v4785 = vmul.f32 %v4777, 0.05
    %v4786 = vmul.f32 %v4778, 0.05
    %v4787 = vmul.f32 %v4779, 0.05
    %v4788 = vmul.f32 %v4780, 0.05
    %v4789 = vsel %vm4781, %v4777, %v4785
    %v4790 = vsel %vm4782, %v4778, %v4786
    %v4791 = vsel %vm4783, %v4779, %v4787
    %v4792 = vsel %vm4784, %v4780, %v4788
    %v4793 = vsel %vm814, %v4789, -1e+30
    %v4794 = vsel %vm815, %v4790, -1e+30
    %v4795 = vsel %vm816, %v4791, -1e+30
    %v4796 = vsel %vm817, %v4792, -1e+30
    %4797 = vst.msk [vmem:[%s885] sm:$0xff] %vm266, %v4793
    %4798 = vst.msk [vmem:[%s885 + $0x8] sm:$0xff] %vm266, %v4794
    %4799 = vst.msk [vmem:[%s885 + $0x10] sm:$0xff] %vm266, %v4795
    %4800 = vst.msk [vmem:[%s885 + $0x18] sm:$0xff] %vm266, %v4796
    %s4801 = sld [smem:[#allocation9 + $0x2]]
    %v4802 = vstv %s4801
    %v4803 = vadd.f32 %v4802, 0.0
    %s4804 = sld [smem:[#allocation9 + $0x6]]
    %v4805 = vstv %s4804
    %v4806 = vsel %vm750, %v4805, %v4803
    %v4807 = vsel %vm751, %v4805, %v4803
    %v4808 = vsel %vm752, %v4805, %v4803
    %v4809 = vsel %vm753, %v4805, %v4803
    %s4810 = sld [smem:[#allocation9 + $0xa]]
    %v4811 = vstv %s4810
    %v4812 = vsel %vm760, %v4811, %v4806
    %v4813 = vsel %vm761, %v4811, %v4807
    %v4814 = vsel %vm762, %v4811, %v4808
    %v4815 = vsel %vm763, %v4811, %v4809
    %4816 = vset.pattern.permute.xlu0 2
    %4817 = vperm.xlu0 %4816, %v4653
    %v4818 = vpop.permute.xlu0 %4817
    %4820 = vset.pattern.permute.xlu0 2
    %4821 = vperm.xlu0 %4820, %v4658
    %v4822 = vpop.permute.xlu0 %4821
    %4824 = vset.pattern.permute.xlu0 2
    %4825 = vperm.xlu0 %4824, %v4663
    %v4826 = vpop.permute.xlu0 %4825
    %4828 = vset.pattern.permute.xlu0 2
    %4829 = vperm.xlu0 %4828, %v4668
    %v4830 = vpop.permute.xlu0 %4829
    %v4832 = vlaneseq
    %v4833 = vshrl.u32 %v4832, 7
    %v4834 = vsub.s32 2, %v4833
    %v4835 = vrot.slane %v4579, %v4834
    %v4836 = vadd.f32 %v4818, %v4835
    %v4837 = vadd.f32 %v4822, %v4835
    %v4838 = vadd.f32 %v4826, %v4835
    %v4839 = vadd.f32 %v4830, %v4835
    %v4840 = vadd.f32 %v4836, %v4812
    %v4841 = vadd.f32 %v4837, %v4813
    %v4842 = vadd.f32 %v4838, %v4814
    %v4843 = vadd.f32 %v4839, %v4815
    %vm4844 = vcmp.ge.f32.partialorder %v4840, 0.0
    %vm4845 = vcmp.ge.f32.partialorder %v4841, 0.0
    %vm4846 = vcmp.ge.f32.partialorder %v4842, 0.0
    %vm4847 = vcmp.ge.f32.partialorder %v4843, 0.0
    %v4848 = vmul.f32 %v4840, 0.05
    %v4849 = vmul.f32 %v4841, 0.05
    %v4850 = vmul.f32 %v4842, 0.05
    %v4851 = vmul.f32 %v4843, 0.05
    %v4852 = vsel %vm4844, %v4840, %v4848
    %v4853 = vsel %vm4845, %v4841, %v4849
    %v4854 = vsel %vm4846, %v4842, %v4850
    %v4855 = vsel %vm4847, %v4843, %v4851
    %v4856 = vsel %vm814, %v4852, -1e+30
    %v4857 = vsel %vm815, %v4853, -1e+30
    %v4858 = vsel %vm816, %v4854, -1e+30
    %v4859 = vsel %vm817, %v4855, -1e+30
    %4860 = vst.msk [vmem:[%s949] sm:$0xff] %vm266, %v4856
    %4861 = vst.msk [vmem:[%s949 + $0x8] sm:$0xff] %vm266, %v4857
    %4862 = vst.msk [vmem:[%s949 + $0x10] sm:$0xff] %vm266, %v4858
    %4863 = vst.msk [vmem:[%s949 + $0x18] sm:$0xff] %vm266, %v4859
    %s4864 = sld [smem:[#allocation9 + $0x3]]
    %v4865 = vstv %s4864
    %v4866 = vadd.f32 %v4865, 0.0
    %s4867 = sld [smem:[#allocation9 + $0x7]]
    %v4868 = vstv %s4867
    %v4869 = vsel %vm750, %v4868, %v4866
    %v4870 = vsel %vm751, %v4868, %v4866
    %v4871 = vsel %vm752, %v4868, %v4866
    %v4872 = vsel %vm753, %v4868, %v4866
    %s4873 = sld [smem:[#allocation9 + $0xb]]
    %v4874 = vstv %s4873
    %v4875 = vsel %vm760, %v4874, %v4869
    %v4876 = vsel %vm761, %v4874, %v4870
    %v4877 = vsel %vm762, %v4874, %v4871
    %v4878 = vsel %vm763, %v4874, %v4872
    %4879 = vset.pattern.permute.xlu0 3
    %4880 = vperm.xlu0 %4879, %v4653
    %v4881 = vpop.permute.xlu0 %4880
    %4883 = vset.pattern.permute.xlu0 3
    %4884 = vperm.xlu0 %4883, %v4658
    %v4885 = vpop.permute.xlu0 %4884
    %4887 = vset.pattern.permute.xlu0 3
    %4888 = vperm.xlu0 %4887, %v4663
    %v4889 = vpop.permute.xlu0 %4888
    %4891 = vset.pattern.permute.xlu0 3
    %4892 = vperm.xlu0 %4891, %v4668
    %v4893 = vpop.permute.xlu0 %4892
    %v4895 = vlaneseq
    %v4896 = vshrl.u32 %v4895, 7
    %v4897 = vsub.s32 3, %v4896
    %v4898 = vrot.slane %v4579, %v4897
    %v4899 = vadd.f32 %v4881, %v4898
    %v4900 = vadd.f32 %v4885, %v4898
    %v4901 = vadd.f32 %v4889, %v4898
    %v4902 = vadd.f32 %v4893, %v4898
    %v4903 = vadd.f32 %v4899, %v4875
    %v4904 = vadd.f32 %v4900, %v4876
    %v4905 = vadd.f32 %v4901, %v4877
    %v4906 = vadd.f32 %v4902, %v4878
    %vm4907 = vcmp.ge.f32.partialorder %v4903, 0.0
    %vm4908 = vcmp.ge.f32.partialorder %v4904, 0.0
    %vm4909 = vcmp.ge.f32.partialorder %v4905, 0.0
    %vm4910 = vcmp.ge.f32.partialorder %v4906, 0.0
    %v4911 = vmul.f32 %v4903, 0.05
    %v4912 = vmul.f32 %v4904, 0.05
    %v4913 = vmul.f32 %v4905, 0.05
    %v4914 = vmul.f32 %v4906, 0.05
    %v4915 = vsel %vm4907, %v4903, %v4911
    %v4916 = vsel %vm4908, %v4904, %v4912
    %v4917 = vsel %vm4909, %v4905, %v4913
    %v4918 = vsel %vm4910, %v4906, %v4914
    %v4919 = vsel %vm814, %v4915, -1e+30
    %v4920 = vsel %vm815, %v4916, -1e+30
    %v4921 = vsel %vm816, %v4917, -1e+30
    %v4922 = vsel %vm817, %v4918, -1e+30
    %4923 = vst.msk [vmem:[%s1013] sm:$0xff] %vm266, %v4919
    %4924 = vst.msk [vmem:[%s1013 + $0x8] sm:$0xff] %vm266, %v4920
    %4925 = vst.msk [vmem:[%s1013 + $0x10] sm:$0xff] %vm266, %v4921
    %4926 = vst.msk [vmem:[%s1013 + $0x18] sm:$0xff] %vm266, %v4922
    %v4927 = vld [vmem:[#allocation3] sm:$0xff]
    %v4928 = vld [vmem:[#allocation3 + $0x8] sm:$0xff]
    %v4929 = vld [vmem:[#allocation3 + $0x10] sm:$0xff]
    %v4930 = vld [vmem:[#allocation3 + $0x18] sm:$0xff]
    %v4931 = vld [vmem:[#allocation3 + $0x20] sm:$0xff]
    %v4932 = vld [vmem:[#allocation3 + $0x28] sm:$0xff]
    %v4933 = vld [vmem:[#allocation3 + $0x30] sm:$0xff]
    %v4934 = vld [vmem:[#allocation3 + $0x38] sm:$0xff]
    %v4935 = vld [vmem:[#allocation3 + $0x40] sm:$0xff]
    %v4936 = vld [vmem:[#allocation3 + $0x48] sm:$0xff]
    %v4937 = vld [vmem:[#allocation3 + $0x50] sm:$0xff]
    %v4938 = vld [vmem:[#allocation3 + $0x58] sm:$0xff]
    %v4939 = vld [vmem:[#allocation3 + $0x60] sm:$0xff]
    %v4940 = vld [vmem:[#allocation3 + $0x68] sm:$0xff]
    %v4941 = vld [vmem:[#allocation3 + $0x70] sm:$0xff]
    %v4942 = vld [vmem:[#allocation3 + $0x78] sm:$0xff]
    %v4943 = vsel %vm266, %v4927, -inf
    %4944 = vmax.xlane.f32.xlu0 %v4943
    %v4945 = vpop.xlane.xlu0 %4944
    %v4946 = vsel %vm266, %v4928, -inf
    %4947 = vmax.xlane.f32.xlu0 %v4946
    %v4948 = vpop.xlane.xlu0 %4947
    %v4949 = vsel %vm266, %v4929, -inf
    %4950 = vmax.xlane.f32.xlu0 %v4949
    %v4951 = vpop.xlane.xlu0 %4950
    %v4952 = vsel %vm266, %v4930, -inf
    %4953 = vmax.xlane.f32.xlu0 %v4952
    %v4954 = vpop.xlane.xlu0 %4953
    %v4955 = vsel %vm266, %v4931, -inf
    %4956 = vmax.xlane.f32.xlu0 %v4955
    %v4957 = vpop.xlane.xlu0 %4956
    %v4958 = vsel %vm266, %v4932, -inf
    %4959 = vmax.xlane.f32.xlu0 %v4958
    %v4960 = vpop.xlane.xlu0 %4959
    %v4961 = vsel %vm266, %v4933, -inf
    %4962 = vmax.xlane.f32.xlu0 %v4961
    %v4963 = vpop.xlane.xlu0 %4962
    %v4964 = vsel %vm266, %v4934, -inf
    %4965 = vmax.xlane.f32.xlu0 %v4964
    %v4966 = vpop.xlane.xlu0 %4965
    %v4967 = vsel %vm266, %v4935, -inf
    %4968 = vmax.xlane.f32.xlu0 %v4967
    %v4969 = vpop.xlane.xlu0 %4968
    %v4970 = vsel %vm266, %v4936, -inf
    %4971 = vmax.xlane.f32.xlu0 %v4970
    %v4972 = vpop.xlane.xlu0 %4971
    %v4973 = vsel %vm266, %v4937, -inf
    %4974 = vmax.xlane.f32.xlu0 %v4973
    %v4975 = vpop.xlane.xlu0 %4974
    %v4976 = vsel %vm266, %v4938, -inf
    %4977 = vmax.xlane.f32.xlu0 %v4976
    %v4978 = vpop.xlane.xlu0 %4977
    %v4979 = vsel %vm266, %v4939, -inf
    %4980 = vmax.xlane.f32.xlu0 %v4979
    %v4981 = vpop.xlane.xlu0 %4980
    %v4982 = vsel %vm266, %v4940, -inf
    %4983 = vmax.xlane.f32.xlu0 %v4982
    %v4984 = vpop.xlane.xlu0 %4983
    %v4985 = vsel %vm266, %v4941, -inf
    %4986 = vmax.xlane.f32.xlu0 %v4985
    %v4987 = vpop.xlane.xlu0 %4986
    %v4988 = vsel %vm266, %v4942, -inf
    %4989 = vmax.xlane.f32.xlu0 %v4988
    %v4990 = vpop.xlane.xlu0 %4989
    %v4991 = vsub.f32 %v4927, %v4945
    %v4992 = vsub.f32 %v4928, %v4948
    %v4993 = vsub.f32 %v4929, %v4951
    %v4994 = vsub.f32 %v4930, %v4954
    %v4995 = vsub.f32 %v4931, %v4957
    %v4996 = vsub.f32 %v4932, %v4960
    %v4997 = vsub.f32 %v4933, %v4963
    %v4998 = vsub.f32 %v4934, %v4966
    %v4999 = vsub.f32 %v4935, %v4969
    %v5000 = vsub.f32 %v4936, %v4972
    %v5001 = vsub.f32 %v4937, %v4975
    %v5002 = vsub.f32 %v4938, %v4978
    %v5003 = vsub.f32 %v4939, %v4981
    %v5004 = vsub.f32 %v4940, %v4984
    %v5005 = vsub.f32 %v4941, %v4987
    %v5006 = vsub.f32 %v4942, %v4990
    %v5007 = vmul.f32 %v4991, 1.442695
    %v5008 = vpow.pop %v5007
    %v5009 = vmul.f32 %v4992, 1.442695
    %v5010 = vpow.pop %v5009
    %v5011 = vmul.f32 %v4993, 1.442695
    %v5012 = vpow.pop %v5011
    %v5013 = vmul.f32 %v4994, 1.442695
    %v5014 = vpow.pop %v5013
    %v5015 = vmul.f32 %v4995, 1.442695
    %v5016 = vpow.pop %v5015
    %v5017 = vmul.f32 %v4996, 1.442695
    %v5018 = vpow.pop %v5017
    %v5019 = vmul.f32 %v4997, 1.442695
    %v5020 = vpow.pop %v5019
    %v5021 = vmul.f32 %v4998, 1.442695
    %v5022 = vpow.pop %v5021
    %v5023 = vmul.f32 %v4999, 1.442695
    %v5024 = vpow.pop %v5023
    %v5025 = vmul.f32 %v5000, 1.442695
    %v5026 = vpow.pop %v5025
    %v5027 = vmul.f32 %v5001, 1.442695
    %v5028 = vpow.pop %v5027
    %v5029 = vmul.f32 %v5002, 1.442695
    %v5030 = vpow.pop %v5029
    %v5031 = vmul.f32 %v5003, 1.442695
    %v5032 = vpow.pop %v5031
    %v5033 = vmul.f32 %v5004, 1.442695
    %v5034 = vpow.pop %v5033
    %v5035 = vmul.f32 %v5005, 1.442695
    %v5036 = vpow.pop %v5035
    %v5037 = vmul.f32 %v5006, 1.442695
    %v5038 = vpow.pop %v5037
    %v5039 = vsel %vm266, %v5008, 0.0
    %5040 = vadd.xlane.f32.xlu0 %v5039
    %v5041 = vpop.xlane.xlu0 %5040
    %v5042 = vsel %vm266, %v5010, 0.0
    %5043 = vadd.xlane.f32.xlu0 %v5042
    %v5044 = vpop.xlane.xlu0 %5043
    %v5045 = vsel %vm266, %v5012, 0.0
    %5046 = vadd.xlane.f32.xlu0 %v5045
    %v5047 = vpop.xlane.xlu0 %5046
    %v5048 = vsel %vm266, %v5014, 0.0
    %5049 = vadd.xlane.f32.xlu0 %v5048
    %v5050 = vpop.xlane.xlu0 %5049
    %v5051 = vsel %vm266, %v5016, 0.0
    %5052 = vadd.xlane.f32.xlu0 %v5051
    %v5053 = vpop.xlane.xlu0 %5052
    %v5054 = vsel %vm266, %v5018, 0.0
    %5055 = vadd.xlane.f32.xlu0 %v5054
    %v5056 = vpop.xlane.xlu0 %5055
    %v5057 = vsel %vm266, %v5020, 0.0
    %5058 = vadd.xlane.f32.xlu0 %v5057
    %v5059 = vpop.xlane.xlu0 %5058
    %v5060 = vsel %vm266, %v5022, 0.0
    %5061 = vadd.xlane.f32.xlu0 %v5060
    %v5062 = vpop.xlane.xlu0 %5061
    %v5063 = vsel %vm266, %v5024, 0.0
    %5064 = vadd.xlane.f32.xlu0 %v5063
    %v5065 = vpop.xlane.xlu0 %5064
    %v5066 = vsel %vm266, %v5026, 0.0
    %5067 = vadd.xlane.f32.xlu0 %v5066
    %v5068 = vpop.xlane.xlu0 %5067
    %v5069 = vsel %vm266, %v5028, 0.0
    %5070 = vadd.xlane.f32.xlu0 %v5069
    %v5071 = vpop.xlane.xlu0 %5070
    %v5072 = vsel %vm266, %v5030, 0.0
    %5073 = vadd.xlane.f32.xlu0 %v5072
    %v5074 = vpop.xlane.xlu0 %5073
    %v5075 = vsel %vm266, %v5032, 0.0
    %5076 = vadd.xlane.f32.xlu0 %v5075
    %v5077 = vpop.xlane.xlu0 %5076
    %v5078 = vsel %vm266, %v5034, 0.0
    %5079 = vadd.xlane.f32.xlu0 %v5078
    %v5080 = vpop.xlane.xlu0 %5079
    %v5081 = vsel %vm266, %v5036, 0.0
    %5082 = vadd.xlane.f32.xlu0 %v5081
    %v5083 = vpop.xlane.xlu0 %5082
    %v5084 = vsel %vm266, %v5038, 0.0
    %5085 = vadd.xlane.f32.xlu0 %v5084
    %v5086 = vpop.xlane.xlu0 %5085
    %v5087 = vmax.f32 %v5041, 1e-20
    %v5088 = vmax.f32 %v5044, 1e-20
    %v5089 = vmax.f32 %v5047, 1e-20
    %v5090 = vmax.f32 %v5050, 1e-20
    %v5091 = vmax.f32 %v5053, 1e-20
    %v5092 = vmax.f32 %v5056, 1e-20
    %v5093 = vmax.f32 %v5059, 1e-20
    %v5094 = vmax.f32 %v5062, 1e-20
    %v5095 = vmax.f32 %v5065, 1e-20
    %v5096 = vmax.f32 %v5068, 1e-20
    %v5097 = vmax.f32 %v5071, 1e-20
    %v5098 = vmax.f32 %v5074, 1e-20
    %v5099 = vmax.f32 %v5077, 1e-20
    %v5100 = vmax.f32 %v5080, 1e-20
    %v5101 = vmax.f32 %v5083, 1e-20
    %v5102 = vmax.f32 %v5086, 1e-20
    %v5103 = vrcp.pop %v5087
    %v5104 = vmul.f32 %v5008, %v5103
    %v5105 = vrcp.pop %v5088
    %v5106 = vmul.f32 %v5010, %v5105
    %v5107 = vrcp.pop %v5089
    %v5108 = vmul.f32 %v5012, %v5107
    %v5109 = vrcp.pop %v5090
    %v5110 = vmul.f32 %v5014, %v5109
    %v5111 = vrcp.pop %v5091
    %v5112 = vmul.f32 %v5016, %v5111
    %v5113 = vrcp.pop %v5092
    %v5114 = vmul.f32 %v5018, %v5113
    %v5115 = vrcp.pop %v5093
    %v5116 = vmul.f32 %v5020, %v5115
    %v5117 = vrcp.pop %v5094
    %v5118 = vmul.f32 %v5022, %v5117
    %v5119 = vrcp.pop %v5095
    %v5120 = vmul.f32 %v5024, %v5119
    %v5121 = vrcp.pop %v5096
    %v5122 = vmul.f32 %v5026, %v5121
    %v5123 = vrcp.pop %v5097
    %v5124 = vmul.f32 %v5028, %v5123
    %v5125 = vrcp.pop %v5098
    %v5126 = vmul.f32 %v5030, %v5125
    %v5127 = vrcp.pop %v5099
    %v5128 = vmul.f32 %v5032, %v5127
    %v5129 = vrcp.pop %v5100
    %v5130 = vmul.f32 %v5034, %v5129
    %v5131 = vrcp.pop %v5101
    %v5132 = vmul.f32 %v5036, %v5131
    %v5133 = vrcp.pop %v5102
    %v5134 = vmul.f32 %v5038, %v5133
    %v5135 = vmul.f32 %v5104, 0.95
    %v5136 = vmul.f32 %v5106, 0.95
    %v5137 = vmul.f32 %v5108, 0.95
    %v5138 = vmul.f32 %v5110, 0.95
    %v5139 = vmul.f32 %v5112, 0.95
    %v5140 = vmul.f32 %v5114, 0.95
    %v5141 = vmul.f32 %v5116, 0.95
    %v5142 = vmul.f32 %v5118, 0.95
    %v5143 = vmul.f32 %v5120, 0.95
    %v5144 = vmul.f32 %v5122, 0.95
    %v5145 = vmul.f32 %v5124, 0.95
    %v5146 = vmul.f32 %v5126, 0.95
    %v5147 = vmul.f32 %v5128, 0.95
    %v5148 = vmul.f32 %v5130, 0.95
    %v5149 = vmul.f32 %v5132, 0.95
    %v5150 = vmul.f32 %v5134, 0.95
    %v5151 = vmul.f32 %v2427, 0.05
    %v5152 = vmul.f32 %v2429, 0.05
    %v5153 = vmul.f32 %v2431, 0.05
    %v5154 = vmul.f32 %v2433, 0.05
    %v5155 = vmul.f32 %v2435, 0.05
    %v5156 = vmul.f32 %v2437, 0.05
    %v5157 = vmul.f32 %v2439, 0.05
    %v5158 = vmul.f32 %v2441, 0.05
    %v5159 = vmul.f32 %v2443, 0.05
    %v5160 = vmul.f32 %v2445, 0.05
    %v5161 = vmul.f32 %v2447, 0.05
    %v5162 = vmul.f32 %v2449, 0.05
    %v5163 = vmul.f32 %v2451, 0.05
    %v5164 = vmul.f32 %v2453, 0.05
    %v5165 = vmul.f32 %v2455, 0.05
    %v5166 = vmul.f32 %v2457, 0.05
    %v5167 = vadd.f32 %v5135, %v5151
    %v5168 = vadd.f32 %v5136, %v5152
    %v5169 = vadd.f32 %v5137, %v5153
    %v5170 = vadd.f32 %v5138, %v5154
    %v5171 = vadd.f32 %v5139, %v5155
    %v5172 = vadd.f32 %v5140, %v5156
    %v5173 = vadd.f32 %v5141, %v5157
    %v5174 = vadd.f32 %v5142, %v5158
    %v5175 = vadd.f32 %v5143, %v5159
    %v5176 = vadd.f32 %v5144, %v5160
    %v5177 = vadd.f32 %v5145, %v5161
    %v5178 = vadd.f32 %v5146, %v5162
    %v5179 = vadd.f32 %v5147, %v5163
    %v5180 = vadd.f32 %v5148, %v5164
    %v5181 = vadd.f32 %v5149, %v5165
    %v5182 = vadd.f32 %v5150, %v5166
    %5183 = vst.msk [vmem:[#allocation3] sm:$0xff] %vm266, %v5167
    %5184 = vst.msk [vmem:[#allocation3 + $0x8] sm:$0xff] %vm266, %v5168
    %5185 = vst.msk [vmem:[#allocation3 + $0x10] sm:$0xff] %vm266, %v5169
    %5186 = vst.msk [vmem:[#allocation3 + $0x18] sm:$0xff] %vm266, %v5170
    %5187 = vst.msk [vmem:[#allocation3 + $0x20] sm:$0xff] %vm266, %v5171
    %5188 = vst.msk [vmem:[#allocation3 + $0x28] sm:$0xff] %vm266, %v5172
    %5189 = vst.msk [vmem:[#allocation3 + $0x30] sm:$0xff] %vm266, %v5173
    %5190 = vst.msk [vmem:[#allocation3 + $0x38] sm:$0xff] %vm266, %v5174
    %5191 = vst.msk [vmem:[#allocation3 + $0x40] sm:$0xff] %vm266, %v5175
    %5192 = vst.msk [vmem:[#allocation3 + $0x48] sm:$0xff] %vm266, %v5176
    %5193 = vst.msk [vmem:[#allocation3 + $0x50] sm:$0xff] %vm266, %v5177
    %5194 = vst.msk [vmem:[#allocation3 + $0x58] sm:$0xff] %vm266, %v5178
    %5195 = vst.msk [vmem:[#allocation3 + $0x60] sm:$0xff] %vm266, %v5179
    %5196 = vst.msk [vmem:[#allocation3 + $0x68] sm:$0xff] %vm266, %v5180
    %5197 = vst.msk [vmem:[#allocation3 + $0x70] sm:$0xff] %vm266, %v5181
    %5198 = vst.msk [vmem:[#allocation3 + $0x78] sm:$0xff] %vm266, %v5182
    %v5199 = vld [vmem:[#allocation3] sm:$0xff]
    %v5200 = vld [vmem:[#allocation3 + $0x8] sm:$0xff]
    %v5201 = vld [vmem:[#allocation3 + $0x10] sm:$0xff]
    %v5202 = vld [vmem:[#allocation3 + $0x18] sm:$0xff]
    %v5203 = vsel %vm1252, %v4478, 0.0
    %v5204 = vsel %vm1252, %v4483, 0.0
    %v5205 = vsel %vm1252, %v4488, 0.0
    %v5206 = vsel %vm1252, %v4493, 0.0
    %v5208 = vsel %vm266, %v5199, 0
    %v5211 = vsel %vm266, %v5200, 0
    %v5214 = vsel %vm266, %v5201, 0
    %v5217 = vsel %vm266, %v5202, 0
    %5219 = vmatprep.subr.mxu0 0.0
    %5220 = vmatpush1.msra.mxu0 %v5203
    %5221 = vmatprep.subr.mxu0 0.0
    %5222 = vmatpush1.msra.mxu0 %v5204
    %5223 = vmatprep.subr.mxu0 0.0
    %5224 = vmatpush1.msra.mxu0 %v5205
    %5225 = vmatprep.subr.mxu0 0.0
    %5226 = vmatpush1.msra.mxu0 %v5206
    %5227 = vmatprep.subr.mxu0 0.0
    %5228 = vmatpush1.msra.mxu0 0.0
    %5229 = vmatprep.subr.mxu0 0.0
    %5230 = vmatpush1.msra.mxu0 0.0
    %5231 = vmatprep.subr.mxu0 0.0
    %5232 = vmatpush1.msra.mxu0 0.0
    %5233 = vmatprep.subr.mxu0 0.0
    %5234 = vmatpush1.msra.mxu0 0.0
    %5235 = vmatprep.subr.mxu0 0.0
    %5236 = vmatpush1.msra.mxu0 0.0
    %5237 = vmatprep.subr.mxu0 0.0
    %5238 = vmatpush1.msra.mxu0 0.0
    %5239 = vmatprep.subr.mxu0 0.0
    %5240 = vmatpush1.msra.mxu0 0.0
    %5241 = vmatprep.subr.mxu0 0.0
    %5242 = vmatpush1.msra.mxu0 0.0
    %5243 = vmatprep.subr.mxu0 0.0
    %5244 = vmatpush1.msra.mxu0 0.0
    %5245 = vmatprep.subr.mxu0 0.0
    %5246 = vmatpush1.msra.mxu0 0.0
    %5247 = vmatprep.subr.mxu0 0.0
    %5248 = vmatpush1.msra.mxu0 0.0
    %5249 = vmatprep.subr.mxu0 0.0
    %5250 = vmatpush1.msra.mxu0 0.0
    %5251 = vmatprep.subr.mxu0 0.0
    %5252 = vmatpush1.msra.mxu0 0.0
    %5253 = vmatprep.subr.mxu0 0.0
    %5254 = vmatpush1.msra.mxu0 0.0
    %5255 = vmatprep.subr.mxu0 0.0
    %5256 = vmatpush1.msra.mxu0 0.0
    %5257 = vmatprep.subr.mxu0 0.0
    %5258 = vmatpush1.msra.mxu0 0.0
    %5259 = vmatprep.subr.mxu0 0.0
    %5260 = vmatpush1.msra.mxu0 0.0
    %5261 = vmatprep.subr.mxu0 0.0
    %5262 = vmatpush1.msra.mxu0 0.0
    %5263 = vmatprep.subr.mxu0 0.0
    %5264 = vmatpush1.msra.mxu0 0.0
    %5265 = vmatprep.subr.mxu0 0.0
    %5266 = vmatpush1.msra.mxu0 0.0
    %5267 = vmatprep.subr.mxu0 0.0
    %5268 = vmatpush1.msra.mxu0 0.0
    %5269 = vmatprep.subr.mxu0 0.0
    %5270 = vmatpush1.msra.mxu0 0.0
    %5271 = vmatprep.subr.mxu0 0.0
    %5272 = vmatpush1.msra.mxu0 0.0
    %5273 = vmatprep.subr.mxu0 0.0
    %5274 = vmatpush1.msra.mxu0 0.0
    %5275 = vmatprep.subr.mxu0 0.0
    %5276 = vmatpush1.msra.mxu0 0.0
    %5277 = vmatprep.subr.mxu0 0.0
    %5278 = vmatpush1.msra.mxu0 0.0
    %5279 = vmatprep.subr.mxu0 0.0
    %5280 = vmatpush1.msra.mxu0 0.0
    %5281 = vmatprep.subr.mxu0 0.0
    %5282 = vmatpush1.msra.mxu0 0.0
    %5283 = vmatprep.mubr.f32.mxu0 0.0
    %5284 = vmatmul.mubr.f32.gmra.mrb[0].mxu0 %v5208
    %v5285 = vpop.f32.mrb[0].mxu0
    %v5286 = vadd.f32 0.0, %v5285
    %v5287 = vpop.f32.mrb[0].mxu0
    %5288 = vmatprep.mubr.f32.mxu0 0.0
    %5289 = vmatmul.mubr.f32.gmra.mrb[0].mxu0 %v5211
    %v5290 = vpop.f32.mrb[0].mxu0
    %v5291 = vadd.f32 0.0, %v5290
    %v5292 = vpop.f32.mrb[0].mxu0
    %5293 = vmatprep.mubr.f32.mxu0 0.0
    %5294 = vmatmul.mubr.f32.gmra.mrb[0].mxu0 %v5214
    %v5295 = vpop.f32.mrb[0].mxu0
    %v5296 = vadd.f32 0.0, %v5295
    %v5297 = vpop.f32.mrb[0].mxu0
    %5298 = vmatprep.mubr.f32.mxu0 0.0
    %5299 = vmatmul.mubr.f32.gmra.mrb[0].mxu0 %v5217
    %v5300 = vpop.f32.mrb[0].mxu0
    %v5301 = vadd.f32 0.0, %v5300
    %v5302 = vpop.f32.mrb[0].mxu0
    %5303 = vdwg.mxu0
    %v5304 = vadd.f32 %v3139, %v5286
    %v5305 = vadd.f32 %v3140, %v5291
    %v5306 = vadd.f32 %v3141, %v5296
    %v5307 = vadd.f32 %v3142, %v5301
    %v5308 = vld [vmem:[%s885] sm:$0xff]
    %v5309 = vld [vmem:[%s885 + $0x8] sm:$0xff]
    %v5310 = vld [vmem:[%s885 + $0x10] sm:$0xff]
    %v5311 = vld [vmem:[%s885 + $0x18] sm:$0xff]
    %v5312 = vsel %vm1265, %v4478, 0.0
    %v5313 = vsel %vm1265, %v4483, 0.0
    %v5314 = vsel %vm1265, %v4488, 0.0
    %v5315 = vsel %vm1265, %v4493, 0.0
    %v5317 = vsel %vm266, %v5308, 0
    %v5320 = vsel %vm266, %v5309, 0
    %v5323 = vsel %vm266, %v5310, 0
    %v5326 = vsel %vm266, %v5311, 0
    %5328 = vmatprep.subr.mxu0 0.0
    %5329 = vmatpush1.msra.mxu0 %v5312
    %5330 = vmatprep.subr.mxu0 0.0
    %5331 = vmatpush1.msra.mxu0 %v5313
    %5332 = vmatprep.subr.mxu0 0.0
    %5333 = vmatpush1.msra.mxu0 %v5314
    %5334 = vmatprep.subr.mxu0 0.0
    %5335 = vmatpush1.msra.mxu0 %v5315
    %5336 = vmatprep.subr.mxu0 0.0
    %5337 = vmatpush1.msra.mxu0 0.0
    %5338 = vmatprep.subr.mxu0 0.0
    %5339 = vmatpush1.msra.mxu0 0.0
    %5340 = vmatprep.subr.mxu0 0.0
    %5341 = vmatpush1.msra.mxu0 0.0
    %5342 = vmatprep.subr.mxu0 0.0
    %5343 = vmatpush1.msra.mxu0 0.0
    %5344 = vmatprep.subr.mxu0 0.0
    %5345 = vmatpush1.msra.mxu0 0.0
    %5346 = vmatprep.subr.mxu0 0.0
    %5347 = vmatpush1.msra.mxu0 0.0
    %5348 = vmatprep.subr.mxu0 0.0
    %5349 = vmatpush1.msra.mxu0 0.0
    %5350 = vmatprep.subr.mxu0 0.0
    %5351 = vmatpush1.msra.mxu0 0.0
    %5352 = vmatprep.subr.mxu0 0.0
    %5353 = vmatpush1.msra.mxu0 0.0
    %5354 = vmatprep.subr.mxu0 0.0
    %5355 = vmatpush1.msra.mxu0 0.0
    %5356 = vmatprep.subr.mxu0 0.0
    %5357 = vmatpush1.msra.mxu0 0.0
    %5358 = vmatprep.subr.mxu0 0.0
    %5359 = vmatpush1.msra.mxu0 0.0
    %5360 = vmatprep.subr.mxu0 0.0
    %5361 = vmatpush1.msra.mxu0 0.0
    %5362 = vmatprep.subr.mxu0 0.0
    %5363 = vmatpush1.msra.mxu0 0.0
    %5364 = vmatprep.subr.mxu0 0.0
    %5365 = vmatpush1.msra.mxu0 0.0
    %5366 = vmatprep.subr.mxu0 0.0
    %5367 = vmatpush1.msra.mxu0 0.0
    %5368 = vmatprep.subr.mxu0 0.0
    %5369 = vmatpush1.msra.mxu0 0.0
    %5370 = vmatprep.subr.mxu0 0.0
    %5371 = vmatpush1.msra.mxu0 0.0
    %5372 = vmatprep.subr.mxu0 0.0
    %5373 = vmatpush1.msra.mxu0 0.0
    %5374 = vmatprep.subr.mxu0 0.0
    %5375 = vmatpush1.msra.mxu0 0.0
    %5376 = vmatprep.subr.mxu0 0.0
    %5377 = vmatpush1.msra.mxu0 0.0
    %5378 = vmatprep.subr.mxu0 0.0
    %5379 = vmatpush1.msra.mxu0 0.0
    %5380 = vmatprep.subr.mxu0 0.0
    %5381 = vmatpush1.msra.mxu0 0.0
    %5382 = vmatprep.subr.mxu0 0.0
    %5383 = vmatpush1.msra.mxu0 0.0
    %5384 = vmatprep.subr.mxu0 0.0
    %5385 = vmatpush1.msra.mxu0 0.0
    %5386 = vmatprep.subr.mxu0 0.0
    %5387 = vmatpush1.msra.mxu0 0.0
    %5388 = vmatprep.subr.mxu0 0.0
    %5389 = vmatpush1.msra.mxu0 0.0
    %5390 = vmatprep.subr.mxu0 0.0
    %5391 = vmatpush1.msra.mxu0 0.0
    %5392 = vmatprep.mubr.f32.mxu0 0.0
    %5393 = vmatmul.mubr.f32.gmra.mrb[0].mxu0 %v5317
    %v5394 = vpop.f32.mrb[0].mxu0
    %v5395 = vadd.f32 0.0, %v5394
    %v5396 = vpop.f32.mrb[0].mxu0
    %5397 = vmatprep.mubr.f32.mxu0 0.0
    %5398 = vmatmul.mubr.f32.gmra.mrb[0].mxu0 %v5320
    %v5399 = vpop.f32.mrb[0].mxu0
    %v5400 = vadd.f32 0.0, %v5399
    %v5401 = vpop.f32.mrb[0].mxu0
    %5402 = vmatprep.mubr.f32.mxu0 0.0
    %5403 = vmatmul.mubr.f32.gmra.mrb[0].mxu0 %v5323
    %v5404 = vpop.f32.mrb[0].mxu0
    %v5405 = vadd.f32 0.0, %v5404
    %v5406 = vpop.f32.mrb[0].mxu0
    %5407 = vmatprep.mubr.f32.mxu0 0.0
    %5408 = vmatmul.mubr.f32.gmra.mrb[0].mxu0 %v5326
    %v5409 = vpop.f32.mrb[0].mxu0
    %v5410 = vadd.f32 0.0, %v5409
    %v5411 = vpop.f32.mrb[0].mxu0
    %5412 = vdwg.mxu0
    %v5413 = vadd.f32 %v5304, %v5395
    %v5414 = vadd.f32 %v5305, %v5400
    %v5415 = vadd.f32 %v5306, %v5405
    %v5416 = vadd.f32 %v5307, %v5410
    %v5417 = vld [vmem:[%s949] sm:$0xff]
    %v5418 = vld [vmem:[%s949 + $0x8] sm:$0xff]
    %v5419 = vld [vmem:[%s949 + $0x10] sm:$0xff]
    %v5420 = vld [vmem:[%s949 + $0x18] sm:$0xff]
    %v5421 = vsel %vm1472, %v4478, 0.0
    %v5422 = vsel %vm1472, %v4483, 0.0
    %v5423 = vsel %vm1472, %v4488, 0.0
    %v5424 = vsel %vm1472, %v4493, 0.0
    %v5426 = vsel %vm266, %v5417, 0
    %v5429 = vsel %vm266, %v5418, 0
    %v5432 = vsel %vm266, %v5419, 0
    %v5435 = vsel %vm266, %v5420, 0
    %5437 = vmatprep.subr.mxu0 0.0
    %5438 = vmatpush1.msra.mxu0 %v5421
    %5439 = vmatprep.subr.mxu0 0.0
    %5440 = vmatpush1.msra.mxu0 %v5422
    %5441 = vmatprep.subr.mxu0 0.0
    %5442 = vmatpush1.msra.mxu0 %v5423
    %5443 = vmatprep.subr.mxu0 0.0
    %5444 = vmatpush1.msra.mxu0 %v5424
    %5445 = vmatprep.subr.mxu0 0.0
    %5446 = vmatpush1.msra.mxu0 0.0
    %5447 = vmatprep.subr.mxu0 0.0
    %5448 = vmatpush1.msra.mxu0 0.0
    %5449 = vmatprep.subr.mxu0 0.0
    %5450 = vmatpush1.msra.mxu0 0.0
    %5451 = vmatprep.subr.mxu0 0.0
    %5452 = vmatpush1.msra.mxu0 0.0
    %5453 = vmatprep.subr.mxu0 0.0
    %5454 = vmatpush1.msra.mxu0 0.0
    %5455 = vmatprep.subr.mxu0 0.0
    %5456 = vmatpush1.msra.mxu0 0.0
    %5457 = vmatprep.subr.mxu0 0.0
    %5458 = vmatpush1.msra.mxu0 0.0
    %5459 = vmatprep.subr.mxu0 0.0
    %5460 = vmatpush1.msra.mxu0 0.0
    %5461 = vmatprep.subr.mxu0 0.0
    %5462 = vmatpush1.msra.mxu0 0.0
    %5463 = vmatprep.subr.mxu0 0.0
    %5464 = vmatpush1.msra.mxu0 0.0
    %5465 = vmatprep.subr.mxu0 0.0
    %5466 = vmatpush1.msra.mxu0 0.0
    %5467 = vmatprep.subr.mxu0 0.0
    %5468 = vmatpush1.msra.mxu0 0.0
    %5469 = vmatprep.subr.mxu0 0.0
    %5470 = vmatpush1.msra.mxu0 0.0
    %5471 = vmatprep.subr.mxu0 0.0
    %5472 = vmatpush1.msra.mxu0 0.0
    %5473 = vmatprep.subr.mxu0 0.0
    %5474 = vmatpush1.msra.mxu0 0.0
    %5475 = vmatprep.subr.mxu0 0.0
    %5476 = vmatpush1.msra.mxu0 0.0
    %5477 = vmatprep.subr.mxu0 0.0
    %5478 = vmatpush1.msra.mxu0 0.0
    %5479 = vmatprep.subr.mxu0 0.0
    %5480 = vmatpush1.msra.mxu0 0.0
    %5481 = vmatprep.subr.mxu0 0.0
    %5482 = vmatpush1.msra.mxu0 0.0
    %5483 = vmatprep.subr.mxu0 0.0
    %5484 = vmatpush1.msra.mxu0 0.0
    %5485 = vmatprep.subr.mxu0 0.0
    %5486 = vmatpush1.msra.mxu0 0.0
    %5487 = vmatprep.subr.mxu0 0.0
    %5488 = vmatpush1.msra.mxu0 0.0
    %5489 = vmatprep.subr.mxu0 0.0
    %5490 = vmatpush1.msra.mxu0 0.0
    %5491 = vmatprep.subr.mxu0 0.0
    %5492 = vmatpush1.msra.mxu0 0.0
    %5493 = vmatprep.subr.mxu0 0.0
    %5494 = vmatpush1.msra.mxu0 0.0
    %5495 = vmatprep.subr.mxu0 0.0
    %5496 = vmatpush1.msra.mxu0 0.0
    %5497 = vmatprep.subr.mxu0 0.0
    %5498 = vmatpush1.msra.mxu0 0.0
    %5499 = vmatprep.subr.mxu0 0.0
    %5500 = vmatpush1.msra.mxu0 0.0
    %5501 = vmatprep.mubr.f32.mxu0 0.0
    %5502 = vmatmul.mubr.f32.gmra.mrb[0].mxu0 %v5426
    %v5503 = vpop.f32.mrb[0].mxu0
    %v5504 = vadd.f32 0.0, %v5503
    %v5505 = vpop.f32.mrb[0].mxu0
    %5506 = vmatprep.mubr.f32.mxu0 0.0
    %5507 = vmatmul.mubr.f32.gmra.mrb[0].mxu0 %v5429
    %v5508 = vpop.f32.mrb[0].mxu0
    %v5509 = vadd.f32 0.0, %v5508
    %v5510 = vpop.f32.mrb[0].mxu0
    %5511 = vmatprep.mubr.f32.mxu0 0.0
    %5512 = vmatmul.mubr.f32.gmra.mrb[0].mxu0 %v5432
    %v5513 = vpop.f32.mrb[0].mxu0
    %v5514 = vadd.f32 0.0, %v5513
    %v5515 = vpop.f32.mrb[0].mxu0
    %5516 = vmatprep.mubr.f32.mxu0 0.0
    %5517 = vmatmul.mubr.f32.gmra.mrb[0].mxu0 %v5435
    %v5518 = vpop.f32.mrb[0].mxu0
    %v5519 = vadd.f32 0.0, %v5518
    %v5520 = vpop.f32.mrb[0].mxu0
    %5521 = vdwg.mxu0
    %v5522 = vadd.f32 %v5413, %v5504
    %v5523 = vadd.f32 %v5414, %v5509
    %v5524 = vadd.f32 %v5415, %v5514
    %v5525 = vadd.f32 %v5416, %v5519
    %v5526 = vld [vmem:[%s1013] sm:$0xff]
    %v5527 = vld [vmem:[%s1013 + $0x8] sm:$0xff]
    %v5528 = vld [vmem:[%s1013 + $0x10] sm:$0xff]
    %v5529 = vld [vmem:[%s1013 + $0x18] sm:$0xff]
    %v5530 = vsel %vm1586, %v4478, 0.0
    %v5531 = vsel %vm1586, %v4483, 0.0
    %v5532 = vsel %vm1586, %v4488, 0.0
    %v5533 = vsel %vm1586, %v4493, 0.0
    %v5535 = vsel %vm266, %v5526, 0
    %v5538 = vsel %vm266, %v5527, 0
    %v5541 = vsel %vm266, %v5528, 0
    %v5544 = vsel %vm266, %v5529, 0
    %5546 = vmatprep.subr.mxu0 0.0
    %5547 = vmatpush1.msra.mxu0 %v5530
    %5548 = vmatprep.subr.mxu0 0.0
    %5549 = vmatpush1.msra.mxu0 %v5531
    %5550 = vmatprep.subr.mxu0 0.0
    %5551 = vmatpush1.msra.mxu0 %v5532
    %5552 = vmatprep.subr.mxu0 0.0
    %5553 = vmatpush1.msra.mxu0 %v5533
    %5554 = vmatprep.subr.mxu0 0.0
    %5555 = vmatpush1.msra.mxu0 0.0
    %5556 = vmatprep.subr.mxu0 0.0
    %5557 = vmatpush1.msra.mxu0 0.0
    %5558 = vmatprep.subr.mxu0 0.0
    %5559 = vmatpush1.msra.mxu0 0.0
    %5560 = vmatprep.subr.mxu0 0.0
    %5561 = vmatpush1.msra.mxu0 0.0
    %5562 = vmatprep.subr.mxu0 0.0
    %5563 = vmatpush1.msra.mxu0 0.0
    %5564 = vmatprep.subr.mxu0 0.0
    %5565 = vmatpush1.msra.mxu0 0.0
    %5566 = vmatprep.subr.mxu0 0.0
    %5567 = vmatpush1.msra.mxu0 0.0
    %5568 = vmatprep.subr.mxu0 0.0
    %5569 = vmatpush1.msra.mxu0 0.0
    %5570 = vmatprep.subr.mxu0 0.0
    %5571 = vmatpush1.msra.mxu0 0.0
    %5572 = vmatprep.subr.mxu0 0.0
    %5573 = vmatpush1.msra.mxu0 0.0
    %5574 = vmatprep.subr.mxu0 0.0
    %5575 = vmatpush1.msra.mxu0 0.0
    %5576 = vmatprep.subr.mxu0 0.0
    %5577 = vmatpush1.msra.mxu0 0.0
    %5578 = vmatprep.subr.mxu0 0.0
    %5579 = vmatpush1.msra.mxu0 0.0
    %5580 = vmatprep.subr.mxu0 0.0
    %5581 = vmatpush1.msra.mxu0 0.0
    %5582 = vmatprep.subr.mxu0 0.0
    %5583 = vmatpush1.msra.mxu0 0.0
    %5584 = vmatprep.subr.mxu0 0.0
    %5585 = vmatpush1.msra.mxu0 0.0
    %5586 = vmatprep.subr.mxu0 0.0
    %5587 = vmatpush1.msra.mxu0 0.0
    %5588 = vmatprep.subr.mxu0 0.0
    %5589 = vmatpush1.msra.mxu0 0.0
    %5590 = vmatprep.subr.mxu0 0.0
    %5591 = vmatpush1.msra.mxu0 0.0
    %5592 = vmatprep.subr.mxu0 0.0
    %5593 = vmatpush1.msra.mxu0 0.0
    %5594 = vmatprep.subr.mxu0 0.0
    %5595 = vmatpush1.msra.mxu0 0.0
    %5596 = vmatprep.subr.mxu0 0.0
    %5597 = vmatpush1.msra.mxu0 0.0
    %5598 = vmatprep.subr.mxu0 0.0
    %5599 = vmatpush1.msra.mxu0 0.0
    %5600 = vmatprep.subr.mxu0 0.0
    %5601 = vmatpush1.msra.mxu0 0.0
    %5602 = vmatprep.subr.mxu0 0.0
    %5603 = vmatpush1.msra.mxu0 0.0
    %5604 = vmatprep.subr.mxu0 0.0
    %5605 = vmatpush1.msra.mxu0 0.0
    %5606 = vmatprep.subr.mxu0 0.0
    %5607 = vmatpush1.msra.mxu0 0.0
    %5608 = vmatprep.subr.mxu0 0.0
    %5609 = vmatpush1.msra.mxu0 0.0
    %5610 = vmatprep.mubr.f32.mxu0 0.0
    %5611 = vmatmul.mubr.f32.gmra.mrb[0].mxu0 %v5535
    %v5612 = vpop.f32.mrb[0].mxu0
    %v5613 = vadd.f32 0.0, %v5612
    %v5614 = vpop.f32.mrb[0].mxu0
    %5615 = vmatprep.mubr.f32.mxu0 0.0
    %5616 = vmatmul.mubr.f32.gmra.mrb[0].mxu0 %v5538
    %v5617 = vpop.f32.mrb[0].mxu0
    %v5618 = vadd.f32 0.0, %v5617
    %v5619 = vpop.f32.mrb[0].mxu0
    %5620 = vmatprep.mubr.f32.mxu0 0.0
    %5621 = vmatmul.mubr.f32.gmra.mrb[0].mxu0 %v5541
    %v5622 = vpop.f32.mrb[0].mxu0
    %v5623 = vadd.f32 0.0, %v5622
    %v5624 = vpop.f32.mrb[0].mxu0
    %5625 = vmatprep.mubr.f32.mxu0 0.0
    %5626 = vmatmul.mubr.f32.gmra.mrb[0].mxu0 %v5544
    %v5627 = vpop.f32.mrb[0].mxu0
    %v5628 = vadd.f32 0.0, %v5627
    %v5629 = vpop.f32.mrb[0].mxu0
    %5630 = vdwg.mxu0
    %v5631 = vadd.f32 %v5522, %v5613
    %v5632 = vadd.f32 %v5523, %v5618
    %v5633 = vadd.f32 %v5524, %v5623
    %v5634 = vadd.f32 %v5525, %v5628
    %vm5635 = vcmp.gt.f32.partialorder %v5631, 0.0
    %vm5636 = vcmp.gt.f32.partialorder %v5632, 0.0
    %vm5637 = vcmp.gt.f32.partialorder %v5633, 0.0
    %vm5638 = vcmp.gt.f32.partialorder %v5634, 0.0
    %v5639 = vmin.f32 %v5631, 0.0
    %v5640 = vmin.f32 %v5632, 0.0
    %v5641 = vmin.f32 %v5633, 0.0
    %v5642 = vmin.f32 %v5634, 0.0
    %v5643 = vmul.f32 %v5639, 1.442695
    %v5644 = vpow.pop %v5643
    %v5645 = vmul.f32 %v5640, 1.442695
    %v5646 = vpow.pop %v5645
    %v5647 = vmul.f32 %v5641, 1.442695
    %v5648 = vpow.pop %v5647
    %v5649 = vmul.f32 %v5642, 1.442695
    %v5650 = vpow.pop %v5649
    %v5651 = vsub.f32 %v5644, 1.0
    %v5652 = vsub.f32 %v5646, 1.0
    %v5653 = vsub.f32 %v5648, 1.0
    %v5654 = vsub.f32 %v5650, 1.0
    %v5655 = vsel %vm5635, %v5631, %v5651
    %v5656 = vsel %vm5636, %v5632, %v5652
    %v5657 = vsel %vm5637, %v5633, %v5653
    %v5658 = vsel %vm5638, %v5634, %v5654
    %v5659 = vld [vmem:[%s61] sm:$0xff]
    %v5660 = vld [vmem:[%s61 + $0x8] sm:$0xff]
    %v5661 = vld [vmem:[%s61 + $0x10] sm:$0xff]
    %v5662 = vld [vmem:[%s61 + $0x18] sm:$0xff]
    %v5663 = vld [vmem:[%s61 + $0x20] sm:$0xff]
    %v5664 = vld [vmem:[%s61 + $0x28] sm:$0xff]
    %v5665 = vld [vmem:[%s61 + $0x30] sm:$0xff]
    %v5666 = vld [vmem:[%s61 + $0x38] sm:$0xff]
    %v5668 = vsel %vm266, %v5655, 0
    %v5671 = vsel %vm266, %v5656, 0
    %v5674 = vsel %vm266, %v5657, 0
    %v5677 = vsel %vm266, %v5658, 0
    %5679 = vmatprep.subr.mxu0 0.0
    %5680 = vmatpush1.msra.mxu0 %v5663
    %5681 = vmatprep.subr.mxu0 0.0
    %5682 = vmatpush1.msra.mxu0 %v5664
    %5683 = vmatprep.subr.mxu0 0.0
    %5684 = vmatpush1.msra.mxu0 %v5665
    %5685 = vmatprep.subr.mxu0 0.0
    %5686 = vmatpush1.msra.mxu0 %v5666
    %5687 = vmatprep.subr.mxu0 0.0
    %5688 = vmatpush1.msra.mxu0 0.0
    %5689 = vmatprep.subr.mxu0 0.0
    %5690 = vmatpush1.msra.mxu0 0.0
    %5691 = vmatprep.subr.mxu0 0.0
    %5692 = vmatpush1.msra.mxu0 0.0
    %5693 = vmatprep.subr.mxu0 0.0
    %5694 = vmatpush1.msra.mxu0 0.0
    %5695 = vmatprep.subr.mxu0 0.0
    %5696 = vmatpush1.msra.mxu0 0.0
    %5697 = vmatprep.subr.mxu0 0.0
    %5698 = vmatpush1.msra.mxu0 0.0
    %5699 = vmatprep.subr.mxu0 0.0
    %5700 = vmatpush1.msra.mxu0 0.0
    %5701 = vmatprep.subr.mxu0 0.0
    %5702 = vmatpush1.msra.mxu0 0.0
    %5703 = vmatprep.subr.mxu0 0.0
    %5704 = vmatpush1.msra.mxu0 0.0
    %5705 = vmatprep.subr.mxu0 0.0
    %5706 = vmatpush1.msra.mxu0 0.0
    %5707 = vmatprep.subr.mxu0 0.0
    %5708 = vmatpush1.msra.mxu0 0.0
    %5709 = vmatprep.subr.mxu0 0.0
    %5710 = vmatpush1.msra.mxu0 0.0
    %5711 = vmatprep.subr.mxu0 0.0
    %5712 = vmatpush1.msra.mxu0 0.0
    %5713 = vmatprep.subr.mxu0 0.0
    %5714 = vmatpush1.msra.mxu0 0.0
    %5715 = vmatprep.subr.mxu0 0.0
    %5716 = vmatpush1.msra.mxu0 0.0
    %5717 = vmatprep.subr.mxu0 0.0
    %5718 = vmatpush1.msra.mxu0 0.0
    %5719 = vmatprep.subr.mxu0 0.0
    %5720 = vmatpush1.msra.mxu0 0.0
    %5721 = vmatprep.subr.mxu0 0.0
    %5722 = vmatpush1.msra.mxu0 0.0
    %5723 = vmatprep.subr.mxu0 0.0
    %5724 = vmatpush1.msra.mxu0 0.0
    %5725 = vmatprep.subr.mxu0 0.0
    %5726 = vmatpush1.msra.mxu0 0.0
    %5727 = vmatprep.subr.mxu0 0.0
    %5728 = vmatpush1.msra.mxu0 0.0
    %5729 = vmatprep.subr.mxu0 0.0
    %5730 = vmatpush1.msra.mxu0 0.0
    %5731 = vmatprep.subr.mxu0 0.0
    %5732 = vmatpush1.msra.mxu0 0.0
    %5733 = vmatprep.subr.mxu0 0.0
    %5734 = vmatpush1.msra.mxu0 0.0
    %5735 = vmatprep.subr.mxu0 0.0
    %5736 = vmatpush1.msra.mxu0 0.0
    %5737 = vmatprep.subr.mxu0 0.0
    %5738 = vmatpush1.msra.mxu0 0.0
    %5739 = vmatprep.subr.mxu0 0.0
    %5740 = vmatpush1.msra.mxu0 0.0
    %5741 = vmatprep.subr.mxu0 0.0
    %5742 = vmatpush1.msra.mxu0 0.0
    %5743 = vmatprep.mubr.f32.mxu0 0.0
    %5744 = vmatmul.mubr.f32.gmra.mrb[0].mxu0 %v5668
    %v5745 = vpop.f32.mrb[0].mxu0
    %v5746 = vadd.f32 0.0, %v5745
    %v5747 = vpop.f32.mrb[0].mxu0
    %5748 = vmatprep.mubr.f32.mxu0 0.0
    %5749 = vmatmul.mubr.f32.gmra.mrb[0].mxu0 %v5671
    %v5750 = vpop.f32.mrb[0].mxu0
    %v5751 = vadd.f32 0.0, %v5750
    %v5752 = vpop.f32.mrb[0].mxu0
    %5753 = vmatprep.mubr.f32.mxu0 0.0
    %5754 = vmatmul.mubr.f32.gmra.mrb[0].mxu0 %v5674
    %v5755 = vpop.f32.mrb[0].mxu0
    %v5756 = vadd.f32 0.0, %v5755
    %v5757 = vpop.f32.mrb[0].mxu0
    %5758 = vmatprep.mubr.f32.mxu0 0.0
    %5759 = vmatmul.mubr.f32.gmra.mrb[0].mxu0 %v5677
    %v5760 = vpop.f32.mrb[0].mxu0
    %v5761 = vadd.f32 0.0, %v5760
    %v5762 = vpop.f32.mrb[0].mxu0
    %5763 = vdwg.mxu0
    %v5765 = vsel %vm266, %v4391, 0
    %v5768 = vsel %vm266, %v4392, 0
    %v5771 = vsel %vm266, %v4393, 0
    %v5774 = vsel %vm266, %v4394, 0
    %5776 = vmatprep.subr.mxu0 0.0
    %5777 = vmatpush1.msra.mxu0 %v5659
    %5778 = vmatprep.subr.mxu0 0.0
    %5779 = vmatpush1.msra.mxu0 %v5660
    %5780 = vmatprep.subr.mxu0 0.0
    %5781 = vmatpush1.msra.mxu0 %v5661
    %5782 = vmatprep.subr.mxu0 0.0
    %5783 = vmatpush1.msra.mxu0 %v5662
    %5784 = vmatprep.subr.mxu0 0.0
    %5785 = vmatpush1.msra.mxu0 0.0
    %5786 = vmatprep.subr.mxu0 0.0
    %5787 = vmatpush1.msra.mxu0 0.0
    %5788 = vmatprep.subr.mxu0 0.0
    %5789 = vmatpush1.msra.mxu0 0.0
    %5790 = vmatprep.subr.mxu0 0.0
    %5791 = vmatpush1.msra.mxu0 0.0
    %5792 = vmatprep.subr.mxu0 0.0
    %5793 = vmatpush1.msra.mxu0 0.0
    %5794 = vmatprep.subr.mxu0 0.0
    %5795 = vmatpush1.msra.mxu0 0.0
    %5796 = vmatprep.subr.mxu0 0.0
    %5797 = vmatpush1.msra.mxu0 0.0
    %5798 = vmatprep.subr.mxu0 0.0
    %5799 = vmatpush1.msra.mxu0 0.0
    %5800 = vmatprep.subr.mxu0 0.0
    %5801 = vmatpush1.msra.mxu0 0.0
    %5802 = vmatprep.subr.mxu0 0.0
    %5803 = vmatpush1.msra.mxu0 0.0
    %5804 = vmatprep.subr.mxu0 0.0
    %5805 = vmatpush1.msra.mxu0 0.0
    %5806 = vmatprep.subr.mxu0 0.0
    %5807 = vmatpush1.msra.mxu0 0.0
    %5808 = vmatprep.subr.mxu0 0.0
    %5809 = vmatpush1.msra.mxu0 0.0
    %5810 = vmatprep.subr.mxu0 0.0
    %5811 = vmatpush1.msra.mxu0 0.0
    %5812 = vmatprep.subr.mxu0 0.0
    %5813 = vmatpush1.msra.mxu0 0.0
    %5814 = vmatprep.subr.mxu0 0.0
    %5815 = vmatpush1.msra.mxu0 0.0
    %5816 = vmatprep.subr.mxu0 0.0
    %5817 = vmatpush1.msra.mxu0 0.0
    %5818 = vmatprep.subr.mxu0 0.0
    %5819 = vmatpush1.msra.mxu0 0.0
    %5820 = vmatprep.subr.mxu0 0.0
    %5821 = vmatpush1.msra.mxu0 0.0
    %5822 = vmatprep.subr.mxu0 0.0
    %5823 = vmatpush1.msra.mxu0 0.0
    %5824 = vmatprep.subr.mxu0 0.0
    %5825 = vmatpush1.msra.mxu0 0.0
    %5826 = vmatprep.subr.mxu0 0.0
    %5827 = vmatpush1.msra.mxu0 0.0
    %5828 = vmatprep.subr.mxu0 0.0
    %5829 = vmatpush1.msra.mxu0 0.0
    %5830 = vmatprep.subr.mxu0 0.0
    %5831 = vmatpush1.msra.mxu0 0.0
    %5832 = vmatprep.subr.mxu0 0.0
    %5833 = vmatpush1.msra.mxu0 0.0
    %5834 = vmatprep.subr.mxu0 0.0
    %5835 = vmatpush1.msra.mxu0 0.0
    %5836 = vmatprep.subr.mxu0 0.0
    %5837 = vmatpush1.msra.mxu0 0.0
    %5838 = vmatprep.subr.mxu0 0.0
    %5839 = vmatpush1.msra.mxu0 0.0
    %5840 = vmatprep.mubr.f32.mxu0 0.0
    %5841 = vmatmul.mubr.f32.gmra.mrb[0].mxu0 %v5765
    %v5842 = vpop.f32.mrb[0].mxu0
    %v5843 = vadd.f32 %v5746, %v5842
    %v5844 = vpop.f32.mrb[0].mxu0
    %5845 = vmatprep.mubr.f32.mxu0 0.0
    %5846 = vmatmul.mubr.f32.gmra.mrb[0].mxu0 %v5768
    %v5847 = vpop.f32.mrb[0].mxu0
    %v5848 = vadd.f32 %v5751, %v5847
    %v5849 = vpop.f32.mrb[0].mxu0
    %5850 = vmatprep.mubr.f32.mxu0 0.0
    %5851 = vmatmul.mubr.f32.gmra.mrb[0].mxu0 %v5771
    %v5852 = vpop.f32.mrb[0].mxu0
    %v5853 = vadd.f32 %v5756, %v5852
    %v5854 = vpop.f32.mrb[0].mxu0
    %5855 = vmatprep.mubr.f32.mxu0 0.0
    %5856 = vmatmul.mubr.f32.gmra.mrb[0].mxu0 %v5774
    %v5857 = vpop.f32.mrb[0].mxu0
    %v5858 = vadd.f32 %v5761, %v5857
    %v5859 = vpop.f32.mrb[0].mxu0
    %5860 = vdwg.mxu0
    %v5861 = vld [vmem:[%s63] sm:$0x1]
    %v5863 = vlaneseq
    %v5864 = vshrl.u32 %v5863, 7
    %v5865 = vsub.s32 0, %v5864
    %v5866 = vrot.slane %v5861, %v5865
    %v5868 = vadd.f32 %v5843, %v5866
    %v5869 = vadd.f32 %v5848, %v5866
    %v5870 = vadd.f32 %v5853, %v5866
    %v5871 = vadd.f32 %v5858, %v5866
    %vm5872 = vcmask 23552
    %5873 = vst.msk [vmem:[%s65] sm:$0xff] %vm5872, %v5868
    %5874 = vst.msk [vmem:[%s65 + $0x8] sm:$0xff] %vm5872, %v5869
    %5875 = vst.msk [vmem:[%s65 + $0x10] sm:$0xff] %vm5872, %v5870
    %5876 = vst.msk [vmem:[%s65 + $0x18] sm:$0xff] %vm5872, %v5871
    // Predicated region
    $region146: #{v1_forward.1} parent=1 // pred_check
      _
    $region147: #{v1_forward.1} parent=1 // pred_check_branch
      %5878 = sbr.rel (0) target = $region149
    $region148: #{v1_forward.1} parent=1 // pred_region
      _
    $region149: #{v1_forward.1} parent=1 // pred_fallthru
      _
    // Predicated region
    $region150: #{v1_forward.1} parent=1 // pred_check
      _
    $region151: #{v1_forward.1} parent=1 // pred_check_branch
      %5880 = sbr.rel (0) target = $region153
    $region152: #{v1_forward.1} parent=1 // pred_region
      _
    $region153: #{v1_forward.1} parent=1 // pred_fallthru
      _
    %5881 = vsyncpa [#allocation5], 1
    %5882 = vsyncpa [#allocation7], 1
    %5883 = vsyncpa [#allocation10], 1

</llo_original>
